<compile_context>
chip_gen: v7x
topology: tpu7x:2x2x1
jax: 0.10.0
libtpu: 0.0.40
codegen_flags: <defaults>
</compile_context>

<pallas_src>
import functools

import jax
import jax.numpy as jnp
from jax import lax
from jax.experimental import pallas as pl
from jax.experimental.pallas import tpu as pltpu

_EPS = 1e-5
_SLOPE = 0.2

# (stride, padding, use_batchnorm, activation) per conv layer.
_CONV_CFG = (
    (2, 1, False, "leaky"),
    (2, 1, True, "leaky"),
    (2, 1, True, "leaky"),
    (2, 1, True, "leaky"),
    (1, 0, False, "sigmoid"),
)


# ----------------------------------------------------------------------------
# Fused whole-network kernel
# ----------------------------------------------------------------------------
def _disc_kernel(x_ref,
                 r1, r2, r3, r4, r5,
                 m1, m2, m3, m4, m5,
                 g2, b2, g3, b3, g4, b4,
                 o_ref, *, cfgs, batch):
    r_refs = (r1, r2, r3, r4, r5)
    m_refs = (m1, m2, m3, m4, m5)
    gb_refs = {1: (g2, b2), 2: (g3, b3), 3: (g4, b4)}

    # Per-sample activation slabs, layout (H, W*C), kept as VMEM-resident values.
    slabs = [x_ref[n] for n in range(batch)]
    last = len(cfgs) - 1

    for l, (ho, wo, cout, use_bn, act) in enumerate(cfgs):
        lanes = wo * cout

        # ---- Conv2d(kernel=4) as 2 chained MXU matmuls per (sample, ker-row) ----
        accs = []
        for n in range(batch):
            a_n = slabs[n]                                   # (Hin, Win*Cin) bf16
            acc = jnp.zeros((ho, lanes), jnp.float32)
            for i in range(4):
                rows = jnp.dot(r_refs[l][i], a_n,            # H gather (stride+pad)
                               preferred_element_type=jnp.float32)
                acc = acc + jnp.dot(rows.astype(jnp.bfloat16),
                                    m_refs[l][i],            # W gather + channel GEMM
                                    preferred_element_type=jnp.float32)
            accs.append(acc)                                 # (Ho, Wo*Cout) f32

        # ---- BatchNorm2d (training mode: biased batch statistics, eps=1e-5) ----
        if use_bn:
            gamma = gb_refs[l][0][...]                       # (1, Cout) f32
            beta = gb_refs[l][1][...]
            cnt = float(batch * ho * wo)
            # fold the wo-groups of the lane axis down to per-channel stats
            kred = (lax.broadcasted_iota(jnp.int32, (lanes, cout), 0) % cout
                    == lax.broadcasted_iota(jnp.int32, (lanes, cout), 1)
                    ).astype(jnp.float32)
            krep = (lax.broadcasted_iota(jnp.int32, (cout, lanes), 0)
                    == lax.broadcasted_iota(jnp.int32, (cout, lanes), 1) % cout
                    ).astype(jnp.float32)
            row_sum = accs[0].sum(axis=0, keepdims=True)
            row_sq = (accs[0] * accs[0]).sum(axis=0, keepdims=True)
            for n in range(1, batch):
                row_sum = row_sum + accs[n].sum(axis=0, keepdims=True)
                row_sq = row_sq + (accs[n] * accs[n]).sum(axis=0, keepdims=True)
            ch_sum = jnp.dot(row_sum, kred, preferred_element_type=jnp.float32)
            ch_sq = jnp.dot(row_sq, kred, preferred_element_type=jnp.float32)
            mean = ch_sum / cnt
            var = ch_sq / cnt - mean * mean
            scale = gamma * lax.rsqrt(var + _EPS)
            shift = beta - mean * scale
            scale_b = jnp.dot(scale, krep, preferred_element_type=jnp.float32)
            shift_b = jnp.dot(shift, krep, preferred_element_type=jnp.float32)
            accs = [a * scale_b + shift_b for a in accs]

        # ---- activation ----
        if act == "leaky":
            accs = [jnp.where(a > 0, a, _SLOPE * a) for a in accs]
        else:  # sigmoid: EUP exp + approximate reciprocal
            accs = [pl.reciprocal(1.0 + jnp.exp(-a), approx=True) for a in accs]

        if l == last:
            for n in range(batch):
                o_ref[n:n + 1, 0:1] = accs[n]                # (1, 1) f32 per sample
        else:
            slabs = [a.astype(jnp.bfloat16) for a in accs]   # becomes next (H, W*C)


# ----------------------------------------------------------------------------
# Wrapper-side weight / selector lowering (pure parameter preprocessing)
# ----------------------------------------------------------------------------
def _build_row_select(Ho, Hin, stride, pad, dtype):
    """R[i, ho, h] = 1 iff input row h == stride*ho + i - pad (zero row if padded)."""
    i = jnp.arange(4)[:, None, None]
    ho = jnp.arange(Ho)[None, :, None]
    h = jnp.arange(Hin)[None, None, :]
    t = stride * ho + i - pad
    return (h == t).astype(dtype)                            # (4, Ho, Hin)


def _build_col_weights(w, Win, Wo, stride, pad, dtype):
    """M[i, w*Cin+ci, wo*Cout+co] = W[co,ci,i, w+pad-stride*wo] (0 outside kernel)."""
    cout, cin, kh, kw = w.shape
    wcol = jnp.arange(Win)[:, None]
    wo = jnp.arange(Wo)[None, :]
    j = wcol + pad - stride * wo                             # (Win, Wo)
    valid = ((j >= 0) & (j < kw)).astype(w.dtype)
    jc = jnp.clip(j, 0, kw - 1)
    wt = jnp.transpose(w, (2, 1, 0, 3))                      # (i, Cin, Cout, j)
    g = wt[:, :, :, jc] * valid[None, None, None, :, :]      # (4, Cin, Cout, Win, Wo)
    m = jnp.transpose(g, (0, 3, 1, 4, 2)).reshape(kh, Win * cin, Wo * cout)
    return m.astype(dtype)


def discriminator_forward(x, mask, params):
    """x: (N, 1, H, W) f32; params: list of (w OIHW, gamma (1,Cout), beta (1,Cout))."""
    del mask  # ignored, exactly as in the PyTorch module's forward
    N, nc, H, W = x.shape
    assert nc == 1 and H == W

    # Static per-layer geometry.
    geo = []
    hin = H
    for (w, _, _), (s, p, _, _) in zip(params, _CONV_CFG):
        cout, cin, _, _ = w.shape
        ho = (hin + 2 * p - 4) // s + 1
        geo.append((hin, ho, cin, cout))
        hin = ho
    assert hin == 1, "Discriminator expects 64x64 inputs (final 4x4 conv -> 1x1)"

    x_slab = x[:, 0].astype(jnp.bfloat16)                    # (N, H, W) per-sample slabs

    r_mats, m_mats, gbs, cfgs = [], [], [], []
    for (w, gamma, beta), (s, p, bn, act), (hin_l, ho, cin, cout) in zip(
            params, _CONV_CFG, geo):
        r_mats.append(_build_row_select(ho, hin_l, s, p, jnp.bfloat16))
        m_mats.append(_build_col_weights(w, hin_l, ho, s, p, jnp.bfloat16))
        if bn:
            gbs += [gamma.astype(jnp.float32), beta.astype(jnp.float32)]
        cfgs.append((ho, ho, cout, bn, act))

    operands = [x_slab] + r_mats + m_mats + gbs              # 17 small operands

    def full_spec(shape):
        zeros = (0,) * len(shape)
        return pl.BlockSpec(shape, lambda i, _z=zeros: _z)

    out = pl.pallas_call(
        functools.partial(_disc_kernel, cfgs=tuple(cfgs), batch=N),
        out_shape=jax.ShapeDtypeStruct((N, 1), jnp.float32),
        grid=(1,),
        in_specs=[full_spec(op.shape) for op in operands],
        out_specs=full_spec((N, 1)),
        compiler_params=pltpu.CompilerParams(
            dimension_semantics=("arbitrary",),
            vmem_limit_bytes=32 * 1024 * 1024),
    )(*operands)
    return out.reshape(N, 1, 1, 1)


# ----------------------------------------------------------------------------
# Parameters + pure-JAX reference (for correctness checking)
# ----------------------------------------------------------------------------
def init_discriminator_params(key, ndf):
    nc = 1
    chans = [(nc, ndf), (ndf, ndf * 2), (ndf * 2, ndf * 4),
             (ndf * 4, ndf * 8), (ndf * 8, 1)]
    params = []
    for cin, cout in chans:
        key, sub = jax.random.split(key)
        w = jax.random.normal(sub, (cout, cin, 4, 4), dtype=jnp.float32) * 0.02
        gamma = jnp.ones((1, cout), jnp.float32)   # PyTorch BatchNorm init
        beta = jnp.zeros((1, cout), jnp.float32)
        params.append((w, gamma, beta))
    return params


def _reference_forward(x, params):
    y = x
    for (w, gamma, beta), (s, p, bn, act) in zip(params, _CONV_CFG):
        y = lax.conv_general_dilated(
            y, w, window_strides=(s, s), padding=((p, p), (p, p)),
            dimension_numbers=("NCHW", "OIHW", "NCHW"))
        if bn:
            mean = jnp.mean(y, axis=(0, 2, 3), keepdims=True)
            var = jnp.mean((y - mean) ** 2, axis=(0, 2, 3), keepdims=True)
            y = (y - mean) * lax.rsqrt(var + _EPS)
            y = y * gamma.reshape(1, -1, 1, 1) + beta.reshape(1, -1, 1, 1)
        if act == "leaky":
            y = jnp.where(y > 0, y, _SLOPE * y)
        else:
            y = jax.nn.sigmoid(y)
    return y


# ----------------------------------------------------------------------------
if __name__ == "__main__":
    key = jax.random.PRNGKey(0)
    k_in, k_mask, k_par = jax.random.split(key, 3)

    ndf = 8
    # Classic DCGAN discriminator geometry: 64x64 single-channel input -> 1x1.
    x = jax.random.normal(k_in, (2, 1, 64, 64), dtype=jnp.float32)
    mask = jax.random.normal(k_mask, (2, 1, 64, 64), dtype=jnp.float32)  # ignored
    params = init_discriminator_params(k_par, ndf)

    fwd = jax.jit(discriminator_forward)
    out = jax.block_until_ready(fwd(x, mask, params))

    assert out.shape == (2, 1, 1, 1), out.shape
    assert bool(jnp.all(jnp.isfinite(out)))
    assert bool(jnp.all((out >= 0.0) & (out <= 1.0)))  # sigmoid output range

    ref = _reference_forward(x, params)
    err = float(jnp.max(jnp.abs(out - ref)))
    assert err < 5e-2, f"mismatch vs f32 reference: max |diff| = {err}"
    print("KERNEL_OK")
</pallas_src>

<mosaic_0001>
module attributes {stable_mosaic.version = 11 : i64} {
  func.func @_disc_kernel(%arg0: i32, %arg1: memref<2x64x64xbf16, #tpu.memory_space<vmem>>, %arg2: memref<4x32x64xbf16, #tpu.memory_space<vmem>>, %arg3: memref<4x16x32xbf16, #tpu.memory_space<vmem>>, %arg4: memref<4x8x16xbf16, #tpu.memory_space<vmem>>, %arg5: memref<4x4x8xbf16, #tpu.memory_space<vmem>>, %arg6: memref<4x1x4xbf16, #tpu.memory_space<vmem>>, %arg7: memref<4x64x256xbf16, #tpu.memory_space<vmem>>, %arg8: memref<4x256x256xbf16, #tpu.memory_space<vmem>>, %arg9: memref<4x256x256xbf16, #tpu.memory_space<vmem>>, %arg10: memref<4x256x256xbf16, #tpu.memory_space<vmem>>, %arg11: memref<4x256x1xbf16, #tpu.memory_space<vmem>>, %arg12: memref<1x16xf32, #tpu.memory_space<vmem>>, %arg13: memref<1x16xf32, #tpu.memory_space<vmem>>, %arg14: memref<1x32xf32, #tpu.memory_space<vmem>>, %arg15: memref<1x32xf32, #tpu.memory_space<vmem>>, %arg16: memref<1x64xf32, #tpu.memory_space<vmem>>, %arg17: memref<1x64xf32, #tpu.memory_space<vmem>>, %arg18: memref<2x1xf32, #tpu.memory_space<vmem>>) attributes {dimension_semantics = [#tpu.dimension_semantics<arbitrary>], iteration_bounds = array<i64: 1>, scalar_prefetch = 0 : i64, scratch_operands = 0 : i64, tpu.core_type = #tpu.core_type<tc>, window_params = [{pipeline_mode = #tpu.pipeline_mode<synchronous>, transform_indices = @transform_0, window_bounds = array<i64: 2, 64, 64>}, {pipeline_mode = #tpu.pipeline_mode<synchronous>, transform_indices = @transform_1, window_bounds = array<i64: 4, 32, 64>}, {pipeline_mode = #tpu.pipeline_mode<synchronous>, transform_indices = @transform_2, window_bounds = array<i64: 4, 16, 32>}, {pipeline_mode = #tpu.pipeline_mode<synchronous>, transform_indices = @transform_3, window_bounds = array<i64: 4, 8, 16>}, {pipeline_mode = #tpu.pipeline_mode<synchronous>, transform_indices = @transform_4, window_bounds = array<i64: 4, 4, 8>}, {pipeline_mode = #tpu.pipeline_mode<synchronous>, transform_indices = @transform_5, window_bounds = array<i64: 4, 1, 4>}, {pipeline_mode = #tpu.pipeline_mode<synchronous>, transform_indices = @transform_6, window_bounds = array<i64: 4, 64, 256>}, {pipeline_mode = #tpu.pipeline_mode<synchronous>, transform_indices = @transform_7, window_bounds = array<i64: 4, 256, 256>}, {pipeline_mode = #tpu.pipeline_mode<synchronous>, transform_indices = @transform_8, window_bounds = array<i64: 4, 256, 256>}, {pipeline_mode = #tpu.pipeline_mode<synchronous>, transform_indices = @transform_9, window_bounds = array<i64: 4, 256, 256>}, {pipeline_mode = #tpu.pipeline_mode<synchronous>, transform_indices = @transform_10, window_bounds = array<i64: 4, 256, 1>}, {pipeline_mode = #tpu.pipeline_mode<synchronous>, transform_indices = @transform_11, window_bounds = array<i64: 1, 16>}, {pipeline_mode = #tpu.pipeline_mode<synchronous>, transform_indices = @transform_12, window_bounds = array<i64: 1, 16>}, {pipeline_mode = #tpu.pipeline_mode<synchronous>, transform_indices = @transform_13, window_bounds = array<i64: 1, 32>}, {pipeline_mode = #tpu.pipeline_mode<synchronous>, transform_indices = @transform_14, window_bounds = array<i64: 1, 32>}, {pipeline_mode = #tpu.pipeline_mode<synchronous>, transform_indices = @transform_15, window_bounds = array<i64: 1, 64>}, {pipeline_mode = #tpu.pipeline_mode<synchronous>, transform_indices = @transform_16, window_bounds = array<i64: 1, 64>}, {pipeline_mode = #tpu.pipeline_mode<synchronous>, transform_indices = @transform_17, window_bounds = array<i64: 2, 1>}]} {
    %c0 = arith.constant 0 : index
    %c0_0 = arith.constant 0 : index
    %c0_1 = arith.constant 0 : index
    %0 = vector.load %arg1[%c0, %c0_0, %c0_1] : memref<2x64x64xbf16, #tpu.memory_space<vmem>>, vector<1x64x64xbf16>
    %1 = vector.shape_cast %0 : vector<1x64x64xbf16> to vector<64x64xbf16>
    %c1 = arith.constant 1 : index
    %c0_2 = arith.constant 0 : index
    %c0_3 = arith.constant 0 : index
    %2 = vector.load %arg1[%c1, %c0_2, %c0_3] : memref<2x64x64xbf16, #tpu.memory_space<vmem>>, vector<1x64x64xbf16>
    %3 = vector.shape_cast %2 : vector<1x64x64xbf16> to vector<64x64xbf16>
    %cst = arith.constant 0.000000e+00 : f32
    %4 = vector.broadcast %cst : f32 to vector<32x256xf32>
    %c0_4 = arith.constant 0 : index
    %c0_5 = arith.constant 0 : index
    %c0_6 = arith.constant 0 : index
    %5 = vector.load %arg2[%c0_4, %c0_5, %c0_6] : memref<4x32x64xbf16, #tpu.memory_space<vmem>>, vector<1x32x64xbf16>
    %6 = vector.shape_cast %5 : vector<1x32x64xbf16> to vector<32x64xbf16>
    %cst_7 = arith.constant dense<0.000000e+00> : vector<32x64xf32>
    %7 = tpu.matmul %6, %1, %cst_7 {dimension_numbers = #tpu.dot_dimension_numbers<[1], [0], [0], [1], [0, 0, 1, 1], [], []>} : vector<32x64xbf16>, vector<64x64xbf16>, vector<32x64xf32> -> vector<32x64xf32>
    %8 = arith.truncf %7 : vector<32x64xf32> to vector<32x64xbf16>
    %c0_8 = arith.constant 0 : index
    %c0_9 = arith.constant 0 : index
    %c0_10 = arith.constant 0 : index
    %9 = vector.load %arg7[%c0_8, %c0_9, %c0_10] : memref<4x64x256xbf16, #tpu.memory_space<vmem>>, vector<1x64x256xbf16>
    %10 = vector.shape_cast %9 : vector<1x64x256xbf16> to vector<64x256xbf16>
    %cst_11 = arith.constant dense<0.000000e+00> : vector<32x256xf32>
    %11 = tpu.matmul %8, %10, %cst_11 {dimension_numbers = #tpu.dot_dimension_numbers<[1], [0], [0], [1], [0, 0, 1, 1], [], []>} : vector<32x64xbf16>, vector<64x256xbf16>, vector<32x256xf32> -> vector<32x256xf32>
    %12 = arith.addf %4, %11 : vector<32x256xf32>
    %c1_12 = arith.constant 1 : index
    %c0_13 = arith.constant 0 : index
    %c0_14 = arith.constant 0 : index
    %13 = vector.load %arg2[%c1_12, %c0_13, %c0_14] : memref<4x32x64xbf16, #tpu.memory_space<vmem>>, vector<1x32x64xbf16>
    %14 = vector.shape_cast %13 : vector<1x32x64xbf16> to vector<32x64xbf16>
    %cst_15 = arith.constant dense<0.000000e+00> : vector<32x64xf32>
    %15 = tpu.matmul %14, %1, %cst_15 {dimension_numbers = #tpu.dot_dimension_numbers<[1], [0], [0], [1], [0, 0, 1, 1], [], []>} : vector<32x64xbf16>, vector<64x64xbf16>, vector<32x64xf32> -> vector<32x64xf32>
    %16 = arith.truncf %15 : vector<32x64xf32> to vector<32x64xbf16>
    %c1_16 = arith.constant 1 : index
    %c0_17 = arith.constant 0 : index
    %c0_18 = arith.constant 0 : index
    %17 = vector.load %arg7[%c1_16, %c0_17, %c0_18] : memref<4x64x256xbf16, #tpu.memory_space<vmem>>, vector<1x64x256xbf16>
    %18 = vector.shape_cast %17 : vector<1x64x256xbf16> to vector<64x256xbf16>
    %cst_19 = arith.constant dense<0.000000e+00> : vector<32x256xf32>
    %19 = tpu.matmul %16, %18, %cst_19 {dimension_numbers = #tpu.dot_dimension_numbers<[1], [0], [0], [1], [0, 0, 1, 1], [], []>} : vector<32x64xbf16>, vector<64x256xbf16>, vector<32x256xf32> -> vector<32x256xf32>
    %20 = arith.addf %12, %19 : vector<32x256xf32>
    %c2 = arith.constant 2 : index
    %c0_20 = arith.constant 0 : index
    %c0_21 = arith.constant 0 : index
    %21 = vector.load %arg2[%c2, %c0_20, %c0_21] : memref<4x32x64xbf16, #tpu.memory_space<vmem>>, vector<1x32x64xbf16>
    %22 = vector.shape_cast %21 : vector<1x32x64xbf16> to vector<32x64xbf16>
    %cst_22 = arith.constant dense<0.000000e+00> : vector<32x64xf32>
    %23 = tpu.matmul %22, %1, %cst_22 {dimension_numbers = #tpu.dot_dimension_numbers<[1], [0], [0], [1], [0, 0, 1, 1], [], []>} : vector<32x64xbf16>, vector<64x64xbf16>, vector<32x64xf32> -> vector<32x64xf32>
    %24 = arith.truncf %23 : vector<32x64xf32> to vector<32x64xbf16>
    %c2_23 = arith.constant 2 : index
    %c0_24 = arith.constant 0 : index
    %c0_25 = arith.constant 0 : index
    %25 = vector.load %arg7[%c2_23, %c0_24, %c0_25] : memref<4x64x256xbf16, #tpu.memory_space<vmem>>, vector<1x64x256xbf16>
    %26 = vector.shape_cast %25 : vector<1x64x256xbf16> to vector<64x256xbf16>
    %cst_26 = arith.constant dense<0.000000e+00> : vector<32x256xf32>
    %27 = tpu.matmul %24, %26, %cst_26 {dimension_numbers = #tpu.dot_dimension_numbers<[1], [0], [0], [1], [0, 0, 1, 1], [], []>} : vector<32x64xbf16>, vector<64x256xbf16>, vector<32x256xf32> -> vector<32x256xf32>
    %28 = arith.addf %20, %27 : vector<32x256xf32>
    %c3 = arith.constant 3 : index
    %c0_27 = arith.constant 0 : index
    %c0_28 = arith.constant 0 : index
    %29 = vector.load %arg2[%c3, %c0_27, %c0_28] : memref<4x32x64xbf16, #tpu.memory_space<vmem>>, vector<1x32x64xbf16>
    %30 = vector.shape_cast %29 : vector<1x32x64xbf16> to vector<32x64xbf16>
    %cst_29 = arith.constant dense<0.000000e+00> : vector<32x64xf32>
    %31 = tpu.matmul %30, %1, %cst_29 {dimension_numbers = #tpu.dot_dimension_numbers<[1], [0], [0], [1], [0, 0, 1, 1], [], []>} : vector<32x64xbf16>, vector<64x64xbf16>, vector<32x64xf32> -> vector<32x64xf32>
    %32 = arith.truncf %31 : vector<32x64xf32> to vector<32x64xbf16>
    %c3_30 = arith.constant 3 : index
    %c0_31 = arith.constant 0 : index
    %c0_32 = arith.constant 0 : index
    %33 = vector.load %arg7[%c3_30, %c0_31, %c0_32] : memref<4x64x256xbf16, #tpu.memory_space<vmem>>, vector<1x64x256xbf16>
    %34 = vector.shape_cast %33 : vector<1x64x256xbf16> to vector<64x256xbf16>
    %cst_33 = arith.constant dense<0.000000e+00> : vector<32x256xf32>
    %35 = tpu.matmul %32, %34, %cst_33 {dimension_numbers = #tpu.dot_dimension_numbers<[1], [0], [0], [1], [0, 0, 1, 1], [], []>} : vector<32x64xbf16>, vector<64x256xbf16>, vector<32x256xf32> -> vector<32x256xf32>
    %36 = arith.addf %28, %35 : vector<32x256xf32>
    %cst_34 = arith.constant 0.000000e+00 : f32
    %37 = vector.broadcast %cst_34 : f32 to vector<32x256xf32>
    %c0_35 = arith.constant 0 : index
    %c0_36 = arith.constant 0 : index
    %c0_37 = arith.constant 0 : index
    %38 = vector.load %arg2[%c0_35, %c0_36, %c0_37] : memref<4x32x64xbf16, #tpu.memory_space<vmem>>, vector<1x32x64xbf16>
    %39 = vector.shape_cast %38 : vector<1x32x64xbf16> to vector<32x64xbf16>
    %cst_38 = arith.constant dense<0.000000e+00> : vector<32x64xf32>
    %40 = tpu.matmul %39, %3, %cst_38 {dimension_numbers = #tpu.dot_dimension_numbers<[1], [0], [0], [1], [0, 0, 1, 1], [], []>} : vector<32x64xbf16>, vector<64x64xbf16>, vector<32x64xf32> -> vector<32x64xf32>
    %41 = arith.truncf %40 : vector<32x64xf32> to vector<32x64xbf16>
    %c0_39 = arith.constant 0 : index
    %c0_40 = arith.constant 0 : index
    %c0_41 = arith.constant 0 : index
    %42 = vector.load %arg7[%c0_39, %c0_40, %c0_41] : memref<4x64x256xbf16, #tpu.memory_space<vmem>>, vector<1x64x256xbf16>
    %43 = vector.shape_cast %42 : vector<1x64x256xbf16> to vector<64x256xbf16>
    %cst_42 = arith.constant dense<0.000000e+00> : vector<32x256xf32>
    %44 = tpu.matmul %41, %43, %cst_42 {dimension_numbers = #tpu.dot_dimension_numbers<[1], [0], [0], [1], [0, 0, 1, 1], [], []>} : vector<32x64xbf16>, vector<64x256xbf16>, vector<32x256xf32> -> vector<32x256xf32>
    %45 = arith.addf %37, %44 : vector<32x256xf32>
    %c1_43 = arith.constant 1 : index
    %c0_44 = arith.constant 0 : index
    %c0_45 = arith.constant 0 : index
    %46 = vector.load %arg2[%c1_43, %c0_44, %c0_45] : memref<4x32x64xbf16, #tpu.memory_space<vmem>>, vector<1x32x64xbf16>
    %47 = vector.shape_cast %46 : vector<1x32x64xbf16> to vector<32x64xbf16>
    %cst_46 = arith.constant dense<0.000000e+00> : vector<32x64xf32>
    %48 = tpu.matmul %47, %3, %cst_46 {dimension_numbers = #tpu.dot_dimension_numbers<[1], [0], [0], [1], [0, 0, 1, 1], [], []>} : vector<32x64xbf16>, vector<64x64xbf16>, vector<32x64xf32> -> vector<32x64xf32>
    %49 = arith.truncf %48 : vector<32x64xf32> to vector<32x64xbf16>
    %c1_47 = arith.constant 1 : index
    %c0_48 = arith.constant 0 : index
    %c0_49 = arith.constant 0 : index
    %50 = vector.load %arg7[%c1_47, %c0_48, %c0_49] : memref<4x64x256xbf16, #tpu.memory_space<vmem>>, vector<1x64x256xbf16>
    %51 = vector.shape_cast %50 : vector<1x64x256xbf16> to vector<64x256xbf16>
    %cst_50 = arith.constant dense<0.000000e+00> : vector<32x256xf32>
    %52 = tpu.matmul %49, %51, %cst_50 {dimension_numbers = #tpu.dot_dimension_numbers<[1], [0], [0], [1], [0, 0, 1, 1], [], []>} : vector<32x64xbf16>, vector<64x256xbf16>, vector<32x256xf32> -> vector<32x256xf32>
    %53 = arith.addf %45, %52 : vector<32x256xf32>
    %c2_51 = arith.constant 2 : index
    %c0_52 = arith.constant 0 : index
    %c0_53 = arith.constant 0 : index
    %54 = vector.load %arg2[%c2_51, %c0_52, %c0_53] : memref<4x32x64xbf16, #tpu.memory_space<vmem>>, vector<1x32x64xbf16>
    %55 = vector.shape_cast %54 : vector<1x32x64xbf16> to vector<32x64xbf16>
    %cst_54 = arith.constant dense<0.000000e+00> : vector<32x64xf32>
    %56 = tpu.matmul %55, %3, %cst_54 {dimension_numbers = #tpu.dot_dimension_numbers<[1], [0], [0], [1], [0, 0, 1, 1], [], []>} : vector<32x64xbf16>, vector<64x64xbf16>, vector<32x64xf32> -> vector<32x64xf32>
    %57 = arith.truncf %56 : vector<32x64xf32> to vector<32x64xbf16>
    %c2_55 = arith.constant 2 : index
    %c0_56 = arith.constant 0 : index
    %c0_57 = arith.constant 0 : index
    %58 = vector.load %arg7[%c2_55, %c0_56, %c0_57] : memref<4x64x256xbf16, #tpu.memory_space<vmem>>, vector<1x64x256xbf16>
    %59 = vector.shape_cast %58 : vector<1x64x256xbf16> to vector<64x256xbf16>
    %cst_58 = arith.constant dense<0.000000e+00> : vector<32x256xf32>
    %60 = tpu.matmul %57, %59, %cst_58 {dimension_numbers = #tpu.dot_dimension_numbers<[1], [0], [0], [1], [0, 0, 1, 1], [], []>} : vector<32x64xbf16>, vector<64x256xbf16>, vector<32x256xf32> -> vector<32x256xf32>
    %61 = arith.addf %53, %60 : vector<32x256xf32>
    %c3_59 = arith.constant 3 : index
    %c0_60 = arith.constant 0 : index
    %c0_61 = arith.constant 0 : index
    %62 = vector.load %arg2[%c3_59, %c0_60, %c0_61] : memref<4x32x64xbf16, #tpu.memory_space<vmem>>, vector<1x32x64xbf16>
    %63 = vector.shape_cast %62 : vector<1x32x64xbf16> to vector<32x64xbf16>
    %cst_62 = arith.constant dense<0.000000e+00> : vector<32x64xf32>
    %64 = tpu.matmul %63, %3, %cst_62 {dimension_numbers = #tpu.dot_dimension_numbers<[1], [0], [0], [1], [0, 0, 1, 1], [], []>} : vector<32x64xbf16>, vector<64x64xbf16>, vector<32x64xf32> -> vector<32x64xf32>
    %65 = arith.truncf %64 : vector<32x64xf32> to vector<32x64xbf16>
    %c3_63 = arith.constant 3 : index
    %c0_64 = arith.constant 0 : index
    %c0_65 = arith.constant 0 : index
    %66 = vector.load %arg7[%c3_63, %c0_64, %c0_65] : memref<4x64x256xbf16, #tpu.memory_space<vmem>>, vector<1x64x256xbf16>
    %67 = vector.shape_cast %66 : vector<1x64x256xbf16> to vector<64x256xbf16>
    %cst_66 = arith.constant dense<0.000000e+00> : vector<32x256xf32>
    %68 = tpu.matmul %65, %67, %cst_66 {dimension_numbers = #tpu.dot_dimension_numbers<[1], [0], [0], [1], [0, 0, 1, 1], [], []>} : vector<32x64xbf16>, vector<64x256xbf16>, vector<32x256xf32> -> vector<32x256xf32>
    %69 = arith.addf %61, %68 : vector<32x256xf32>
    %cst_67 = arith.constant 0.000000e+00 : f32
    %70 = vector.broadcast %cst_67 : f32 to vector<32x256xf32>
    %71 = arith.cmpf ogt, %36, %70 : vector<32x256xf32>
    %cst_68 = arith.constant 2.000000e-01 : f32
    %72 = vector.broadcast %cst_68 : f32 to vector<32x256xf32>
    %73 = arith.mulf %72, %36 : vector<32x256xf32>
    %74 = arith.select %71, %36, %73 : vector<32x256xi1>, vector<32x256xf32>
    %cst_69 = arith.constant 0.000000e+00 : f32
    %75 = vector.broadcast %cst_69 : f32 to vector<32x256xf32>
    %76 = arith.cmpf ogt, %69, %75 : vector<32x256xf32>
    %cst_70 = arith.constant 2.000000e-01 : f32
    %77 = vector.broadcast %cst_70 : f32 to vector<32x256xf32>
    %78 = arith.mulf %77, %69 : vector<32x256xf32>
    %79 = arith.select %76, %69, %78 : vector<32x256xi1>, vector<32x256xf32>
    %80 = arith.truncf %74 : vector<32x256xf32> to vector<32x256xbf16>
    %81 = arith.truncf %79 : vector<32x256xf32> to vector<32x256xbf16>
    %cst_71 = arith.constant 0.000000e+00 : f32
    %82 = vector.broadcast %cst_71 : f32 to vector<16x256xf32>
    %c0_72 = arith.constant 0 : index
    %c0_73 = arith.constant 0 : index
    %c0_74 = arith.constant 0 : index
    %83 = vector.load %arg3[%c0_72, %c0_73, %c0_74] : memref<4x16x32xbf16, #tpu.memory_space<vmem>>, vector<1x16x32xbf16>
    %84 = vector.shape_cast %83 : vector<1x16x32xbf16> to vector<16x32xbf16>
    %cst_75 = arith.constant dense<0.000000e+00> : vector<16x256xf32>
    %85 = tpu.matmul %84, %80, %cst_75 {dimension_numbers = #tpu.dot_dimension_numbers<[1], [0], [0], [1], [0, 0, 1, 1], [], []>} : vector<16x32xbf16>, vector<32x256xbf16>, vector<16x256xf32> -> vector<16x256xf32>
    %86 = arith.truncf %85 : vector<16x256xf32> to vector<16x256xbf16>
    %c0_76 = arith.constant 0 : index
    %c0_77 = arith.constant 0 : index
    %c0_78 = arith.constant 0 : index
    %87 = vector.load %arg8[%c0_76, %c0_77, %c0_78] : memref<4x256x256xbf16, #tpu.memory_space<vmem>>, vector<1x256x256xbf16>
    %88 = vector.shape_cast %87 : vector<1x256x256xbf16> to vector<256x256xbf16>
    %cst_79 = arith.constant dense<0.000000e+00> : vector<16x256xf32>
    %89 = tpu.matmul %86, %88, %cst_79 {dimension_numbers = #tpu.dot_dimension_numbers<[1], [0], [0], [1], [0, 0, 1, 1], [], []>} : vector<16x256xbf16>, vector<256x256xbf16>, vector<16x256xf32> -> vector<16x256xf32>
    %90 = arith.addf %82, %89 : vector<16x256xf32>
    %c1_80 = arith.constant 1 : index
    %c0_81 = arith.constant 0 : index
    %c0_82 = arith.constant 0 : index
    %91 = vector.load %arg3[%c1_80, %c0_81, %c0_82] : memref<4x16x32xbf16, #tpu.memory_space<vmem>>, vector<1x16x32xbf16>
    %92 = vector.shape_cast %91 : vector<1x16x32xbf16> to vector<16x32xbf16>
    %cst_83 = arith.constant dense<0.000000e+00> : vector<16x256xf32>
    %93 = tpu.matmul %92, %80, %cst_83 {dimension_numbers = #tpu.dot_dimension_numbers<[1], [0], [0], [1], [0, 0, 1, 1], [], []>} : vector<16x32xbf16>, vector<32x256xbf16>, vector<16x256xf32> -> vector<16x256xf32>
    %94 = arith.truncf %93 : vector<16x256xf32> to vector<16x256xbf16>
    %c1_84 = arith.constant 1 : index
    %c0_85 = arith.constant 0 : index
    %c0_86 = arith.constant 0 : index
    %95 = vector.load %arg8[%c1_84, %c0_85, %c0_86] : memref<4x256x256xbf16, #tpu.memory_space<vmem>>, vector<1x256x256xbf16>
    %96 = vector.shape_cast %95 : vector<1x256x256xbf16> to vector<256x256xbf16>
    %cst_87 = arith.constant dense<0.000000e+00> : vector<16x256xf32>
    %97 = tpu.matmul %94, %96, %cst_87 {dimension_numbers = #tpu.dot_dimension_numbers<[1], [0], [0], [1], [0, 0, 1, 1], [], []>} : vector<16x256xbf16>, vector<256x256xbf16>, vector<16x256xf32> -> vector<16x256xf32>
    %98 = arith.addf %90, %97 : vector<16x256xf32>
    %c2_88 = arith.constant 2 : index
    %c0_89 = arith.constant 0 : index
    %c0_90 = arith.constant 0 : index
    %99 = vector.load %arg3[%c2_88, %c0_89, %c0_90] : memref<4x16x32xbf16, #tpu.memory_space<vmem>>, vector<1x16x32xbf16>
    %100 = vector.shape_cast %99 : vector<1x16x32xbf16> to vector<16x32xbf16>
    %cst_91 = arith.constant dense<0.000000e+00> : vector<16x256xf32>
    %101 = tpu.matmul %100, %80, %cst_91 {dimension_numbers = #tpu.dot_dimension_numbers<[1], [0], [0], [1], [0, 0, 1, 1], [], []>} : vector<16x32xbf16>, vector<32x256xbf16>, vector<16x256xf32> -> vector<16x256xf32>
    %102 = arith.truncf %101 : vector<16x256xf32> to vector<16x256xbf16>
    %c2_92 = arith.constant 2 : index
    %c0_93 = arith.constant 0 : index
    %c0_94 = arith.constant 0 : index
    %103 = vector.load %arg8[%c2_92, %c0_93, %c0_94] : memref<4x256x256xbf16, #tpu.memory_space<vmem>>, vector<1x256x256xbf16>
    %104 = vector.shape_cast %103 : vector<1x256x256xbf16> to vector<256x256xbf16>
    %cst_95 = arith.constant dense<0.000000e+00> : vector<16x256xf32>
    %105 = tpu.matmul %102, %104, %cst_95 {dimension_numbers = #tpu.dot_dimension_numbers<[1], [0], [0], [1], [0, 0, 1, 1], [], []>} : vector<16x256xbf16>, vector<256x256xbf16>, vector<16x256xf32> -> vector<16x256xf32>
    %106 = arith.addf %98, %105 : vector<16x256xf32>
    %c3_96 = arith.constant 3 : index
    %c0_97 = arith.constant 0 : index
    %c0_98 = arith.constant 0 : index
    %107 = vector.load %arg3[%c3_96, %c0_97, %c0_98] : memref<4x16x32xbf16, #tpu.memory_space<vmem>>, vector<1x16x32xbf16>
    %108 = vector.shape_cast %107 : vector<1x16x32xbf16> to vector<16x32xbf16>
    %cst_99 = arith.constant dense<0.000000e+00> : vector<16x256xf32>
    %109 = tpu.matmul %108, %80, %cst_99 {dimension_numbers = #tpu.dot_dimension_numbers<[1], [0], [0], [1], [0, 0, 1, 1], [], []>} : vector<16x32xbf16>, vector<32x256xbf16>, vector<16x256xf32> -> vector<16x256xf32>
    %110 = arith.truncf %109 : vector<16x256xf32> to vector<16x256xbf16>
    %c3_100 = arith.constant 3 : index
    %c0_101 = arith.constant 0 : index
    %c0_102 = arith.constant 0 : index
    %111 = vector.load %arg8[%c3_100, %c0_101, %c0_102] : memref<4x256x256xbf16, #tpu.memory_space<vmem>>, vector<1x256x256xbf16>
    %112 = vector.shape_cast %111 : vector<1x256x256xbf16> to vector<256x256xbf16>
    %cst_103 = arith.constant dense<0.000000e+00> : vector<16x256xf32>
    %113 = tpu.matmul %110, %112, %cst_103 {dimension_numbers = #tpu.dot_dimension_numbers<[1], [0], [0], [1], [0, 0, 1, 1], [], []>} : vector<16x256xbf16>, vector<256x256xbf16>, vector<16x256xf32> -> vector<16x256xf32>
    %114 = arith.addf %106, %113 : vector<16x256xf32>
    %cst_104 = arith.constant 0.000000e+00 : f32
    %115 = vector.broadcast %cst_104 : f32 to vector<16x256xf32>
    %c0_105 = arith.constant 0 : index
    %c0_106 = arith.constant 0 : index
    %c0_107 = arith.constant 0 : index
    %116 = vector.load %arg3[%c0_105, %c0_106, %c0_107] : memref<4x16x32xbf16, #tpu.memory_space<vmem>>, vector<1x16x32xbf16>
    %117 = vector.shape_cast %116 : vector<1x16x32xbf16> to vector<16x32xbf16>
    %cst_108 = arith.constant dense<0.000000e+00> : vector<16x256xf32>
    %118 = tpu.matmul %117, %81, %cst_108 {dimension_numbers = #tpu.dot_dimension_numbers<[1], [0], [0], [1], [0, 0, 1, 1], [], []>} : vector<16x32xbf16>, vector<32x256xbf16>, vector<16x256xf32> -> vector<16x256xf32>
    %119 = arith.truncf %118 : vector<16x256xf32> to vector<16x256xbf16>
    %c0_109 = arith.constant 0 : index
    %c0_110 = arith.constant 0 : index
    %c0_111 = arith.constant 0 : index
    %120 = vector.load %arg8[%c0_109, %c0_110, %c0_111] : memref<4x256x256xbf16, #tpu.memory_space<vmem>>, vector<1x256x256xbf16>
    %121 = vector.shape_cast %120 : vector<1x256x256xbf16> to vector<256x256xbf16>
    %cst_112 = arith.constant dense<0.000000e+00> : vector<16x256xf32>
    %122 = tpu.matmul %119, %121, %cst_112 {dimension_numbers = #tpu.dot_dimension_numbers<[1], [0], [0], [1], [0, 0, 1, 1], [], []>} : vector<16x256xbf16>, vector<256x256xbf16>, vector<16x256xf32> -> vector<16x256xf32>
    %123 = arith.addf %115, %122 : vector<16x256xf32>
    %c1_113 = arith.constant 1 : index
    %c0_114 = arith.constant 0 : index
    %c0_115 = arith.constant 0 : index
    %124 = vector.load %arg3[%c1_113, %c0_114, %c0_115] : memref<4x16x32xbf16, #tpu.memory_space<vmem>>, vector<1x16x32xbf16>
    %125 = vector.shape_cast %124 : vector<1x16x32xbf16> to vector<16x32xbf16>
    %cst_116 = arith.constant dense<0.000000e+00> : vector<16x256xf32>
    %126 = tpu.matmul %125, %81, %cst_116 {dimension_numbers = #tpu.dot_dimension_numbers<[1], [0], [0], [1], [0, 0, 1, 1], [], []>} : vector<16x32xbf16>, vector<32x256xbf16>, vector<16x256xf32> -> vector<16x256xf32>
    %127 = arith.truncf %126 : vector<16x256xf32> to vector<16x256xbf16>
    %c1_117 = arith.constant 1 : index
    %c0_118 = arith.constant 0 : index
    %c0_119 = arith.constant 0 : index
    %128 = vector.load %arg8[%c1_117, %c0_118, %c0_119] : memref<4x256x256xbf16, #tpu.memory_space<vmem>>, vector<1x256x256xbf16>
    %129 = vector.shape_cast %128 : vector<1x256x256xbf16> to vector<256x256xbf16>
    %cst_120 = arith.constant dense<0.000000e+00> : vector<16x256xf32>
    %130 = tpu.matmul %127, %129, %cst_120 {dimension_numbers = #tpu.dot_dimension_numbers<[1], [0], [0], [1], [0, 0, 1, 1], [], []>} : vector<16x256xbf16>, vector<256x256xbf16>, vector<16x256xf32> -> vector<16x256xf32>
    %131 = arith.addf %123, %130 : vector<16x256xf32>
    %c2_121 = arith.constant 2 : index
    %c0_122 = arith.constant 0 : index
    %c0_123 = arith.constant 0 : index
    %132 = vector.load %arg3[%c2_121, %c0_122, %c0_123] : memref<4x16x32xbf16, #tpu.memory_space<vmem>>, vector<1x16x32xbf16>
    %133 = vector.shape_cast %132 : vector<1x16x32xbf16> to vector<16x32xbf16>
    %cst_124 = arith.constant dense<0.000000e+00> : vector<16x256xf32>
    %134 = tpu.matmul %133, %81, %cst_124 {dimension_numbers = #tpu.dot_dimension_numbers<[1], [0], [0], [1], [0, 0, 1, 1], [], []>} : vector<16x32xbf16>, vector<32x256xbf16>, vector<16x256xf32> -> vector<16x256xf32>
    %135 = arith.truncf %134 : vector<16x256xf32> to vector<16x256xbf16>
    %c2_125 = arith.constant 2 : index
    %c0_126 = arith.constant 0 : index
    %c0_127 = arith.constant 0 : index
    %136 = vector.load %arg8[%c2_125, %c0_126, %c0_127] : memref<4x256x256xbf16, #tpu.memory_space<vmem>>, vector<1x256x256xbf16>
    %137 = vector.shape_cast %136 : vector<1x256x256xbf16> to vector<256x256xbf16>
    %cst_128 = arith.constant dense<0.000000e+00> : vector<16x256xf32>
    %138 = tpu.matmul %135, %137, %cst_128 {dimension_numbers = #tpu.dot_dimension_numbers<[1], [0], [0], [1], [0, 0, 1, 1], [], []>} : vector<16x256xbf16>, vector<256x256xbf16>, vector<16x256xf32> -> vector<16x256xf32>
    %139 = arith.addf %131, %138 : vector<16x256xf32>
    %c3_129 = arith.constant 3 : index
    %c0_130 = arith.constant 0 : index
    %c0_131 = arith.constant 0 : index
    %140 = vector.load %arg3[%c3_129, %c0_130, %c0_131] : memref<4x16x32xbf16, #tpu.memory_space<vmem>>, vector<1x16x32xbf16>
    %141 = vector.shape_cast %140 : vector<1x16x32xbf16> to vector<16x32xbf16>
    %cst_132 = arith.constant dense<0.000000e+00> : vector<16x256xf32>
    %142 = tpu.matmul %141, %81, %cst_132 {dimension_numbers = #tpu.dot_dimension_numbers<[1], [0], [0], [1], [0, 0, 1, 1], [], []>} : vector<16x32xbf16>, vector<32x256xbf16>, vector<16x256xf32> -> vector<16x256xf32>
    %143 = arith.truncf %142 : vector<16x256xf32> to vector<16x256xbf16>
    %c3_133 = arith.constant 3 : index
    %c0_134 = arith.constant 0 : index
    %c0_135 = arith.constant 0 : index
    %144 = vector.load %arg8[%c3_133, %c0_134, %c0_135] : memref<4x256x256xbf16, #tpu.memory_space<vmem>>, vector<1x256x256xbf16>
    %145 = vector.shape_cast %144 : vector<1x256x256xbf16> to vector<256x256xbf16>
    %cst_136 = arith.constant dense<0.000000e+00> : vector<16x256xf32>
    %146 = tpu.matmul %143, %145, %cst_136 {dimension_numbers = #tpu.dot_dimension_numbers<[1], [0], [0], [1], [0, 0, 1, 1], [], []>} : vector<16x256xbf16>, vector<256x256xbf16>, vector<16x256xf32> -> vector<16x256xf32>
    %147 = arith.addf %139, %146 : vector<16x256xf32>
    %c0_137 = arith.constant 0 : index
    %c0_138 = arith.constant 0 : index
    %148 = vector.load %arg12[%c0_137, %c0_138] : memref<1x16xf32, #tpu.memory_space<vmem>>, vector<1x16xf32>
    %c0_139 = arith.constant 0 : index
    %c0_140 = arith.constant 0 : index
    %149 = vector.load %arg13[%c0_139, %c0_140] : memref<1x16xf32, #tpu.memory_space<vmem>>, vector<1x16xf32>
    %150 = tpu.iota {dimensions = array<i32: 0>} : vector<256x16xi32>
    %c16_i32 = arith.constant 16 : i32
    %c0_i32 = arith.constant 0 : i32
    %151 = arith.cmpi eq, %c16_i32, %c0_i32 : i32
    %c1_i32 = arith.constant 1 : i32
    %152 = arith.select %151, %c1_i32, %c16_i32 : i32
    %153 = vector.broadcast %152 : i32 to vector<256x16xi32>
    %154 = arith.remsi %150, %153 : vector<256x16xi32>
    %c0_i32_141 = arith.constant 0 : i32
    %155 = vector.broadcast %c0_i32_141 : i32 to vector<256x16xi32>
    %156 = arith.cmpi ne, %154, %155 : vector<256x16xi32>
    %c0_i32_142 = arith.constant 0 : i32
    %157 = vector.broadcast %c0_i32_142 : i32 to vector<256x16xi32>
    %158 = arith.cmpi slt, %154, %157 : vector<256x16xi32>
    %c0_i32_143 = arith.constant 0 : i32
    %159 = arith.cmpi slt, %152, %c0_i32_143 : i32
    %160 = vector.broadcast %159 : i1 to vector<256x16xi1>
    %161 = vector.broadcast %160 : vector<256x16xi1> to vector<256x16xi1>
    %162 = arith.xori %158, %161 : vector<256x16xi1>
    %163 = arith.andi %162, %156 : vector<256x16xi1>
    %164 = vector.broadcast %152 : i32 to vector<256x16xi32>
    %165 = arith.addi %154, %164 : vector<256x16xi32>
    %166 = arith.select %163, %165, %154 : vector<256x16xi1>, vector<256x16xi32>
    %167 = tpu.iota {dimensions = array<i32: 1>} : vector<256x16xi32>
    %168 = arith.cmpi eq, %166, %167 : vector<256x16xi32>
    %169 = arith.extui %168 : vector<256x16xi1> to vector<256x16xi32>
    %170 = arith.sitofp %169 : vector<256x16xi32> to vector<256x16xf32>
    %171 = tpu.iota {dimensions = array<i32: 0>} : vector<16x256xi32>
    %172 = tpu.iota {dimensions = array<i32: 1>} : vector<16x256xi32>
    %c16_i32_144 = arith.constant 16 : i32
    %c0_i32_145 = arith.constant 0 : i32
    %173 = arith.cmpi eq, %c16_i32_144, %c0_i32_145 : i32
    %c1_i32_146 = arith.constant 1 : i32
    %174 = arith.select %173, %c1_i32_146, %c16_i32_144 : i32
    %175 = vector.broadcast %174 : i32 to vector<16x256xi32>
    %176 = arith.remsi %172, %175 : vector<16x256xi32>
    %c0_i32_147 = arith.constant 0 : i32
    %177 = vector.broadcast %c0_i32_147 : i32 to vector<16x256xi32>
    %178 = arith.cmpi ne, %176, %177 : vector<16x256xi32>
    %c0_i32_148 = arith.constant 0 : i32
    %179 = vector.broadcast %c0_i32_148 : i32 to vector<16x256xi32>
    %180 = arith.cmpi slt, %176, %179 : vector<16x256xi32>
    %c0_i32_149 = arith.constant 0 : i32
    %181 = arith.cmpi slt, %174, %c0_i32_149 : i32
    %182 = vector.broadcast %181 : i1 to vector<16x256xi1>
    %183 = vector.broadcast %182 : vector<16x256xi1> to vector<16x256xi1>
    %184 = arith.xori %180, %183 : vector<16x256xi1>
    %185 = arith.andi %184, %178 : vector<16x256xi1>
    %186 = vector.broadcast %174 : i32 to vector<16x256xi32>
    %187 = arith.addi %176, %186 : vector<16x256xi32>
    %188 = arith.select %185, %187, %176 : vector<16x256xi1>, vector<16x256xi32>
    %189 = arith.cmpi eq, %171, %188 : vector<16x256xi32>
    %190 = arith.extui %189 : vector<16x256xi1> to vector<16x256xi32>
    %191 = arith.sitofp %190 : vector<16x256xi32> to vector<16x256xf32>
    %cst_150 = arith.constant dense<0.000000e+00> : vector<256xf32>
    %192 = vector.multi_reduction <add>, %114, %cst_150 [0] : vector<16x256xf32> to vector<256xf32>
    %193 = vector.shape_cast %192 : vector<256xf32> to vector<1x256xf32>
    %194 = arith.mulf %114, %114 : vector<16x256xf32>
    %cst_151 = arith.constant dense<0.000000e+00> : vector<256xf32>
    %195 = vector.multi_reduction <add>, %194, %cst_151 [0] : vector<16x256xf32> to vector<256xf32>
    %196 = vector.shape_cast %195 : vector<256xf32> to vector<1x256xf32>
    %cst_152 = arith.constant dense<0.000000e+00> : vector<256xf32>
    %197 = vector.multi_reduction <add>, %147, %cst_152 [0] : vector<16x256xf32> to vector<256xf32>
    %198 = vector.shape_cast %197 : vector<256xf32> to vector<1x256xf32>
    %199 = arith.addf %193, %198 : vector<1x256xf32>
    %200 = arith.mulf %147, %147 : vector<16x256xf32>
    %cst_153 = arith.constant dense<0.000000e+00> : vector<256xf32>
    %201 = vector.multi_reduction <add>, %200, %cst_153 [0] : vector<16x256xf32> to vector<256xf32>
    %202 = vector.shape_cast %201 : vector<256xf32> to vector<1x256xf32>
    %203 = arith.addf %196, %202 : vector<1x256xf32>
    %cst_154 = arith.constant dense<0.000000e+00> : vector<1x16xf32>
    %204 = tpu.matmul %199, %170, %cst_154 {dimension_numbers = #tpu.dot_dimension_numbers<[1], [0], [0], [1], [0, 0, 1, 1], [], []>} : vector<1x256xf32>, vector<256x16xf32>, vector<1x16xf32> -> vector<1x16xf32>
    %cst_155 = arith.constant dense<0.000000e+00> : vector<1x16xf32>
    %205 = tpu.matmul %203, %170, %cst_155 {dimension_numbers = #tpu.dot_dimension_numbers<[1], [0], [0], [1], [0, 0, 1, 1], [], []>} : vector<1x256xf32>, vector<256x16xf32>, vector<1x16xf32> -> vector<1x16xf32>
    %cst_156 = arith.constant 5.120000e+02 : f32
    %206 = vector.broadcast %cst_156 : f32 to vector<1x16xf32>
    %207 = arith.divf %204, %206 : vector<1x16xf32>
    %cst_157 = arith.constant 5.120000e+02 : f32
    %208 = vector.broadcast %cst_157 : f32 to vector<1x16xf32>
    %209 = arith.divf %205, %208 : vector<1x16xf32>
    %210 = arith.mulf %207, %207 : vector<1x16xf32>
    %211 = arith.subf %209, %210 : vector<1x16xf32>
    %cst_158 = arith.constant 9.99999974E-6 : f32
    %212 = vector.broadcast %cst_158 : f32 to vector<1x16xf32>
    %213 = arith.addf %211, %212 : vector<1x16xf32>
    %214 = math.rsqrt %213 : vector<1x16xf32>
    %215 = arith.mulf %148, %214 : vector<1x16xf32>
    %216 = arith.mulf %207, %215 : vector<1x16xf32>
    %217 = arith.subf %149, %216 : vector<1x16xf32>
    %cst_159 = arith.constant dense<0.000000e+00> : vector<1x256xf32>
    %218 = tpu.matmul %215, %191, %cst_159 {dimension_numbers = #tpu.dot_dimension_numbers<[1], [0], [0], [1], [0, 0, 1, 1], [], []>} : vector<1x16xf32>, vector<16x256xf32>, vector<1x256xf32> -> vector<1x256xf32>
    %cst_160 = arith.constant dense<0.000000e+00> : vector<1x256xf32>
    %219 = tpu.matmul %217, %191, %cst_160 {dimension_numbers = #tpu.dot_dimension_numbers<[1], [0], [0], [1], [0, 0, 1, 1], [], []>} : vector<1x16xf32>, vector<16x256xf32>, vector<1x256xf32> -> vector<1x256xf32>
    %220 = vector.broadcast %218 : vector<1x256xf32> to vector<16x256xf32>
    %221 = arith.mulf %114, %220 : vector<16x256xf32>
    %222 = vector.broadcast %219 : vector<1x256xf32> to vector<16x256xf32>
    %223 = arith.addf %221, %222 : vector<16x256xf32>
    %224 = vector.broadcast %218 : vector<1x256xf32> to vector<16x256xf32>
    %225 = arith.mulf %147, %224 : vector<16x256xf32>
    %226 = vector.broadcast %219 : vector<1x256xf32> to vector<16x256xf32>
    %227 = arith.addf %225, %226 : vector<16x256xf32>
    %cst_161 = arith.constant 0.000000e+00 : f32
    %228 = vector.broadcast %cst_161 : f32 to vector<16x256xf32>
    %229 = arith.cmpf ogt, %223, %228 : vector<16x256xf32>
    %cst_162 = arith.constant 2.000000e-01 : f32
    %230 = vector.broadcast %cst_162 : f32 to vector<16x256xf32>
    %231 = arith.mulf %230, %223 : vector<16x256xf32>
    %232 = arith.select %229, %223, %231 : vector<16x256xi1>, vector<16x256xf32>
    %cst_163 = arith.constant 0.000000e+00 : f32
    %233 = vector.broadcast %cst_163 : f32 to vector<16x256xf32>
    %234 = arith.cmpf ogt, %227, %233 : vector<16x256xf32>
    %cst_164 = arith.constant 2.000000e-01 : f32
    %235 = vector.broadcast %cst_164 : f32 to vector<16x256xf32>
    %236 = arith.mulf %235, %227 : vector<16x256xf32>
    %237 = arith.select %234, %227, %236 : vector<16x256xi1>, vector<16x256xf32>
    %238 = arith.truncf %232 : vector<16x256xf32> to vector<16x256xbf16>
    %239 = arith.truncf %237 : vector<16x256xf32> to vector<16x256xbf16>
    %cst_165 = arith.constant 0.000000e+00 : f32
    %240 = vector.broadcast %cst_165 : f32 to vector<8x256xf32>
    %c0_166 = arith.constant 0 : index
    %c0_167 = arith.constant 0 : index
    %c0_168 = arith.constant 0 : index
    %241 = vector.load %arg4[%c0_166, %c0_167, %c0_168] : memref<4x8x16xbf16, #tpu.memory_space<vmem>>, vector<1x8x16xbf16>
    %242 = vector.shape_cast %241 : vector<1x8x16xbf16> to vector<8x16xbf16>
    %cst_169 = arith.constant dense<0.000000e+00> : vector<8x256xf32>
    %243 = tpu.matmul %242, %238, %cst_169 {dimension_numbers = #tpu.dot_dimension_numbers<[1], [0], [0], [1], [0, 0, 1, 1], [], []>} : vector<8x16xbf16>, vector<16x256xbf16>, vector<8x256xf32> -> vector<8x256xf32>
    %244 = arith.truncf %243 : vector<8x256xf32> to vector<8x256xbf16>
    %c0_170 = arith.constant 0 : index
    %c0_171 = arith.constant 0 : index
    %c0_172 = arith.constant 0 : index
    %245 = vector.load %arg9[%c0_170, %c0_171, %c0_172] : memref<4x256x256xbf16, #tpu.memory_space<vmem>>, vector<1x256x256xbf16>
    %246 = vector.shape_cast %245 : vector<1x256x256xbf16> to vector<256x256xbf16>
    %cst_173 = arith.constant dense<0.000000e+00> : vector<8x256xf32>
    %247 = tpu.matmul %244, %246, %cst_173 {dimension_numbers = #tpu.dot_dimension_numbers<[1], [0], [0], [1], [0, 0, 1, 1], [], []>} : vector<8x256xbf16>, vector<256x256xbf16>, vector<8x256xf32> -> vector<8x256xf32>
    %248 = arith.addf %240, %247 : vector<8x256xf32>
    %c1_174 = arith.constant 1 : index
    %c0_175 = arith.constant 0 : index
    %c0_176 = arith.constant 0 : index
    %249 = vector.load %arg4[%c1_174, %c0_175, %c0_176] : memref<4x8x16xbf16, #tpu.memory_space<vmem>>, vector<1x8x16xbf16>
    %250 = vector.shape_cast %249 : vector<1x8x16xbf16> to vector<8x16xbf16>
    %cst_177 = arith.constant dense<0.000000e+00> : vector<8x256xf32>
    %251 = tpu.matmul %250, %238, %cst_177 {dimension_numbers = #tpu.dot_dimension_numbers<[1], [0], [0], [1], [0, 0, 1, 1], [], []>} : vector<8x16xbf16>, vector<16x256xbf16>, vector<8x256xf32> -> vector<8x256xf32>
    %252 = arith.truncf %251 : vector<8x256xf32> to vector<8x256xbf16>
    %c1_178 = arith.constant 1 : index
    %c0_179 = arith.constant 0 : index
    %c0_180 = arith.constant 0 : index
    %253 = vector.load %arg9[%c1_178, %c0_179, %c0_180] : memref<4x256x256xbf16, #tpu.memory_space<vmem>>, vector<1x256x256xbf16>
    %254 = vector.shape_cast %253 : vector<1x256x256xbf16> to vector<256x256xbf16>
    %cst_181 = arith.constant dense<0.000000e+00> : vector<8x256xf32>
    %255 = tpu.matmul %252, %254, %cst_181 {dimension_numbers = #tpu.dot_dimension_numbers<[1], [0], [0], [1], [0, 0, 1, 1], [], []>} : vector<8x256xbf16>, vector<256x256xbf16>, vector<8x256xf32> -> vector<8x256xf32>
    %256 = arith.addf %248, %255 : vector<8x256xf32>
    %c2_182 = arith.constant 2 : index
    %c0_183 = arith.constant 0 : index
    %c0_184 = arith.constant 0 : index
    %257 = vector.load %arg4[%c2_182, %c0_183, %c0_184] : memref<4x8x16xbf16, #tpu.memory_space<vmem>>, vector<1x8x16xbf16>
    %258 = vector.shape_cast %257 : vector<1x8x16xbf16> to vector<8x16xbf16>
    %cst_185 = arith.constant dense<0.000000e+00> : vector<8x256xf32>
    %259 = tpu.matmul %258, %238, %cst_185 {dimension_numbers = #tpu.dot_dimension_numbers<[1], [0], [0], [1], [0, 0, 1, 1], [], []>} : vector<8x16xbf16>, vector<16x256xbf16>, vector<8x256xf32> -> vector<8x256xf32>
    %260 = arith.truncf %259 : vector<8x256xf32> to vector<8x256xbf16>
    %c2_186 = arith.constant 2 : index
    %c0_187 = arith.constant 0 : index
    %c0_188 = arith.constant 0 : index
    %261 = vector.load %arg9[%c2_186, %c0_187, %c0_188] : memref<4x256x256xbf16, #tpu.memory_space<vmem>>, vector<1x256x256xbf16>
    %262 = vector.shape_cast %261 : vector<1x256x256xbf16> to vector<256x256xbf16>
    %cst_189 = arith.constant dense<0.000000e+00> : vector<8x256xf32>
    %263 = tpu.matmul %260, %262, %cst_189 {dimension_numbers = #tpu.dot_dimension_numbers<[1], [0], [0], [1], [0, 0, 1, 1], [], []>} : vector<8x256xbf16>, vector<256x256xbf16>, vector<8x256xf32> -> vector<8x256xf32>
    %264 = arith.addf %256, %263 : vector<8x256xf32>
    %c3_190 = arith.constant 3 : index
    %c0_191 = arith.constant 0 : index
    %c0_192 = arith.constant 0 : index
    %265 = vector.load %arg4[%c3_190, %c0_191, %c0_192] : memref<4x8x16xbf16, #tpu.memory_space<vmem>>, vector<1x8x16xbf16>
    %266 = vector.shape_cast %265 : vector<1x8x16xbf16> to vector<8x16xbf16>
    %cst_193 = arith.constant dense<0.000000e+00> : vector<8x256xf32>
    %267 = tpu.matmul %266, %238, %cst_193 {dimension_numbers = #tpu.dot_dimension_numbers<[1], [0], [0], [1], [0, 0, 1, 1], [], []>} : vector<8x16xbf16>, vector<16x256xbf16>, vector<8x256xf32> -> vector<8x256xf32>
    %268 = arith.truncf %267 : vector<8x256xf32> to vector<8x256xbf16>
    %c3_194 = arith.constant 3 : index
    %c0_195 = arith.constant 0 : index
    %c0_196 = arith.constant 0 : index
    %269 = vector.load %arg9[%c3_194, %c0_195, %c0_196] : memref<4x256x256xbf16, #tpu.memory_space<vmem>>, vector<1x256x256xbf16>
    %270 = vector.shape_cast %269 : vector<1x256x256xbf16> to vector<256x256xbf16>
    %cst_197 = arith.constant dense<0.000000e+00> : vector<8x256xf32>
    %271 = tpu.matmul %268, %270, %cst_197 {dimension_numbers = #tpu.dot_dimension_numbers<[1], [0], [0], [1], [0, 0, 1, 1], [], []>} : vector<8x256xbf16>, vector<256x256xbf16>, vector<8x256xf32> -> vector<8x256xf32>
    %272 = arith.addf %264, %271 : vector<8x256xf32>
    %cst_198 = arith.constant 0.000000e+00 : f32
    %273 = vector.broadcast %cst_198 : f32 to vector<8x256xf32>
    %c0_199 = arith.constant 0 : index
    %c0_200 = arith.constant 0 : index
    %c0_201 = arith.constant 0 : index
    %274 = vector.load %arg4[%c0_199, %c0_200, %c0_201] : memref<4x8x16xbf16, #tpu.memory_space<vmem>>, vector<1x8x16xbf16>
    %275 = vector.shape_cast %274 : vector<1x8x16xbf16> to vector<8x16xbf16>
    %cst_202 = arith.constant dense<0.000000e+00> : vector<8x256xf32>
    %276 = tpu.matmul %275, %239, %cst_202 {dimension_numbers = #tpu.dot_dimension_numbers<[1], [0], [0], [1], [0, 0, 1, 1], [], []>} : vector<8x16xbf16>, vector<16x256xbf16>, vector<8x256xf32> -> vector<8x256xf32>
    %277 = arith.truncf %276 : vector<8x256xf32> to vector<8x256xbf16>
    %c0_203 = arith.constant 0 : index
    %c0_204 = arith.constant 0 : index
    %c0_205 = arith.constant 0 : index
    %278 = vector.load %arg9[%c0_203, %c0_204, %c0_205] : memref<4x256x256xbf16, #tpu.memory_space<vmem>>, vector<1x256x256xbf16>
    %279 = vector.shape_cast %278 : vector<1x256x256xbf16> to vector<256x256xbf16>
    %cst_206 = arith.constant dense<0.000000e+00> : vector<8x256xf32>
    %280 = tpu.matmul %277, %279, %cst_206 {dimension_numbers = #tpu.dot_dimension_numbers<[1], [0], [0], [1], [0, 0, 1, 1], [], []>} : vector<8x256xbf16>, vector<256x256xbf16>, vector<8x256xf32> -> vector<8x256xf32>
    %281 = arith.addf %273, %280 : vector<8x256xf32>
    %c1_207 = arith.constant 1 : index
    %c0_208 = arith.constant 0 : index
    %c0_209 = arith.constant 0 : index
    %282 = vector.load %arg4[%c1_207, %c0_208, %c0_209] : memref<4x8x16xbf16, #tpu.memory_space<vmem>>, vector<1x8x16xbf16>
    %283 = vector.shape_cast %282 : vector<1x8x16xbf16> to vector<8x16xbf16>
    %cst_210 = arith.constant dense<0.000000e+00> : vector<8x256xf32>
    %284 = tpu.matmul %283, %239, %cst_210 {dimension_numbers = #tpu.dot_dimension_numbers<[1], [0], [0], [1], [0, 0, 1, 1], [], []>} : vector<8x16xbf16>, vector<16x256xbf16>, vector<8x256xf32> -> vector<8x256xf32>
    %285 = arith.truncf %284 : vector<8x256xf32> to vector<8x256xbf16>
    %c1_211 = arith.constant 1 : index
    %c0_212 = arith.constant 0 : index
    %c0_213 = arith.constant 0 : index
    %286 = vector.load %arg9[%c1_211, %c0_212, %c0_213] : memref<4x256x256xbf16, #tpu.memory_space<vmem>>, vector<1x256x256xbf16>
    %287 = vector.shape_cast %286 : vector<1x256x256xbf16> to vector<256x256xbf16>
    %cst_214 = arith.constant dense<0.000000e+00> : vector<8x256xf32>
    %288 = tpu.matmul %285, %287, %cst_214 {dimension_numbers = #tpu.dot_dimension_numbers<[1], [0], [0], [1], [0, 0, 1, 1], [], []>} : vector<8x256xbf16>, vector<256x256xbf16>, vector<8x256xf32> -> vector<8x256xf32>
    %289 = arith.addf %281, %288 : vector<8x256xf32>
    %c2_215 = arith.constant 2 : index
    %c0_216 = arith.constant 0 : index
    %c0_217 = arith.constant 0 : index
    %290 = vector.load %arg4[%c2_215, %c0_216, %c0_217] : memref<4x8x16xbf16, #tpu.memory_space<vmem>>, vector<1x8x16xbf16>
    %291 = vector.shape_cast %290 : vector<1x8x16xbf16> to vector<8x16xbf16>
    %cst_218 = arith.constant dense<0.000000e+00> : vector<8x256xf32>
    %292 = tpu.matmul %291, %239, %cst_218 {dimension_numbers = #tpu.dot_dimension_numbers<[1], [0], [0], [1], [0, 0, 1, 1], [], []>} : vector<8x16xbf16>, vector<16x256xbf16>, vector<8x256xf32> -> vector<8x256xf32>
    %293 = arith.truncf %292 : vector<8x256xf32> to vector<8x256xbf16>
    %c2_219 = arith.constant 2 : index
    %c0_220 = arith.constant 0 : index
    %c0_221 = arith.constant 0 : index
    %294 = vector.load %arg9[%c2_219, %c0_220, %c0_221] : memref<4x256x256xbf16, #tpu.memory_space<vmem>>, vector<1x256x256xbf16>
    %295 = vector.shape_cast %294 : vector<1x256x256xbf16> to vector<256x256xbf16>
    %cst_222 = arith.constant dense<0.000000e+00> : vector<8x256xf32>
    %296 = tpu.matmul %293, %295, %cst_222 {dimension_numbers = #tpu.dot_dimension_numbers<[1], [0], [0], [1], [0, 0, 1, 1], [], []>} : vector<8x256xbf16>, vector<256x256xbf16>, vector<8x256xf32> -> vector<8x256xf32>
    %297 = arith.addf %289, %296 : vector<8x256xf32>
    %c3_223 = arith.constant 3 : index
    %c0_224 = arith.constant 0 : index
    %c0_225 = arith.constant 0 : index
    %298 = vector.load %arg4[%c3_223, %c0_224, %c0_225] : memref<4x8x16xbf16, #tpu.memory_space<vmem>>, vector<1x8x16xbf16>
    %299 = vector.shape_cast %298 : vector<1x8x16xbf16> to vector<8x16xbf16>
    %cst_226 = arith.constant dense<0.000000e+00> : vector<8x256xf32>
    %300 = tpu.matmul %299, %239, %cst_226 {dimension_numbers = #tpu.dot_dimension_numbers<[1], [0], [0], [1], [0, 0, 1, 1], [], []>} : vector<8x16xbf16>, vector<16x256xbf16>, vector<8x256xf32> -> vector<8x256xf32>
    %301 = arith.truncf %300 : vector<8x256xf32> to vector<8x256xbf16>
    %c3_227 = arith.constant 3 : index
    %c0_228 = arith.constant 0 : index
    %c0_229 = arith.constant 0 : index
    %302 = vector.load %arg9[%c3_227, %c0_228, %c0_229] : memref<4x256x256xbf16, #tpu.memory_space<vmem>>, vector<1x256x256xbf16>
    %303 = vector.shape_cast %302 : vector<1x256x256xbf16> to vector<256x256xbf16>
    %cst_230 = arith.constant dense<0.000000e+00> : vector<8x256xf32>
    %304 = tpu.matmul %301, %303, %cst_230 {dimension_numbers = #tpu.dot_dimension_numbers<[1], [0], [0], [1], [0, 0, 1, 1], [], []>} : vector<8x256xbf16>, vector<256x256xbf16>, vector<8x256xf32> -> vector<8x256xf32>
    %305 = arith.addf %297, %304 : vector<8x256xf32>
    %c0_231 = arith.constant 0 : index
    %c0_232 = arith.constant 0 : index
    %306 = vector.load %arg14[%c0_231, %c0_232] : memref<1x32xf32, #tpu.memory_space<vmem>>, vector<1x32xf32>
    %c0_233 = arith.constant 0 : index
    %c0_234 = arith.constant 0 : index
    %307 = vector.load %arg15[%c0_233, %c0_234] : memref<1x32xf32, #tpu.memory_space<vmem>>, vector<1x32xf32>
    %308 = tpu.iota {dimensions = array<i32: 0>} : vector<256x32xi32>
    %c32_i32 = arith.constant 32 : i32
    %c0_i32_235 = arith.constant 0 : i32
    %309 = arith.cmpi eq, %c32_i32, %c0_i32_235 : i32
    %c1_i32_236 = arith.constant 1 : i32
    %310 = arith.select %309, %c1_i32_236, %c32_i32 : i32
    %311 = vector.broadcast %310 : i32 to vector<256x32xi32>
    %312 = arith.remsi %308, %311 : vector<256x32xi32>
    %c0_i32_237 = arith.constant 0 : i32
    %313 = vector.broadcast %c0_i32_237 : i32 to vector<256x32xi32>
    %314 = arith.cmpi ne, %312, %313 : vector<256x32xi32>
    %c0_i32_238 = arith.constant 0 : i32
    %315 = vector.broadcast %c0_i32_238 : i32 to vector<256x32xi32>
    %316 = arith.cmpi slt, %312, %315 : vector<256x32xi32>
    %c0_i32_239 = arith.constant 0 : i32
    %317 = arith.cmpi slt, %310, %c0_i32_239 : i32
    %318 = vector.broadcast %317 : i1 to vector<256x32xi1>
    %319 = vector.broadcast %318 : vector<256x32xi1> to vector<256x32xi1>
    %320 = arith.xori %316, %319 : vector<256x32xi1>
    %321 = arith.andi %320, %314 : vector<256x32xi1>
    %322 = vector.broadcast %310 : i32 to vector<256x32xi32>
    %323 = arith.addi %312, %322 : vector<256x32xi32>
    %324 = arith.select %321, %323, %312 : vector<256x32xi1>, vector<256x32xi32>
    %325 = tpu.iota {dimensions = array<i32: 1>} : vector<256x32xi32>
    %326 = arith.cmpi eq, %324, %325 : vector<256x32xi32>
    %327 = arith.extui %326 : vector<256x32xi1> to vector<256x32xi32>
    %328 = arith.sitofp %327 : vector<256x32xi32> to vector<256x32xf32>
    %329 = tpu.iota {dimensions = array<i32: 0>} : vector<32x256xi32>
    %330 = tpu.iota {dimensions = array<i32: 1>} : vector<32x256xi32>
    %c32_i32_240 = arith.constant 32 : i32
    %c0_i32_241 = arith.constant 0 : i32
    %331 = arith.cmpi eq, %c32_i32_240, %c0_i32_241 : i32
    %c1_i32_242 = arith.constant 1 : i32
    %332 = arith.select %331, %c1_i32_242, %c32_i32_240 : i32
    %333 = vector.broadcast %332 : i32 to vector<32x256xi32>
    %334 = arith.remsi %330, %333 : vector<32x256xi32>
    %c0_i32_243 = arith.constant 0 : i32
    %335 = vector.broadcast %c0_i32_243 : i32 to vector<32x256xi32>
    %336 = arith.cmpi ne, %334, %335 : vector<32x256xi32>
    %c0_i32_244 = arith.constant 0 : i32
    %337 = vector.broadcast %c0_i32_244 : i32 to vector<32x256xi32>
    %338 = arith.cmpi slt, %334, %337 : vector<32x256xi32>
    %c0_i32_245 = arith.constant 0 : i32
    %339 = arith.cmpi slt, %332, %c0_i32_245 : i32
    %340 = vector.broadcast %339 : i1 to vector<32x256xi1>
    %341 = vector.broadcast %340 : vector<32x256xi1> to vector<32x256xi1>
    %342 = arith.xori %338, %341 : vector<32x256xi1>
    %343 = arith.andi %342, %336 : vector<32x256xi1>
    %344 = vector.broadcast %332 : i32 to vector<32x256xi32>
    %345 = arith.addi %334, %344 : vector<32x256xi32>
    %346 = arith.select %343, %345, %334 : vector<32x256xi1>, vector<32x256xi32>
    %347 = arith.cmpi eq, %329, %346 : vector<32x256xi32>
    %348 = arith.extui %347 : vector<32x256xi1> to vector<32x256xi32>
    %349 = arith.sitofp %348 : vector<32x256xi32> to vector<32x256xf32>
    %cst_246 = arith.constant dense<0.000000e+00> : vector<256xf32>
    %350 = vector.multi_reduction <add>, %272, %cst_246 [0] : vector<8x256xf32> to vector<256xf32>
    %351 = vector.shape_cast %350 : vector<256xf32> to vector<1x256xf32>
    %352 = arith.mulf %272, %272 : vector<8x256xf32>
    %cst_247 = arith.constant dense<0.000000e+00> : vector<256xf32>
    %353 = vector.multi_reduction <add>, %352, %cst_247 [0] : vector<8x256xf32> to vector<256xf32>
    %354 = vector.shape_cast %353 : vector<256xf32> to vector<1x256xf32>
    %cst_248 = arith.constant dense<0.000000e+00> : vector<256xf32>
    %355 = vector.multi_reduction <add>, %305, %cst_248 [0] : vector<8x256xf32> to vector<256xf32>
    %356 = vector.shape_cast %355 : vector<256xf32> to vector<1x256xf32>
    %357 = arith.addf %351, %356 : vector<1x256xf32>
    %358 = arith.mulf %305, %305 : vector<8x256xf32>
    %cst_249 = arith.constant dense<0.000000e+00> : vector<256xf32>
    %359 = vector.multi_reduction <add>, %358, %cst_249 [0] : vector<8x256xf32> to vector<256xf32>
    %360 = vector.shape_cast %359 : vector<256xf32> to vector<1x256xf32>
    %361 = arith.addf %354, %360 : vector<1x256xf32>
    %cst_250 = arith.constant dense<0.000000e+00> : vector<1x32xf32>
    %362 = tpu.matmul %357, %328, %cst_250 {dimension_numbers = #tpu.dot_dimension_numbers<[1], [0], [0], [1], [0, 0, 1, 1], [], []>} : vector<1x256xf32>, vector<256x32xf32>, vector<1x32xf32> -> vector<1x32xf32>
    %cst_251 = arith.constant dense<0.000000e+00> : vector<1x32xf32>
    %363 = tpu.matmul %361, %328, %cst_251 {dimension_numbers = #tpu.dot_dimension_numbers<[1], [0], [0], [1], [0, 0, 1, 1], [], []>} : vector<1x256xf32>, vector<256x32xf32>, vector<1x32xf32> -> vector<1x32xf32>
    %cst_252 = arith.constant 1.280000e+02 : f32
    %364 = vector.broadcast %cst_252 : f32 to vector<1x32xf32>
    %365 = arith.divf %362, %364 : vector<1x32xf32>
    %cst_253 = arith.constant 1.280000e+02 : f32
    %366 = vector.broadcast %cst_253 : f32 to vector<1x32xf32>
    %367 = arith.divf %363, %366 : vector<1x32xf32>
    %368 = arith.mulf %365, %365 : vector<1x32xf32>
    %369 = arith.subf %367, %368 : vector<1x32xf32>
    %cst_254 = arith.constant 9.99999974E-6 : f32
    %370 = vector.broadcast %cst_254 : f32 to vector<1x32xf32>
    %371 = arith.addf %369, %370 : vector<1x32xf32>
    %372 = math.rsqrt %371 : vector<1x32xf32>
    %373 = arith.mulf %306, %372 : vector<1x32xf32>
    %374 = arith.mulf %365, %373 : vector<1x32xf32>
    %375 = arith.subf %307, %374 : vector<1x32xf32>
    %cst_255 = arith.constant dense<0.000000e+00> : vector<1x256xf32>
    %376 = tpu.matmul %373, %349, %cst_255 {dimension_numbers = #tpu.dot_dimension_numbers<[1], [0], [0], [1], [0, 0, 1, 1], [], []>} : vector<1x32xf32>, vector<32x256xf32>, vector<1x256xf32> -> vector<1x256xf32>
    %cst_256 = arith.constant dense<0.000000e+00> : vector<1x256xf32>
    %377 = tpu.matmul %375, %349, %cst_256 {dimension_numbers = #tpu.dot_dimension_numbers<[1], [0], [0], [1], [0, 0, 1, 1], [], []>} : vector<1x32xf32>, vector<32x256xf32>, vector<1x256xf32> -> vector<1x256xf32>
    %378 = vector.broadcast %376 : vector<1x256xf32> to vector<8x256xf32>
    %379 = arith.mulf %272, %378 : vector<8x256xf32>
    %380 = vector.broadcast %377 : vector<1x256xf32> to vector<8x256xf32>
    %381 = arith.addf %379, %380 : vector<8x256xf32>
    %382 = vector.broadcast %376 : vector<1x256xf32> to vector<8x256xf32>
    %383 = arith.mulf %305, %382 : vector<8x256xf32>
    %384 = vector.broadcast %377 : vector<1x256xf32> to vector<8x256xf32>
    %385 = arith.addf %383, %384 : vector<8x256xf32>
    %cst_257 = arith.constant 0.000000e+00 : f32
    %386 = vector.broadcast %cst_257 : f32 to vector<8x256xf32>
    %387 = arith.cmpf ogt, %381, %386 : vector<8x256xf32>
    %cst_258 = arith.constant 2.000000e-01 : f32
    %388 = vector.broadcast %cst_258 : f32 to vector<8x256xf32>
    %389 = arith.mulf %388, %381 : vector<8x256xf32>
    %390 = arith.select %387, %381, %389 : vector<8x256xi1>, vector<8x256xf32>
    %cst_259 = arith.constant 0.000000e+00 : f32
    %391 = vector.broadcast %cst_259 : f32 to vector<8x256xf32>
    %392 = arith.cmpf ogt, %385, %391 : vector<8x256xf32>
    %cst_260 = arith.constant 2.000000e-01 : f32
    %393 = vector.broadcast %cst_260 : f32 to vector<8x256xf32>
    %394 = arith.mulf %393, %385 : vector<8x256xf32>
    %395 = arith.select %392, %385, %394 : vector<8x256xi1>, vector<8x256xf32>
    %396 = arith.truncf %390 : vector<8x256xf32> to vector<8x256xbf16>
    %397 = arith.truncf %395 : vector<8x256xf32> to vector<8x256xbf16>
    %cst_261 = arith.constant 0.000000e+00 : f32
    %398 = vector.broadcast %cst_261 : f32 to vector<4x256xf32>
    %c0_262 = arith.constant 0 : index
    %c0_263 = arith.constant 0 : index
    %c0_264 = arith.constant 0 : index
    %399 = vector.load %arg5[%c0_262, %c0_263, %c0_264] : memref<4x4x8xbf16, #tpu.memory_space<vmem>>, vector<1x4x8xbf16>
    %400 = vector.shape_cast %399 : vector<1x4x8xbf16> to vector<4x8xbf16>
    %cst_265 = arith.constant dense<0.000000e+00> : vector<4x256xf32>
    %401 = tpu.matmul %400, %396, %cst_265 {dimension_numbers = #tpu.dot_dimension_numbers<[1], [0], [0], [1], [0, 0, 1, 1], [], []>} : vector<4x8xbf16>, vector<8x256xbf16>, vector<4x256xf32> -> vector<4x256xf32>
    %402 = arith.truncf %401 : vector<4x256xf32> to vector<4x256xbf16>
    %c0_266 = arith.constant 0 : index
    %c0_267 = arith.constant 0 : index
    %c0_268 = arith.constant 0 : index
    %403 = vector.load %arg10[%c0_266, %c0_267, %c0_268] : memref<4x256x256xbf16, #tpu.memory_space<vmem>>, vector<1x256x256xbf16>
    %404 = vector.shape_cast %403 : vector<1x256x256xbf16> to vector<256x256xbf16>
    %cst_269 = arith.constant dense<0.000000e+00> : vector<4x256xf32>
    %405 = tpu.matmul %402, %404, %cst_269 {dimension_numbers = #tpu.dot_dimension_numbers<[1], [0], [0], [1], [0, 0, 1, 1], [], []>} : vector<4x256xbf16>, vector<256x256xbf16>, vector<4x256xf32> -> vector<4x256xf32>
    %406 = arith.addf %398, %405 : vector<4x256xf32>
    %c1_270 = arith.constant 1 : index
    %c0_271 = arith.constant 0 : index
    %c0_272 = arith.constant 0 : index
    %407 = vector.load %arg5[%c1_270, %c0_271, %c0_272] : memref<4x4x8xbf16, #tpu.memory_space<vmem>>, vector<1x4x8xbf16>
    %408 = vector.shape_cast %407 : vector<1x4x8xbf16> to vector<4x8xbf16>
    %cst_273 = arith.constant dense<0.000000e+00> : vector<4x256xf32>
    %409 = tpu.matmul %408, %396, %cst_273 {dimension_numbers = #tpu.dot_dimension_numbers<[1], [0], [0], [1], [0, 0, 1, 1], [], []>} : vector<4x8xbf16>, vector<8x256xbf16>, vector<4x256xf32> -> vector<4x256xf32>
    %410 = arith.truncf %409 : vector<4x256xf32> to vector<4x256xbf16>
    %c1_274 = arith.constant 1 : index
    %c0_275 = arith.constant 0 : index
    %c0_276 = arith.constant 0 : index
    %411 = vector.load %arg10[%c1_274, %c0_275, %c0_276] : memref<4x256x256xbf16, #tpu.memory_space<vmem>>, vector<1x256x256xbf16>
    %412 = vector.shape_cast %411 : vector<1x256x256xbf16> to vector<256x256xbf16>
    %cst_277 = arith.constant dense<0.000000e+00> : vector<4x256xf32>
    %413 = tpu.matmul %410, %412, %cst_277 {dimension_numbers = #tpu.dot_dimension_numbers<[1], [0], [0], [1], [0, 0, 1, 1], [], []>} : vector<4x256xbf16>, vector<256x256xbf16>, vector<4x256xf32> -> vector<4x256xf32>
    %414 = arith.addf %406, %413 : vector<4x256xf32>
    %c2_278 = arith.constant 2 : index
    %c0_279 = arith.constant 0 : index
    %c0_280 = arith.constant 0 : index
    %415 = vector.load %arg5[%c2_278, %c0_279, %c0_280] : memref<4x4x8xbf16, #tpu.memory_space<vmem>>, vector<1x4x8xbf16>
    %416 = vector.shape_cast %415 : vector<1x4x8xbf16> to vector<4x8xbf16>
    %cst_281 = arith.constant dense<0.000000e+00> : vector<4x256xf32>
    %417 = tpu.matmul %416, %396, %cst_281 {dimension_numbers = #tpu.dot_dimension_numbers<[1], [0], [0], [1], [0, 0, 1, 1], [], []>} : vector<4x8xbf16>, vector<8x256xbf16>, vector<4x256xf32> -> vector<4x256xf32>
    %418 = arith.truncf %417 : vector<4x256xf32> to vector<4x256xbf16>
    %c2_282 = arith.constant 2 : index
    %c0_283 = arith.constant 0 : index
    %c0_284 = arith.constant 0 : index
    %419 = vector.load %arg10[%c2_282, %c0_283, %c0_284] : memref<4x256x256xbf16, #tpu.memory_space<vmem>>, vector<1x256x256xbf16>
    %420 = vector.shape_cast %419 : vector<1x256x256xbf16> to vector<256x256xbf16>
    %cst_285 = arith.constant dense<0.000000e+00> : vector<4x256xf32>
    %421 = tpu.matmul %418, %420, %cst_285 {dimension_numbers = #tpu.dot_dimension_numbers<[1], [0], [0], [1], [0, 0, 1, 1], [], []>} : vector<4x256xbf16>, vector<256x256xbf16>, vector<4x256xf32> -> vector<4x256xf32>
    %422 = arith.addf %414, %421 : vector<4x256xf32>
    %c3_286 = arith.constant 3 : index
    %c0_287 = arith.constant 0 : index
    %c0_288 = arith.constant 0 : index
    %423 = vector.load %arg5[%c3_286, %c0_287, %c0_288] : memref<4x4x8xbf16, #tpu.memory_space<vmem>>, vector<1x4x8xbf16>
    %424 = vector.shape_cast %423 : vector<1x4x8xbf16> to vector<4x8xbf16>
    %cst_289 = arith.constant dense<0.000000e+00> : vector<4x256xf32>
    %425 = tpu.matmul %424, %396, %cst_289 {dimension_numbers = #tpu.dot_dimension_numbers<[1], [0], [0], [1], [0, 0, 1, 1], [], []>} : vector<4x8xbf16>, vector<8x256xbf16>, vector<4x256xf32> -> vector<4x256xf32>
    %426 = arith.truncf %425 : vector<4x256xf32> to vector<4x256xbf16>
    %c3_290 = arith.constant 3 : index
    %c0_291 = arith.constant 0 : index
    %c0_292 = arith.constant 0 : index
    %427 = vector.load %arg10[%c3_290, %c0_291, %c0_292] : memref<4x256x256xbf16, #tpu.memory_space<vmem>>, vector<1x256x256xbf16>
    %428 = vector.shape_cast %427 : vector<1x256x256xbf16> to vector<256x256xbf16>
    %cst_293 = arith.constant dense<0.000000e+00> : vector<4x256xf32>
    %429 = tpu.matmul %426, %428, %cst_293 {dimension_numbers = #tpu.dot_dimension_numbers<[1], [0], [0], [1], [0, 0, 1, 1], [], []>} : vector<4x256xbf16>, vector<256x256xbf16>, vector<4x256xf32> -> vector<4x256xf32>
    %430 = arith.addf %422, %429 : vector<4x256xf32>
    %cst_294 = arith.constant 0.000000e+00 : f32
    %431 = vector.broadcast %cst_294 : f32 to vector<4x256xf32>
    %c0_295 = arith.constant 0 : index
    %c0_296 = arith.constant 0 : index
    %c0_297 = arith.constant 0 : index
    %432 = vector.load %arg5[%c0_295, %c0_296, %c0_297] : memref<4x4x8xbf16, #tpu.memory_space<vmem>>, vector<1x4x8xbf16>
    %433 = vector.shape_cast %432 : vector<1x4x8xbf16> to vector<4x8xbf16>
    %cst_298 = arith.constant dense<0.000000e+00> : vector<4x256xf32>
    %434 = tpu.matmul %433, %397, %cst_298 {dimension_numbers = #tpu.dot_dimension_numbers<[1], [0], [0], [1], [0, 0, 1, 1], [], []>} : vector<4x8xbf16>, vector<8x256xbf16>, vector<4x256xf32> -> vector<4x256xf32>
    %435 = arith.truncf %434 : vector<4x256xf32> to vector<4x256xbf16>
    %c0_299 = arith.constant 0 : index
    %c0_300 = arith.constant 0 : index
    %c0_301 = arith.constant 0 : index
    %436 = vector.load %arg10[%c0_299, %c0_300, %c0_301] : memref<4x256x256xbf16, #tpu.memory_space<vmem>>, vector<1x256x256xbf16>
    %437 = vector.shape_cast %436 : vector<1x256x256xbf16> to vector<256x256xbf16>
    %cst_302 = arith.constant dense<0.000000e+00> : vector<4x256xf32>
    %438 = tpu.matmul %435, %437, %cst_302 {dimension_numbers = #tpu.dot_dimension_numbers<[1], [0], [0], [1], [0, 0, 1, 1], [], []>} : vector<4x256xbf16>, vector<256x256xbf16>, vector<4x256xf32> -> vector<4x256xf32>
    %439 = arith.addf %431, %438 : vector<4x256xf32>
    %c1_303 = arith.constant 1 : index
    %c0_304 = arith.constant 0 : index
    %c0_305 = arith.constant 0 : index
    %440 = vector.load %arg5[%c1_303, %c0_304, %c0_305] : memref<4x4x8xbf16, #tpu.memory_space<vmem>>, vector<1x4x8xbf16>
    %441 = vector.shape_cast %440 : vector<1x4x8xbf16> to vector<4x8xbf16>
    %cst_306 = arith.constant dense<0.000000e+00> : vector<4x256xf32>
    %442 = tpu.matmul %441, %397, %cst_306 {dimension_numbers = #tpu.dot_dimension_numbers<[1], [0], [0], [1], [0, 0, 1, 1], [], []>} : vector<4x8xbf16>, vector<8x256xbf16>, vector<4x256xf32> -> vector<4x256xf32>
    %443 = arith.truncf %442 : vector<4x256xf32> to vector<4x256xbf16>
    %c1_307 = arith.constant 1 : index
    %c0_308 = arith.constant 0 : index
    %c0_309 = arith.constant 0 : index
    %444 = vector.load %arg10[%c1_307, %c0_308, %c0_309] : memref<4x256x256xbf16, #tpu.memory_space<vmem>>, vector<1x256x256xbf16>
    %445 = vector.shape_cast %444 : vector<1x256x256xbf16> to vector<256x256xbf16>
    %cst_310 = arith.constant dense<0.000000e+00> : vector<4x256xf32>
    %446 = tpu.matmul %443, %445, %cst_310 {dimension_numbers = #tpu.dot_dimension_numbers<[1], [0], [0], [1], [0, 0, 1, 1], [], []>} : vector<4x256xbf16>, vector<256x256xbf16>, vector<4x256xf32> -> vector<4x256xf32>
    %447 = arith.addf %439, %446 : vector<4x256xf32>
    %c2_311 = arith.constant 2 : index
    %c0_312 = arith.constant 0 : index
    %c0_313 = arith.constant 0 : index
    %448 = vector.load %arg5[%c2_311, %c0_312, %c0_313] : memref<4x4x8xbf16, #tpu.memory_space<vmem>>, vector<1x4x8xbf16>
    %449 = vector.shape_cast %448 : vector<1x4x8xbf16> to vector<4x8xbf16>
    %cst_314 = arith.constant dense<0.000000e+00> : vector<4x256xf32>
    %450 = tpu.matmul %449, %397, %cst_314 {dimension_numbers = #tpu.dot_dimension_numbers<[1], [0], [0], [1], [0, 0, 1, 1], [], []>} : vector<4x8xbf16>, vector<8x256xbf16>, vector<4x256xf32> -> vector<4x256xf32>
    %451 = arith.truncf %450 : vector<4x256xf32> to vector<4x256xbf16>
    %c2_315 = arith.constant 2 : index
    %c0_316 = arith.constant 0 : index
    %c0_317 = arith.constant 0 : index
    %452 = vector.load %arg10[%c2_315, %c0_316, %c0_317] : memref<4x256x256xbf16, #tpu.memory_space<vmem>>, vector<1x256x256xbf16>
    %453 = vector.shape_cast %452 : vector<1x256x256xbf16> to vector<256x256xbf16>
    %cst_318 = arith.constant dense<0.000000e+00> : vector<4x256xf32>
    %454 = tpu.matmul %451, %453, %cst_318 {dimension_numbers = #tpu.dot_dimension_numbers<[1], [0], [0], [1], [0, 0, 1, 1], [], []>} : vector<4x256xbf16>, vector<256x256xbf16>, vector<4x256xf32> -> vector<4x256xf32>
    %455 = arith.addf %447, %454 : vector<4x256xf32>
    %c3_319 = arith.constant 3 : index
    %c0_320 = arith.constant 0 : index
    %c0_321 = arith.constant 0 : index
    %456 = vector.load %arg5[%c3_319, %c0_320, %c0_321] : memref<4x4x8xbf16, #tpu.memory_space<vmem>>, vector<1x4x8xbf16>
    %457 = vector.shape_cast %456 : vector<1x4x8xbf16> to vector<4x8xbf16>
    %cst_322 = arith.constant dense<0.000000e+00> : vector<4x256xf32>
    %458 = tpu.matmul %457, %397, %cst_322 {dimension_numbers = #tpu.dot_dimension_numbers<[1], [0], [0], [1], [0, 0, 1, 1], [], []>} : vector<4x8xbf16>, vector<8x256xbf16>, vector<4x256xf32> -> vector<4x256xf32>
    %459 = arith.truncf %458 : vector<4x256xf32> to vector<4x256xbf16>
    %c3_323 = arith.constant 3 : index
    %c0_324 = arith.constant 0 : index
    %c0_325 = arith.constant 0 : index
    %460 = vector.load %arg10[%c3_323, %c0_324, %c0_325] : memref<4x256x256xbf16, #tpu.memory_space<vmem>>, vector<1x256x256xbf16>
    %461 = vector.shape_cast %460 : vector<1x256x256xbf16> to vector<256x256xbf16>
    %cst_326 = arith.constant dense<0.000000e+00> : vector<4x256xf32>
    %462 = tpu.matmul %459, %461, %cst_326 {dimension_numbers = #tpu.dot_dimension_numbers<[1], [0], [0], [1], [0, 0, 1, 1], [], []>} : vector<4x256xbf16>, vector<256x256xbf16>, vector<4x256xf32> -> vector<4x256xf32>
    %463 = arith.addf %455, %462 : vector<4x256xf32>
    %c0_327 = arith.constant 0 : index
    %c0_328 = arith.constant 0 : index
    %464 = vector.load %arg16[%c0_327, %c0_328] : memref<1x64xf32, #tpu.memory_space<vmem>>, vector<1x64xf32>
    %c0_329 = arith.constant 0 : index
    %c0_330 = arith.constant 0 : index
    %465 = vector.load %arg17[%c0_329, %c0_330] : memref<1x64xf32, #tpu.memory_space<vmem>>, vector<1x64xf32>
    %466 = tpu.iota {dimensions = array<i32: 0>} : vector<256x64xi32>
    %c64_i32 = arith.constant 64 : i32
    %c0_i32_331 = arith.constant 0 : i32
    %467 = arith.cmpi eq, %c64_i32, %c0_i32_331 : i32
    %c1_i32_332 = arith.constant 1 : i32
    %468 = arith.select %467, %c1_i32_332, %c64_i32 : i32
    %469 = vector.broadcast %468 : i32 to vector<256x64xi32>
    %470 = arith.remsi %466, %469 : vector<256x64xi32>
    %c0_i32_333 = arith.constant 0 : i32
    %471 = vector.broadcast %c0_i32_333 : i32 to vector<256x64xi32>
    %472 = arith.cmpi ne, %470, %471 : vector<256x64xi32>
    %c0_i32_334 = arith.constant 0 : i32
    %473 = vector.broadcast %c0_i32_334 : i32 to vector<256x64xi32>
    %474 = arith.cmpi slt, %470, %473 : vector<256x64xi32>
    %c0_i32_335 = arith.constant 0 : i32
    %475 = arith.cmpi slt, %468, %c0_i32_335 : i32
    %476 = vector.broadcast %475 : i1 to vector<256x64xi1>
    %477 = vector.broadcast %476 : vector<256x64xi1> to vector<256x64xi1>
    %478 = arith.xori %474, %477 : vector<256x64xi1>
    %479 = arith.andi %478, %472 : vector<256x64xi1>
    %480 = vector.broadcast %468 : i32 to vector<256x64xi32>
    %481 = arith.addi %470, %480 : vector<256x64xi32>
    %482 = arith.select %479, %481, %470 : vector<256x64xi1>, vector<256x64xi32>
    %483 = tpu.iota {dimensions = array<i32: 1>} : vector<256x64xi32>
    %484 = arith.cmpi eq, %482, %483 : vector<256x64xi32>
    %485 = arith.extui %484 : vector<256x64xi1> to vector<256x64xi32>
    %486 = arith.sitofp %485 : vector<256x64xi32> to vector<256x64xf32>
    %487 = tpu.iota {dimensions = array<i32: 0>} : vector<64x256xi32>
    %488 = tpu.iota {dimensions = array<i32: 1>} : vector<64x256xi32>
    %c64_i32_336 = arith.constant 64 : i32
    %c0_i32_337 = arith.constant 0 : i32
    %489 = arith.cmpi eq, %c64_i32_336, %c0_i32_337 : i32
    %c1_i32_338 = arith.constant 1 : i32
    %490 = arith.select %489, %c1_i32_338, %c64_i32_336 : i32
    %491 = vector.broadcast %490 : i32 to vector<64x256xi32>
    %492 = arith.remsi %488, %491 : vector<64x256xi32>
    %c0_i32_339 = arith.constant 0 : i32
    %493 = vector.broadcast %c0_i32_339 : i32 to vector<64x256xi32>
    %494 = arith.cmpi ne, %492, %493 : vector<64x256xi32>
    %c0_i32_340 = arith.constant 0 : i32
    %495 = vector.broadcast %c0_i32_340 : i32 to vector<64x256xi32>
    %496 = arith.cmpi slt, %492, %495 : vector<64x256xi32>
    %c0_i32_341 = arith.constant 0 : i32
    %497 = arith.cmpi slt, %490, %c0_i32_341 : i32
    %498 = vector.broadcast %497 : i1 to vector<64x256xi1>
    %499 = vector.broadcast %498 : vector<64x256xi1> to vector<64x256xi1>
    %500 = arith.xori %496, %499 : vector<64x256xi1>
    %501 = arith.andi %500, %494 : vector<64x256xi1>
    %502 = vector.broadcast %490 : i32 to vector<64x256xi32>
    %503 = arith.addi %492, %502 : vector<64x256xi32>
    %504 = arith.select %501, %503, %492 : vector<64x256xi1>, vector<64x256xi32>
    %505 = arith.cmpi eq, %487, %504 : vector<64x256xi32>
    %506 = arith.extui %505 : vector<64x256xi1> to vector<64x256xi32>
    %507 = arith.sitofp %506 : vector<64x256xi32> to vector<64x256xf32>
    %cst_342 = arith.constant dense<0.000000e+00> : vector<256xf32>
    %508 = vector.multi_reduction <add>, %430, %cst_342 [0] : vector<4x256xf32> to vector<256xf32>
    %509 = vector.shape_cast %508 : vector<256xf32> to vector<1x256xf32>
    %510 = arith.mulf %430, %430 : vector<4x256xf32>
    %cst_343 = arith.constant dense<0.000000e+00> : vector<256xf32>
    %511 = vector.multi_reduction <add>, %510, %cst_343 [0] : vector<4x256xf32> to vector<256xf32>
    %512 = vector.shape_cast %511 : vector<256xf32> to vector<1x256xf32>
    %cst_344 = arith.constant dense<0.000000e+00> : vector<256xf32>
    %513 = vector.multi_reduction <add>, %463, %cst_344 [0] : vector<4x256xf32> to vector<256xf32>
    %514 = vector.shape_cast %513 : vector<256xf32> to vector<1x256xf32>
    %515 = arith.addf %509, %514 : vector<1x256xf32>
    %516 = arith.mulf %463, %463 : vector<4x256xf32>
    %cst_345 = arith.constant dense<0.000000e+00> : vector<256xf32>
    %517 = vector.multi_reduction <add>, %516, %cst_345 [0] : vector<4x256xf32> to vector<256xf32>
    %518 = vector.shape_cast %517 : vector<256xf32> to vector<1x256xf32>
    %519 = arith.addf %512, %518 : vector<1x256xf32>
    %cst_346 = arith.constant dense<0.000000e+00> : vector<1x64xf32>
    %520 = tpu.matmul %515, %486, %cst_346 {dimension_numbers = #tpu.dot_dimension_numbers<[1], [0], [0], [1], [0, 0, 1, 1], [], []>} : vector<1x256xf32>, vector<256x64xf32>, vector<1x64xf32> -> vector<1x64xf32>
    %cst_347 = arith.constant dense<0.000000e+00> : vector<1x64xf32>
    %521 = tpu.matmul %519, %486, %cst_347 {dimension_numbers = #tpu.dot_dimension_numbers<[1], [0], [0], [1], [0, 0, 1, 1], [], []>} : vector<1x256xf32>, vector<256x64xf32>, vector<1x64xf32> -> vector<1x64xf32>
    %cst_348 = arith.constant 3.200000e+01 : f32
    %522 = vector.broadcast %cst_348 : f32 to vector<1x64xf32>
    %523 = arith.divf %520, %522 : vector<1x64xf32>
    %cst_349 = arith.constant 3.200000e+01 : f32
    %524 = vector.broadcast %cst_349 : f32 to vector<1x64xf32>
    %525 = arith.divf %521, %524 : vector<1x64xf32>
    %526 = arith.mulf %523, %523 : vector<1x64xf32>
    %527 = arith.subf %525, %526 : vector<1x64xf32>
    %cst_350 = arith.constant 9.99999974E-6 : f32
    %528 = vector.broadcast %cst_350 : f32 to vector<1x64xf32>
    %529 = arith.addf %527, %528 : vector<1x64xf32>
    %530 = math.rsqrt %529 : vector<1x64xf32>
    %531 = arith.mulf %464, %530 : vector<1x64xf32>
    %532 = arith.mulf %523, %531 : vector<1x64xf32>
    %533 = arith.subf %465, %532 : vector<1x64xf32>
    %cst_351 = arith.constant dense<0.000000e+00> : vector<1x256xf32>
    %534 = tpu.matmul %531, %507, %cst_351 {dimension_numbers = #tpu.dot_dimension_numbers<[1], [0], [0], [1], [0, 0, 1, 1], [], []>} : vector<1x64xf32>, vector<64x256xf32>, vector<1x256xf32> -> vector<1x256xf32>
    %cst_352 = arith.constant dense<0.000000e+00> : vector<1x256xf32>
    %535 = tpu.matmul %533, %507, %cst_352 {dimension_numbers = #tpu.dot_dimension_numbers<[1], [0], [0], [1], [0, 0, 1, 1], [], []>} : vector<1x64xf32>, vector<64x256xf32>, vector<1x256xf32> -> vector<1x256xf32>
    %536 = vector.broadcast %534 : vector<1x256xf32> to vector<4x256xf32>
    %537 = arith.mulf %430, %536 : vector<4x256xf32>
    %538 = vector.broadcast %535 : vector<1x256xf32> to vector<4x256xf32>
    %539 = arith.addf %537, %538 : vector<4x256xf32>
    %540 = vector.broadcast %534 : vector<1x256xf32> to vector<4x256xf32>
    %541 = arith.mulf %463, %540 : vector<4x256xf32>
    %542 = vector.broadcast %535 : vector<1x256xf32> to vector<4x256xf32>
    %543 = arith.addf %541, %542 : vector<4x256xf32>
    %cst_353 = arith.constant 0.000000e+00 : f32
    %544 = vector.broadcast %cst_353 : f32 to vector<4x256xf32>
    %545 = arith.cmpf ogt, %539, %544 : vector<4x256xf32>
    %cst_354 = arith.constant 2.000000e-01 : f32
    %546 = vector.broadcast %cst_354 : f32 to vector<4x256xf32>
    %547 = arith.mulf %546, %539 : vector<4x256xf32>
    %548 = arith.select %545, %539, %547 : vector<4x256xi1>, vector<4x256xf32>
    %cst_355 = arith.constant 0.000000e+00 : f32
    %549 = vector.broadcast %cst_355 : f32 to vector<4x256xf32>
    %550 = arith.cmpf ogt, %543, %549 : vector<4x256xf32>
    %cst_356 = arith.constant 2.000000e-01 : f32
    %551 = vector.broadcast %cst_356 : f32 to vector<4x256xf32>
    %552 = arith.mulf %551, %543 : vector<4x256xf32>
    %553 = arith.select %550, %543, %552 : vector<4x256xi1>, vector<4x256xf32>
    %554 = arith.truncf %548 : vector<4x256xf32> to vector<4x256xbf16>
    %555 = arith.truncf %553 : vector<4x256xf32> to vector<4x256xbf16>
    %cst_357 = arith.constant 0.000000e+00 : f32
    %556 = vector.broadcast %cst_357 : f32 to vector<1x1xf32>
    %c0_358 = arith.constant 0 : index
    %c0_359 = arith.constant 0 : index
    %c0_360 = arith.constant 0 : index
    %557 = vector.load %arg6[%c0_358, %c0_359, %c0_360] : memref<4x1x4xbf16, #tpu.memory_space<vmem>>, vector<1x1x4xbf16>
    %558 = vector.shape_cast %557 : vector<1x1x4xbf16> to vector<1x4xbf16>
    %cst_361 = arith.constant dense<0.000000e+00> : vector<1x256xf32>
    %559 = tpu.matmul %558, %554, %cst_361 {dimension_numbers = #tpu.dot_dimension_numbers<[1], [0], [0], [1], [0, 0, 1, 1], [], []>} : vector<1x4xbf16>, vector<4x256xbf16>, vector<1x256xf32> -> vector<1x256xf32>
    %560 = arith.truncf %559 : vector<1x256xf32> to vector<1x256xbf16>
    %c0_362 = arith.constant 0 : index
    %c0_363 = arith.constant 0 : index
    %c0_364 = arith.constant 0 : index
    %561 = vector.load %arg11[%c0_362, %c0_363, %c0_364] : memref<4x256x1xbf16, #tpu.memory_space<vmem>>, vector<1x256x1xbf16>
    %562 = vector.shape_cast %561 : vector<1x256x1xbf16> to vector<256x1xbf16>
    %cst_365 = arith.constant dense<0.000000e+00> : vector<1x1xf32>
    %563 = tpu.matmul %560, %562, %cst_365 {dimension_numbers = #tpu.dot_dimension_numbers<[1], [0], [0], [1], [0, 0, 1, 1], [], []>} : vector<1x256xbf16>, vector<256x1xbf16>, vector<1x1xf32> -> vector<1x1xf32>
    %564 = arith.addf %556, %563 : vector<1x1xf32>
    %c1_366 = arith.constant 1 : index
    %c0_367 = arith.constant 0 : index
    %c0_368 = arith.constant 0 : index
    %565 = vector.load %arg6[%c1_366, %c0_367, %c0_368] : memref<4x1x4xbf16, #tpu.memory_space<vmem>>, vector<1x1x4xbf16>
    %566 = vector.shape_cast %565 : vector<1x1x4xbf16> to vector<1x4xbf16>
    %cst_369 = arith.constant dense<0.000000e+00> : vector<1x256xf32>
    %567 = tpu.matmul %566, %554, %cst_369 {dimension_numbers = #tpu.dot_dimension_numbers<[1], [0], [0], [1], [0, 0, 1, 1], [], []>} : vector<1x4xbf16>, vector<4x256xbf16>, vector<1x256xf32> -> vector<1x256xf32>
    %568 = arith.truncf %567 : vector<1x256xf32> to vector<1x256xbf16>
    %c1_370 = arith.constant 1 : index
    %c0_371 = arith.constant 0 : index
    %c0_372 = arith.constant 0 : index
    %569 = vector.load %arg11[%c1_370, %c0_371, %c0_372] : memref<4x256x1xbf16, #tpu.memory_space<vmem>>, vector<1x256x1xbf16>
    %570 = vector.shape_cast %569 : vector<1x256x1xbf16> to vector<256x1xbf16>
    %cst_373 = arith.constant dense<0.000000e+00> : vector<1x1xf32>
    %571 = tpu.matmul %568, %570, %cst_373 {dimension_numbers = #tpu.dot_dimension_numbers<[1], [0], [0], [1], [0, 0, 1, 1], [], []>} : vector<1x256xbf16>, vector<256x1xbf16>, vector<1x1xf32> -> vector<1x1xf32>
    %572 = arith.addf %564, %571 : vector<1x1xf32>
    %c2_374 = arith.constant 2 : index
    %c0_375 = arith.constant 0 : index
    %c0_376 = arith.constant 0 : index
    %573 = vector.load %arg6[%c2_374, %c0_375, %c0_376] : memref<4x1x4xbf16, #tpu.memory_space<vmem>>, vector<1x1x4xbf16>
    %574 = vector.shape_cast %573 : vector<1x1x4xbf16> to vector<1x4xbf16>
    %cst_377 = arith.constant dense<0.000000e+00> : vector<1x256xf32>
    %575 = tpu.matmul %574, %554, %cst_377 {dimension_numbers = #tpu.dot_dimension_numbers<[1], [0], [0], [1], [0, 0, 1, 1], [], []>} : vector<1x4xbf16>, vector<4x256xbf16>, vector<1x256xf32> -> vector<1x256xf32>
    %576 = arith.truncf %575 : vector<1x256xf32> to vector<1x256xbf16>
    %c2_378 = arith.constant 2 : index
    %c0_379 = arith.constant 0 : index
    %c0_380 = arith.constant 0 : index
    %577 = vector.load %arg11[%c2_378, %c0_379, %c0_380] : memref<4x256x1xbf16, #tpu.memory_space<vmem>>, vector<1x256x1xbf16>
    %578 = vector.shape_cast %577 : vector<1x256x1xbf16> to vector<256x1xbf16>
    %cst_381 = arith.constant dense<0.000000e+00> : vector<1x1xf32>
    %579 = tpu.matmul %576, %578, %cst_381 {dimension_numbers = #tpu.dot_dimension_numbers<[1], [0], [0], [1], [0, 0, 1, 1], [], []>} : vector<1x256xbf16>, vector<256x1xbf16>, vector<1x1xf32> -> vector<1x1xf32>
    %580 = arith.addf %572, %579 : vector<1x1xf32>
    %c3_382 = arith.constant 3 : index
    %c0_383 = arith.constant 0 : index
    %c0_384 = arith.constant 0 : index
    %581 = vector.load %arg6[%c3_382, %c0_383, %c0_384] : memref<4x1x4xbf16, #tpu.memory_space<vmem>>, vector<1x1x4xbf16>
    %582 = vector.shape_cast %581 : vector<1x1x4xbf16> to vector<1x4xbf16>
    %cst_385 = arith.constant dense<0.000000e+00> : vector<1x256xf32>
    %583 = tpu.matmul %582, %554, %cst_385 {dimension_numbers = #tpu.dot_dimension_numbers<[1], [0], [0], [1], [0, 0, 1, 1], [], []>} : vector<1x4xbf16>, vector<4x256xbf16>, vector<1x256xf32> -> vector<1x256xf32>
    %584 = arith.truncf %583 : vector<1x256xf32> to vector<1x256xbf16>
    %c3_386 = arith.constant 3 : index
    %c0_387 = arith.constant 0 : index
    %c0_388 = arith.constant 0 : index
    %585 = vector.load %arg11[%c3_386, %c0_387, %c0_388] : memref<4x256x1xbf16, #tpu.memory_space<vmem>>, vector<1x256x1xbf16>
    %586 = vector.shape_cast %585 : vector<1x256x1xbf16> to vector<256x1xbf16>
    %cst_389 = arith.constant dense<0.000000e+00> : vector<1x1xf32>
    %587 = tpu.matmul %584, %586, %cst_389 {dimension_numbers = #tpu.dot_dimension_numbers<[1], [0], [0], [1], [0, 0, 1, 1], [], []>} : vector<1x256xbf16>, vector<256x1xbf16>, vector<1x1xf32> -> vector<1x1xf32>
    %588 = arith.addf %580, %587 : vector<1x1xf32>
    %cst_390 = arith.constant 0.000000e+00 : f32
    %589 = vector.broadcast %cst_390 : f32 to vector<1x1xf32>
    %c0_391 = arith.constant 0 : index
    %c0_392 = arith.constant 0 : index
    %c0_393 = arith.constant 0 : index
    %590 = vector.load %arg6[%c0_391, %c0_392, %c0_393] : memref<4x1x4xbf16, #tpu.memory_space<vmem>>, vector<1x1x4xbf16>
    %591 = vector.shape_cast %590 : vector<1x1x4xbf16> to vector<1x4xbf16>
    %cst_394 = arith.constant dense<0.000000e+00> : vector<1x256xf32>
    %592 = tpu.matmul %591, %555, %cst_394 {dimension_numbers = #tpu.dot_dimension_numbers<[1], [0], [0], [1], [0, 0, 1, 1], [], []>} : vector<1x4xbf16>, vector<4x256xbf16>, vector<1x256xf32> -> vector<1x256xf32>
    %593 = arith.truncf %592 : vector<1x256xf32> to vector<1x256xbf16>
    %c0_395 = arith.constant 0 : index
    %c0_396 = arith.constant 0 : index
    %c0_397 = arith.constant 0 : index
    %594 = vector.load %arg11[%c0_395, %c0_396, %c0_397] : memref<4x256x1xbf16, #tpu.memory_space<vmem>>, vector<1x256x1xbf16>
    %595 = vector.shape_cast %594 : vector<1x256x1xbf16> to vector<256x1xbf16>
    %cst_398 = arith.constant dense<0.000000e+00> : vector<1x1xf32>
    %596 = tpu.matmul %593, %595, %cst_398 {dimension_numbers = #tpu.dot_dimension_numbers<[1], [0], [0], [1], [0, 0, 1, 1], [], []>} : vector<1x256xbf16>, vector<256x1xbf16>, vector<1x1xf32> -> vector<1x1xf32>
    %597 = arith.addf %589, %596 : vector<1x1xf32>
    %c1_399 = arith.constant 1 : index
    %c0_400 = arith.constant 0 : index
    %c0_401 = arith.constant 0 : index
    %598 = vector.load %arg6[%c1_399, %c0_400, %c0_401] : memref<4x1x4xbf16, #tpu.memory_space<vmem>>, vector<1x1x4xbf16>
    %599 = vector.shape_cast %598 : vector<1x1x4xbf16> to vector<1x4xbf16>
    %cst_402 = arith.constant dense<0.000000e+00> : vector<1x256xf32>
    %600 = tpu.matmul %599, %555, %cst_402 {dimension_numbers = #tpu.dot_dimension_numbers<[1], [0], [0], [1], [0, 0, 1, 1], [], []>} : vector<1x4xbf16>, vector<4x256xbf16>, vector<1x256xf32> -> vector<1x256xf32>
    %601 = arith.truncf %600 : vector<1x256xf32> to vector<1x256xbf16>
    %c1_403 = arith.constant 1 : index
    %c0_404 = arith.constant 0 : index
    %c0_405 = arith.constant 0 : index
    %602 = vector.load %arg11[%c1_403, %c0_404, %c0_405] : memref<4x256x1xbf16, #tpu.memory_space<vmem>>, vector<1x256x1xbf16>
    %603 = vector.shape_cast %602 : vector<1x256x1xbf16> to vector<256x1xbf16>
    %cst_406 = arith.constant dense<0.000000e+00> : vector<1x1xf32>
    %604 = tpu.matmul %601, %603, %cst_406 {dimension_numbers = #tpu.dot_dimension_numbers<[1], [0], [0], [1], [0, 0, 1, 1], [], []>} : vector<1x256xbf16>, vector<256x1xbf16>, vector<1x1xf32> -> vector<1x1xf32>
    %605 = arith.addf %597, %604 : vector<1x1xf32>
    %c2_407 = arith.constant 2 : index
    %c0_408 = arith.constant 0 : index
    %c0_409 = arith.constant 0 : index
    %606 = vector.load %arg6[%c2_407, %c0_408, %c0_409] : memref<4x1x4xbf16, #tpu.memory_space<vmem>>, vector<1x1x4xbf16>
    %607 = vector.shape_cast %606 : vector<1x1x4xbf16> to vector<1x4xbf16>
    %cst_410 = arith.constant dense<0.000000e+00> : vector<1x256xf32>
    %608 = tpu.matmul %607, %555, %cst_410 {dimension_numbers = #tpu.dot_dimension_numbers<[1], [0], [0], [1], [0, 0, 1, 1], [], []>} : vector<1x4xbf16>, vector<4x256xbf16>, vector<1x256xf32> -> vector<1x256xf32>
    %609 = arith.truncf %608 : vector<1x256xf32> to vector<1x256xbf16>
    %c2_411 = arith.constant 2 : index
    %c0_412 = arith.constant 0 : index
    %c0_413 = arith.constant 0 : index
    %610 = vector.load %arg11[%c2_411, %c0_412, %c0_413] : memref<4x256x1xbf16, #tpu.memory_space<vmem>>, vector<1x256x1xbf16>
    %611 = vector.shape_cast %610 : vector<1x256x1xbf16> to vector<256x1xbf16>
    %cst_414 = arith.constant dense<0.000000e+00> : vector<1x1xf32>
    %612 = tpu.matmul %609, %611, %cst_414 {dimension_numbers = #tpu.dot_dimension_numbers<[1], [0], [0], [1], [0, 0, 1, 1], [], []>} : vector<1x256xbf16>, vector<256x1xbf16>, vector<1x1xf32> -> vector<1x1xf32>
    %613 = arith.addf %605, %612 : vector<1x1xf32>
    %c3_415 = arith.constant 3 : index
    %c0_416 = arith.constant 0 : index
    %c0_417 = arith.constant 0 : index
    %614 = vector.load %arg6[%c3_415, %c0_416, %c0_417] : memref<4x1x4xbf16, #tpu.memory_space<vmem>>, vector<1x1x4xbf16>
    %615 = vector.shape_cast %614 : vector<1x1x4xbf16> to vector<1x4xbf16>
    %cst_418 = arith.constant dense<0.000000e+00> : vector<1x256xf32>
    %616 = tpu.matmul %615, %555, %cst_418 {dimension_numbers = #tpu.dot_dimension_numbers<[1], [0], [0], [1], [0, 0, 1, 1], [], []>} : vector<1x4xbf16>, vector<4x256xbf16>, vector<1x256xf32> -> vector<1x256xf32>
    %617 = arith.truncf %616 : vector<1x256xf32> to vector<1x256xbf16>
    %c3_419 = arith.constant 3 : index
    %c0_420 = arith.constant 0 : index
    %c0_421 = arith.constant 0 : index
    %618 = vector.load %arg11[%c3_419, %c0_420, %c0_421] : memref<4x256x1xbf16, #tpu.memory_space<vmem>>, vector<1x256x1xbf16>
    %619 = vector.shape_cast %618 : vector<1x256x1xbf16> to vector<256x1xbf16>
    %cst_422 = arith.constant dense<0.000000e+00> : vector<1x1xf32>
    %620 = tpu.matmul %617, %619, %cst_422 {dimension_numbers = #tpu.dot_dimension_numbers<[1], [0], [0], [1], [0, 0, 1, 1], [], []>} : vector<1x256xbf16>, vector<256x1xbf16>, vector<1x1xf32> -> vector<1x1xf32>
    %621 = arith.addf %613, %620 : vector<1x1xf32>
    %cst_423 = arith.constant 0.000000e+00 : f32
    %622 = vector.broadcast %cst_423 : f32 to vector<1x1xf32>
    %623 = arith.subf %622, %588 : vector<1x1xf32>
    %624 = math.exp %623 : vector<1x1xf32>
    %cst_424 = arith.constant 1.000000e+00 : f32
    %625 = vector.broadcast %cst_424 : f32 to vector<1x1xf32>
    %626 = arith.addf %625, %624 : vector<1x1xf32>
    %627 = tpu.reciprocal %626 {approx = true} : vector<1x1xf32> -> vector<1x1xf32>
    %cst_425 = arith.constant 0.000000e+00 : f32
    %628 = vector.broadcast %cst_425 : f32 to vector<1x1xf32>
    %629 = arith.subf %628, %621 : vector<1x1xf32>
    %630 = math.exp %629 : vector<1x1xf32>
    %cst_426 = arith.constant 1.000000e+00 : f32
    %631 = vector.broadcast %cst_426 : f32 to vector<1x1xf32>
    %632 = arith.addf %631, %630 : vector<1x1xf32>
    %633 = tpu.reciprocal %632 {approx = true} : vector<1x1xf32> -> vector<1x1xf32>
    %c0_427 = arith.constant 0 : index
    %c0_428 = arith.constant 0 : index
    %634 = vector.load %arg18[%c0_427, %c0_428] : memref<2x1xf32, #tpu.memory_space<vmem>>, vector<1x1xf32>
    tpu.vector_store %arg18[%c0_427, %c0_428], %627 {strides = array<i32>} : memref<2x1xf32, #tpu.memory_space<vmem>>, vector<1x1xf32>,
    %c1_429 = arith.constant 1 : index
    %c0_430 = arith.constant 0 : index
    %635 = vector.load %arg18[%c1_429, %c0_430] : memref<2x1xf32, #tpu.memory_space<vmem>>, vector<1x1xf32>
    tpu.vector_store %arg18[%c1_429, %c0_430], %633 {strides = array<i32>} : memref<2x1xf32, #tpu.memory_space<vmem>>, vector<1x1xf32>,
    return
  }
  func.func @transform_0(%arg0: i32) -> (i32, i32, i32) {
    %c0_i32 = arith.constant 0 : i32
    %c0_i32_0 = arith.constant 0 : i32
    %c0_i32_1 = arith.constant 0 : i32
    %c0_i32_2 = arith.constant 0 : i32
    return %c0_i32, %c0_i32_0, %c0_i32_1 : i32, i32, i32
  }
  func.func @transform_1(%arg0: i32) -> (i32, i32, i32) {
    %c0_i32 = arith.constant 0 : i32
    %c0_i32_0 = arith.constant 0 : i32
    %c0_i32_1 = arith.constant 0 : i32
    %c0_i32_2 = arith.constant 0 : i32
    return %c0_i32, %c0_i32_0, %c0_i32_1 : i32, i32, i32
  }
  func.func @transform_2(%arg0: i32) -> (i32, i32, i32) {
    %c0_i32 = arith.constant 0 : i32
    %c0_i32_0 = arith.constant 0 : i32
    %c0_i32_1 = arith.constant 0 : i32
    %c0_i32_2 = arith.constant 0 : i32
    return %c0_i32, %c0_i32_0, %c0_i32_1 : i32, i32, i32
  }
  func.func @transform_3(%arg0: i32) -> (i32, i32, i32) {
    %c0_i32 = arith.constant 0 : i32
    %c0_i32_0 = arith.constant 0 : i32
    %c0_i32_1 = arith.constant 0 : i32
    %c0_i32_2 = arith.constant 0 : i32
    return %c0_i32, %c0_i32_0, %c0_i32_1 : i32, i32, i32
  }
  func.func @transform_4(%arg0: i32) -> (i32, i32, i32) {
    %c0_i32 = arith.constant 0 : i32
    %c0_i32_0 = arith.constant 0 : i32
    %c0_i32_1 = arith.constant 0 : i32
    %c0_i32_2 = arith.constant 0 : i32
    return %c0_i32, %c0_i32_0, %c0_i32_1 : i32, i32, i32
  }
  func.func @transform_5(%arg0: i32) -> (i32, i32, i32) {
    %c0_i32 = arith.constant 0 : i32
    %c0_i32_0 = arith.constant 0 : i32
    %c0_i32_1 = arith.constant 0 : i32
    %c0_i32_2 = arith.constant 0 : i32
    return %c0_i32, %c0_i32_0, %c0_i32_1 : i32, i32, i32
  }
  func.func @transform_6(%arg0: i32) -> (i32, i32, i32) {
    %c0_i32 = arith.constant 0 : i32
    %c0_i32_0 = arith.constant 0 : i32
    %c0_i32_1 = arith.constant 0 : i32
    %c0_i32_2 = arith.constant 0 : i32
    return %c0_i32, %c0_i32_0, %c0_i32_1 : i32, i32, i32
  }
  func.func @transform_7(%arg0: i32) -> (i32, i32, i32) {
    %c0_i32 = arith.constant 0 : i32
    %c0_i32_0 = arith.constant 0 : i32
    %c0_i32_1 = arith.constant 0 : i32
    %c0_i32_2 = arith.constant 0 : i32
    return %c0_i32, %c0_i32_0, %c0_i32_1 : i32, i32, i32
  }
  func.func @transform_8(%arg0: i32) -> (i32, i32, i32) {
    %c0_i32 = arith.constant 0 : i32
    %c0_i32_0 = arith.constant 0 : i32
    %c0_i32_1 = arith.constant 0 : i32
    %c0_i32_2 = arith.constant 0 : i32
    return %c0_i32, %c0_i32_0, %c0_i32_1 : i32, i32, i32
  }
  func.func @transform_9(%arg0: i32) -> (i32, i32, i32) {
    %c0_i32 = arith.constant 0 : i32
    %c0_i32_0 = arith.constant 0 : i32
    %c0_i32_1 = arith.constant 0 : i32
    %c0_i32_2 = arith.constant 0 : i32
    return %c0_i32, %c0_i32_0, %c0_i32_1 : i32, i32, i32
  }
  func.func @transform_10(%arg0: i32) -> (i32, i32, i32) {
    %c0_i32 = arith.constant 0 : i32
    %c0_i32_0 = arith.constant 0 : i32
    %c0_i32_1 = arith.constant 0 : i32
    %c0_i32_2 = arith.constant 0 : i32
    return %c0_i32, %c0_i32_0, %c0_i32_1 : i32, i32, i32
  }
  func.func @transform_11(%arg0: i32) -> (i32, i32) {
    %c0_i32 = arith.constant 0 : i32
    %c0_i32_0 = arith.constant 0 : i32
    %c0_i32_1 = arith.constant 0 : i32
    return %c0_i32, %c0_i32_0 : i32, i32
  }
  func.func @transform_12(%arg0: i32) -> (i32, i32) {
    %c0_i32 = arith.constant 0 : i32
    %c0_i32_0 = arith.constant 0 : i32
    %c0_i32_1 = arith.constant 0 : i32
    return %c0_i32, %c0_i32_0 : i32, i32
  }
  func.func @transform_13(%arg0: i32) -> (i32, i32) {
    %c0_i32 = arith.constant 0 : i32
    %c0_i32_0 = arith.constant 0 : i32
    %c0_i32_1 = arith.constant 0 : i32
    return %c0_i32, %c0_i32_0 : i32, i32
  }
  func.func @transform_14(%arg0: i32) -> (i32, i32) {
    %c0_i32 = arith.constant 0 : i32
    %c0_i32_0 = arith.constant 0 : i32
    %c0_i32_1 = arith.constant 0 : i32
    return %c0_i32, %c0_i32_0 : i32, i32
  }
  func.func @transform_15(%arg0: i32) -> (i32, i32) {
    %c0_i32 = arith.constant 0 : i32
    %c0_i32_0 = arith.constant 0 : i32
    %c0_i32_1 = arith.constant 0 : i32
    return %c0_i32, %c0_i32_0 : i32, i32
  }
  func.func @transform_16(%arg0: i32) -> (i32, i32) {
    %c0_i32 = arith.constant 0 : i32
    %c0_i32_0 = arith.constant 0 : i32
    %c0_i32_1 = arith.constant 0 : i32
    return %c0_i32, %c0_i32_0 : i32, i32
  }
  func.func @transform_17(%arg0: i32) -> (i32, i32) {
    %c0_i32 = arith.constant 0 : i32
    %c0_i32_0 = arith.constant 0 : i32
    %c0_i32_1 = arith.constant 0 : i32
    return %c0_i32, %c0_i32_0 : i32, i32
  }
}

</mosaic_0001>

<llo_original>
// kernel: discriminator_forward.1
$region0: #{discriminator_forward.1}
  #allocation0 [shape = 'u32[]', space=smem, size = 0x4, offset = 0x4, fixed_abs, tag = 'smem constant byte address 0x4 - core index']
  #allocation1 [shape = 'u32[144,128]{1,0:T(1,128)}', space=vmem, size = 0x12000, scoped, tag = 'internal scratch']
  %s0 = inlined_call_operand.vmem [shape: bf16[2,64,64], index: 0, kind: input, shape index: {}]
  %s1 = inlined_call_operand.vmem [shape: bf16[4,32,64], index: 1, kind: input, shape index: {}]
  %s2 = inlined_call_operand.vmem [shape: bf16[4,16,32], index: 2, kind: input, shape index: {}]
  %s3 = inlined_call_operand.vmem [shape: bf16[4,8,16], index: 3, kind: input, shape index: {}]
  %s4 = inlined_call_operand.vmem [shape: bf16[4,4,8], index: 4, kind: input, shape index: {}]
  %s5 = inlined_call_operand.vmem [shape: bf16[4,1,4], index: 5, kind: input, shape index: {}]
  %s6 = inlined_call_operand.vmem [shape: bf16[4,64,256], index: 6, kind: input, shape index: {}]
  %s7 = inlined_call_operand.vmem [shape: bf16[4,256,256], index: 7, kind: input, shape index: {}]
  %s8 = inlined_call_operand.vmem [shape: bf16[4,256,256], index: 8, kind: input, shape index: {}]
  %s9 = inlined_call_operand.vmem [shape: bf16[4,256,256], index: 9, kind: input, shape index: {}]
  %s10 = inlined_call_operand.vmem [shape: bf16[4,256,1], index: 10, kind: input, shape index: {}]
  %s11 = inlined_call_operand.vmem [shape: f32[1,16], index: 11, kind: input, shape index: {}]
  %s12 = inlined_call_operand.vmem [shape: f32[1,16], index: 12, kind: input, shape index: {}]
  %s13 = inlined_call_operand.vmem [shape: f32[1,32], index: 13, kind: input, shape index: {}]
  %s14 = inlined_call_operand.vmem [shape: f32[1,32], index: 14, kind: input, shape index: {}]
  %s15 = inlined_call_operand.vmem [shape: f32[1,64], index: 15, kind: input, shape index: {}]
  %s16 = inlined_call_operand.vmem [shape: f32[1,64], index: 16, kind: input, shape index: {}]
  %s17 = inlined_call_operand.vmem [shape: f32[2,1], index: 17, kind: output, shape index: {}]
  %s18 = sld [smem:[#allocation0]]
  $region78: #{discriminator_forward.1} parent=0
    _
  %s20 = ssub.s32 1, %s18
  %s21 = scalar_select 0, %s20, %s18
  // Predicated region
  $region2: #{discriminator_forward.1} parent=0 // pred_check
    _
  $region3: #{discriminator_forward.1} parent=0 // pred_check_branch
    %23 = sbr.rel (0) target = $region5
  $region4: #{discriminator_forward.1} parent=0 // pred_region
    _
  $region5: #{discriminator_forward.1} parent=0 // pred_fallthru
    _
  // Predicated region
  $region6: #{discriminator_forward.1} parent=0 // pred_check
    _
  $region7: #{discriminator_forward.1} parent=0 // pred_check_branch
    %25 = sbr.rel (0) target = $region9
  $region8: #{discriminator_forward.1} parent=0 // pred_region
    _
  $region9: #{discriminator_forward.1} parent=0 // pred_fallthru
    _
  // Predicated region
  $region10: #{discriminator_forward.1} parent=0 // pred_check
    _
  $region11: #{discriminator_forward.1} parent=0 // pred_check_branch
    %27 = sbr.rel (0) target = $region13
  $region12: #{discriminator_forward.1} parent=0 // pred_region
    _
  $region13: #{discriminator_forward.1} parent=0 // pred_fallthru
    _
  // Predicated region
  $region14: #{discriminator_forward.1} parent=0 // pred_check
    _
  $region15: #{discriminator_forward.1} parent=0 // pred_check_branch
    %29 = sbr.rel (0) target = $region17
  $region16: #{discriminator_forward.1} parent=0 // pred_region
    _
  $region17: #{discriminator_forward.1} parent=0 // pred_fallthru
    _
  // Predicated region
  $region18: #{discriminator_forward.1} parent=0 // pred_check
    _
  $region19: #{discriminator_forward.1} parent=0 // pred_check_branch
    %31 = sbr.rel (0) target = $region21
  $region20: #{discriminator_forward.1} parent=0 // pred_region
    _
  $region21: #{discriminator_forward.1} parent=0 // pred_fallthru
    _
  // Predicated region
  $region22: #{discriminator_forward.1} parent=0 // pred_check
    _
  $region23: #{discriminator_forward.1} parent=0 // pred_check_branch
    %33 = sbr.rel (0) target = $region25
  $region24: #{discriminator_forward.1} parent=0 // pred_region
    _
  $region25: #{discriminator_forward.1} parent=0 // pred_fallthru
    _
  // Predicated region
  $region26: #{discriminator_forward.1} parent=0 // pred_check
    _
  $region27: #{discriminator_forward.1} parent=0 // pred_check_branch
    %35 = sbr.rel (0) target = $region29
  $region28: #{discriminator_forward.1} parent=0 // pred_region
    _
  $region29: #{discriminator_forward.1} parent=0 // pred_fallthru
    _
  // Predicated region
  $region30: #{discriminator_forward.1} parent=0 // pred_check
    _
  $region31: #{discriminator_forward.1} parent=0 // pred_check_branch
    %37 = sbr.rel (0) target = $region33
  $region32: #{discriminator_forward.1} parent=0 // pred_region
    _
  $region33: #{discriminator_forward.1} parent=0 // pred_fallthru
    _
  // Predicated region
  $region34: #{discriminator_forward.1} parent=0 // pred_check
    _
  $region35: #{discriminator_forward.1} parent=0 // pred_check_branch
    %39 = sbr.rel (0) target = $region37
  $region36: #{discriminator_forward.1} parent=0 // pred_region
    _
  $region37: #{discriminator_forward.1} parent=0 // pred_fallthru
    _
  // Predicated region
  $region38: #{discriminator_forward.1} parent=0 // pred_check
    _
  $region39: #{discriminator_forward.1} parent=0 // pred_check_branch
    %41 = sbr.rel (0) target = $region41
  $region40: #{discriminator_forward.1} parent=0 // pred_region
    _
  $region41: #{discriminator_forward.1} parent=0 // pred_fallthru
    _
  // Predicated region
  $region42: #{discriminator_forward.1} parent=0 // pred_check
    _
  $region43: #{discriminator_forward.1} parent=0 // pred_check_branch
    %43 = sbr.rel (0) target = $region45
  $region44: #{discriminator_forward.1} parent=0 // pred_region
    _
  $region45: #{discriminator_forward.1} parent=0 // pred_fallthru
    _
  // Predicated region
  $region46: #{discriminator_forward.1} parent=0 // pred_check
    _
  $region47: #{discriminator_forward.1} parent=0 // pred_check_branch
    %45 = sbr.rel (0) target = $region49
  $region48: #{discriminator_forward.1} parent=0 // pred_region
    _
  $region49: #{discriminator_forward.1} parent=0 // pred_fallthru
    _
  // Predicated region
  $region50: #{discriminator_forward.1} parent=0 // pred_check
    _
  $region51: #{discriminator_forward.1} parent=0 // pred_check_branch
    %47 = sbr.rel (0) target = $region53
  $region52: #{discriminator_forward.1} parent=0 // pred_region
    _
  $region53: #{discriminator_forward.1} parent=0 // pred_fallthru
    _
  // Predicated region
  $region54: #{discriminator_forward.1} parent=0 // pred_check
    _
  $region55: #{discriminator_forward.1} parent=0 // pred_check_branch
    %49 = sbr.rel (0) target = $region57
  $region56: #{discriminator_forward.1} parent=0 // pred_region
    _
  $region57: #{discriminator_forward.1} parent=0 // pred_fallthru
    _
  // Predicated region
  $region58: #{discriminator_forward.1} parent=0 // pred_check
    _
  $region59: #{discriminator_forward.1} parent=0 // pred_check_branch
    %51 = sbr.rel (0) target = $region61
  $region60: #{discriminator_forward.1} parent=0 // pred_region
    _
  $region61: #{discriminator_forward.1} parent=0 // pred_fallthru
    _
  // Predicated region
  $region62: #{discriminator_forward.1} parent=0 // pred_check
    _
  $region63: #{discriminator_forward.1} parent=0 // pred_check_branch
    %53 = sbr.rel (0) target = $region65
  $region64: #{discriminator_forward.1} parent=0 // pred_region
    _
  $region65: #{discriminator_forward.1} parent=0 // pred_fallthru
    _
  // Predicated region
  $region66: #{discriminator_forward.1} parent=0 // pred_check
    _
  $region67: #{discriminator_forward.1} parent=0 // pred_check_branch
    %55 = sbr.rel (0) target = $region69
  $region68: #{discriminator_forward.1} parent=0 // pred_region
    _
  $region69: #{discriminator_forward.1} parent=0 // pred_fallthru
    _
  %v57 = vld [vmem:[%s0] sm:$0xf]
  %v58 = vld [vmem:[%s0 + $0x4] sm:$0xf]
  %v59 = vld [vmem:[%s0 + $0x8] sm:$0xf]
  %v60 = vld [vmem:[%s0 + $0xc] sm:$0xf]
  %v61 = vld [vmem:[%s0 + $0x10] sm:$0xf]
  %v62 = vld [vmem:[%s0 + $0x14] sm:$0xf]
  %v63 = vld [vmem:[%s0 + $0x18] sm:$0xf]
  %v64 = vld [vmem:[%s0 + $0x1c] sm:$0xf]
  %s65 = scalar_lea.vmem %s0, 32
  %v66 = vld [vmem:[%s65] sm:$0xf]
  %v67 = vld [vmem:[%s65 + $0x4] sm:$0xf]
  %v68 = vld [vmem:[%s65 + $0x8] sm:$0xf]
  %v69 = vld [vmem:[%s65 + $0xc] sm:$0xf]
  %v70 = vld [vmem:[%s65 + $0x10] sm:$0xf]
  %v71 = vld [vmem:[%s65 + $0x14] sm:$0xf]
  %v72 = vld [vmem:[%s65 + $0x18] sm:$0xf]
  %v73 = vld [vmem:[%s65 + $0x1c] sm:$0xf]
  %v74 = vld [vmem:[%s1] sm:$0xf]
  %v75 = vld [vmem:[%s1 + $0x4] sm:$0xf]
  %v76 = vld [vmem:[%s1 + $0x8] sm:$0xf]
  %v77 = vld [vmem:[%s1 + $0xc] sm:$0xf]
  %v82 = vunpack.c.l.b16 %v74
  %v83 = vunpack.c.l.b16 %v75
  %v84 = vunpack.c.l.b16 %v76
  %v85 = vunpack.c.l.b16 %v77
  %v86 = vpack.c.b16 %v83, %v82
  %v87 = vpack.c.b16 %v85, %v84
  %v96 = vunpack.c.l.b16 %v57
  %v97 = vunpack.c.l.b16 %v58
  %v98 = vunpack.c.l.b16 %v59
  %v99 = vunpack.c.l.b16 %v60
  %v100 = vunpack.c.l.b16 %v61
  %v101 = vunpack.c.l.b16 %v62
  %v102 = vunpack.c.l.b16 %v63
  %v103 = vunpack.c.l.b16 %v64
  %v104 = vpack.c.b16 %v97, %v96
  %v105 = vpack.c.b16 %v99, %v98
  %v106 = vpack.c.b16 %v101, %v100
  %v107 = vpack.c.b16 %v103, %v102
  %vm112 = vcmask 523264
  %v114 = vsel %vm112, %v86, 0
  %v117 = vsel %vm112, %v87, 0
  %119 = vmatprep.subr.bf16.mxu0 0
  %120 = vmatpush1.bf16.msra.mxu0 %v104
  %121 = vmatprep.subr.bf16.mxu0 0
  %122 = vmatpush1.bf16.msra.mxu0 %v105
  %123 = vmatprep.subr.bf16.mxu0 0
  %124 = vmatpush1.bf16.msra.mxu0 %v106
  %125 = vmatprep.subr.bf16.mxu0 0
  %126 = vmatpush1.bf16.msra.mxu0 %v107
  %127 = vmatprep.subr.bf16.mxu0 0
  %128 = vmatpush1.bf16.msra.mxu0 0
  %129 = vmatprep.subr.bf16.mxu0 0
  %130 = vmatpush1.bf16.msra.mxu0 0
  %131 = vmatprep.subr.bf16.mxu0 0
  %132 = vmatpush1.bf16.msra.mxu0 0
  %133 = vmatprep.subr.bf16.mxu0 0
  %134 = vmatpush1.bf16.msra.mxu0 0
  %135 = vmatprep.subr.bf16.mxu0 0
  %136 = vmatpush1.bf16.msra.mxu0 0
  %137 = vmatprep.subr.bf16.mxu0 0
  %138 = vmatpush1.bf16.msra.mxu0 0
  %139 = vmatprep.subr.bf16.mxu0 0
  %140 = vmatpush1.bf16.msra.mxu0 0
  %141 = vmatprep.subr.bf16.mxu0 0
  %142 = vmatpush1.bf16.msra.mxu0 0
  %143 = vmatprep.subr.bf16.mxu0 0
  %144 = vmatpush1.bf16.msra.mxu0 0
  %145 = vmatprep.subr.bf16.mxu0 0
  %146 = vmatpush1.bf16.msra.mxu0 0
  %147 = vmatprep.subr.bf16.mxu0 0
  %148 = vmatpush1.bf16.msra.mxu0 0
  %149 = vmatprep.subr.bf16.mxu0 0
  %150 = vmatpush1.bf16.msra.mxu0 0
  %151 = vmatprep.mubr.bf16.mxu0 0
  %152 = vmatmul.mubr.bf16.gmra.mrb[0].mxu0 %v114
  %v153 = vpop.f32.mrb[0].mxu0
  %v154 = vadd.f32 0.0, %v153
  %v155 = vpop.f32.mrb[0].mxu0
  %v156 = vpop.f32.mrb[0].mxu0
  %v157 = vadd.f32 0.0, %v156
  %v158 = vpop.f32.mrb[0].mxu0
  %159 = vmatprep.mubr.bf16.mxu0 0
  %160 = vmatmul.mubr.bf16.gmra.mrb[0].mxu0 %v117
  %v161 = vpop.f32.mrb[0].mxu0
  %v162 = vadd.f32 0.0, %v161
  %v163 = vpop.f32.mrb[0].mxu0
  %v164 = vpop.f32.mrb[0].mxu0
  %v165 = vadd.f32 0.0, %v164
  %v166 = vpop.f32.mrb[0].mxu0
  %167 = vdwg.mxu0
  %v168 = vpack.c.bf16 %v157, %v154
  %v169 = vpack.c.bf16 %v165, %v162
  %v170 = vld [vmem:[%s6] sm:$0xff]
  %v171 = vld [vmem:[%s6 + $0x8] sm:$0xff]
  %v172 = vld [vmem:[%s6 + $0x10] sm:$0xff]
  %v173 = vld [vmem:[%s6 + $0x18] sm:$0xff]
  %v174 = vld [vmem:[%s6 + $0x20] sm:$0xff]
  %v175 = vld [vmem:[%s6 + $0x28] sm:$0xff]
  %v176 = vld [vmem:[%s6 + $0x30] sm:$0xff]
  %v177 = vld [vmem:[%s6 + $0x38] sm:$0xff]
  %s178 = scalar_lea.vmem %s1, 16
  %v179 = vld [vmem:[%s178] sm:$0xf]
  %v180 = vld [vmem:[%s178 + $0x4] sm:$0xf]
  %v181 = vld [vmem:[%s178 + $0x8] sm:$0xf]
  %v182 = vld [vmem:[%s178 + $0xc] sm:$0xf]
  %v187 = vunpack.c.l.b16 %v179
  %v188 = vunpack.c.l.b16 %v180
  %v189 = vunpack.c.l.b16 %v181
  %v190 = vunpack.c.l.b16 %v182
  %v191 = vpack.c.b16 %v188, %v187
  %v192 = vpack.c.b16 %v190, %v189
  %v194 = vsel %vm112, %v191, 0
  %v197 = vsel %vm112, %v192, 0
  %199 = vmatprep.subr.bf16.mxu0 0
  %200 = vmatpush1.bf16.msra.mxu0 %v104
  %201 = vmatprep.subr.bf16.mxu0 0
  %202 = vmatpush1.bf16.msra.mxu0 %v105
  %203 = vmatprep.subr.bf16.mxu0 0
  %204 = vmatpush1.bf16.msra.mxu0 %v106
  %205 = vmatprep.subr.bf16.mxu0 0
  %206 = vmatpush1.bf16.msra.mxu0 %v107
  %207 = vmatprep.subr.bf16.mxu0 0
  %208 = vmatpush1.bf16.msra.mxu0 0
  %209 = vmatprep.subr.bf16.mxu0 0
  %210 = vmatpush1.bf16.msra.mxu0 0
  %211 = vmatprep.subr.bf16.mxu0 0
  %212 = vmatpush1.bf16.msra.mxu0 0
  %213 = vmatprep.subr.bf16.mxu0 0
  %214 = vmatpush1.bf16.msra.mxu0 0
  %215 = vmatprep.subr.bf16.mxu0 0
  %216 = vmatpush1.bf16.msra.mxu0 0
  %217 = vmatprep.subr.bf16.mxu0 0
  %218 = vmatpush1.bf16.msra.mxu0 0
  %219 = vmatprep.subr.bf16.mxu0 0
  %220 = vmatpush1.bf16.msra.mxu0 0
  %221 = vmatprep.subr.bf16.mxu0 0
  %222 = vmatpush1.bf16.msra.mxu0 0
  %223 = vmatprep.subr.bf16.mxu0 0
  %224 = vmatpush1.bf16.msra.mxu0 0
  %225 = vmatprep.subr.bf16.mxu0 0
  %226 = vmatpush1.bf16.msra.mxu0 0
  %227 = vmatprep.subr.bf16.mxu0 0
  %228 = vmatpush1.bf16.msra.mxu0 0
  %229 = vmatprep.subr.bf16.mxu0 0
  %230 = vmatpush1.bf16.msra.mxu0 0
  %231 = vmatprep.mubr.bf16.mxu0 0
  %232 = vmatmul.mubr.bf16.gmra.mrb[0].mxu0 %v194
  %v233 = vpop.f32.mrb[0].mxu0
  %v234 = vadd.f32 0.0, %v233
  %v235 = vpop.f32.mrb[0].mxu0
  %v236 = vpop.f32.mrb[0].mxu0
  %v237 = vadd.f32 0.0, %v236
  %v238 = vpop.f32.mrb[0].mxu0
  %239 = vmatprep.mubr.bf16.mxu0 0
  %240 = vmatmul.mubr.bf16.gmra.mrb[0].mxu0 %v197
  %v241 = vpop.f32.mrb[0].mxu0
  %v242 = vadd.f32 0.0, %v241
  %v243 = vpop.f32.mrb[0].mxu0
  %v244 = vpop.f32.mrb[0].mxu0
  %v245 = vadd.f32 0.0, %v244
  %v246 = vpop.f32.mrb[0].mxu0
  %247 = vdwg.mxu0
  %v248 = vpack.c.bf16 %v237, %v234
  %v249 = vpack.c.bf16 %v245, %v242
  %s250 = scalar_lea.vmem %s6, 64
  %v251 = vld [vmem:[%s250] sm:$0xff]
  %v252 = vld [vmem:[%s250 + $0x8] sm:$0xff]
  %v253 = vld [vmem:[%s250 + $0x10] sm:$0xff]
  %v254 = vld [vmem:[%s250 + $0x18] sm:$0xff]
  %v255 = vld [vmem:[%s250 + $0x20] sm:$0xff]
  %v256 = vld [vmem:[%s250 + $0x28] sm:$0xff]
  %v257 = vld [vmem:[%s250 + $0x30] sm:$0xff]
  %v258 = vld [vmem:[%s250 + $0x38] sm:$0xff]
  %v267 = vunpack.c.l.b16 %v251
  %v268 = vunpack.c.h.b16 %v251
  %v269 = vunpack.c.l.b16 %v252
  %v270 = vunpack.c.h.b16 %v252
  %v271 = vunpack.c.l.b16 %v253
  %v272 = vunpack.c.h.b16 %v253
  %v273 = vunpack.c.l.b16 %v254
  %v274 = vunpack.c.h.b16 %v254
  %v275 = vunpack.c.l.b16 %v255
  %v276 = vunpack.c.h.b16 %v255
  %v277 = vunpack.c.l.b16 %v256
  %v278 = vunpack.c.h.b16 %v256
  %v279 = vunpack.c.l.b16 %v257
  %v280 = vunpack.c.h.b16 %v257
  %v281 = vunpack.c.l.b16 %v258
  %v282 = vunpack.c.h.b16 %v258
  %v283 = vpack.c.b16 %v269, %v267
  %v284 = vpack.c.b16 %v270, %v268
  %v285 = vpack.c.b16 %v273, %v271
  %v286 = vpack.c.b16 %v274, %v272
  %v287 = vpack.c.b16 %v277, %v275
  %v288 = vpack.c.b16 %v278, %v276
  %v289 = vpack.c.b16 %v281, %v279
  %v290 = vpack.c.b16 %v282, %v280
  %v300 = vsel %vm112, %v248, 0
  %v303 = vsel %vm112, %v249, 0
  %305 = vmatprep.subr.bf16.mxu0 %v284
  %306 = vmatpush1.bf16.msra.mxu0 %v283
  %307 = vmatprep.subr.bf16.mxu0 %v286
  %308 = vmatpush1.bf16.msra.mxu0 %v285
  %309 = vmatprep.subr.bf16.mxu0 %v288
  %310 = vmatpush1.bf16.msra.mxu0 %v287
  %311 = vmatprep.subr.bf16.mxu0 %v290
  %312 = vmatpush1.bf16.msra.mxu0 %v289
  %313 = vmatprep.subr.bf16.mxu0 0
  %314 = vmatpush1.bf16.msra.mxu0 0
  %315 = vmatprep.subr.bf16.mxu0 0
  %316 = vmatpush1.bf16.msra.mxu0 0
  %317 = vmatprep.subr.bf16.mxu0 0
  %318 = vmatpush1.bf16.msra.mxu0 0
  %319 = vmatprep.subr.bf16.mxu0 0
  %320 = vmatpush1.bf16.msra.mxu0 0
  %321 = vmatprep.subr.bf16.mxu0 0
  %322 = vmatpush1.bf16.msra.mxu0 0
  %323 = vmatprep.subr.bf16.mxu0 0
  %324 = vmatpush1.bf16.msra.mxu0 0
  %325 = vmatprep.subr.bf16.mxu0 0
  %326 = vmatpush1.bf16.msra.mxu0 0
  %327 = vmatprep.subr.bf16.mxu0 0
  %328 = vmatpush1.bf16.msra.mxu0 0
  %329 = vmatprep.subr.bf16.mxu0 0
  %330 = vmatpush1.bf16.msra.mxu0 0
  %331 = vmatprep.subr.bf16.mxu0 0
  %332 = vmatpush1.bf16.msra.mxu0 0
  %333 = vmatprep.subr.bf16.mxu0 0
  %334 = vmatpush1.bf16.msra.mxu0 0
  %335 = vmatprep.subr.bf16.mxu0 0
  %336 = vmatpush1.bf16.msra.mxu0 0
  %337 = vmatprep.mubr.bf16.mxu0 0
  %338 = vmatmul.mubr.bf16.gmra.mrb[0].mxu0 %v300
  %v339 = vpop.f32.mrb[0].mxu0
  %v340 = vadd.f32 0.0, %v339
  %v341 = vpop.f32.mrb[0].mxu0
  %v342 = vadd.f32 0.0, %v341
  %v343 = vpop.f32.mrb[0].mxu0
  %v344 = vadd.f32 0.0, %v343
  %v345 = vpop.f32.mrb[0].mxu0
  %v346 = vadd.f32 0.0, %v345
  %347 = vmatprep.mubr.bf16.mxu0 0
  %348 = vmatmul.mubr.bf16.gmra.mrb[0].mxu0 %v303
  %v349 = vpop.f32.mrb[0].mxu0
  %v350 = vadd.f32 0.0, %v349
  %v351 = vpop.f32.mrb[0].mxu0
  %v352 = vadd.f32 0.0, %v351
  %v353 = vpop.f32.mrb[0].mxu0
  %v354 = vadd.f32 0.0, %v353
  %v355 = vpop.f32.mrb[0].mxu0
  %v356 = vadd.f32 0.0, %v355
  %357 = vdwg.mxu0
  %v366 = vunpack.c.l.b16 %v170
  %v367 = vunpack.c.h.b16 %v170
  %v368 = vunpack.c.l.b16 %v171
  %v369 = vunpack.c.h.b16 %v171
  %v370 = vunpack.c.l.b16 %v172
  %v371 = vunpack.c.h.b16 %v172
  %v372 = vunpack.c.l.b16 %v173
  %v373 = vunpack.c.h.b16 %v173
  %v374 = vunpack.c.l.b16 %v174
  %v375 = vunpack.c.h.b16 %v174
  %v376 = vunpack.c.l.b16 %v175
  %v377 = vunpack.c.h.b16 %v175
  %v378 = vunpack.c.l.b16 %v176
  %v379 = vunpack.c.h.b16 %v176
  %v380 = vunpack.c.l.b16 %v177
  %v381 = vunpack.c.h.b16 %v177
  %v382 = vpack.c.b16 %v368, %v366
  %v383 = vpack.c.b16 %v369, %v367
  %v384 = vpack.c.b16 %v372, %v370
  %v385 = vpack.c.b16 %v373, %v371
  %v386 = vpack.c.b16 %v376, %v374
  %v387 = vpack.c.b16 %v377, %v375
  %v388 = vpack.c.b16 %v380, %v378
  %v389 = vpack.c.b16 %v381, %v379
  %v399 = vsel %vm112, %v168, 0
  %v402 = vsel %vm112, %v169, 0
  %404 = vmatprep.subr.bf16.mxu0 %v383
  %405 = vmatpush1.bf16.msra.mxu0 %v382
  %406 = vmatprep.subr.bf16.mxu0 %v385
  %407 = vmatpush1.bf16.msra.mxu0 %v384
  %408 = vmatprep.subr.bf16.mxu0 %v387
  %409 = vmatpush1.bf16.msra.mxu0 %v386
  %410 = vmatprep.subr.bf16.mxu0 %v389
  %411 = vmatpush1.bf16.msra.mxu0 %v388
  %412 = vmatprep.subr.bf16.mxu0 0
  %413 = vmatpush1.bf16.msra.mxu0 0
  %414 = vmatprep.subr.bf16.mxu0 0
  %415 = vmatpush1.bf16.msra.mxu0 0
  %416 = vmatprep.subr.bf16.mxu0 0
  %417 = vmatpush1.bf16.msra.mxu0 0
  %418 = vmatprep.subr.bf16.mxu0 0
  %419 = vmatpush1.bf16.msra.mxu0 0
  %420 = vmatprep.subr.bf16.mxu0 0
  %421 = vmatpush1.bf16.msra.mxu0 0
  %422 = vmatprep.subr.bf16.mxu0 0
  %423 = vmatpush1.bf16.msra.mxu0 0
  %424 = vmatprep.subr.bf16.mxu0 0
  %425 = vmatpush1.bf16.msra.mxu0 0
  %426 = vmatprep.subr.bf16.mxu0 0
  %427 = vmatpush1.bf16.msra.mxu0 0
  %428 = vmatprep.subr.bf16.mxu0 0
  %429 = vmatpush1.bf16.msra.mxu0 0
  %430 = vmatprep.subr.bf16.mxu0 0
  %431 = vmatpush1.bf16.msra.mxu0 0
  %432 = vmatprep.subr.bf16.mxu0 0
  %433 = vmatpush1.bf16.msra.mxu0 0
  %434 = vmatprep.subr.bf16.mxu0 0
  %435 = vmatpush1.bf16.msra.mxu0 0
  %436 = vmatprep.mubr.bf16.mxu0 0
  %437 = vmatmul.mubr.bf16.gmra.mrb[0].mxu0 %v399
  %v438 = vpop.f32.mrb[0].mxu0
  %v439 = vadd.f32 %v340, %v438
  %v440 = vpop.f32.mrb[0].mxu0
  %v441 = vadd.f32 %v342, %v440
  %v442 = vpop.f32.mrb[0].mxu0
  %v443 = vadd.f32 %v344, %v442
  %v444 = vpop.f32.mrb[0].mxu0
  %v445 = vadd.f32 %v346, %v444
  %446 = vmatprep.mubr.bf16.mxu0 0
  %447 = vmatmul.mubr.bf16.gmra.mrb[0].mxu0 %v402
  %v448 = vpop.f32.mrb[0].mxu0
  %v449 = vadd.f32 %v350, %v448
  %v450 = vpop.f32.mrb[0].mxu0
  %v451 = vadd.f32 %v352, %v450
  %v452 = vpop.f32.mrb[0].mxu0
  %v453 = vadd.f32 %v354, %v452
  %v454 = vpop.f32.mrb[0].mxu0
  %v455 = vadd.f32 %v356, %v454
  %456 = vdwg.mxu0
  %s457 = scalar_lea.vmem %s1, 32
  %v458 = vld [vmem:[%s457] sm:$0xf]
  %v459 = vld [vmem:[%s457 + $0x4] sm:$0xf]
  %v460 = vld [vmem:[%s457 + $0x8] sm:$0xf]
  %v461 = vld [vmem:[%s457 + $0xc] sm:$0xf]
  %v466 = vunpack.c.l.b16 %v458
  %v467 = vunpack.c.l.b16 %v459
  %v468 = vunpack.c.l.b16 %v460
  %v469 = vunpack.c.l.b16 %v461
  %v470 = vpack.c.b16 %v467, %v466
  %v471 = vpack.c.b16 %v469, %v468
  %v473 = vsel %vm112, %v470, 0
  %v476 = vsel %vm112, %v471, 0
  %478 = vmatprep.subr.bf16.mxu0 0
  %479 = vmatpush1.bf16.msra.mxu0 %v104
  %480 = vmatprep.subr.bf16.mxu0 0
  %481 = vmatpush1.bf16.msra.mxu0 %v105
  %482 = vmatprep.subr.bf16.mxu0 0
  %483 = vmatpush1.bf16.msra.mxu0 %v106
  %484 = vmatprep.subr.bf16.mxu0 0
  %485 = vmatpush1.bf16.msra.mxu0 %v107
  %486 = vmatprep.subr.bf16.mxu0 0
  %487 = vmatpush1.bf16.msra.mxu0 0
  %488 = vmatprep.subr.bf16.mxu0 0
  %489 = vmatpush1.bf16.msra.mxu0 0
  %490 = vmatprep.subr.bf16.mxu0 0
  %491 = vmatpush1.bf16.msra.mxu0 0
  %492 = vmatprep.subr.bf16.mxu0 0
  %493 = vmatpush1.bf16.msra.mxu0 0
  %494 = vmatprep.subr.bf16.mxu0 0
  %495 = vmatpush1.bf16.msra.mxu0 0
  %496 = vmatprep.subr.bf16.mxu0 0
  %497 = vmatpush1.bf16.msra.mxu0 0
  %498 = vmatprep.subr.bf16.mxu0 0
  %499 = vmatpush1.bf16.msra.mxu0 0
  %500 = vmatprep.subr.bf16.mxu0 0
  %501 = vmatpush1.bf16.msra.mxu0 0
  %502 = vmatprep.subr.bf16.mxu0 0
  %503 = vmatpush1.bf16.msra.mxu0 0
  %504 = vmatprep.subr.bf16.mxu0 0
  %505 = vmatpush1.bf16.msra.mxu0 0
  %506 = vmatprep.subr.bf16.mxu0 0
  %507 = vmatpush1.bf16.msra.mxu0 0
  %508 = vmatprep.subr.bf16.mxu0 0
  %509 = vmatpush1.bf16.msra.mxu0 0
  %510 = vmatprep.mubr.bf16.mxu0 0
  %511 = vmatmul.mubr.bf16.gmra.mrb[0].mxu0 %v473
  %v512 = vpop.f32.mrb[0].mxu0
  %v513 = vadd.f32 0.0, %v512
  %v514 = vpop.f32.mrb[0].mxu0
  %v515 = vpop.f32.mrb[0].mxu0
  %v516 = vadd.f32 0.0, %v515
  %v517 = vpop.f32.mrb[0].mxu0
  %518 = vmatprep.mubr.bf16.mxu0 0
  %519 = vmatmul.mubr.bf16.gmra.mrb[0].mxu0 %v476
  %v520 = vpop.f32.mrb[0].mxu0
  %v521 = vadd.f32 0.0, %v520
  %v522 = vpop.f32.mrb[0].mxu0
  %v523 = vpop.f32.mrb[0].mxu0
  %v524 = vadd.f32 0.0, %v523
  %v525 = vpop.f32.mrb[0].mxu0
  %526 = vdwg.mxu0
  %v527 = vpack.c.bf16 %v516, %v513
  %v528 = vpack.c.bf16 %v524, %v521
  %s529 = scalar_lea.vmem %s6, 128
  %v530 = vld [vmem:[%s529] sm:$0xff]
  %v531 = vld [vmem:[%s529 + $0x8] sm:$0xff]
  %v532 = vld [vmem:[%s529 + $0x10] sm:$0xff]
  %v533 = vld [vmem:[%s529 + $0x18] sm:$0xff]
  %v534 = vld [vmem:[%s529 + $0x20] sm:$0xff]
  %v535 = vld [vmem:[%s529 + $0x28] sm:$0xff]
  %v536 = vld [vmem:[%s529 + $0x30] sm:$0xff]
  %v537 = vld [vmem:[%s529 + $0x38] sm:$0xff]
  %v546 = vunpack.c.l.b16 %v530
  %v547 = vunpack.c.h.b16 %v530
  %v548 = vunpack.c.l.b16 %v531
  %v549 = vunpack.c.h.b16 %v531
  %v550 = vunpack.c.l.b16 %v532
  %v551 = vunpack.c.h.b16 %v532
  %v552 = vunpack.c.l.b16 %v533
  %v553 = vunpack.c.h.b16 %v533
  %v554 = vunpack.c.l.b16 %v534
  %v555 = vunpack.c.h.b16 %v534
  %v556 = vunpack.c.l.b16 %v535
  %v557 = vunpack.c.h.b16 %v535
  %v558 = vunpack.c.l.b16 %v536
  %v559 = vunpack.c.h.b16 %v536
  %v560 = vunpack.c.l.b16 %v537
  %v561 = vunpack.c.h.b16 %v537
  %v562 = vpack.c.b16 %v548, %v546
  %v563 = vpack.c.b16 %v549, %v547
  %v564 = vpack.c.b16 %v552, %v550
  %v565 = vpack.c.b16 %v553, %v551
  %v566 = vpack.c.b16 %v556, %v554
  %v567 = vpack.c.b16 %v557, %v555
  %v568 = vpack.c.b16 %v560, %v558
  %v569 = vpack.c.b16 %v561, %v559
  %v579 = vsel %vm112, %v527, 0
  %v582 = vsel %vm112, %v528, 0
  %584 = vmatprep.subr.bf16.mxu0 %v563
  %585 = vmatpush1.bf16.msra.mxu0 %v562
  %586 = vmatprep.subr.bf16.mxu0 %v565
  %587 = vmatpush1.bf16.msra.mxu0 %v564
  %588 = vmatprep.subr.bf16.mxu0 %v567
  %589 = vmatpush1.bf16.msra.mxu0 %v566
  %590 = vmatprep.subr.bf16.mxu0 %v569
  %591 = vmatpush1.bf16.msra.mxu0 %v568
  %592 = vmatprep.subr.bf16.mxu0 0
  %593 = vmatpush1.bf16.msra.mxu0 0
  %594 = vmatprep.subr.bf16.mxu0 0
  %595 = vmatpush1.bf16.msra.mxu0 0
  %596 = vmatprep.subr.bf16.mxu0 0
  %597 = vmatpush1.bf16.msra.mxu0 0
  %598 = vmatprep.subr.bf16.mxu0 0
  %599 = vmatpush1.bf16.msra.mxu0 0
  %600 = vmatprep.subr.bf16.mxu0 0
  %601 = vmatpush1.bf16.msra.mxu0 0
  %602 = vmatprep.subr.bf16.mxu0 0
  %603 = vmatpush1.bf16.msra.mxu0 0
  %604 = vmatprep.subr.bf16.mxu0 0
  %605 = vmatpush1.bf16.msra.mxu0 0
  %606 = vmatprep.subr.bf16.mxu0 0
  %607 = vmatpush1.bf16.msra.mxu0 0
  %608 = vmatprep.subr.bf16.mxu0 0
  %609 = vmatpush1.bf16.msra.mxu0 0
  %610 = vmatprep.subr.bf16.mxu0 0
  %611 = vmatpush1.bf16.msra.mxu0 0
  %612 = vmatprep.subr.bf16.mxu0 0
  %613 = vmatpush1.bf16.msra.mxu0 0
  %614 = vmatprep.subr.bf16.mxu0 0
  %615 = vmatpush1.bf16.msra.mxu0 0
  %616 = vmatprep.mubr.bf16.mxu0 0
  %617 = vmatmul.mubr.bf16.gmra.mrb[0].mxu0 %v579
  %v618 = vpop.f32.mrb[0].mxu0
  %v619 = vadd.f32 0.0, %v618
  %v620 = vpop.f32.mrb[0].mxu0
  %v621 = vadd.f32 0.0, %v620
  %v622 = vpop.f32.mrb[0].mxu0
  %v623 = vadd.f32 0.0, %v622
  %v624 = vpop.f32.mrb[0].mxu0
  %v625 = vadd.f32 0.0, %v624
  %626 = vmatprep.mubr.bf16.mxu0 0
  %627 = vmatmul.mubr.bf16.gmra.mrb[0].mxu0 %v582
  %v628 = vpop.f32.mrb[0].mxu0
  %v629 = vadd.f32 0.0, %v628
  %v630 = vpop.f32.mrb[0].mxu0
  %v631 = vadd.f32 0.0, %v630
  %v632 = vpop.f32.mrb[0].mxu0
  %v633 = vadd.f32 0.0, %v632
  %v634 = vpop.f32.mrb[0].mxu0
  %v635 = vadd.f32 0.0, %v634
  %636 = vdwg.mxu0
  %v637 = vadd.f32 %v439, %v619
  %v638 = vadd.f32 %v441, %v621
  %v639 = vadd.f32 %v443, %v623
  %v640 = vadd.f32 %v445, %v625
  %v641 = vadd.f32 %v449, %v629
  %v642 = vadd.f32 %v451, %v631
  %v643 = vadd.f32 %v453, %v633
  %v644 = vadd.f32 %v455, %v635
  %s645 = scalar_lea.vmem %s1, 48
  %v646 = vld [vmem:[%s645] sm:$0xf]
  %v647 = vld [vmem:[%s645 + $0x4] sm:$0xf]
  %v648 = vld [vmem:[%s645 + $0x8] sm:$0xf]
  %v649 = vld [vmem:[%s645 + $0xc] sm:$0xf]
  %v654 = vunpack.c.l.b16 %v646
  %v655 = vunpack.c.l.b16 %v647
  %v656 = vunpack.c.l.b16 %v648
  %v657 = vunpack.c.l.b16 %v649
  %v658 = vpack.c.b16 %v655, %v654
  %v659 = vpack.c.b16 %v657, %v656
  %v661 = vsel %vm112, %v658, 0
  %v664 = vsel %vm112, %v659, 0
  %666 = vmatprep.subr.bf16.mxu0 0
  %667 = vmatpush1.bf16.msra.mxu0 %v104
  %668 = vmatprep.subr.bf16.mxu0 0
  %669 = vmatpush1.bf16.msra.mxu0 %v105
  %670 = vmatprep.subr.bf16.mxu0 0
  %671 = vmatpush1.bf16.msra.mxu0 %v106
  %672 = vmatprep.subr.bf16.mxu0 0
  %673 = vmatpush1.bf16.msra.mxu0 %v107
  %674 = vmatprep.subr.bf16.mxu0 0
  %675 = vmatpush1.bf16.msra.mxu0 0
  %676 = vmatprep.subr.bf16.mxu0 0
  %677 = vmatpush1.bf16.msra.mxu0 0
  %678 = vmatprep.subr.bf16.mxu0 0
  %679 = vmatpush1.bf16.msra.mxu0 0
  %680 = vmatprep.subr.bf16.mxu0 0
  %681 = vmatpush1.bf16.msra.mxu0 0
  %682 = vmatprep.subr.bf16.mxu0 0
  %683 = vmatpush1.bf16.msra.mxu0 0
  %684 = vmatprep.subr.bf16.mxu0 0
  %685 = vmatpush1.bf16.msra.mxu0 0
  %686 = vmatprep.subr.bf16.mxu0 0
  %687 = vmatpush1.bf16.msra.mxu0 0
  %688 = vmatprep.subr.bf16.mxu0 0
  %689 = vmatpush1.bf16.msra.mxu0 0
  %690 = vmatprep.subr.bf16.mxu0 0
  %691 = vmatpush1.bf16.msra.mxu0 0
  %692 = vmatprep.subr.bf16.mxu0 0
  %693 = vmatpush1.bf16.msra.mxu0 0
  %694 = vmatprep.subr.bf16.mxu0 0
  %695 = vmatpush1.bf16.msra.mxu0 0
  %696 = vmatprep.subr.bf16.mxu0 0
  %697 = vmatpush1.bf16.msra.mxu0 0
  %698 = vmatprep.mubr.bf16.mxu0 0
  %699 = vmatmul.mubr.bf16.gmra.mrb[0].mxu0 %v661
  %v700 = vpop.f32.mrb[0].mxu0
  %v701 = vadd.f32 0.0, %v700
  %v702 = vpop.f32.mrb[0].mxu0
  %v703 = vpop.f32.mrb[0].mxu0
  %v704 = vadd.f32 0.0, %v703
  %v705 = vpop.f32.mrb[0].mxu0
  %706 = vmatprep.mubr.bf16.mxu0 0
  %707 = vmatmul.mubr.bf16.gmra.mrb[0].mxu0 %v664
  %v708 = vpop.f32.mrb[0].mxu0
  %v709 = vadd.f32 0.0, %v708
  %v710 = vpop.f32.mrb[0].mxu0
  %v711 = vpop.f32.mrb[0].mxu0
  %v712 = vadd.f32 0.0, %v711
  %v713 = vpop.f32.mrb[0].mxu0
  %714 = vdwg.mxu0
  %v715 = vpack.c.bf16 %v704, %v701
  %v716 = vpack.c.bf16 %v712, %v709
  %s717 = scalar_lea.vmem %s6, 192
  %v718 = vld [vmem:[%s717] sm:$0xff]
  %v719 = vld [vmem:[%s717 + $0x8] sm:$0xff]
  %v720 = vld [vmem:[%s717 + $0x10] sm:$0xff]
  %v721 = vld [vmem:[%s717 + $0x18] sm:$0xff]
  %v722 = vld [vmem:[%s717 + $0x20] sm:$0xff]
  %v723 = vld [vmem:[%s717 + $0x28] sm:$0xff]
  %v724 = vld [vmem:[%s717 + $0x30] sm:$0xff]
  %v725 = vld [vmem:[%s717 + $0x38] sm:$0xff]
  %v734 = vunpack.c.l.b16 %v718
  %v735 = vunpack.c.h.b16 %v718
  %v736 = vunpack.c.l.b16 %v719
  %v737 = vunpack.c.h.b16 %v719
  %v738 = vunpack.c.l.b16 %v720
  %v739 = vunpack.c.h.b16 %v720
  %v740 = vunpack.c.l.b16 %v721
  %v741 = vunpack.c.h.b16 %v721
  %v742 = vunpack.c.l.b16 %v722
  %v743 = vunpack.c.h.b16 %v722
  %v744 = vunpack.c.l.b16 %v723
  %v745 = vunpack.c.h.b16 %v723
  %v746 = vunpack.c.l.b16 %v724
  %v747 = vunpack.c.h.b16 %v724
  %v748 = vunpack.c.l.b16 %v725
  %v749 = vunpack.c.h.b16 %v725
  %v750 = vpack.c.b16 %v736, %v734
  %v751 = vpack.c.b16 %v737, %v735
  %v752 = vpack.c.b16 %v740, %v738
  %v753 = vpack.c.b16 %v741, %v739
  %v754 = vpack.c.b16 %v744, %v742
  %v755 = vpack.c.b16 %v745, %v743
  %v756 = vpack.c.b16 %v748, %v746
  %v757 = vpack.c.b16 %v749, %v747
  %v767 = vsel %vm112, %v715, 0
  %v770 = vsel %vm112, %v716, 0
  %772 = vmatprep.subr.bf16.mxu0 %v751
  %773 = vmatpush1.bf16.msra.mxu0 %v750
  %774 = vmatprep.subr.bf16.mxu0 %v753
  %775 = vmatpush1.bf16.msra.mxu0 %v752
  %776 = vmatprep.subr.bf16.mxu0 %v755
  %777 = vmatpush1.bf16.msra.mxu0 %v754
  %778 = vmatprep.subr.bf16.mxu0 %v757
  %779 = vmatpush1.bf16.msra.mxu0 %v756
  %780 = vmatprep.subr.bf16.mxu0 0
  %781 = vmatpush1.bf16.msra.mxu0 0
  %782 = vmatprep.subr.bf16.mxu0 0
  %783 = vmatpush1.bf16.msra.mxu0 0
  %784 = vmatprep.subr.bf16.mxu0 0
  %785 = vmatpush1.bf16.msra.mxu0 0
  %786 = vmatprep.subr.bf16.mxu0 0
  %787 = vmatpush1.bf16.msra.mxu0 0
  %788 = vmatprep.subr.bf16.mxu0 0
  %789 = vmatpush1.bf16.msra.mxu0 0
  %790 = vmatprep.subr.bf16.mxu0 0
  %791 = vmatpush1.bf16.msra.mxu0 0
  %792 = vmatprep.subr.bf16.mxu0 0
  %793 = vmatpush1.bf16.msra.mxu0 0
  %794 = vmatprep.subr.bf16.mxu0 0
  %795 = vmatpush1.bf16.msra.mxu0 0
  %796 = vmatprep.subr.bf16.mxu0 0
  %797 = vmatpush1.bf16.msra.mxu0 0
  %798 = vmatprep.subr.bf16.mxu0 0
  %799 = vmatpush1.bf16.msra.mxu0 0
  %800 = vmatprep.subr.bf16.mxu0 0
  %801 = vmatpush1.bf16.msra.mxu0 0
  %802 = vmatprep.subr.bf16.mxu0 0
  %803 = vmatpush1.bf16.msra.mxu0 0
  %804 = vmatprep.mubr.bf16.mxu0 0
  %805 = vmatmul.mubr.bf16.gmra.mrb[0].mxu0 %v767
  %v806 = vpop.f32.mrb[0].mxu0
  %v807 = vadd.f32 0.0, %v806
  %v808 = vpop.f32.mrb[0].mxu0
  %v809 = vadd.f32 0.0, %v808
  %v810 = vpop.f32.mrb[0].mxu0
  %v811 = vadd.f32 0.0, %v810
  %v812 = vpop.f32.mrb[0].mxu0
  %v813 = vadd.f32 0.0, %v812
  %814 = vmatprep.mubr.bf16.mxu0 0
  %815 = vmatmul.mubr.bf16.gmra.mrb[0].mxu0 %v770
  %v816 = vpop.f32.mrb[0].mxu0
  %v817 = vadd.f32 0.0, %v816
  %v818 = vpop.f32.mrb[0].mxu0
  %v819 = vadd.f32 0.0, %v818
  %v820 = vpop.f32.mrb[0].mxu0
  %v821 = vadd.f32 0.0, %v820
  %v822 = vpop.f32.mrb[0].mxu0
  %v823 = vadd.f32 0.0, %v822
  %824 = vdwg.mxu0
  %v825 = vadd.f32 %v637, %v807
  %v826 = vadd.f32 %v638, %v809
  %v827 = vadd.f32 %v639, %v811
  %v828 = vadd.f32 %v640, %v813
  %v829 = vadd.f32 %v641, %v817
  %v830 = vadd.f32 %v642, %v819
  %v831 = vadd.f32 %v643, %v821
  %v832 = vadd.f32 %v644, %v823
  %v841 = vunpack.c.l.b16 %v66
  %v842 = vunpack.c.l.b16 %v67
  %v843 = vunpack.c.l.b16 %v68
  %v844 = vunpack.c.l.b16 %v69
  %v845 = vunpack.c.l.b16 %v70
  %v846 = vunpack.c.l.b16 %v71
  %v847 = vunpack.c.l.b16 %v72
  %v848 = vunpack.c.l.b16 %v73
  %v849 = vpack.c.b16 %v842, %v841
  %v850 = vpack.c.b16 %v844, %v843
  %v851 = vpack.c.b16 %v846, %v845
  %v852 = vpack.c.b16 %v848, %v847
  %857 = vmatprep.subr.bf16.mxu0 0
  %858 = vmatpush1.bf16.msra.mxu0 %v849
  %859 = vmatprep.subr.bf16.mxu0 0
  %860 = vmatpush1.bf16.msra.mxu0 %v850
  %861 = vmatprep.subr.bf16.mxu0 0
  %862 = vmatpush1.bf16.msra.mxu0 %v851
  %863 = vmatprep.subr.bf16.mxu0 0
  %864 = vmatpush1.bf16.msra.mxu0 %v852
  %865 = vmatprep.subr.bf16.mxu0 0
  %866 = vmatpush1.bf16.msra.mxu0 0
  %867 = vmatprep.subr.bf16.mxu0 0
  %868 = vmatpush1.bf16.msra.mxu0 0
  %869 = vmatprep.subr.bf16.mxu0 0
  %870 = vmatpush1.bf16.msra.mxu0 0
  %871 = vmatprep.subr.bf16.mxu0 0
  %872 = vmatpush1.bf16.msra.mxu0 0
  %873 = vmatprep.subr.bf16.mxu0 0
  %874 = vmatpush1.bf16.msra.mxu0 0
  %875 = vmatprep.subr.bf16.mxu0 0
  %876 = vmatpush1.bf16.msra.mxu0 0
  %877 = vmatprep.subr.bf16.mxu0 0
  %878 = vmatpush1.bf16.msra.mxu0 0
  %879 = vmatprep.subr.bf16.mxu0 0
  %880 = vmatpush1.bf16.msra.mxu0 0
  %881 = vmatprep.subr.bf16.mxu0 0
  %882 = vmatpush1.bf16.msra.mxu0 0
  %883 = vmatprep.subr.bf16.mxu0 0
  %884 = vmatpush1.bf16.msra.mxu0 0
  %885 = vmatprep.subr.bf16.mxu0 0
  %886 = vmatpush1.bf16.msra.mxu0 0
  %887 = vmatprep.subr.bf16.mxu0 0
  %888 = vmatpush1.bf16.msra.mxu0 0
  %889 = vmatprep.mubr.bf16.mxu0 0
  %890 = vmatmul.mubr.bf16.gmra.mrb[0].mxu0 %v114
  %v891 = vpop.f32.mrb[0].mxu0
  %v892 = vadd.f32 0.0, %v891
  %v893 = vpop.f32.mrb[0].mxu0
  %v894 = vpop.f32.mrb[0].mxu0
  %v895 = vadd.f32 0.0, %v894
  %v896 = vpop.f32.mrb[0].mxu0
  %897 = vmatprep.mubr.bf16.mxu0 0
  %898 = vmatmul.mubr.bf16.gmra.mrb[0].mxu0 %v117
  %v899 = vpop.f32.mrb[0].mxu0
  %v900 = vadd.f32 0.0, %v899
  %v901 = vpop.f32.mrb[0].mxu0
  %v902 = vpop.f32.mrb[0].mxu0
  %v903 = vadd.f32 0.0, %v902
  %v904 = vpop.f32.mrb[0].mxu0
  %905 = vdwg.mxu0
  %v906 = vpack.c.bf16 %v895, %v892
  %v907 = vpack.c.bf16 %v903, %v900
  %908 = vmatprep.subr.bf16.mxu0 0
  %909 = vmatpush1.bf16.msra.mxu0 %v849
  %910 = vmatprep.subr.bf16.mxu0 0
  %911 = vmatpush1.bf16.msra.mxu0 %v850
  %912 = vmatprep.subr.bf16.mxu0 0
  %913 = vmatpush1.bf16.msra.mxu0 %v851
  %914 = vmatprep.subr.bf16.mxu0 0
  %915 = vmatpush1.bf16.msra.mxu0 %v852
  %916 = vmatprep.subr.bf16.mxu0 0
  %917 = vmatpush1.bf16.msra.mxu0 0
  %918 = vmatprep.subr.bf16.mxu0 0
  %919 = vmatpush1.bf16.msra.mxu0 0
  %920 = vmatprep.subr.bf16.mxu0 0
  %921 = vmatpush1.bf16.msra.mxu0 0
  %922 = vmatprep.subr.bf16.mxu0 0
  %923 = vmatpush1.bf16.msra.mxu0 0
  %924 = vmatprep.subr.bf16.mxu0 0
  %925 = vmatpush1.bf16.msra.mxu0 0
  %926 = vmatprep.subr.bf16.mxu0 0
  %927 = vmatpush1.bf16.msra.mxu0 0
  %928 = vmatprep.subr.bf16.mxu0 0
  %929 = vmatpush1.bf16.msra.mxu0 0
  %930 = vmatprep.subr.bf16.mxu0 0
  %931 = vmatpush1.bf16.msra.mxu0 0
  %932 = vmatprep.subr.bf16.mxu0 0
  %933 = vmatpush1.bf16.msra.mxu0 0
  %934 = vmatprep.subr.bf16.mxu0 0
  %935 = vmatpush1.bf16.msra.mxu0 0
  %936 = vmatprep.subr.bf16.mxu0 0
  %937 = vmatpush1.bf16.msra.mxu0 0
  %938 = vmatprep.subr.bf16.mxu0 0
  %939 = vmatpush1.bf16.msra.mxu0 0
  %940 = vmatprep.mubr.bf16.mxu0 0
  %941 = vmatmul.mubr.bf16.gmra.mrb[0].mxu0 %v194
  %v942 = vpop.f32.mrb[0].mxu0
  %v943 = vadd.f32 0.0, %v942
  %v944 = vpop.f32.mrb[0].mxu0
  %v945 = vpop.f32.mrb[0].mxu0
  %v946 = vadd.f32 0.0, %v945
  %v947 = vpop.f32.mrb[0].mxu0
  %948 = vmatprep.mubr.bf16.mxu0 0
  %949 = vmatmul.mubr.bf16.gmra.mrb[0].mxu0 %v197
  %v950 = vpop.f32.mrb[0].mxu0
  %v951 = vadd.f32 0.0, %v950
  %v952 = vpop.f32.mrb[0].mxu0
  %v953 = vpop.f32.mrb[0].mxu0
  %v954 = vadd.f32 0.0, %v953
  %v955 = vpop.f32.mrb[0].mxu0
  %956 = vdwg.mxu0
  %v957 = vpack.c.bf16 %v946, %v943
  %v958 = vpack.c.bf16 %v954, %v951
  %v960 = vsel %vm112, %v957, 0
  %v963 = vsel %vm112, %v958, 0
  %965 = vmatprep.subr.bf16.mxu0 %v284
  %966 = vmatpush1.bf16.msra.mxu0 %v283
  %967 = vmatprep.subr.bf16.mxu0 %v286
  %968 = vmatpush1.bf16.msra.mxu0 %v285
  %969 = vmatprep.subr.bf16.mxu0 %v288
  %970 = vmatpush1.bf16.msra.mxu0 %v287
  %971 = vmatprep.subr.bf16.mxu0 %v290
  %972 = vmatpush1.bf16.msra.mxu0 %v289
  %973 = vmatprep.subr.bf16.mxu0 0
  %974 = vmatpush1.bf16.msra.mxu0 0
  %975 = vmatprep.subr.bf16.mxu0 0
  %976 = vmatpush1.bf16.msra.mxu0 0
  %977 = vmatprep.subr.bf16.mxu0 0
  %978 = vmatpush1.bf16.msra.mxu0 0
  %979 = vmatprep.subr.bf16.mxu0 0
  %980 = vmatpush1.bf16.msra.mxu0 0
  %981 = vmatprep.subr.bf16.mxu0 0
  %982 = vmatpush1.bf16.msra.mxu0 0
  %983 = vmatprep.subr.bf16.mxu0 0
  %984 = vmatpush1.bf16.msra.mxu0 0
  %985 = vmatprep.subr.bf16.mxu0 0
  %986 = vmatpush1.bf16.msra.mxu0 0
  %987 = vmatprep.subr.bf16.mxu0 0
  %988 = vmatpush1.bf16.msra.mxu0 0
  %989 = vmatprep.subr.bf16.mxu0 0
  %990 = vmatpush1.bf16.msra.mxu0 0
  %991 = vmatprep.subr.bf16.mxu0 0
  %992 = vmatpush1.bf16.msra.mxu0 0
  %993 = vmatprep.subr.bf16.mxu0 0
  %994 = vmatpush1.bf16.msra.mxu0 0
  %995 = vmatprep.subr.bf16.mxu0 0
  %996 = vmatpush1.bf16.msra.mxu0 0
  %997 = vmatprep.mubr.bf16.mxu0 0
  %998 = vmatmul.mubr.bf16.gmra.mrb[0].mxu0 %v960
  %v999 = vpop.f32.mrb[0].mxu0
  %v1000 = vadd.f32 0.0, %v999
  %v1001 = vpop.f32.mrb[0].mxu0
  %v1002 = vadd.f32 0.0, %v1001
  %v1003 = vpop.f32.mrb[0].mxu0
  %v1004 = vadd.f32 0.0, %v1003
  %v1005 = vpop.f32.mrb[0].mxu0
  %v1006 = vadd.f32 0.0, %v1005
  %1007 = vmatprep.mubr.bf16.mxu0 0
  %1008 = vmatmul.mubr.bf16.gmra.mrb[0].mxu0 %v963
  %v1009 = vpop.f32.mrb[0].mxu0
  %v1010 = vadd.f32 0.0, %v1009
  %v1011 = vpop.f32.mrb[0].mxu0
  %v1012 = vadd.f32 0.0, %v1011
  %v1013 = vpop.f32.mrb[0].mxu0
  %v1014 = vadd.f32 0.0, %v1013
  %v1015 = vpop.f32.mrb[0].mxu0
  %v1016 = vadd.f32 0.0, %v1015
  %1017 = vdwg.mxu0
  %v1019 = vsel %vm112, %v906, 0
  %v1022 = vsel %vm112, %v907, 0
  %1024 = vmatprep.subr.bf16.mxu0 %v383
  %1025 = vmatpush1.bf16.msra.mxu0 %v382
  %1026 = vmatprep.subr.bf16.mxu0 %v385
  %1027 = vmatpush1.bf16.msra.mxu0 %v384
  %1028 = vmatprep.subr.bf16.mxu0 %v387
  %1029 = vmatpush1.bf16.msra.mxu0 %v386
  %1030 = vmatprep.subr.bf16.mxu0 %v389
  %1031 = vmatpush1.bf16.msra.mxu0 %v388
  %1032 = vmatprep.subr.bf16.mxu0 0
  %1033 = vmatpush1.bf16.msra.mxu0 0
  %1034 = vmatprep.subr.bf16.mxu0 0
  %1035 = vmatpush1.bf16.msra.mxu0 0
  %1036 = vmatprep.subr.bf16.mxu0 0
  %1037 = vmatpush1.bf16.msra.mxu0 0
  %1038 = vmatprep.subr.bf16.mxu0 0
  %1039 = vmatpush1.bf16.msra.mxu0 0
  %1040 = vmatprep.subr.bf16.mxu0 0
  %1041 = vmatpush1.bf16.msra.mxu0 0
  %1042 = vmatprep.subr.bf16.mxu0 0
  %1043 = vmatpush1.bf16.msra.mxu0 0
  %1044 = vmatprep.subr.bf16.mxu0 0
  %1045 = vmatpush1.bf16.msra.mxu0 0
  %1046 = vmatprep.subr.bf16.mxu0 0
  %1047 = vmatpush1.bf16.msra.mxu0 0
  %1048 = vmatprep.subr.bf16.mxu0 0
  %1049 = vmatpush1.bf16.msra.mxu0 0
  %1050 = vmatprep.subr.bf16.mxu0 0
  %1051 = vmatpush1.bf16.msra.mxu0 0
  %1052 = vmatprep.subr.bf16.mxu0 0
  %1053 = vmatpush1.bf16.msra.mxu0 0
  %1054 = vmatprep.subr.bf16.mxu0 0
  %1055 = vmatpush1.bf16.msra.mxu0 0
  %1056 = vmatprep.mubr.bf16.mxu0 0
  %1057 = vmatmul.mubr.bf16.gmra.mrb[0].mxu0 %v1019
  %v1058 = vpop.f32.mrb[0].mxu0
  %v1059 = vadd.f32 %v1000, %v1058
  %v1060 = vpop.f32.mrb[0].mxu0
  %v1061 = vadd.f32 %v1002, %v1060
  %v1062 = vpop.f32.mrb[0].mxu0
  %v1063 = vadd.f32 %v1004, %v1062
  %v1064 = vpop.f32.mrb[0].mxu0
  %v1065 = vadd.f32 %v1006, %v1064
  %1066 = vmatprep.mubr.bf16.mxu0 0
  %1067 = vmatmul.mubr.bf16.gmra.mrb[0].mxu0 %v1022
  %v1068 = vpop.f32.mrb[0].mxu0
  %v1069 = vadd.f32 %v1010, %v1068
  %v1070 = vpop.f32.mrb[0].mxu0
  %v1071 = vadd.f32 %v1012, %v1070
  %v1072 = vpop.f32.mrb[0].mxu0
  %v1073 = vadd.f32 %v1014, %v1072
  %v1074 = vpop.f32.mrb[0].mxu0
  %v1075 = vadd.f32 %v1016, %v1074
  %1076 = vdwg.mxu0
  %1077 = vmatprep.subr.bf16.mxu0 0
  %1078 = vmatpush1.bf16.msra.mxu0 %v849
  %1079 = vmatprep.subr.bf16.mxu0 0
  %1080 = vmatpush1.bf16.msra.mxu0 %v850
  %1081 = vmatprep.subr.bf16.mxu0 0
  %1082 = vmatpush1.bf16.msra.mxu0 %v851
  %1083 = vmatprep.subr.bf16.mxu0 0
  %1084 = vmatpush1.bf16.msra.mxu0 %v852
  %1085 = vmatprep.subr.bf16.mxu0 0
  %1086 = vmatpush1.bf16.msra.mxu0 0
  %1087 = vmatprep.subr.bf16.mxu0 0
  %1088 = vmatpush1.bf16.msra.mxu0 0
  %1089 = vmatprep.subr.bf16.mxu0 0
  %1090 = vmatpush1.bf16.msra.mxu0 0
  %1091 = vmatprep.subr.bf16.mxu0 0
  %1092 = vmatpush1.bf16.msra.mxu0 0
  %1093 = vmatprep.subr.bf16.mxu0 0
  %1094 = vmatpush1.bf16.msra.mxu0 0
  %1095 = vmatprep.subr.bf16.mxu0 0
  %1096 = vmatpush1.bf16.msra.mxu0 0
  %1097 = vmatprep.subr.bf16.mxu0 0
  %1098 = vmatpush1.bf16.msra.mxu0 0
  %1099 = vmatprep.subr.bf16.mxu0 0
  %1100 = vmatpush1.bf16.msra.mxu0 0
  %1101 = vmatprep.subr.bf16.mxu0 0
  %1102 = vmatpush1.bf16.msra.mxu0 0
  %1103 = vmatprep.subr.bf16.mxu0 0
  %1104 = vmatpush1.bf16.msra.mxu0 0
  %1105 = vmatprep.subr.bf16.mxu0 0
  %1106 = vmatpush1.bf16.msra.mxu0 0
  %1107 = vmatprep.subr.bf16.mxu0 0
  %1108 = vmatpush1.bf16.msra.mxu0 0
  %1109 = vmatprep.mubr.bf16.mxu0 0
  %1110 = vmatmul.mubr.bf16.gmra.mrb[0].mxu0 %v473
  %v1111 = vpop.f32.mrb[0].mxu0
  %v1112 = vadd.f32 0.0, %v1111
  %v1113 = vpop.f32.mrb[0].mxu0
  %v1114 = vpop.f32.mrb[0].mxu0
  %v1115 = vadd.f32 0.0, %v1114
  %v1116 = vpop.f32.mrb[0].mxu0
  %1117 = vmatprep.mubr.bf16.mxu0 0
  %1118 = vmatmul.mubr.bf16.gmra.mrb[0].mxu0 %v476
  %v1119 = vpop.f32.mrb[0].mxu0
  %v1120 = vadd.f32 0.0, %v1119
  %v1121 = vpop.f32.mrb[0].mxu0
  %v1122 = vpop.f32.mrb[0].mxu0
  %v1123 = vadd.f32 0.0, %v1122
  %v1124 = vpop.f32.mrb[0].mxu0
  %1125 = vdwg.mxu0
  %v1126 = vpack.c.bf16 %v1115, %v1112
  %v1127 = vpack.c.bf16 %v1123, %v1120
  %v1129 = vsel %vm112, %v1126, 0
  %v1132 = vsel %vm112, %v1127, 0
  %1134 = vmatprep.subr.bf16.mxu0 %v563
  %1135 = vmatpush1.bf16.msra.mxu0 %v562
  %1136 = vmatprep.subr.bf16.mxu0 %v565
  %1137 = vmatpush1.bf16.msra.mxu0 %v564
  %1138 = vmatprep.subr.bf16.mxu0 %v567
  %1139 = vmatpush1.bf16.msra.mxu0 %v566
  %1140 = vmatprep.subr.bf16.mxu0 %v569
  %1141 = vmatpush1.bf16.msra.mxu0 %v568
  %1142 = vmatprep.subr.bf16.mxu0 0
  %1143 = vmatpush1.bf16.msra.mxu0 0
  %1144 = vmatprep.subr.bf16.mxu0 0
  %1145 = vmatpush1.bf16.msra.mxu0 0
  %1146 = vmatprep.subr.bf16.mxu0 0
  %1147 = vmatpush1.bf16.msra.mxu0 0
  %1148 = vmatprep.subr.bf16.mxu0 0
  %1149 = vmatpush1.bf16.msra.mxu0 0
  %1150 = vmatprep.subr.bf16.mxu0 0
  %1151 = vmatpush1.bf16.msra.mxu0 0
  %1152 = vmatprep.subr.bf16.mxu0 0
  %1153 = vmatpush1.bf16.msra.mxu0 0
  %1154 = vmatprep.subr.bf16.mxu0 0
  %1155 = vmatpush1.bf16.msra.mxu0 0
  %1156 = vmatprep.subr.bf16.mxu0 0
  %1157 = vmatpush1.bf16.msra.mxu0 0
  %1158 = vmatprep.subr.bf16.mxu0 0
  %1159 = vmatpush1.bf16.msra.mxu0 0
  %1160 = vmatprep.subr.bf16.mxu0 0
  %1161 = vmatpush1.bf16.msra.mxu0 0
  %1162 = vmatprep.subr.bf16.mxu0 0
  %1163 = vmatpush1.bf16.msra.mxu0 0
  %1164 = vmatprep.subr.bf16.mxu0 0
  %1165 = vmatpush1.bf16.msra.mxu0 0
  %1166 = vmatprep.mubr.bf16.mxu0 0
  %1167 = vmatmul.mubr.bf16.gmra.mrb[0].mxu0 %v1129
  %v1168 = vpop.f32.mrb[0].mxu0
  %v1169 = vadd.f32 0.0, %v1168
  %v1170 = vpop.f32.mrb[0].mxu0
  %v1171 = vadd.f32 0.0, %v1170
  %v1172 = vpop.f32.mrb[0].mxu0
  %v1173 = vadd.f32 0.0, %v1172
  %v1174 = vpop.f32.mrb[0].mxu0
  %v1175 = vadd.f32 0.0, %v1174
  %1176 = vmatprep.mubr.bf16.mxu0 0
  %1177 = vmatmul.mubr.bf16.gmra.mrb[0].mxu0 %v1132
  %v1178 = vpop.f32.mrb[0].mxu0
  %v1179 = vadd.f32 0.0, %v1178
  %v1180 = vpop.f32.mrb[0].mxu0
  %v1181 = vadd.f32 0.0, %v1180
  %v1182 = vpop.f32.mrb[0].mxu0
  %v1183 = vadd.f32 0.0, %v1182
  %v1184 = vpop.f32.mrb[0].mxu0
  %v1185 = vadd.f32 0.0, %v1184
  %1186 = vdwg.mxu0
  %v1187 = vadd.f32 %v1059, %v1169
  %v1188 = vadd.f32 %v1061, %v1171
  %v1189 = vadd.f32 %v1063, %v1173
  %v1190 = vadd.f32 %v1065, %v1175
  %v1191 = vadd.f32 %v1069, %v1179
  %v1192 = vadd.f32 %v1071, %v1181
  %v1193 = vadd.f32 %v1073, %v1183
  %v1194 = vadd.f32 %v1075, %v1185
  %1195 = vmatprep.subr.bf16.mxu0 0
  %1196 = vmatpush1.bf16.msra.mxu0 %v849
  %1197 = vmatprep.subr.bf16.mxu0 0
  %1198 = vmatpush1.bf16.msra.mxu0 %v850
  %1199 = vmatprep.subr.bf16.mxu0 0
  %1200 = vmatpush1.bf16.msra.mxu0 %v851
  %1201 = vmatprep.subr.bf16.mxu0 0
  %1202 = vmatpush1.bf16.msra.mxu0 %v852
  %1203 = vmatprep.subr.bf16.mxu0 0
  %1204 = vmatpush1.bf16.msra.mxu0 0
  %1205 = vmatprep.subr.bf16.mxu0 0
  %1206 = vmatpush1.bf16.msra.mxu0 0
  %1207 = vmatprep.subr.bf16.mxu0 0
  %1208 = vmatpush1.bf16.msra.mxu0 0
  %1209 = vmatprep.subr.bf16.mxu0 0
  %1210 = vmatpush1.bf16.msra.mxu0 0
  %1211 = vmatprep.subr.bf16.mxu0 0
  %1212 = vmatpush1.bf16.msra.mxu0 0
  %1213 = vmatprep.subr.bf16.mxu0 0
  %1214 = vmatpush1.bf16.msra.mxu0 0
  %1215 = vmatprep.subr.bf16.mxu0 0
  %1216 = vmatpush1.bf16.msra.mxu0 0
  %1217 = vmatprep.subr.bf16.mxu0 0
  %1218 = vmatpush1.bf16.msra.mxu0 0
  %1219 = vmatprep.subr.bf16.mxu0 0
  %1220 = vmatpush1.bf16.msra.mxu0 0
  %1221 = vmatprep.subr.bf16.mxu0 0
  %1222 = vmatpush1.bf16.msra.mxu0 0
  %1223 = vmatprep.subr.bf16.mxu0 0
  %1224 = vmatpush1.bf16.msra.mxu0 0
  %1225 = vmatprep.subr.bf16.mxu0 0
  %1226 = vmatpush1.bf16.msra.mxu0 0
  %1227 = vmatprep.mubr.bf16.mxu0 0
  %1228 = vmatmul.mubr.bf16.gmra.mrb[0].mxu0 %v661
  %v1229 = vpop.f32.mrb[0].mxu0
  %v1230 = vadd.f32 0.0, %v1229
  %v1231 = vpop.f32.mrb[0].mxu0
  %v1232 = vpop.f32.mrb[0].mxu0
  %v1233 = vadd.f32 0.0, %v1232
  %v1234 = vpop.f32.mrb[0].mxu0
  %1235 = vmatprep.mubr.bf16.mxu0 0
  %1236 = vmatmul.mubr.bf16.gmra.mrb[0].mxu0 %v664
  %v1237 = vpop.f32.mrb[0].mxu0
  %v1238 = vadd.f32 0.0, %v1237
  %v1239 = vpop.f32.mrb[0].mxu0
  %v1240 = vpop.f32.mrb[0].mxu0
  %v1241 = vadd.f32 0.0, %v1240
  %v1242 = vpop.f32.mrb[0].mxu0
  %1243 = vdwg.mxu0
  %v1244 = vpack.c.bf16 %v1233, %v1230
  %v1245 = vpack.c.bf16 %v1241, %v1238
  %v1247 = vsel %vm112, %v1244, 0
  %v1250 = vsel %vm112, %v1245, 0
  %1252 = vmatprep.subr.bf16.mxu0 %v751
  %1253 = vmatpush1.bf16.msra.mxu0 %v750
  %1254 = vmatprep.subr.bf16.mxu0 %v753
  %1255 = vmatpush1.bf16.msra.mxu0 %v752
  %1256 = vmatprep.subr.bf16.mxu0 %v755
  %1257 = vmatpush1.bf16.msra.mxu0 %v754
  %1258 = vmatprep.subr.bf16.mxu0 %v757
  %1259 = vmatpush1.bf16.msra.mxu0 %v756
  %1260 = vmatprep.subr.bf16.mxu0 0
  %1261 = vmatpush1.bf16.msra.mxu0 0
  %1262 = vmatprep.subr.bf16.mxu0 0
  %1263 = vmatpush1.bf16.msra.mxu0 0
  %1264 = vmatprep.subr.bf16.mxu0 0
  %1265 = vmatpush1.bf16.msra.mxu0 0
  %1266 = vmatprep.subr.bf16.mxu0 0
  %1267 = vmatpush1.bf16.msra.mxu0 0
  %1268 = vmatprep.subr.bf16.mxu0 0
  %1269 = vmatpush1.bf16.msra.mxu0 0
  %1270 = vmatprep.subr.bf16.mxu0 0
  %1271 = vmatpush1.bf16.msra.mxu0 0
  %1272 = vmatprep.subr.bf16.mxu0 0
  %1273 = vmatpush1.bf16.msra.mxu0 0
  %1274 = vmatprep.subr.bf16.mxu0 0
  %1275 = vmatpush1.bf16.msra.mxu0 0
  %1276 = vmatprep.subr.bf16.mxu0 0
  %1277 = vmatpush1.bf16.msra.mxu0 0
  %1278 = vmatprep.subr.bf16.mxu0 0
  %1279 = vmatpush1.bf16.msra.mxu0 0
  %1280 = vmatprep.subr.bf16.mxu0 0
  %1281 = vmatpush1.bf16.msra.mxu0 0
  %1282 = vmatprep.subr.bf16.mxu0 0
  %1283 = vmatpush1.bf16.msra.mxu0 0
  %1284 = vmatprep.mubr.bf16.mxu0 0
  %1285 = vmatmul.mubr.bf16.gmra.mrb[0].mxu0 %v1247
  %v1286 = vpop.f32.mrb[0].mxu0
  %v1287 = vadd.f32 0.0, %v1286
  %v1288 = vpop.f32.mrb[0].mxu0
  %v1289 = vadd.f32 0.0, %v1288
  %v1290 = vpop.f32.mrb[0].mxu0
  %v1291 = vadd.f32 0.0, %v1290
  %v1292 = vpop.f32.mrb[0].mxu0
  %v1293 = vadd.f32 0.0, %v1292
  %1294 = vmatprep.mubr.bf16.mxu0 0
  %1295 = vmatmul.mubr.bf16.gmra.mrb[0].mxu0 %v1250
  %v1296 = vpop.f32.mrb[0].mxu0
  %v1297 = vadd.f32 0.0, %v1296
  %v1298 = vpop.f32.mrb[0].mxu0
  %v1299 = vadd.f32 0.0, %v1298
  %v1300 = vpop.f32.mrb[0].mxu0
  %v1301 = vadd.f32 0.0, %v1300
  %v1302 = vpop.f32.mrb[0].mxu0
  %v1303 = vadd.f32 0.0, %v1302
  %1304 = vdwg.mxu0
  %v1305 = vadd.f32 %v1187, %v1287
  %v1306 = vadd.f32 %v1188, %v1289
  %v1307 = vadd.f32 %v1189, %v1291
  %v1308 = vadd.f32 %v1190, %v1293
  %v1309 = vadd.f32 %v1191, %v1297
  %v1310 = vadd.f32 %v1192, %v1299
  %v1311 = vadd.f32 %v1193, %v1301
  %v1312 = vadd.f32 %v1194, %v1303
  %vm1313 = vcmp.gt.f32.partialorder %v825, 0.0
  %vm1314 = vcmp.gt.f32.partialorder %v826, 0.0
  %vm1315 = vcmp.gt.f32.partialorder %v827, 0.0
  %vm1316 = vcmp.gt.f32.partialorder %v828, 0.0
  %vm1317 = vcmp.gt.f32.partialorder %v829, 0.0
  %vm1318 = vcmp.gt.f32.partialorder %v830, 0.0
  %vm1319 = vcmp.gt.f32.partialorder %v831, 0.0
  %vm1320 = vcmp.gt.f32.partialorder %v832, 0.0
  %v1321 = vmul.f32 %v825, 0.2
  %v1322 = vmul.f32 %v826, 0.2
  %v1323 = vmul.f32 %v827, 0.2
  %v1324 = vmul.f32 %v828, 0.2
  %v1325 = vmul.f32 %v829, 0.2
  %v1326 = vmul.f32 %v830, 0.2
  %v1327 = vmul.f32 %v831, 0.2
  %v1328 = vmul.f32 %v832, 0.2
  %v1329 = vsel %vm1313, %v825, %v1321
  %v1330 = vsel %vm1314, %v826, %v1322
  %v1331 = vsel %vm1315, %v827, %v1323
  %v1332 = vsel %vm1316, %v828, %v1324
  %v1333 = vsel %vm1317, %v829, %v1325
  %v1334 = vsel %vm1318, %v830, %v1326
  %v1335 = vsel %vm1319, %v831, %v1327
  %v1336 = vsel %vm1320, %v832, %v1328
  %vm1337 = vcmp.gt.f32.partialorder %v1305, 0.0
  %vm1338 = vcmp.gt.f32.partialorder %v1306, 0.0
  %vm1339 = vcmp.gt.f32.partialorder %v1307, 0.0
  %vm1340 = vcmp.gt.f32.partialorder %v1308, 0.0
  %vm1341 = vcmp.gt.f32.partialorder %v1309, 0.0
  %vm1342 = vcmp.gt.f32.partialorder %v1310, 0.0
  %vm1343 = vcmp.gt.f32.partialorder %v1311, 0.0
  %vm1344 = vcmp.gt.f32.partialorder %v1312, 0.0
  %v1345 = vmul.f32 %v1305, 0.2
  %v1346 = vmul.f32 %v1306, 0.2
  %v1347 = vmul.f32 %v1307, 0.2
  %v1348 = vmul.f32 %v1308, 0.2
  %v1349 = vmul.f32 %v1309, 0.2
  %v1350 = vmul.f32 %v1310, 0.2
  %v1351 = vmul.f32 %v1311, 0.2
  %v1352 = vmul.f32 %v1312, 0.2
  %v1353 = vsel %vm1337, %v1305, %v1345
  %v1354 = vsel %vm1338, %v1306, %v1346
  %v1355 = vsel %vm1339, %v1307, %v1347
  %v1356 = vsel %vm1340, %v1308, %v1348
  %v1357 = vsel %vm1341, %v1309, %v1349
  %v1358 = vsel %vm1342, %v1310, %v1350
  %v1359 = vsel %vm1343, %v1311, %v1351
  %v1360 = vsel %vm1344, %v1312, %v1352
  %v1361 = vpack.c.bf16 %v1331, %v1329
  %v1362 = vpack.c.bf16 %v1332, %v1330
  %v1363 = vpack.c.bf16 %v1335, %v1333
  %v1364 = vpack.c.bf16 %v1336, %v1334
  %v1365 = vpack.c.bf16 %v1355, %v1353
  %v1366 = vpack.c.bf16 %v1356, %v1354
  %v1367 = vpack.c.bf16 %v1359, %v1357
  %v1368 = vpack.c.bf16 %v1360, %v1358
  %v1369 = vld [vmem:[%s2] sm:$0xf]
  %v1370 = vld [vmem:[%s2 + $0x4] sm:$0xf]
  %v1373 = vunpack.c.l.b16 %v1369
  %v1374 = vunpack.c.l.b16 %v1370
  %v1375 = vpack.c.b16 %v1374, %v1373
  %vm1376 = vcmask 261120
  %v1378 = vsel %vm1376, %v1375, 0
  %1380 = vmatprep.subr.bf16.mxu0 %v1362
  %1381 = vmatpush1.bf16.msra.mxu0 %v1361
  %1382 = vmatprep.subr.bf16.mxu0 %v1364
  %1383 = vmatpush1.bf16.msra.mxu0 %v1363
  %1384 = vmatprep.subr.bf16.mxu0 0
  %1385 = vmatpush1.bf16.msra.mxu0 0
  %1386 = vmatprep.subr.bf16.mxu0 0
  %1387 = vmatpush1.bf16.msra.mxu0 0
  %1388 = vmatprep.subr.bf16.mxu0 0
  %1389 = vmatpush1.bf16.msra.mxu0 0
  %1390 = vmatprep.subr.bf16.mxu0 0
  %1391 = vmatpush1.bf16.msra.mxu0 0
  %1392 = vmatprep.subr.bf16.mxu0 0
  %1393 = vmatpush1.bf16.msra.mxu0 0
  %1394 = vmatprep.subr.bf16.mxu0 0
  %1395 = vmatpush1.bf16.msra.mxu0 0
  %1396 = vmatprep.subr.bf16.mxu0 0
  %1397 = vmatpush1.bf16.msra.mxu0 0
  %1398 = vmatprep.subr.bf16.mxu0 0
  %1399 = vmatpush1.bf16.msra.mxu0 0
  %1400 = vmatprep.subr.bf16.mxu0 0
  %1401 = vmatpush1.bf16.msra.mxu0 0
  %1402 = vmatprep.subr.bf16.mxu0 0
  %1403 = vmatpush1.bf16.msra.mxu0 0
  %1404 = vmatprep.subr.bf16.mxu0 0
  %1405 = vmatpush1.bf16.msra.mxu0 0
  %1406 = vmatprep.subr.bf16.mxu0 0
  %1407 = vmatpush1.bf16.msra.mxu0 0
  %1408 = vmatprep.subr.bf16.mxu0 0
  %1409 = vmatpush1.bf16.msra.mxu0 0
  %1410 = vmatprep.subr.bf16.mxu0 0
  %1411 = vmatpush1.bf16.msra.mxu0 0
  %1412 = vmatprep.mubr.bf16.mxu0 0
  %1413 = vmatmul.mubr.bf16.gmra.mrb[0].mxu0 %v1378
  %v1414 = vpop.f32.mrb[0].mxu0
  %v1415 = vadd.f32 0.0, %v1414
  %v1416 = vpop.f32.mrb[0].mxu0
  %v1417 = vadd.f32 0.0, %v1416
  %v1418 = vpop.f32.mrb[0].mxu0
  %v1419 = vadd.f32 0.0, %v1418
  %v1420 = vpop.f32.mrb[0].mxu0
  %v1421 = vadd.f32 0.0, %v1420
  %1422 = vdwg.mxu0
  %v1423 = vpack.c.bf16 %v1419, %v1415
  %v1424 = vpack.c.bf16 %v1421, %v1417
  %v1425 = vld [vmem:[%s7] sm:$0xff]
  %v1426 = vld [vmem:[%s7 + $0x8] sm:$0xff]
  %v1427 = vld [vmem:[%s7 + $0x10] sm:$0xff]
  %v1428 = vld [vmem:[%s7 + $0x18] sm:$0xff]
  %v1429 = vld [vmem:[%s7 + $0x20] sm:$0xff]
  %v1430 = vld [vmem:[%s7 + $0x28] sm:$0xff]
  %v1431 = vld [vmem:[%s7 + $0x30] sm:$0xff]
  %v1432 = vld [vmem:[%s7 + $0x38] sm:$0xff]
  %v1433 = vld [vmem:[%s7 + $0x40] sm:$0xff]
  %v1434 = vld [vmem:[%s7 + $0x48] sm:$0xff]
  %v1435 = vld [vmem:[%s7 + $0x50] sm:$0xff]
  %v1436 = vld [vmem:[%s7 + $0x58] sm:$0xff]
  %v1437 = vld [vmem:[%s7 + $0x60] sm:$0xff]
  %v1438 = vld [vmem:[%s7 + $0x68] sm:$0xff]
  %v1439 = vld [vmem:[%s7 + $0x70] sm:$0xff]
  %v1440 = vld [vmem:[%s7 + $0x78] sm:$0xff]
  %v1441 = vld [vmem:[%s7 + $0x80] sm:$0xff]
  %v1442 = vld [vmem:[%s7 + $0x88] sm:$0xff]
  %v1443 = vld [vmem:[%s7 + $0x90] sm:$0xff]
  %v1444 = vld [vmem:[%s7 + $0x98] sm:$0xff]
  %v1445 = vld [vmem:[%s7 + $0xa0] sm:$0xff]
  %v1446 = vld [vmem:[%s7 + $0xa8] sm:$0xff]
  %v1447 = vld [vmem:[%s7 + $0xb0] sm:$0xff]
  %v1448 = vld [vmem:[%s7 + $0xb8] sm:$0xff]
  %v1449 = vld [vmem:[%s7 + $0xc0] sm:$0xff]
  %v1450 = vld [vmem:[%s7 + $0xc8] sm:$0xff]
  %v1451 = vld [vmem:[%s7 + $0xd0] sm:$0xff]
  %v1452 = vld [vmem:[%s7 + $0xd8] sm:$0xff]
  %v1453 = vld [vmem:[%s7 + $0xe0] sm:$0xff]
  %v1454 = vld [vmem:[%s7 + $0xe8] sm:$0xff]
  %v1455 = vld [vmem:[%s7 + $0xf0] sm:$0xff]
  %v1456 = vld [vmem:[%s7 + $0xf8] sm:$0xff]
  %s1457 = scalar_lea.vmem %s2, 8
  %v1458 = vld [vmem:[%s1457] sm:$0xf]
  %v1459 = vld [vmem:[%s1457 + $0x4] sm:$0xf]
  %v1462 = vunpack.c.l.b16 %v1458
  %v1463 = vunpack.c.l.b16 %v1459
  %v1464 = vpack.c.b16 %v1463, %v1462
  %v1466 = vsel %vm1376, %v1464, 0
  %1468 = vmatprep.subr.bf16.mxu0 %v1362
  %1469 = vmatpush1.bf16.msra.mxu0 %v1361
  %1470 = vmatprep.subr.bf16.mxu0 %v1364
  %1471 = vmatpush1.bf16.msra.mxu0 %v1363
  %1472 = vmatprep.subr.bf16.mxu0 0
  %1473 = vmatpush1.bf16.msra.mxu0 0
  %1474 = vmatprep.subr.bf16.mxu0 0
  %1475 = vmatpush1.bf16.msra.mxu0 0
  %1476 = vmatprep.subr.bf16.mxu0 0
  %1477 = vmatpush1.bf16.msra.mxu0 0
  %1478 = vmatprep.subr.bf16.mxu0 0
  %1479 = vmatpush1.bf16.msra.mxu0 0
  %1480 = vmatprep.subr.bf16.mxu0 0
  %1481 = vmatpush1.bf16.msra.mxu0 0
  %1482 = vmatprep.subr.bf16.mxu0 0
  %1483 = vmatpush1.bf16.msra.mxu0 0
  %1484 = vmatprep.subr.bf16.mxu0 0
  %1485 = vmatpush1.bf16.msra.mxu0 0
  %1486 = vmatprep.subr.bf16.mxu0 0
  %1487 = vmatpush1.bf16.msra.mxu0 0
  %1488 = vmatprep.subr.bf16.mxu0 0
  %1489 = vmatpush1.bf16.msra.mxu0 0
  %1490 = vmatprep.subr.bf16.mxu0 0
  %1491 = vmatpush1.bf16.msra.mxu0 0
  %1492 = vmatprep.subr.bf16.mxu0 0
  %1493 = vmatpush1.bf16.msra.mxu0 0
  %1494 = vmatprep.subr.bf16.mxu0 0
  %1495 = vmatpush1.bf16.msra.mxu0 0
  %1496 = vmatprep.subr.bf16.mxu0 0
  %1497 = vmatpush1.bf16.msra.mxu0 0
  %1498 = vmatprep.subr.bf16.mxu0 0
  %1499 = vmatpush1.bf16.msra.mxu0 0
  %1500 = vmatprep.mubr.bf16.mxu0 0
  %1501 = vmatmul.mubr.bf16.gmra.mrb[0].mxu0 %v1466
  %v1502 = vpop.f32.mrb[0].mxu0
  %v1503 = vadd.f32 0.0, %v1502
  %v1504 = vpop.f32.mrb[0].mxu0
  %v1505 = vadd.f32 0.0, %v1504
  %v1506 = vpop.f32.mrb[0].mxu0
  %v1507 = vadd.f32 0.0, %v1506
  %v1508 = vpop.f32.mrb[0].mxu0
  %v1509 = vadd.f32 0.0, %v1508
  %1510 = vdwg.mxu0
  %v1511 = vpack.c.bf16 %v1507, %v1503
  %v1512 = vpack.c.bf16 %v1509, %v1505
  %s1513 = scalar_lea.vmem %s7, 256
  %v1514 = vld [vmem:[%s1513] sm:$0xff]
  %v1515 = vld [vmem:[%s1513 + $0x8] sm:$0xff]
  %v1516 = vld [vmem:[%s1513 + $0x10] sm:$0xff]
  %v1517 = vld [vmem:[%s1513 + $0x18] sm:$0xff]
  %v1518 = vld [vmem:[%s1513 + $0x20] sm:$0xff]
  %v1519 = vld [vmem:[%s1513 + $0x28] sm:$0xff]
  %v1520 = vld [vmem:[%s1513 + $0x30] sm:$0xff]
  %v1521 = vld [vmem:[%s1513 + $0x38] sm:$0xff]
  %v1522 = vld [vmem:[%s1513 + $0x40] sm:$0xff]
  %v1523 = vld [vmem:[%s1513 + $0x48] sm:$0xff]
  %v1524 = vld [vmem:[%s1513 + $0x50] sm:$0xff]
  %v1525 = vld [vmem:[%s1513 + $0x58] sm:$0xff]
  %v1526 = vld [vmem:[%s1513 + $0x60] sm:$0xff]
  %v1527 = vld [vmem:[%s1513 + $0x68] sm:$0xff]
  %v1528 = vld [vmem:[%s1513 + $0x70] sm:$0xff]
  %v1529 = vld [vmem:[%s1513 + $0x78] sm:$0xff]
  %v1530 = vld [vmem:[%s1513 + $0x80] sm:$0xff]
  %v1531 = vld [vmem:[%s1513 + $0x88] sm:$0xff]
  %v1532 = vld [vmem:[%s1513 + $0x90] sm:$0xff]
  %v1533 = vld [vmem:[%s1513 + $0x98] sm:$0xff]
  %v1534 = vld [vmem:[%s1513 + $0xa0] sm:$0xff]
  %v1535 = vld [vmem:[%s1513 + $0xa8] sm:$0xff]
  %v1536 = vld [vmem:[%s1513 + $0xb0] sm:$0xff]
  %v1537 = vld [vmem:[%s1513 + $0xb8] sm:$0xff]
  %v1538 = vld [vmem:[%s1513 + $0xc0] sm:$0xff]
  %v1539 = vld [vmem:[%s1513 + $0xc8] sm:$0xff]
  %v1540 = vld [vmem:[%s1513 + $0xd0] sm:$0xff]
  %v1541 = vld [vmem:[%s1513 + $0xd8] sm:$0xff]
  %v1542 = vld [vmem:[%s1513 + $0xe0] sm:$0xff]
  %v1543 = vld [vmem:[%s1513 + $0xe8] sm:$0xff]
  %v1544 = vld [vmem:[%s1513 + $0xf0] sm:$0xff]
  %v1545 = vld [vmem:[%s1513 + $0xf8] sm:$0xff]
  %v1578 = vunpack.c.l.b16 %v1514
  %v1579 = vunpack.c.h.b16 %v1514
  %v1580 = vunpack.c.l.b16 %v1515
  %v1581 = vunpack.c.h.b16 %v1515
  %v1582 = vunpack.c.l.b16 %v1516
  %v1583 = vunpack.c.h.b16 %v1516
  %v1584 = vunpack.c.l.b16 %v1517
  %v1585 = vunpack.c.h.b16 %v1517
  %v1586 = vunpack.c.l.b16 %v1518
  %v1587 = vunpack.c.h.b16 %v1518
  %v1588 = vunpack.c.l.b16 %v1519
  %v1589 = vunpack.c.h.b16 %v1519
  %v1590 = vunpack.c.l.b16 %v1520
  %v1591 = vunpack.c.h.b16 %v1520
  %v1592 = vunpack.c.l.b16 %v1521
  %v1593 = vunpack.c.h.b16 %v1521
  %v1594 = vunpack.c.l.b16 %v1522
  %v1595 = vunpack.c.h.b16 %v1522
  %v1596 = vunpack.c.l.b16 %v1523
  %v1597 = vunpack.c.h.b16 %v1523
  %v1598 = vunpack.c.l.b16 %v1524
  %v1599 = vunpack.c.h.b16 %v1524
  %v1600 = vunpack.c.l.b16 %v1525
  %v1601 = vunpack.c.h.b16 %v1525
  %v1602 = vunpack.c.l.b16 %v1526
  %v1603 = vunpack.c.h.b16 %v1526
  %v1604 = vunpack.c.l.b16 %v1527
  %v1605 = vunpack.c.h.b16 %v1527
  %v1606 = vunpack.c.l.b16 %v1528
  %v1607 = vunpack.c.h.b16 %v1528
  %v1608 = vunpack.c.l.b16 %v1529
  %v1609 = vunpack.c.h.b16 %v1529
  %v1610 = vunpack.c.l.b16 %v1530
  %v1611 = vunpack.c.h.b16 %v1530
  %v1612 = vunpack.c.l.b16 %v1531
  %v1613 = vunpack.c.h.b16 %v1531
  %v1614 = vunpack.c.l.b16 %v1532
  %v1615 = vunpack.c.h.b16 %v1532
  %v1616 = vunpack.c.l.b16 %v1533
  %v1617 = vunpack.c.h.b16 %v1533
  %v1618 = vunpack.c.l.b16 %v1534
  %v1619 = vunpack.c.h.b16 %v1534
  %v1620 = vunpack.c.l.b16 %v1535
  %v1621 = vunpack.c.h.b16 %v1535
  %v1622 = vunpack.c.l.b16 %v1536
  %v1623 = vunpack.c.h.b16 %v1536
  %v1624 = vunpack.c.l.b16 %v1537
  %v1625 = vunpack.c.h.b16 %v1537
  %v1626 = vunpack.c.l.b16 %v1538
  %v1627 = vunpack.c.h.b16 %v1538
  %v1628 = vunpack.c.l.b16 %v1539
  %v1629 = vunpack.c.h.b16 %v1539
  %v1630 = vunpack.c.l.b16 %v1540
  %v1631 = vunpack.c.h.b16 %v1540
  %v1632 = vunpack.c.l.b16 %v1541
  %v1633 = vunpack.c.h.b16 %v1541
  %v1634 = vunpack.c.l.b16 %v1542
  %v1635 = vunpack.c.h.b16 %v1542
  %v1636 = vunpack.c.l.b16 %v1543
  %v1637 = vunpack.c.h.b16 %v1543
  %v1638 = vunpack.c.l.b16 %v1544
  %v1639 = vunpack.c.h.b16 %v1544
  %v1640 = vunpack.c.l.b16 %v1545
  %v1641 = vunpack.c.h.b16 %v1545
  %v1642 = vpack.c.b16 %v1580, %v1578
  %v1643 = vpack.c.b16 %v1581, %v1579
  %v1644 = vpack.c.b16 %v1584, %v1582
  %v1645 = vpack.c.b16 %v1585, %v1583
  %v1646 = vpack.c.b16 %v1588, %v1586
  %v1647 = vpack.c.b16 %v1589, %v1587
  %v1648 = vpack.c.b16 %v1592, %v1590
  %v1649 = vpack.c.b16 %v1593, %v1591
  %v1650 = vpack.c.b16 %v1596, %v1594
  %v1651 = vpack.c.b16 %v1597, %v1595
  %v1652 = vpack.c.b16 %v1600, %v1598
  %v1653 = vpack.c.b16 %v1601, %v1599
  %v1654 = vpack.c.b16 %v1604, %v1602
  %v1655 = vpack.c.b16 %v1605, %v1603
  %v1656 = vpack.c.b16 %v1608, %v1606
  %v1657 = vpack.c.b16 %v1609, %v1607
  %v1658 = vpack.c.b16 %v1612, %v1610
  %v1659 = vpack.c.b16 %v1613, %v1611
  %v1660 = vpack.c.b16 %v1616, %v1614
  %v1661 = vpack.c.b16 %v1617, %v1615
  %v1662 = vpack.c.b16 %v1620, %v1618
  %v1663 = vpack.c.b16 %v1621, %v1619
  %v1664 = vpack.c.b16 %v1624, %v1622
  %v1665 = vpack.c.b16 %v1625, %v1623
  %v1666 = vpack.c.b16 %v1628, %v1626
  %v1667 = vpack.c.b16 %v1629, %v1627
  %v1668 = vpack.c.b16 %v1632, %v1630
  %v1669 = vpack.c.b16 %v1633, %v1631
  %v1670 = vpack.c.b16 %v1636, %v1634
  %v1671 = vpack.c.b16 %v1637, %v1635
  %v1672 = vpack.c.b16 %v1640, %v1638
  %v1673 = vpack.c.b16 %v1641, %v1639
  %1706 = vmatprep.subr.bf16.mxu0 %v1643
  %1707 = vmatpush1.bf16.msra.mxu0 %v1642
  %1708 = vmatprep.subr.bf16.mxu0 %v1645
  %1709 = vmatpush1.bf16.msra.mxu0 %v1644
  %1710 = vmatprep.subr.bf16.mxu0 %v1647
  %1711 = vmatpush1.bf16.msra.mxu0 %v1646
  %1712 = vmatprep.subr.bf16.mxu0 %v1649
  %1713 = vmatpush1.bf16.msra.mxu0 %v1648
  %1714 = vmatprep.subr.bf16.mxu0 %v1651
  %1715 = vmatpush1.bf16.msra.mxu0 %v1650
  %1716 = vmatprep.subr.bf16.mxu0 %v1653
  %1717 = vmatpush1.bf16.msra.mxu0 %v1652
  %1718 = vmatprep.subr.bf16.mxu0 %v1655
  %1719 = vmatpush1.bf16.msra.mxu0 %v1654
  %1720 = vmatprep.subr.bf16.mxu0 %v1657
  %1721 = vmatpush1.bf16.msra.mxu0 %v1656
  %1722 = vmatprep.subr.bf16.mxu0 %v1659
  %1723 = vmatpush1.bf16.msra.mxu0 %v1658
  %1724 = vmatprep.subr.bf16.mxu0 %v1661
  %1725 = vmatpush1.bf16.msra.mxu0 %v1660
  %1726 = vmatprep.subr.bf16.mxu0 %v1663
  %1727 = vmatpush1.bf16.msra.mxu0 %v1662
  %1728 = vmatprep.subr.bf16.mxu0 %v1665
  %1729 = vmatpush1.bf16.msra.mxu0 %v1664
  %1730 = vmatprep.subr.bf16.mxu0 %v1667
  %1731 = vmatpush1.bf16.msra.mxu0 %v1666
  %1732 = vmatprep.subr.bf16.mxu0 %v1669
  %1733 = vmatpush1.bf16.msra.mxu0 %v1668
  %1734 = vmatprep.subr.bf16.mxu0 %v1671
  %1735 = vmatpush1.bf16.msra.mxu0 %v1670
  %1736 = vmatprep.subr.bf16.mxu0 %v1673
  %1737 = vmatpush1.bf16.msra.mxu0 %v1672
  %1738 = vmatprep.mubr.bf16.mxu0 %v1512
  %1739 = vmatmul.mubr.bf16.gmra.mrb[0].mxu0 %v1511
  %v1740 = vpop.f32.mrb[0].mxu0
  %v1741 = vadd.f32 0.0, %v1740
  %v1742 = vpop.f32.mrb[0].mxu0
  %v1743 = vadd.f32 0.0, %v1742
  %v1744 = vpop.f32.mrb[0].mxu0
  %v1745 = vadd.f32 0.0, %v1744
  %v1746 = vpop.f32.mrb[0].mxu0
  %v1747 = vadd.f32 0.0, %v1746
  %1748 = vdwg.mxu0
  %v1781 = vunpack.c.l.b16 %v1425
  %v1782 = vunpack.c.h.b16 %v1425
  %v1783 = vunpack.c.l.b16 %v1426
  %v1784 = vunpack.c.h.b16 %v1426
  %v1785 = vunpack.c.l.b16 %v1427
  %v1786 = vunpack.c.h.b16 %v1427
  %v1787 = vunpack.c.l.b16 %v1428
  %v1788 = vunpack.c.h.b16 %v1428
  %v1789 = vunpack.c.l.b16 %v1429
  %v1790 = vunpack.c.h.b16 %v1429
  %v1791 = vunpack.c.l.b16 %v1430
  %v1792 = vunpack.c.h.b16 %v1430
  %v1793 = vunpack.c.l.b16 %v1431
  %v1794 = vunpack.c.h.b16 %v1431
  %v1795 = vunpack.c.l.b16 %v1432
  %v1796 = vunpack.c.h.b16 %v1432
  %v1797 = vunpack.c.l.b16 %v1433
  %v1798 = vunpack.c.h.b16 %v1433
  %v1799 = vunpack.c.l.b16 %v1434
  %v1800 = vunpack.c.h.b16 %v1434
  %v1801 = vunpack.c.l.b16 %v1435
  %v1802 = vunpack.c.h.b16 %v1435
  %v1803 = vunpack.c.l.b16 %v1436
  %v1804 = vunpack.c.h.b16 %v1436
  %v1805 = vunpack.c.l.b16 %v1437
  %v1806 = vunpack.c.h.b16 %v1437
  %v1807 = vunpack.c.l.b16 %v1438
  %v1808 = vunpack.c.h.b16 %v1438
  %v1809 = vunpack.c.l.b16 %v1439
  %v1810 = vunpack.c.h.b16 %v1439
  %v1811 = vunpack.c.l.b16 %v1440
  %v1812 = vunpack.c.h.b16 %v1440
  %v1813 = vunpack.c.l.b16 %v1441
  %v1814 = vunpack.c.h.b16 %v1441
  %v1815 = vunpack.c.l.b16 %v1442
  %v1816 = vunpack.c.h.b16 %v1442
  %v1817 = vunpack.c.l.b16 %v1443
  %v1818 = vunpack.c.h.b16 %v1443
  %v1819 = vunpack.c.l.b16 %v1444
  %v1820 = vunpack.c.h.b16 %v1444
  %v1821 = vunpack.c.l.b16 %v1445
  %v1822 = vunpack.c.h.b16 %v1445
  %v1823 = vunpack.c.l.b16 %v1446
  %v1824 = vunpack.c.h.b16 %v1446
  %v1825 = vunpack.c.l.b16 %v1447
  %v1826 = vunpack.c.h.b16 %v1447
  %v1827 = vunpack.c.l.b16 %v1448
  %v1828 = vunpack.c.h.b16 %v1448
  %v1829 = vunpack.c.l.b16 %v1449
  %v1830 = vunpack.c.h.b16 %v1449
  %v1831 = vunpack.c.l.b16 %v1450
  %v1832 = vunpack.c.h.b16 %v1450
  %v1833 = vunpack.c.l.b16 %v1451
  %v1834 = vunpack.c.h.b16 %v1451
  %v1835 = vunpack.c.l.b16 %v1452
  %v1836 = vunpack.c.h.b16 %v1452
  %v1837 = vunpack.c.l.b16 %v1453
  %v1838 = vunpack.c.h.b16 %v1453
  %v1839 = vunpack.c.l.b16 %v1454
  %v1840 = vunpack.c.h.b16 %v1454
  %v1841 = vunpack.c.l.b16 %v1455
  %v1842 = vunpack.c.h.b16 %v1455
  %v1843 = vunpack.c.l.b16 %v1456
  %v1844 = vunpack.c.h.b16 %v1456
  %v1845 = vpack.c.b16 %v1783, %v1781
  %v1846 = vpack.c.b16 %v1784, %v1782
  %v1847 = vpack.c.b16 %v1787, %v1785
  %v1848 = vpack.c.b16 %v1788, %v1786
  %v1849 = vpack.c.b16 %v1791, %v1789
  %v1850 = vpack.c.b16 %v1792, %v1790
  %v1851 = vpack.c.b16 %v1795, %v1793
  %v1852 = vpack.c.b16 %v1796, %v1794
  %v1853 = vpack.c.b16 %v1799, %v1797
  %v1854 = vpack.c.b16 %v1800, %v1798
  %v1855 = vpack.c.b16 %v1803, %v1801
  %v1856 = vpack.c.b16 %v1804, %v1802
  %v1857 = vpack.c.b16 %v1807, %v1805
  %v1858 = vpack.c.b16 %v1808, %v1806
  %v1859 = vpack.c.b16 %v1811, %v1809
  %v1860 = vpack.c.b16 %v1812, %v1810
  %v1861 = vpack.c.b16 %v1815, %v1813
  %v1862 = vpack.c.b16 %v1816, %v1814
  %v1863 = vpack.c.b16 %v1819, %v1817
  %v1864 = vpack.c.b16 %v1820, %v1818
  %v1865 = vpack.c.b16 %v1823, %v1821
  %v1866 = vpack.c.b16 %v1824, %v1822
  %v1867 = vpack.c.b16 %v1827, %v1825
  %v1868 = vpack.c.b16 %v1828, %v1826
  %v1869 = vpack.c.b16 %v1831, %v1829
  %v1870 = vpack.c.b16 %v1832, %v1830
  %v1871 = vpack.c.b16 %v1835, %v1833
  %v1872 = vpack.c.b16 %v1836, %v1834
  %v1873 = vpack.c.b16 %v1839, %v1837
  %v1874 = vpack.c.b16 %v1840, %v1838
  %v1875 = vpack.c.b16 %v1843, %v1841
  %v1876 = vpack.c.b16 %v1844, %v1842
  %1909 = vmatprep.subr.bf16.mxu0 %v1846
  %1910 = vmatpush1.bf16.msra.mxu0 %v1845
  %1911 = vmatprep.subr.bf16.mxu0 %v1848
  %1912 = vmatpush1.bf16.msra.mxu0 %v1847
  %1913 = vmatprep.subr.bf16.mxu0 %v1850
  %1914 = vmatpush1.bf16.msra.mxu0 %v1849
  %1915 = vmatprep.subr.bf16.mxu0 %v1852
  %1916 = vmatpush1.bf16.msra.mxu0 %v1851
  %1917 = vmatprep.subr.bf16.mxu0 %v1854
  %1918 = vmatpush1.bf16.msra.mxu0 %v1853
  %1919 = vmatprep.subr.bf16.mxu0 %v1856
  %1920 = vmatpush1.bf16.msra.mxu0 %v1855
  %1921 = vmatprep.subr.bf16.mxu0 %v1858
  %1922 = vmatpush1.bf16.msra.mxu0 %v1857
  %1923 = vmatprep.subr.bf16.mxu0 %v1860
  %1924 = vmatpush1.bf16.msra.mxu0 %v1859
  %1925 = vmatprep.subr.bf16.mxu0 %v1862
  %1926 = vmatpush1.bf16.msra.mxu0 %v1861
  %1927 = vmatprep.subr.bf16.mxu0 %v1864
  %1928 = vmatpush1.bf16.msra.mxu0 %v1863
  %1929 = vmatprep.subr.bf16.mxu0 %v1866
  %1930 = vmatpush1.bf16.msra.mxu0 %v1865
  %1931 = vmatprep.subr.bf16.mxu0 %v1868
  %1932 = vmatpush1.bf16.msra.mxu0 %v1867
  %1933 = vmatprep.subr.bf16.mxu0 %v1870
  %1934 = vmatpush1.bf16.msra.mxu0 %v1869
  %1935 = vmatprep.subr.bf16.mxu0 %v1872
  %1936 = vmatpush1.bf16.msra.mxu0 %v1871
  %1937 = vmatprep.subr.bf16.mxu0 %v1874
  %1938 = vmatpush1.bf16.msra.mxu0 %v1873
  %1939 = vmatprep.subr.bf16.mxu0 %v1876
  %1940 = vmatpush1.bf16.msra.mxu0 %v1875
  %1941 = vmatprep.mubr.bf16.mxu0 %v1424
  %1942 = vmatmul.mubr.bf16.gmra.mrb[0].mxu0 %v1423
  %v1943 = vpop.f32.mrb[0].mxu0
  %v1944 = vadd.f32 %v1741, %v1943
  %v1945 = vpop.f32.mrb[0].mxu0
  %v1946 = vadd.f32 %v1743, %v1945
  %v1947 = vpop.f32.mrb[0].mxu0
  %v1948 = vadd.f32 %v1745, %v1947
  %v1949 = vpop.f32.mrb[0].mxu0
  %v1950 = vadd.f32 %v1747, %v1949
  %1951 = vdwg.mxu0
  %s1952 = scalar_lea.vmem %s2, 16
  %v1953 = vld [vmem:[%s1952] sm:$0xf]
  %v1954 = vld [vmem:[%s1952 + $0x4] sm:$0xf]
  %v1957 = vunpack.c.l.b16 %v1953
  %v1958 = vunpack.c.l.b16 %v1954
  %v1959 = vpack.c.b16 %v1958, %v1957
  %v1961 = vsel %vm1376, %v1959, 0
  %1963 = vmatprep.subr.bf16.mxu0 %v1362
  %1964 = vmatpush1.bf16.msra.mxu0 %v1361
  %1965 = vmatprep.subr.bf16.mxu0 %v1364
  %1966 = vmatpush1.bf16.msra.mxu0 %v1363
  %1967 = vmatprep.subr.bf16.mxu0 0
  %1968 = vmatpush1.bf16.msra.mxu0 0
  %1969 = vmatprep.subr.bf16.mxu0 0
  %1970 = vmatpush1.bf16.msra.mxu0 0
  %1971 = vmatprep.subr.bf16.mxu0 0
  %1972 = vmatpush1.bf16.msra.mxu0 0
  %1973 = vmatprep.subr.bf16.mxu0 0
  %1974 = vmatpush1.bf16.msra.mxu0 0
  %1975 = vmatprep.subr.bf16.mxu0 0
  %1976 = vmatpush1.bf16.msra.mxu0 0
  %1977 = vmatprep.subr.bf16.mxu0 0
  %1978 = vmatpush1.bf16.msra.mxu0 0
  %1979 = vmatprep.subr.bf16.mxu0 0
  %1980 = vmatpush1.bf16.msra.mxu0 0
  %1981 = vmatprep.subr.bf16.mxu0 0
  %1982 = vmatpush1.bf16.msra.mxu0 0
  %1983 = vmatprep.subr.bf16.mxu0 0
  %1984 = vmatpush1.bf16.msra.mxu0 0
  %1985 = vmatprep.subr.bf16.mxu0 0
  %1986 = vmatpush1.bf16.msra.mxu0 0
  %1987 = vmatprep.subr.bf16.mxu0 0
  %1988 = vmatpush1.bf16.msra.mxu0 0
  %1989 = vmatprep.subr.bf16.mxu0 0
  %1990 = vmatpush1.bf16.msra.mxu0 0
  %1991 = vmatprep.subr.bf16.mxu0 0
  %1992 = vmatpush1.bf16.msra.mxu0 0
  %1993 = vmatprep.subr.bf16.mxu0 0
  %1994 = vmatpush1.bf16.msra.mxu0 0
  %1995 = vmatprep.mubr.bf16.mxu0 0
  %1996 = vmatmul.mubr.bf16.gmra.mrb[0].mxu0 %v1961
  %v1997 = vpop.f32.mrb[0].mxu0
  %v1998 = vadd.f32 0.0, %v1997
  %v1999 = vpop.f32.mrb[0].mxu0
  %v2000 = vadd.f32 0.0, %v1999
  %v2001 = vpop.f32.mrb[0].mxu0
  %v2002 = vadd.f32 0.0, %v2001
  %v2003 = vpop.f32.mrb[0].mxu0
  %v2004 = vadd.f32 0.0, %v2003
  %2005 = vdwg.mxu0
  %v2006 = vpack.c.bf16 %v2002, %v1998
  %v2007 = vpack.c.bf16 %v2004, %v2000
  %s2008 = scalar_lea.vmem %s7, 512
  %v2009 = vld [vmem:[%s2008] sm:$0xff]
  %v2010 = vld [vmem:[%s2008 + $0x8] sm:$0xff]
  %v2011 = vld [vmem:[%s2008 + $0x10] sm:$0xff]
  %v2012 = vld [vmem:[%s2008 + $0x18] sm:$0xff]
  %v2013 = vld [vmem:[%s2008 + $0x20] sm:$0xff]
  %v2014 = vld [vmem:[%s2008 + $0x28] sm:$0xff]
  %v2015 = vld [vmem:[%s2008 + $0x30] sm:$0xff]
  %v2016 = vld [vmem:[%s2008 + $0x38] sm:$0xff]
  %v2017 = vld [vmem:[%s2008 + $0x40] sm:$0xff]
  %v2018 = vld [vmem:[%s2008 + $0x48] sm:$0xff]
  %v2019 = vld [vmem:[%s2008 + $0x50] sm:$0xff]
  %v2020 = vld [vmem:[%s2008 + $0x58] sm:$0xff]
  %v2021 = vld [vmem:[%s2008 + $0x60] sm:$0xff]
  %v2022 = vld [vmem:[%s2008 + $0x68] sm:$0xff]
  %v2023 = vld [vmem:[%s2008 + $0x70] sm:$0xff]
  %v2024 = vld [vmem:[%s2008 + $0x78] sm:$0xff]
  %v2025 = vld [vmem:[%s2008 + $0x80] sm:$0xff]
  %v2026 = vld [vmem:[%s2008 + $0x88] sm:$0xff]
  %v2027 = vld [vmem:[%s2008 + $0x90] sm:$0xff]
  %v2028 = vld [vmem:[%s2008 + $0x98] sm:$0xff]
  %v2029 = vld [vmem:[%s2008 + $0xa0] sm:$0xff]
  %v2030 = vld [vmem:[%s2008 + $0xa8] sm:$0xff]
  %v2031 = vld [vmem:[%s2008 + $0xb0] sm:$0xff]
  %v2032 = vld [vmem:[%s2008 + $0xb8] sm:$0xff]
  %v2033 = vld [vmem:[%s2008 + $0xc0] sm:$0xff]
  %v2034 = vld [vmem:[%s2008 + $0xc8] sm:$0xff]
  %v2035 = vld [vmem:[%s2008 + $0xd0] sm:$0xff]
  %v2036 = vld [vmem:[%s2008 + $0xd8] sm:$0xff]
  %v2037 = vld [vmem:[%s2008 + $0xe0] sm:$0xff]
  %v2038 = vld [vmem:[%s2008 + $0xe8] sm:$0xff]
  %v2039 = vld [vmem:[%s2008 + $0xf0] sm:$0xff]
  %v2040 = vld [vmem:[%s2008 + $0xf8] sm:$0xff]
  %v2073 = vunpack.c.l.b16 %v2009
  %v2074 = vunpack.c.h.b16 %v2009
  %v2075 = vunpack.c.l.b16 %v2010
  %v2076 = vunpack.c.h.b16 %v2010
  %v2077 = vunpack.c.l.b16 %v2011
  %v2078 = vunpack.c.h.b16 %v2011
  %v2079 = vunpack.c.l.b16 %v2012
  %v2080 = vunpack.c.h.b16 %v2012
  %v2081 = vunpack.c.l.b16 %v2013
  %v2082 = vunpack.c.h.b16 %v2013
  %v2083 = vunpack.c.l.b16 %v2014
  %v2084 = vunpack.c.h.b16 %v2014
  %v2085 = vunpack.c.l.b16 %v2015
  %v2086 = vunpack.c.h.b16 %v2015
  %v2087 = vunpack.c.l.b16 %v2016
  %v2088 = vunpack.c.h.b16 %v2016
  %v2089 = vunpack.c.l.b16 %v2017
  %v2090 = vunpack.c.h.b16 %v2017
  %v2091 = vunpack.c.l.b16 %v2018
  %v2092 = vunpack.c.h.b16 %v2018
  %v2093 = vunpack.c.l.b16 %v2019
  %v2094 = vunpack.c.h.b16 %v2019
  %v2095 = vunpack.c.l.b16 %v2020
  %v2096 = vunpack.c.h.b16 %v2020
  %v2097 = vunpack.c.l.b16 %v2021
  %v2098 = vunpack.c.h.b16 %v2021
  %v2099 = vunpack.c.l.b16 %v2022
  %v2100 = vunpack.c.h.b16 %v2022
  %v2101 = vunpack.c.l.b16 %v2023
  %v2102 = vunpack.c.h.b16 %v2023
  %v2103 = vunpack.c.l.b16 %v2024
  %v2104 = vunpack.c.h.b16 %v2024
  %v2105 = vunpack.c.l.b16 %v2025
  %v2106 = vunpack.c.h.b16 %v2025
  %v2107 = vunpack.c.l.b16 %v2026
  %v2108 = vunpack.c.h.b16 %v2026
  %v2109 = vunpack.c.l.b16 %v2027
  %v2110 = vunpack.c.h.b16 %v2027
  %v2111 = vunpack.c.l.b16 %v2028
  %v2112 = vunpack.c.h.b16 %v2028
  %v2113 = vunpack.c.l.b16 %v2029
  %v2114 = vunpack.c.h.b16 %v2029
  %v2115 = vunpack.c.l.b16 %v2030
  %v2116 = vunpack.c.h.b16 %v2030
  %v2117 = vunpack.c.l.b16 %v2031
  %v2118 = vunpack.c.h.b16 %v2031
  %v2119 = vunpack.c.l.b16 %v2032
  %v2120 = vunpack.c.h.b16 %v2032
  %v2121 = vunpack.c.l.b16 %v2033
  %v2122 = vunpack.c.h.b16 %v2033
  %v2123 = vunpack.c.l.b16 %v2034
  %v2124 = vunpack.c.h.b16 %v2034
  %v2125 = vunpack.c.l.b16 %v2035
  %v2126 = vunpack.c.h.b16 %v2035
  %v2127 = vunpack.c.l.b16 %v2036
  %v2128 = vunpack.c.h.b16 %v2036
  %v2129 = vunpack.c.l.b16 %v2037
  %v2130 = vunpack.c.h.b16 %v2037
  %v2131 = vunpack.c.l.b16 %v2038
  %v2132 = vunpack.c.h.b16 %v2038
  %v2133 = vunpack.c.l.b16 %v2039
  %v2134 = vunpack.c.h.b16 %v2039
  %v2135 = vunpack.c.l.b16 %v2040
  %v2136 = vunpack.c.h.b16 %v2040
  %v2137 = vpack.c.b16 %v2075, %v2073
  %v2138 = vpack.c.b16 %v2076, %v2074
  %v2139 = vpack.c.b16 %v2079, %v2077
  %v2140 = vpack.c.b16 %v2080, %v2078
  %v2141 = vpack.c.b16 %v2083, %v2081
  %v2142 = vpack.c.b16 %v2084, %v2082
  %v2143 = vpack.c.b16 %v2087, %v2085
  %v2144 = vpack.c.b16 %v2088, %v2086
  %v2145 = vpack.c.b16 %v2091, %v2089
  %v2146 = vpack.c.b16 %v2092, %v2090
  %v2147 = vpack.c.b16 %v2095, %v2093
  %v2148 = vpack.c.b16 %v2096, %v2094
  %v2149 = vpack.c.b16 %v2099, %v2097
  %v2150 = vpack.c.b16 %v2100, %v2098
  %v2151 = vpack.c.b16 %v2103, %v2101
  %v2152 = vpack.c.b16 %v2104, %v2102
  %v2153 = vpack.c.b16 %v2107, %v2105
  %v2154 = vpack.c.b16 %v2108, %v2106
  %v2155 = vpack.c.b16 %v2111, %v2109
  %v2156 = vpack.c.b16 %v2112, %v2110
  %v2157 = vpack.c.b16 %v2115, %v2113
  %v2158 = vpack.c.b16 %v2116, %v2114
  %v2159 = vpack.c.b16 %v2119, %v2117
  %v2160 = vpack.c.b16 %v2120, %v2118
  %v2161 = vpack.c.b16 %v2123, %v2121
  %v2162 = vpack.c.b16 %v2124, %v2122
  %v2163 = vpack.c.b16 %v2127, %v2125
  %v2164 = vpack.c.b16 %v2128, %v2126
  %v2165 = vpack.c.b16 %v2131, %v2129
  %v2166 = vpack.c.b16 %v2132, %v2130
  %v2167 = vpack.c.b16 %v2135, %v2133
  %v2168 = vpack.c.b16 %v2136, %v2134
  %2201 = vmatprep.subr.bf16.mxu0 %v2138
  %2202 = vmatpush1.bf16.msra.mxu0 %v2137
  %2203 = vmatprep.subr.bf16.mxu0 %v2140
  %2204 = vmatpush1.bf16.msra.mxu0 %v2139
  %2205 = vmatprep.subr.bf16.mxu0 %v2142
  %2206 = vmatpush1.bf16.msra.mxu0 %v2141
  %2207 = vmatprep.subr.bf16.mxu0 %v2144
  %2208 = vmatpush1.bf16.msra.mxu0 %v2143
  %2209 = vmatprep.subr.bf16.mxu0 %v2146
  %2210 = vmatpush1.bf16.msra.mxu0 %v2145
  %2211 = vmatprep.subr.bf16.mxu0 %v2148
  %2212 = vmatpush1.bf16.msra.mxu0 %v2147
  %2213 = vmatprep.subr.bf16.mxu0 %v2150
  %2214 = vmatpush1.bf16.msra.mxu0 %v2149
  %2215 = vmatprep.subr.bf16.mxu0 %v2152
  %2216 = vmatpush1.bf16.msra.mxu0 %v2151
  %2217 = vmatprep.subr.bf16.mxu0 %v2154
  %2218 = vmatpush1.bf16.msra.mxu0 %v2153
  %2219 = vmatprep.subr.bf16.mxu0 %v2156
  %2220 = vmatpush1.bf16.msra.mxu0 %v2155
  %2221 = vmatprep.subr.bf16.mxu0 %v2158
  %2222 = vmatpush1.bf16.msra.mxu0 %v2157
  %2223 = vmatprep.subr.bf16.mxu0 %v2160
  %2224 = vmatpush1.bf16.msra.mxu0 %v2159
  %2225 = vmatprep.subr.bf16.mxu0 %v2162
  %2226 = vmatpush1.bf16.msra.mxu0 %v2161
  %2227 = vmatprep.subr.bf16.mxu0 %v2164
  %2228 = vmatpush1.bf16.msra.mxu0 %v2163
  %2229 = vmatprep.subr.bf16.mxu0 %v2166
  %2230 = vmatpush1.bf16.msra.mxu0 %v2165
  %2231 = vmatprep.subr.bf16.mxu0 %v2168
  %2232 = vmatpush1.bf16.msra.mxu0 %v2167
  %2233 = vmatprep.mubr.bf16.mxu0 %v2007
  %2234 = vmatmul.mubr.bf16.gmra.mrb[0].mxu0 %v2006
  %v2235 = vpop.f32.mrb[0].mxu0
  %v2236 = vadd.f32 0.0, %v2235
  %v2237 = vpop.f32.mrb[0].mxu0
  %v2238 = vadd.f32 0.0, %v2237
  %v2239 = vpop.f32.mrb[0].mxu0
  %v2240 = vadd.f32 0.0, %v2239
  %v2241 = vpop.f32.mrb[0].mxu0
  %v2242 = vadd.f32 0.0, %v2241
  %2243 = vdwg.mxu0
  %v2244 = vadd.f32 %v1944, %v2236
  %v2245 = vadd.f32 %v1946, %v2238
  %v2246 = vadd.f32 %v1948, %v2240
  %v2247 = vadd.f32 %v1950, %v2242
  %s2248 = scalar_lea.vmem %s2, 24
  %v2249 = vld [vmem:[%s2248] sm:$0xf]
  %v2250 = vld [vmem:[%s2248 + $0x4] sm:$0xf]
  %v2253 = vunpack.c.l.b16 %v2249
  %v2254 = vunpack.c.l.b16 %v2250
  %v2255 = vpack.c.b16 %v2254, %v2253
  %v2257 = vsel %vm1376, %v2255, 0
  %2259 = vmatprep.subr.bf16.mxu0 %v1362
  %2260 = vmatpush1.bf16.msra.mxu0 %v1361
  %2261 = vmatprep.subr.bf16.mxu0 %v1364
  %2262 = vmatpush1.bf16.msra.mxu0 %v1363
  %2263 = vmatprep.subr.bf16.mxu0 0
  %2264 = vmatpush1.bf16.msra.mxu0 0
  %2265 = vmatprep.subr.bf16.mxu0 0
  %2266 = vmatpush1.bf16.msra.mxu0 0
  %2267 = vmatprep.subr.bf16.mxu0 0
  %2268 = vmatpush1.bf16.msra.mxu0 0
  %2269 = vmatprep.subr.bf16.mxu0 0
  %2270 = vmatpush1.bf16.msra.mxu0 0
  %2271 = vmatprep.subr.bf16.mxu0 0
  %2272 = vmatpush1.bf16.msra.mxu0 0
  %2273 = vmatprep.subr.bf16.mxu0 0
  %2274 = vmatpush1.bf16.msra.mxu0 0
  %2275 = vmatprep.subr.bf16.mxu0 0
  %2276 = vmatpush1.bf16.msra.mxu0 0
  %2277 = vmatprep.subr.bf16.mxu0 0
  %2278 = vmatpush1.bf16.msra.mxu0 0
  %2279 = vmatprep.subr.bf16.mxu0 0
  %2280 = vmatpush1.bf16.msra.mxu0 0
  %2281 = vmatprep.subr.bf16.mxu0 0
  %2282 = vmatpush1.bf16.msra.mxu0 0
  %2283 = vmatprep.subr.bf16.mxu0 0
  %2284 = vmatpush1.bf16.msra.mxu0 0
  %2285 = vmatprep.subr.bf16.mxu0 0
  %2286 = vmatpush1.bf16.msra.mxu0 0
  %2287 = vmatprep.subr.bf16.mxu0 0
  %2288 = vmatpush1.bf16.msra.mxu0 0
  %2289 = vmatprep.subr.bf16.mxu0 0
  %2290 = vmatpush1.bf16.msra.mxu0 0
  %2291 = vmatprep.mubr.bf16.mxu0 0
  %2292 = vmatmul.mubr.bf16.gmra.mrb[0].mxu0 %v2257
  %v2293 = vpop.f32.mrb[0].mxu0
  %v2294 = vadd.f32 0.0, %v2293
  %v2295 = vpop.f32.mrb[0].mxu0
  %v2296 = vadd.f32 0.0, %v2295
  %v2297 = vpop.f32.mrb[0].mxu0
  %v2298 = vadd.f32 0.0, %v2297
  %v2299 = vpop.f32.mrb[0].mxu0
  %v2300 = vadd.f32 0.0, %v2299
  %2301 = vdwg.mxu0
  %v2302 = vpack.c.bf16 %v2298, %v2294
  %v2303 = vpack.c.bf16 %v2300, %v2296
  %s2304 = scalar_lea.vmem %s7, 768
  %v2305 = vld [vmem:[%s2304] sm:$0xff]
  %v2306 = vld [vmem:[%s2304 + $0x8] sm:$0xff]
  %v2307 = vld [vmem:[%s2304 + $0x10] sm:$0xff]
  %v2308 = vld [vmem:[%s2304 + $0x18] sm:$0xff]
  %v2309 = vld [vmem:[%s2304 + $0x20] sm:$0xff]
  %v2310 = vld [vmem:[%s2304 + $0x28] sm:$0xff]
  %v2311 = vld [vmem:[%s2304 + $0x30] sm:$0xff]
  %v2312 = vld [vmem:[%s2304 + $0x38] sm:$0xff]
  %v2313 = vld [vmem:[%s2304 + $0x40] sm:$0xff]
  %v2314 = vld [vmem:[%s2304 + $0x48] sm:$0xff]
  %v2315 = vld [vmem:[%s2304 + $0x50] sm:$0xff]
  %v2316 = vld [vmem:[%s2304 + $0x58] sm:$0xff]
  %v2317 = vld [vmem:[%s2304 + $0x60] sm:$0xff]
  %v2318 = vld [vmem:[%s2304 + $0x68] sm:$0xff]
  %v2319 = vld [vmem:[%s2304 + $0x70] sm:$0xff]
  %v2320 = vld [vmem:[%s2304 + $0x78] sm:$0xff]
  %v2321 = vld [vmem:[%s2304 + $0x80] sm:$0xff]
  %v2322 = vld [vmem:[%s2304 + $0x88] sm:$0xff]
  %v2323 = vld [vmem:[%s2304 + $0x90] sm:$0xff]
  %v2324 = vld [vmem:[%s2304 + $0x98] sm:$0xff]
  %v2325 = vld [vmem:[%s2304 + $0xa0] sm:$0xff]
  %v2326 = vld [vmem:[%s2304 + $0xa8] sm:$0xff]
  %v2327 = vld [vmem:[%s2304 + $0xb0] sm:$0xff]
  %v2328 = vld [vmem:[%s2304 + $0xb8] sm:$0xff]
  %v2329 = vld [vmem:[%s2304 + $0xc0] sm:$0xff]
  %v2330 = vld [vmem:[%s2304 + $0xc8] sm:$0xff]
  %v2331 = vld [vmem:[%s2304 + $0xd0] sm:$0xff]
  %v2332 = vld [vmem:[%s2304 + $0xd8] sm:$0xff]
  %v2333 = vld [vmem:[%s2304 + $0xe0] sm:$0xff]
  %v2334 = vld [vmem:[%s2304 + $0xe8] sm:$0xff]
  %v2335 = vld [vmem:[%s2304 + $0xf0] sm:$0xff]
  %v2336 = vld [vmem:[%s2304 + $0xf8] sm:$0xff]
  %v2369 = vunpack.c.l.b16 %v2305
  %v2370 = vunpack.c.h.b16 %v2305
  %v2371 = vunpack.c.l.b16 %v2306
  %v2372 = vunpack.c.h.b16 %v2306
  %v2373 = vunpack.c.l.b16 %v2307
  %v2374 = vunpack.c.h.b16 %v2307
  %v2375 = vunpack.c.l.b16 %v2308
  %v2376 = vunpack.c.h.b16 %v2308
  %v2377 = vunpack.c.l.b16 %v2309
  %v2378 = vunpack.c.h.b16 %v2309
  %v2379 = vunpack.c.l.b16 %v2310
  %v2380 = vunpack.c.h.b16 %v2310
  %v2381 = vunpack.c.l.b16 %v2311
  %v2382 = vunpack.c.h.b16 %v2311
  %v2383 = vunpack.c.l.b16 %v2312
  %v2384 = vunpack.c.h.b16 %v2312
  %v2385 = vunpack.c.l.b16 %v2313
  %v2386 = vunpack.c.h.b16 %v2313
  %v2387 = vunpack.c.l.b16 %v2314
  %v2388 = vunpack.c.h.b16 %v2314
  %v2389 = vunpack.c.l.b16 %v2315
  %v2390 = vunpack.c.h.b16 %v2315
  %v2391 = vunpack.c.l.b16 %v2316
  %v2392 = vunpack.c.h.b16 %v2316
  %v2393 = vunpack.c.l.b16 %v2317
  %v2394 = vunpack.c.h.b16 %v2317
  %v2395 = vunpack.c.l.b16 %v2318
  %v2396 = vunpack.c.h.b16 %v2318
  %v2397 = vunpack.c.l.b16 %v2319
  %v2398 = vunpack.c.h.b16 %v2319
  %v2399 = vunpack.c.l.b16 %v2320
  %v2400 = vunpack.c.h.b16 %v2320
  %v2401 = vunpack.c.l.b16 %v2321
  %v2402 = vunpack.c.h.b16 %v2321
  %v2403 = vunpack.c.l.b16 %v2322
  %v2404 = vunpack.c.h.b16 %v2322
  %v2405 = vunpack.c.l.b16 %v2323
  %v2406 = vunpack.c.h.b16 %v2323
  %v2407 = vunpack.c.l.b16 %v2324
  %v2408 = vunpack.c.h.b16 %v2324
  %v2409 = vunpack.c.l.b16 %v2325
  %v2410 = vunpack.c.h.b16 %v2325
  %v2411 = vunpack.c.l.b16 %v2326
  %v2412 = vunpack.c.h.b16 %v2326
  %v2413 = vunpack.c.l.b16 %v2327
  %v2414 = vunpack.c.h.b16 %v2327
  %v2415 = vunpack.c.l.b16 %v2328
  %v2416 = vunpack.c.h.b16 %v2328
  %v2417 = vunpack.c.l.b16 %v2329
  %v2418 = vunpack.c.h.b16 %v2329
  %v2419 = vunpack.c.l.b16 %v2330
  %v2420 = vunpack.c.h.b16 %v2330
  %v2421 = vunpack.c.l.b16 %v2331
  %v2422 = vunpack.c.h.b16 %v2331
  %v2423 = vunpack.c.l.b16 %v2332
  %v2424 = vunpack.c.h.b16 %v2332
  %v2425 = vunpack.c.l.b16 %v2333
  %v2426 = vunpack.c.h.b16 %v2333
  %v2427 = vunpack.c.l.b16 %v2334
  %v2428 = vunpack.c.h.b16 %v2334
  %v2429 = vunpack.c.l.b16 %v2335
  %v2430 = vunpack.c.h.b16 %v2335
  %v2431 = vunpack.c.l.b16 %v2336
  %v2432 = vunpack.c.h.b16 %v2336
  %v2433 = vpack.c.b16 %v2371, %v2369
  %v2434 = vpack.c.b16 %v2372, %v2370
  %v2435 = vpack.c.b16 %v2375, %v2373
  %v2436 = vpack.c.b16 %v2376, %v2374
  %v2437 = vpack.c.b16 %v2379, %v2377
  %v2438 = vpack.c.b16 %v2380, %v2378
  %v2439 = vpack.c.b16 %v2383, %v2381
  %v2440 = vpack.c.b16 %v2384, %v2382
  %v2441 = vpack.c.b16 %v2387, %v2385
  %v2442 = vpack.c.b16 %v2388, %v2386
  %v2443 = vpack.c.b16 %v2391, %v2389
  %v2444 = vpack.c.b16 %v2392, %v2390
  %v2445 = vpack.c.b16 %v2395, %v2393
  %v2446 = vpack.c.b16 %v2396, %v2394
  %v2447 = vpack.c.b16 %v2399, %v2397
  %v2448 = vpack.c.b16 %v2400, %v2398
  %v2449 = vpack.c.b16 %v2403, %v2401
  %v2450 = vpack.c.b16 %v2404, %v2402
  %v2451 = vpack.c.b16 %v2407, %v2405
  %v2452 = vpack.c.b16 %v2408, %v2406
  %v2453 = vpack.c.b16 %v2411, %v2409
  %v2454 = vpack.c.b16 %v2412, %v2410
  %v2455 = vpack.c.b16 %v2415, %v2413
  %v2456 = vpack.c.b16 %v2416, %v2414
  %v2457 = vpack.c.b16 %v2419, %v2417
  %v2458 = vpack.c.b16 %v2420, %v2418
  %v2459 = vpack.c.b16 %v2423, %v2421
  %v2460 = vpack.c.b16 %v2424, %v2422
  %v2461 = vpack.c.b16 %v2427, %v2425
  %v2462 = vpack.c.b16 %v2428, %v2426
  %v2463 = vpack.c.b16 %v2431, %v2429
  %v2464 = vpack.c.b16 %v2432, %v2430
  %2497 = vmatprep.subr.bf16.mxu0 %v2434
  %2498 = vmatpush1.bf16.msra.mxu0 %v2433
  %2499 = vmatprep.subr.bf16.mxu0 %v2436
  %2500 = vmatpush1.bf16.msra.mxu0 %v2435
  %2501 = vmatprep.subr.bf16.mxu0 %v2438
  %2502 = vmatpush1.bf16.msra.mxu0 %v2437
  %2503 = vmatprep.subr.bf16.mxu0 %v2440
  %2504 = vmatpush1.bf16.msra.mxu0 %v2439
  %2505 = vmatprep.subr.bf16.mxu0 %v2442
  %2506 = vmatpush1.bf16.msra.mxu0 %v2441
  %2507 = vmatprep.subr.bf16.mxu0 %v2444
  %2508 = vmatpush1.bf16.msra.mxu0 %v2443
  %2509 = vmatprep.subr.bf16.mxu0 %v2446
  %2510 = vmatpush1.bf16.msra.mxu0 %v2445
  %2511 = vmatprep.subr.bf16.mxu0 %v2448
  %2512 = vmatpush1.bf16.msra.mxu0 %v2447
  %2513 = vmatprep.subr.bf16.mxu0 %v2450
  %2514 = vmatpush1.bf16.msra.mxu0 %v2449
  %2515 = vmatprep.subr.bf16.mxu0 %v2452
  %2516 = vmatpush1.bf16.msra.mxu0 %v2451
  %2517 = vmatprep.subr.bf16.mxu0 %v2454
  %2518 = vmatpush1.bf16.msra.mxu0 %v2453
  %2519 = vmatprep.subr.bf16.mxu0 %v2456
  %2520 = vmatpush1.bf16.msra.mxu0 %v2455
  %2521 = vmatprep.subr.bf16.mxu0 %v2458
  %2522 = vmatpush1.bf16.msra.mxu0 %v2457
  %2523 = vmatprep.subr.bf16.mxu0 %v2460
  %2524 = vmatpush1.bf16.msra.mxu0 %v2459
  %2525 = vmatprep.subr.bf16.mxu0 %v2462
  %2526 = vmatpush1.bf16.msra.mxu0 %v2461
  %2527 = vmatprep.subr.bf16.mxu0 %v2464
  %2528 = vmatpush1.bf16.msra.mxu0 %v2463
  %2529 = vmatprep.mubr.bf16.mxu0 %v2303
  %2530 = vmatmul.mubr.bf16.gmra.mrb[0].mxu0 %v2302
  %v2531 = vpop.f32.mrb[0].mxu0
  %v2532 = vadd.f32 0.0, %v2531
  %v2533 = vpop.f32.mrb[0].mxu0
  %v2534 = vadd.f32 0.0, %v2533
  %v2535 = vpop.f32.mrb[0].mxu0
  %v2536 = vadd.f32 0.0, %v2535
  %v2537 = vpop.f32.mrb[0].mxu0
  %v2538 = vadd.f32 0.0, %v2537
  %2539 = vdwg.mxu0
  %v2540 = vadd.f32 %v2244, %v2532
  %v2541 = vadd.f32 %v2245, %v2534
  %v2542 = vadd.f32 %v2246, %v2536
  %v2543 = vadd.f32 %v2247, %v2538
  %2544 = vmatprep.subr.bf16.mxu0 %v1366
  %2545 = vmatpush1.bf16.msra.mxu0 %v1365
  %2546 = vmatprep.subr.bf16.mxu0 %v1368
  %2547 = vmatpush1.bf16.msra.mxu0 %v1367
  %2548 = vmatprep.subr.bf16.mxu0 0
  %2549 = vmatpush1.bf16.msra.mxu0 0
  %2550 = vmatprep.subr.bf16.mxu0 0
  %2551 = vmatpush1.bf16.msra.mxu0 0
  %2552 = vmatprep.subr.bf16.mxu0 0
  %2553 = vmatpush1.bf16.msra.mxu0 0
  %2554 = vmatprep.subr.bf16.mxu0 0
  %2555 = vmatpush1.bf16.msra.mxu0 0
  %2556 = vmatprep.subr.bf16.mxu0 0
  %2557 = vmatpush1.bf16.msra.mxu0 0
  %2558 = vmatprep.subr.bf16.mxu0 0
  %2559 = vmatpush1.bf16.msra.mxu0 0
  %2560 = vmatprep.subr.bf16.mxu0 0
  %2561 = vmatpush1.bf16.msra.mxu0 0
  %2562 = vmatprep.subr.bf16.mxu0 0
  %2563 = vmatpush1.bf16.msra.mxu0 0
  %2564 = vmatprep.subr.bf16.mxu0 0
  %2565 = vmatpush1.bf16.msra.mxu0 0
  %2566 = vmatprep.subr.bf16.mxu0 0
  %2567 = vmatpush1.bf16.msra.mxu0 0
  %2568 = vmatprep.subr.bf16.mxu0 0
  %2569 = vmatpush1.bf16.msra.mxu0 0
  %2570 = vmatprep.subr.bf16.mxu0 0
  %2571 = vmatpush1.bf16.msra.mxu0 0
  %2572 = vmatprep.subr.bf16.mxu0 0
  %2573 = vmatpush1.bf16.msra.mxu0 0
  %2574 = vmatprep.subr.bf16.mxu0 0
  %2575 = vmatpush1.bf16.msra.mxu0 0
  %2576 = vmatprep.mubr.bf16.mxu0 0
  %2577 = vmatmul.mubr.bf16.gmra.mrb[0].mxu0 %v1378
  %v2578 = vpop.f32.mrb[0].mxu0
  %v2579 = vadd.f32 0.0, %v2578
  %v2580 = vpop.f32.mrb[0].mxu0
  %v2581 = vadd.f32 0.0, %v2580
  %v2582 = vpop.f32.mrb[0].mxu0
  %v2583 = vadd.f32 0.0, %v2582
  %v2584 = vpop.f32.mrb[0].mxu0
  %v2585 = vadd.f32 0.0, %v2584
  %2586 = vdwg.mxu0
  %v2587 = vpack.c.bf16 %v2583, %v2579
  %v2588 = vpack.c.bf16 %v2585, %v2581
  %2589 = vmatprep.subr.bf16.mxu0 %v1366
  %2590 = vmatpush1.bf16.msra.mxu0 %v1365
  %2591 = vmatprep.subr.bf16.mxu0 %v1368
  %2592 = vmatpush1.bf16.msra.mxu0 %v1367
  %2593 = vmatprep.subr.bf16.mxu0 0
  %2594 = vmatpush1.bf16.msra.mxu0 0
  %2595 = vmatprep.subr.bf16.mxu0 0
  %2596 = vmatpush1.bf16.msra.mxu0 0
  %2597 = vmatprep.subr.bf16.mxu0 0
  %2598 = vmatpush1.bf16.msra.mxu0 0
  %2599 = vmatprep.subr.bf16.mxu0 0
  %2600 = vmatpush1.bf16.msra.mxu0 0
  %2601 = vmatprep.subr.bf16.mxu0 0
  %2602 = vmatpush1.bf16.msra.mxu0 0
  %2603 = vmatprep.subr.bf16.mxu0 0
  %2604 = vmatpush1.bf16.msra.mxu0 0
  %2605 = vmatprep.subr.bf16.mxu0 0
  %2606 = vmatpush1.bf16.msra.mxu0 0
  %2607 = vmatprep.subr.bf16.mxu0 0
  %2608 = vmatpush1.bf16.msra.mxu0 0
  %2609 = vmatprep.subr.bf16.mxu0 0
  %2610 = vmatpush1.bf16.msra.mxu0 0
  %2611 = vmatprep.subr.bf16.mxu0 0
  %2612 = vmatpush1.bf16.msra.mxu0 0
  %2613 = vmatprep.subr.bf16.mxu0 0
  %2614 = vmatpush1.bf16.msra.mxu0 0
  %2615 = vmatprep.subr.bf16.mxu0 0
  %2616 = vmatpush1.bf16.msra.mxu0 0
  %2617 = vmatprep.subr.bf16.mxu0 0
  %2618 = vmatpush1.bf16.msra.mxu0 0
  %2619 = vmatprep.subr.bf16.mxu0 0
  %2620 = vmatpush1.bf16.msra.mxu0 0
  %2621 = vmatprep.mubr.bf16.mxu0 0
  %2622 = vmatmul.mubr.bf16.gmra.mrb[0].mxu0 %v1466
  %v2623 = vpop.f32.mrb[0].mxu0
  %v2624 = vadd.f32 0.0, %v2623
  %v2625 = vpop.f32.mrb[0].mxu0
  %v2626 = vadd.f32 0.0, %v2625
  %v2627 = vpop.f32.mrb[0].mxu0
  %v2628 = vadd.f32 0.0, %v2627
  %v2629 = vpop.f32.mrb[0].mxu0
  %v2630 = vadd.f32 0.0, %v2629
  %2631 = vdwg.mxu0
  %v2632 = vpack.c.bf16 %v2628, %v2624
  %v2633 = vpack.c.bf16 %v2630, %v2626
  %2634 = vmatprep.subr.bf16.mxu0 %v1643
  %2635 = vmatpush1.bf16.msra.mxu0 %v1642
  %2636 = vmatprep.subr.bf16.mxu0 %v1645
  %2637 = vmatpush1.bf16.msra.mxu0 %v1644
  %2638 = vmatprep.subr.bf16.mxu0 %v1647
  %2639 = vmatpush1.bf16.msra.mxu0 %v1646
  %2640 = vmatprep.subr.bf16.mxu0 %v1649
  %2641 = vmatpush1.bf16.msra.mxu0 %v1648
  %2642 = vmatprep.subr.bf16.mxu0 %v1651
  %2643 = vmatpush1.bf16.msra.mxu0 %v1650
  %2644 = vmatprep.subr.bf16.mxu0 %v1653
  %2645 = vmatpush1.bf16.msra.mxu0 %v1652
  %2646 = vmatprep.subr.bf16.mxu0 %v1655
  %2647 = vmatpush1.bf16.msra.mxu0 %v1654
  %2648 = vmatprep.subr.bf16.mxu0 %v1657
  %2649 = vmatpush1.bf16.msra.mxu0 %v1656
  %2650 = vmatprep.subr.bf16.mxu0 %v1659
  %2651 = vmatpush1.bf16.msra.mxu0 %v1658
  %2652 = vmatprep.subr.bf16.mxu0 %v1661
  %2653 = vmatpush1.bf16.msra.mxu0 %v1660
  %2654 = vmatprep.subr.bf16.mxu0 %v1663
  %2655 = vmatpush1.bf16.msra.mxu0 %v1662
  %2656 = vmatprep.subr.bf16.mxu0 %v1665
  %2657 = vmatpush1.bf16.msra.mxu0 %v1664
  %2658 = vmatprep.subr.bf16.mxu0 %v1667
  %2659 = vmatpush1.bf16.msra.mxu0 %v1666
  %2660 = vmatprep.subr.bf16.mxu0 %v1669
  %2661 = vmatpush1.bf16.msra.mxu0 %v1668
  %2662 = vmatprep.subr.bf16.mxu0 %v1671
  %2663 = vmatpush1.bf16.msra.mxu0 %v1670
  %2664 = vmatprep.subr.bf16.mxu0 %v1673
  %2665 = vmatpush1.bf16.msra.mxu0 %v1672
  %2666 = vmatprep.mubr.bf16.mxu0 %v2633
  %2667 = vmatmul.mubr.bf16.gmra.mrb[0].mxu0 %v2632
  %v2668 = vpop.f32.mrb[0].mxu0
  %v2669 = vadd.f32 0.0, %v2668
  %v2670 = vpop.f32.mrb[0].mxu0
  %v2671 = vadd.f32 0.0, %v2670
  %v2672 = vpop.f32.mrb[0].mxu0
  %v2673 = vadd.f32 0.0, %v2672
  %v2674 = vpop.f32.mrb[0].mxu0
  %v2675 = vadd.f32 0.0, %v2674
  %2676 = vdwg.mxu0
  %2677 = vmatprep.subr.bf16.mxu0 %v1846
  %2678 = vmatpush1.bf16.msra.mxu0 %v1845
  %2679 = vmatprep.subr.bf16.mxu0 %v1848
  %2680 = vmatpush1.bf16.msra.mxu0 %v1847
  %2681 = vmatprep.subr.bf16.mxu0 %v1850
  %2682 = vmatpush1.bf16.msra.mxu0 %v1849
  %2683 = vmatprep.subr.bf16.mxu0 %v1852
  %2684 = vmatpush1.bf16.msra.mxu0 %v1851
  %2685 = vmatprep.subr.bf16.mxu0 %v1854
  %2686 = vmatpush1.bf16.msra.mxu0 %v1853
  %2687 = vmatprep.subr.bf16.mxu0 %v1856
  %2688 = vmatpush1.bf16.msra.mxu0 %v1855
  %2689 = vmatprep.subr.bf16.mxu0 %v1858
  %2690 = vmatpush1.bf16.msra.mxu0 %v1857
  %2691 = vmatprep.subr.bf16.mxu0 %v1860
  %2692 = vmatpush1.bf16.msra.mxu0 %v1859
  %2693 = vmatprep.subr.bf16.mxu0 %v1862
  %2694 = vmatpush1.bf16.msra.mxu0 %v1861
  %2695 = vmatprep.subr.bf16.mxu0 %v1864
  %2696 = vmatpush1.bf16.msra.mxu0 %v1863
  %2697 = vmatprep.subr.bf16.mxu0 %v1866
  %2698 = vmatpush1.bf16.msra.mxu0 %v1865
  %2699 = vmatprep.subr.bf16.mxu0 %v1868
  %2700 = vmatpush1.bf16.msra.mxu0 %v1867
  %2701 = vmatprep.subr.bf16.mxu0 %v1870
  %2702 = vmatpush1.bf16.msra.mxu0 %v1869
  %2703 = vmatprep.subr.bf16.mxu0 %v1872
  %2704 = vmatpush1.bf16.msra.mxu0 %v1871
  %2705 = vmatprep.subr.bf16.mxu0 %v1874
  %2706 = vmatpush1.bf16.msra.mxu0 %v1873
  %2707 = vmatprep.subr.bf16.mxu0 %v1876
  %2708 = vmatpush1.bf16.msra.mxu0 %v1875
  %2709 = vmatprep.mubr.bf16.mxu0 %v2588
  %2710 = vmatmul.mubr.bf16.gmra.mrb[0].mxu0 %v2587
  %v2711 = vpop.f32.mrb[0].mxu0
  %v2712 = vadd.f32 %v2669, %v2711
  %v2713 = vpop.f32.mrb[0].mxu0
  %v2714 = vadd.f32 %v2671, %v2713
  %v2715 = vpop.f32.mrb[0].mxu0
  %v2716 = vadd.f32 %v2673, %v2715
  %v2717 = vpop.f32.mrb[0].mxu0
  %v2718 = vadd.f32 %v2675, %v2717
  %2719 = vdwg.mxu0
  %2720 = vmatprep.subr.bf16.mxu0 %v1366
  %2721 = vmatpush1.bf16.msra.mxu0 %v1365
  %2722 = vmatprep.subr.bf16.mxu0 %v1368
  %2723 = vmatpush1.bf16.msra.mxu0 %v1367
  %2724 = vmatprep.subr.bf16.mxu0 0
  %2725 = vmatpush1.bf16.msra.mxu0 0
  %2726 = vmatprep.subr.bf16.mxu0 0
  %2727 = vmatpush1.bf16.msra.mxu0 0
  %2728 = vmatprep.subr.bf16.mxu0 0
  %2729 = vmatpush1.bf16.msra.mxu0 0
  %2730 = vmatprep.subr.bf16.mxu0 0
  %2731 = vmatpush1.bf16.msra.mxu0 0
  %2732 = vmatprep.subr.bf16.mxu0 0
  %2733 = vmatpush1.bf16.msra.mxu0 0
  %2734 = vmatprep.subr.bf16.mxu0 0
  %2735 = vmatpush1.bf16.msra.mxu0 0
  %2736 = vmatprep.subr.bf16.mxu0 0
  %2737 = vmatpush1.bf16.msra.mxu0 0
  %2738 = vmatprep.subr.bf16.mxu0 0
  %2739 = vmatpush1.bf16.msra.mxu0 0
  %2740 = vmatprep.subr.bf16.mxu0 0
  %2741 = vmatpush1.bf16.msra.mxu0 0
  %2742 = vmatprep.subr.bf16.mxu0 0
  %2743 = vmatpush1.bf16.msra.mxu0 0
  %2744 = vmatprep.subr.bf16.mxu0 0
  %2745 = vmatpush1.bf16.msra.mxu0 0
  %2746 = vmatprep.subr.bf16.mxu0 0
  %2747 = vmatpush1.bf16.msra.mxu0 0
  %2748 = vmatprep.subr.bf16.mxu0 0
  %2749 = vmatpush1.bf16.msra.mxu0 0
  %2750 = vmatprep.subr.bf16.mxu0 0
  %2751 = vmatpush1.bf16.msra.mxu0 0
  %2752 = vmatprep.mubr.bf16.mxu0 0
  %2753 = vmatmul.mubr.bf16.gmra.mrb[0].mxu0 %v1961
  %v2754 = vpop.f32.mrb[0].mxu0
  %v2755 = vadd.f32 0.0, %v2754
  %v2756 = vpop.f32.mrb[0].mxu0
  %v2757 = vadd.f32 0.0, %v2756
  %v2758 = vpop.f32.mrb[0].mxu0
  %v2759 = vadd.f32 0.0, %v2758
  %v2760 = vpop.f32.mrb[0].mxu0
  %v2761 = vadd.f32 0.0, %v2760
  %2762 = vdwg.mxu0
  %v2763 = vpack.c.bf16 %v2759, %v2755
  %v2764 = vpack.c.bf16 %v2761, %v2757
  %2765 = vmatprep.subr.bf16.mxu0 %v2138
  %2766 = vmatpush1.bf16.msra.mxu0 %v2137
  %2767 = vmatprep.subr.bf16.mxu0 %v2140
  %2768 = vmatpush1.bf16.msra.mxu0 %v2139
  %2769 = vmatprep.subr.bf16.mxu0 %v2142
  %2770 = vmatpush1.bf16.msra.mxu0 %v2141
  %2771 = vmatprep.subr.bf16.mxu0 %v2144
  %2772 = vmatpush1.bf16.msra.mxu0 %v2143
  %2773 = vmatprep.subr.bf16.mxu0 %v2146
  %2774 = vmatpush1.bf16.msra.mxu0 %v2145
  %2775 = vmatprep.subr.bf16.mxu0 %v2148
  %2776 = vmatpush1.bf16.msra.mxu0 %v2147
  %2777 = vmatprep.subr.bf16.mxu0 %v2150
  %2778 = vmatpush1.bf16.msra.mxu0 %v2149
  %2779 = vmatprep.subr.bf16.mxu0 %v2152
  %2780 = vmatpush1.bf16.msra.mxu0 %v2151
  %2781 = vmatprep.subr.bf16.mxu0 %v2154
  %2782 = vmatpush1.bf16.msra.mxu0 %v2153
  %2783 = vmatprep.subr.bf16.mxu0 %v2156
  %2784 = vmatpush1.bf16.msra.mxu0 %v2155
  %2785 = vmatprep.subr.bf16.mxu0 %v2158
  %2786 = vmatpush1.bf16.msra.mxu0 %v2157
  %2787 = vmatprep.subr.bf16.mxu0 %v2160
  %2788 = vmatpush1.bf16.msra.mxu0 %v2159
  %2789 = vmatprep.subr.bf16.mxu0 %v2162
  %2790 = vmatpush1.bf16.msra.mxu0 %v2161
  %2791 = vmatprep.subr.bf16.mxu0 %v2164
  %2792 = vmatpush1.bf16.msra.mxu0 %v2163
  %2793 = vmatprep.subr.bf16.mxu0 %v2166
  %2794 = vmatpush1.bf16.msra.mxu0 %v2165
  %2795 = vmatprep.subr.bf16.mxu0 %v2168
  %2796 = vmatpush1.bf16.msra.mxu0 %v2167
  %2797 = vmatprep.mubr.bf16.mxu0 %v2764
  %2798 = vmatmul.mubr.bf16.gmra.mrb[0].mxu0 %v2763
  %v2799 = vpop.f32.mrb[0].mxu0
  %v2800 = vadd.f32 0.0, %v2799
  %v2801 = vpop.f32.mrb[0].mxu0
  %v2802 = vadd.f32 0.0, %v2801
  %v2803 = vpop.f32.mrb[0].mxu0
  %v2804 = vadd.f32 0.0, %v2803
  %v2805 = vpop.f32.mrb[0].mxu0
  %v2806 = vadd.f32 0.0, %v2805
  %2807 = vdwg.mxu0
  %v2808 = vadd.f32 %v2712, %v2800
  %v2809 = vadd.f32 %v2714, %v2802
  %v2810 = vadd.f32 %v2716, %v2804
  %v2811 = vadd.f32 %v2718, %v2806
  %2812 = vmatprep.subr.bf16.mxu0 %v1366
  %2813 = vmatpush1.bf16.msra.mxu0 %v1365
  %2814 = vmatprep.subr.bf16.mxu0 %v1368
  %2815 = vmatpush1.bf16.msra.mxu0 %v1367
  %2816 = vmatprep.subr.bf16.mxu0 0
  %2817 = vmatpush1.bf16.msra.mxu0 0
  %2818 = vmatprep.subr.bf16.mxu0 0
  %2819 = vmatpush1.bf16.msra.mxu0 0
  %2820 = vmatprep.subr.bf16.mxu0 0
  %2821 = vmatpush1.bf16.msra.mxu0 0
  %2822 = vmatprep.subr.bf16.mxu0 0
  %2823 = vmatpush1.bf16.msra.mxu0 0
  %2824 = vmatprep.subr.bf16.mxu0 0
  %2825 = vmatpush1.bf16.msra.mxu0 0
  %2826 = vmatprep.subr.bf16.mxu0 0
  %2827 = vmatpush1.bf16.msra.mxu0 0
  %2828 = vmatprep.subr.bf16.mxu0 0
  %2829 = vmatpush1.bf16.msra.mxu0 0
  %2830 = vmatprep.subr.bf16.mxu0 0
  %2831 = vmatpush1.bf16.msra.mxu0 0
  %2832 = vmatprep.subr.bf16.mxu0 0
  %2833 = vmatpush1.bf16.msra.mxu0 0
  %2834 = vmatprep.subr.bf16.mxu0 0
  %2835 = vmatpush1.bf16.msra.mxu0 0
  %2836 = vmatprep.subr.bf16.mxu0 0
  %2837 = vmatpush1.bf16.msra.mxu0 0
  %2838 = vmatprep.subr.bf16.mxu0 0
  %2839 = vmatpush1.bf16.msra.mxu0 0
  %2840 = vmatprep.subr.bf16.mxu0 0
  %2841 = vmatpush1.bf16.msra.mxu0 0
  %2842 = vmatprep.subr.bf16.mxu0 0
  %2843 = vmatpush1.bf16.msra.mxu0 0
  %2844 = vmatprep.mubr.bf16.mxu0 0
  %2845 = vmatmul.mubr.bf16.gmra.mrb[0].mxu0 %v2257
  %v2846 = vpop.f32.mrb[0].mxu0
  %v2847 = vadd.f32 0.0, %v2846
  %v2848 = vpop.f32.mrb[0].mxu0
  %v2849 = vadd.f32 0.0, %v2848
  %v2850 = vpop.f32.mrb[0].mxu0
  %v2851 = vadd.f32 0.0, %v2850
  %v2852 = vpop.f32.mrb[0].mxu0
  %v2853 = vadd.f32 0.0, %v2852
  %2854 = vdwg.mxu0
  %v2855 = vpack.c.bf16 %v2851, %v2847
  %v2856 = vpack.c.bf16 %v2853, %v2849
  %2857 = vmatprep.subr.bf16.mxu0 %v2434
  %2858 = vmatpush1.bf16.msra.mxu0 %v2433
  %2859 = vmatprep.subr.bf16.mxu0 %v2436
  %2860 = vmatpush1.bf16.msra.mxu0 %v2435
  %2861 = vmatprep.subr.bf16.mxu0 %v2438
  %2862 = vmatpush1.bf16.msra.mxu0 %v2437
  %2863 = vmatprep.subr.bf16.mxu0 %v2440
  %2864 = vmatpush1.bf16.msra.mxu0 %v2439
  %2865 = vmatprep.subr.bf16.mxu0 %v2442
  %2866 = vmatpush1.bf16.msra.mxu0 %v2441
  %2867 = vmatprep.subr.bf16.mxu0 %v2444
  %2868 = vmatpush1.bf16.msra.mxu0 %v2443
  %2869 = vmatprep.subr.bf16.mxu0 %v2446
  %2870 = vmatpush1.bf16.msra.mxu0 %v2445
  %2871 = vmatprep.subr.bf16.mxu0 %v2448
  %2872 = vmatpush1.bf16.msra.mxu0 %v2447
  %2873 = vmatprep.subr.bf16.mxu0 %v2450
  %2874 = vmatpush1.bf16.msra.mxu0 %v2449
  %2875 = vmatprep.subr.bf16.mxu0 %v2452
  %2876 = vmatpush1.bf16.msra.mxu0 %v2451
  %2877 = vmatprep.subr.bf16.mxu0 %v2454
  %2878 = vmatpush1.bf16.msra.mxu0 %v2453
  %2879 = vmatprep.subr.bf16.mxu0 %v2456
  %2880 = vmatpush1.bf16.msra.mxu0 %v2455
  %2881 = vmatprep.subr.bf16.mxu0 %v2458
  %2882 = vmatpush1.bf16.msra.mxu0 %v2457
  %2883 = vmatprep.subr.bf16.mxu0 %v2460
  %2884 = vmatpush1.bf16.msra.mxu0 %v2459
  %2885 = vmatprep.subr.bf16.mxu0 %v2462
  %2886 = vmatpush1.bf16.msra.mxu0 %v2461
  %2887 = vmatprep.subr.bf16.mxu0 %v2464
  %2888 = vmatpush1.bf16.msra.mxu0 %v2463
  %2889 = vmatprep.mubr.bf16.mxu0 %v2856
  %2890 = vmatmul.mubr.bf16.gmra.mrb[0].mxu0 %v2855
  %v2891 = vpop.f32.mrb[0].mxu0
  %v2892 = vadd.f32 0.0, %v2891
  %v2893 = vpop.f32.mrb[0].mxu0
  %v2894 = vadd.f32 0.0, %v2893
  %v2895 = vpop.f32.mrb[0].mxu0
  %v2896 = vadd.f32 0.0, %v2895
  %v2897 = vpop.f32.mrb[0].mxu0
  %v2898 = vadd.f32 0.0, %v2897
  %2899 = vdwg.mxu0
  %v2900 = vadd.f32 %v2808, %v2892
  %v2901 = vadd.f32 %v2809, %v2894
  %v2902 = vadd.f32 %v2810, %v2896
  %v2903 = vadd.f32 %v2811, %v2898
  %v2904 = vld [vmem:[%s11] sm:$0x1]
  %v2905 = vld [vmem:[%s12] sm:$0x1]
  %v2906 = vlaneseq
  %v2907 = vshrl.u32 %v2906, 7
  %v2908 = vadd.s32 %v2907, 8
  %v2909 = vadd.s32 %v2907, 16
  %v2910 = vadd.s32 %v2907, 24
  %v2911 = vadd.s32 %v2907, 32
  %v2912 = vadd.s32 %v2907, 40
  %v2913 = vadd.s32 %v2907, 48
  %v2914 = vadd.s32 %v2907, 56
  %v2915 = vadd.s32 %v2907, 64
  %v2916 = vadd.s32 %v2907, 72
  %v2917 = vadd.s32 %v2907, 80
  %v2918 = vadd.s32 %v2907, 88
  %v2919 = vadd.s32 %v2907, 96
  %v2920 = vadd.s32 %v2907, 104
  %v2921 = vadd.s32 %v2907, 112
  %v2922 = vadd.s32 %v2907, 120
  %v2923 = vadd.s32 %v2907, 128
  %v2924 = vadd.s32 %v2907, 136
  %v2925 = vadd.s32 %v2907, 144
  %v2926 = vadd.s32 %v2907, 152
  %v2927 = vadd.s32 %v2907, 160
  %v2928 = vadd.s32 %v2907, 168
  %v2929 = vadd.s32 %v2907, 176
  %v2930 = vadd.s32 %v2907, 184
  %v2931 = vadd.s32 %v2907, 192
  %v2932 = vadd.s32 %v2907, 200
  %v2933 = vadd.s32 %v2907, 208
  %v2934 = vadd.s32 %v2907, 216
  %v2935 = vadd.s32 %v2907, 224
  %v2936 = vadd.s32 %v2907, 232
  %v2937 = vadd.s32 %v2907, 240
  %v2938 = vadd.s32 %v2907, 248
  %vm2939 = vcmp.lt.s32.totalorder %v2907, 0
  %v2940 = vsub.s32 0, %v2907
  %v2941 = vsel %vm2939, %v2940, %v2907
  %v2942 = vshrl.u32 %v2941, 4
  %v2943 = vand.u32 %v2941, 15
  %v2944 = vsub.s32 0, %v2943
  %v2945 = vsel %vm2939, %v2944, %v2943
  %vm2946 = vcmp.lt.s32.totalorder %v2908, 0
  %v2947 = vsub.s32 0, %v2908
  %v2948 = vsel %vm2946, %v2947, %v2908
  %v2949 = vshrl.u32 %v2948, 4
  %v2950 = vand.u32 %v2948, 15
  %v2951 = vsub.s32 0, %v2950
  %v2952 = vsel %vm2946, %v2951, %v2950
  %vm2953 = vcmp.lt.s32.totalorder %v2909, 0
  %v2954 = vsub.s32 0, %v2909
  %v2955 = vsel %vm2953, %v2954, %v2909
  %v2956 = vshrl.u32 %v2955, 4
  %v2957 = vand.u32 %v2955, 15
  %v2958 = vsub.s32 0, %v2957
  %v2959 = vsel %vm2953, %v2958, %v2957
  %vm2960 = vcmp.lt.s32.totalorder %v2910, 0
  %v2961 = vsub.s32 0, %v2910
  %v2962 = vsel %vm2960, %v2961, %v2910
  %v2963 = vshrl.u32 %v2962, 4
  %v2964 = vand.u32 %v2962, 15
  %v2965 = vsub.s32 0, %v2964
  %v2966 = vsel %vm2960, %v2965, %v2964
  %vm2967 = vcmp.lt.s32.totalorder %v2911, 0
  %v2968 = vsub.s32 0, %v2911
  %v2969 = vsel %vm2967, %v2968, %v2911
  %v2970 = vshrl.u32 %v2969, 4
  %v2971 = vand.u32 %v2969, 15
  %v2972 = vsub.s32 0, %v2971
  %v2973 = vsel %vm2967, %v2972, %v2971
  %vm2974 = vcmp.lt.s32.totalorder %v2912, 0
  %v2975 = vsub.s32 0, %v2912
  %v2976 = vsel %vm2974, %v2975, %v2912
  %v2977 = vshrl.u32 %v2976, 4
  %v2978 = vand.u32 %v2976, 15
  %v2979 = vsub.s32 0, %v2978
  %v2980 = vsel %vm2974, %v2979, %v2978
  %vm2981 = vcmp.lt.s32.totalorder %v2913, 0
  %v2982 = vsub.s32 0, %v2913
  %v2983 = vsel %vm2981, %v2982, %v2913
  %v2984 = vshrl.u32 %v2983, 4
  %v2985 = vand.u32 %v2983, 15
  %v2986 = vsub.s32 0, %v2985
  %v2987 = vsel %vm2981, %v2986, %v2985
  %vm2988 = vcmp.lt.s32.totalorder %v2914, 0
  %v2989 = vsub.s32 0, %v2914
  %v2990 = vsel %vm2988, %v2989, %v2914
  %v2991 = vshrl.u32 %v2990, 4
  %v2992 = vand.u32 %v2990, 15
  %v2993 = vsub.s32 0, %v2992
  %v2994 = vsel %vm2988, %v2993, %v2992
  %vm2995 = vcmp.lt.s32.totalorder %v2915, 0
  %v2996 = vsub.s32 0, %v2915
  %v2997 = vsel %vm2995, %v2996, %v2915
  %v2998 = vshrl.u32 %v2997, 4
  %v2999 = vand.u32 %v2997, 15
  %v3000 = vsub.s32 0, %v2999
  %v3001 = vsel %vm2995, %v3000, %v2999
  %vm3002 = vcmp.lt.s32.totalorder %v2916, 0
  %v3003 = vsub.s32 0, %v2916
  %v3004 = vsel %vm3002, %v3003, %v2916
  %v3005 = vshrl.u32 %v3004, 4
  %v3006 = vand.u32 %v3004, 15
  %v3007 = vsub.s32 0, %v3006
  %v3008 = vsel %vm3002, %v3007, %v3006
  %vm3009 = vcmp.lt.s32.totalorder %v2917, 0
  %v3010 = vsub.s32 0, %v2917
  %v3011 = vsel %vm3009, %v3010, %v2917
  %v3012 = vshrl.u32 %v3011, 4
  %v3013 = vand.u32 %v3011, 15
  %v3014 = vsub.s32 0, %v3013
  %v3015 = vsel %vm3009, %v3014, %v3013
  %vm3016 = vcmp.lt.s32.totalorder %v2918, 0
  %v3017 = vsub.s32 0, %v2918
  %v3018 = vsel %vm3016, %v3017, %v2918
  %v3019 = vshrl.u32 %v3018, 4
  %v3020 = vand.u32 %v3018, 15
  %v3021 = vsub.s32 0, %v3020
  %v3022 = vsel %vm3016, %v3021, %v3020
  %vm3023 = vcmp.lt.s32.totalorder %v2919, 0
  %v3024 = vsub.s32 0, %v2919
  %v3025 = vsel %vm3023, %v3024, %v2919
  %v3026 = vshrl.u32 %v3025, 4
  %v3027 = vand.u32 %v3025, 15
  %v3028 = vsub.s32 0, %v3027
  %v3029 = vsel %vm3023, %v3028, %v3027
  %vm3030 = vcmp.lt.s32.totalorder %v2920, 0
  %v3031 = vsub.s32 0, %v2920
  %v3032 = vsel %vm3030, %v3031, %v2920
  %v3033 = vshrl.u32 %v3032, 4
  %v3034 = vand.u32 %v3032, 15
  %v3035 = vsub.s32 0, %v3034
  %v3036 = vsel %vm3030, %v3035, %v3034
  %vm3037 = vcmp.lt.s32.totalorder %v2921, 0
  %v3038 = vsub.s32 0, %v2921
  %v3039 = vsel %vm3037, %v3038, %v2921
  %v3040 = vshrl.u32 %v3039, 4
  %v3041 = vand.u32 %v3039, 15
  %v3042 = vsub.s32 0, %v3041
  %v3043 = vsel %vm3037, %v3042, %v3041
  %vm3044 = vcmp.lt.s32.totalorder %v2922, 0
  %v3045 = vsub.s32 0, %v2922
  %v3046 = vsel %vm3044, %v3045, %v2922
  %v3047 = vshrl.u32 %v3046, 4
  %v3048 = vand.u32 %v3046, 15
  %v3049 = vsub.s32 0, %v3048
  %v3050 = vsel %vm3044, %v3049, %v3048
  %vm3051 = vcmp.lt.s32.totalorder %v2923, 0
  %v3052 = vsub.s32 0, %v2923
  %v3053 = vsel %vm3051, %v3052, %v2923
  %v3054 = vshrl.u32 %v3053, 4
  %v3055 = vand.u32 %v3053, 15
  %v3056 = vsub.s32 0, %v3055
  %v3057 = vsel %vm3051, %v3056, %v3055
  %vm3058 = vcmp.lt.s32.totalorder %v2924, 0
  %v3059 = vsub.s32 0, %v2924
  %v3060 = vsel %vm3058, %v3059, %v2924
  %v3061 = vshrl.u32 %v3060, 4
  %v3062 = vand.u32 %v3060, 15
  %v3063 = vsub.s32 0, %v3062
  %v3064 = vsel %vm3058, %v3063, %v3062
  %vm3065 = vcmp.lt.s32.totalorder %v2925, 0
  %v3066 = vsub.s32 0, %v2925
  %v3067 = vsel %vm3065, %v3066, %v2925
  %v3068 = vshrl.u32 %v3067, 4
  %v3069 = vand.u32 %v3067, 15
  %v3070 = vsub.s32 0, %v3069
  %v3071 = vsel %vm3065, %v3070, %v3069
  %vm3072 = vcmp.lt.s32.totalorder %v2926, 0
  %v3073 = vsub.s32 0, %v2926
  %v3074 = vsel %vm3072, %v3073, %v2926
  %v3075 = vshrl.u32 %v3074, 4
  %v3076 = vand.u32 %v3074, 15
  %v3077 = vsub.s32 0, %v3076
  %v3078 = vsel %vm3072, %v3077, %v3076
  %vm3079 = vcmp.lt.s32.totalorder %v2927, 0
  %v3080 = vsub.s32 0, %v2927
  %v3081 = vsel %vm3079, %v3080, %v2927
  %v3082 = vshrl.u32 %v3081, 4
  %v3083 = vand.u32 %v3081, 15
  %v3084 = vsub.s32 0, %v3083
  %v3085 = vsel %vm3079, %v3084, %v3083
  %vm3086 = vcmp.lt.s32.totalorder %v2928, 0
  %v3087 = vsub.s32 0, %v2928
  %v3088 = vsel %vm3086, %v3087, %v2928
  %v3089 = vshrl.u32 %v3088, 4
  %v3090 = vand.u32 %v3088, 15
  %v3091 = vsub.s32 0, %v3090
  %v3092 = vsel %vm3086, %v3091, %v3090
  %vm3093 = vcmp.lt.s32.totalorder %v2929, 0
  %v3094 = vsub.s32 0, %v2929
  %v3095 = vsel %vm3093, %v3094, %v2929
  %v3096 = vshrl.u32 %v3095, 4
  %v3097 = vand.u32 %v3095, 15
  %v3098 = vsub.s32 0, %v3097
  %v3099 = vsel %vm3093, %v3098, %v3097
  %vm3100 = vcmp.lt.s32.totalorder %v2930, 0
  %v3101 = vsub.s32 0, %v2930
  %v3102 = vsel %vm3100, %v3101, %v2930
  %v3103 = vshrl.u32 %v3102, 4
  %v3104 = vand.u32 %v3102, 15
  %v3105 = vsub.s32 0, %v3104
  %v3106 = vsel %vm3100, %v3105, %v3104
  %vm3107 = vcmp.lt.s32.totalorder %v2931, 0
  %v3108 = vsub.s32 0, %v2931
  %v3109 = vsel %vm3107, %v3108, %v2931
  %v3110 = vshrl.u32 %v3109, 4
  %v3111 = vand.u32 %v3109, 15
  %v3112 = vsub.s32 0, %v3111
  %v3113 = vsel %vm3107, %v3112, %v3111
  %vm3114 = vcmp.lt.s32.totalorder %v2932, 0
  %v3115 = vsub.s32 0, %v2932
  %v3116 = vsel %vm3114, %v3115, %v2932
  %v3117 = vshrl.u32 %v3116, 4
  %v3118 = vand.u32 %v3116, 15
  %v3119 = vsub.s32 0, %v3118
  %v3120 = vsel %vm3114, %v3119, %v3118
  %vm3121 = vcmp.lt.s32.totalorder %v2933, 0
  %v3122 = vsub.s32 0, %v2933
  %v3123 = vsel %vm3121, %v3122, %v2933
  %v3124 = vshrl.u32 %v3123, 4
  %v3125 = vand.u32 %v3123, 15
  %v3126 = vsub.s32 0, %v3125
  %v3127 = vsel %vm3121, %v3126, %v3125
  %vm3128 = vcmp.lt.s32.totalorder %v2934, 0
  %v3129 = vsub.s32 0, %v2934
  %v3130 = vsel %vm3128, %v3129, %v2934
  %v3131 = vshrl.u32 %v3130, 4
  %v3132 = vand.u32 %v3130, 15
  %v3133 = vsub.s32 0, %v3132
  %v3134 = vsel %vm3128, %v3133, %v3132
  %vm3135 = vcmp.lt.s32.totalorder %v2935, 0
  %v3136 = vsub.s32 0, %v2935
  %v3137 = vsel %vm3135, %v3136, %v2935
  %v3138 = vshrl.u32 %v3137, 4
  %v3139 = vand.u32 %v3137, 15
  %v3140 = vsub.s32 0, %v3139
  %v3141 = vsel %vm3135, %v3140, %v3139
  %vm3142 = vcmp.lt.s32.totalorder %v2936, 0
  %v3143 = vsub.s32 0, %v2936
  %v3144 = vsel %vm3142, %v3143, %v2936
  %v3145 = vshrl.u32 %v3144, 4
  %v3146 = vand.u32 %v3144, 15
  %v3147 = vsub.s32 0, %v3146
  %v3148 = vsel %vm3142, %v3147, %v3146
  %vm3149 = vcmp.lt.s32.totalorder %v2937, 0
  %v3150 = vsub.s32 0, %v2937
  %v3151 = vsel %vm3149, %v3150, %v2937
  %v3152 = vshrl.u32 %v3151, 4
  %v3153 = vand.u32 %v3151, 15
  %v3154 = vsub.s32 0, %v3153
  %v3155 = vsel %vm3149, %v3154, %v3153
  %vm3156 = vcmp.lt.s32.totalorder %v2938, 0
  %v3157 = vsub.s32 0, %v2938
  %v3158 = vsel %vm3156, %v3157, %v2938
  %v3159 = vshrl.u32 %v3158, 4
  %v3160 = vand.u32 %v3158, 15
  %v3161 = vsub.s32 0, %v3160
  %v3162 = vsel %vm3156, %v3161, %v3160
  %vm3163 = vcmp.ne.s32.totalorder %v2945, 0
  %vm3164 = vcmp.ne.s32.totalorder %v2952, 0
  %vm3165 = vcmp.ne.s32.totalorder %v2959, 0
  %vm3166 = vcmp.ne.s32.totalorder %v2966, 0
  %vm3167 = vcmp.ne.s32.totalorder %v2973, 0
  %vm3168 = vcmp.ne.s32.totalorder %v2980, 0
  %vm3169 = vcmp.ne.s32.totalorder %v2987, 0
  %vm3170 = vcmp.ne.s32.totalorder %v2994, 0
  %vm3171 = vcmp.ne.s32.totalorder %v3001, 0
  %vm3172 = vcmp.ne.s32.totalorder %v3008, 0
  %vm3173 = vcmp.ne.s32.totalorder %v3015, 0
  %vm3174 = vcmp.ne.s32.totalorder %v3022, 0
  %vm3175 = vcmp.ne.s32.totalorder %v3029, 0
  %vm3176 = vcmp.ne.s32.totalorder %v3036, 0
  %vm3177 = vcmp.ne.s32.totalorder %v3043, 0
  %vm3178 = vcmp.ne.s32.totalorder %v3050, 0
  %vm3179 = vcmp.ne.s32.totalorder %v3057, 0
  %vm3180 = vcmp.ne.s32.totalorder %v3064, 0
  %vm3181 = vcmp.ne.s32.totalorder %v3071, 0
  %vm3182 = vcmp.ne.s32.totalorder %v3078, 0
  %vm3183 = vcmp.ne.s32.totalorder %v3085, 0
  %vm3184 = vcmp.ne.s32.totalorder %v3092, 0
  %vm3185 = vcmp.ne.s32.totalorder %v3099, 0
  %vm3186 = vcmp.ne.s32.totalorder %v3106, 0
  %vm3187 = vcmp.ne.s32.totalorder %v3113, 0
  %vm3188 = vcmp.ne.s32.totalorder %v3120, 0
  %vm3189 = vcmp.ne.s32.totalorder %v3127, 0
  %vm3190 = vcmp.ne.s32.totalorder %v3134, 0
  %vm3191 = vcmp.ne.s32.totalorder %v3141, 0
  %vm3192 = vcmp.ne.s32.totalorder %v3148, 0
  %vm3193 = vcmp.ne.s32.totalorder %v3155, 0
  %vm3194 = vcmp.ne.s32.totalorder %v3162, 0
  %vm3195 = vcmp.lt.s32.totalorder %v2945, 0
  %vm3196 = vcmp.lt.s32.totalorder %v2952, 0
  %vm3197 = vcmp.lt.s32.totalorder %v2959, 0
  %vm3198 = vcmp.lt.s32.totalorder %v2966, 0
  %vm3199 = vcmp.lt.s32.totalorder %v2973, 0
  %vm3200 = vcmp.lt.s32.totalorder %v2980, 0
  %vm3201 = vcmp.lt.s32.totalorder %v2987, 0
  %vm3202 = vcmp.lt.s32.totalorder %v2994, 0
  %vm3203 = vcmp.lt.s32.totalorder %v3001, 0
  %vm3204 = vcmp.lt.s32.totalorder %v3008, 0
  %vm3205 = vcmp.lt.s32.totalorder %v3015, 0
  %vm3206 = vcmp.lt.s32.totalorder %v3022, 0
  %vm3207 = vcmp.lt.s32.totalorder %v3029, 0
  %vm3208 = vcmp.lt.s32.totalorder %v3036, 0
  %vm3209 = vcmp.lt.s32.totalorder %v3043, 0
  %vm3210 = vcmp.lt.s32.totalorder %v3050, 0
  %vm3211 = vcmp.lt.s32.totalorder %v3057, 0
  %vm3212 = vcmp.lt.s32.totalorder %v3064, 0
  %vm3213 = vcmp.lt.s32.totalorder %v3071, 0
  %vm3214 = vcmp.lt.s32.totalorder %v3078, 0
  %vm3215 = vcmp.lt.s32.totalorder %v3085, 0
  %vm3216 = vcmp.lt.s32.totalorder %v3092, 0
  %vm3217 = vcmp.lt.s32.totalorder %v3099, 0
  %vm3218 = vcmp.lt.s32.totalorder %v3106, 0
  %vm3219 = vcmp.lt.s32.totalorder %v3113, 0
  %vm3220 = vcmp.lt.s32.totalorder %v3120, 0
  %vm3221 = vcmp.lt.s32.totalorder %v3127, 0
  %vm3222 = vcmp.lt.s32.totalorder %v3134, 0
  %vm3223 = vcmp.lt.s32.totalorder %v3141, 0
  %vm3224 = vcmp.lt.s32.totalorder %v3148, 0
  %vm3225 = vcmp.lt.s32.totalorder %v3155, 0
  %vm3226 = vcmp.lt.s32.totalorder %v3162, 0
  %vm3227 = vmand %vm3195, %vm3163
  %vm3228 = vmand %vm3196, %vm3164
  %vm3229 = vmand %vm3197, %vm3165
  %vm3230 = vmand %vm3198, %vm3166
  %vm3231 = vmand %vm3199, %vm3167
  %vm3232 = vmand %vm3200, %vm3168
  %vm3233 = vmand %vm3201, %vm3169
  %vm3234 = vmand %vm3202, %vm3170
  %vm3235 = vmand %vm3203, %vm3171
  %vm3236 = vmand %vm3204, %vm3172
  %vm3237 = vmand %vm3205, %vm3173
  %vm3238 = vmand %vm3206, %vm3174
  %vm3239 = vmand %vm3207, %vm3175
  %vm3240 = vmand %vm3208, %vm3176
  %vm3241 = vmand %vm3209, %vm3177
  %vm3242 = vmand %vm3210, %vm3178
  %vm3243 = vmand %vm3211, %vm3179
  %vm3244 = vmand %vm3212, %vm3180
  %vm3245 = vmand %vm3213, %vm3181
  %vm3246 = vmand %vm3214, %vm3182
  %vm3247 = vmand %vm3215, %vm3183
  %vm3248 = vmand %vm3216, %vm3184
  %vm3249 = vmand %vm3217, %vm3185
  %vm3250 = vmand %vm3218, %vm3186
  %vm3251 = vmand %vm3219, %vm3187
  %vm3252 = vmand %vm3220, %vm3188
  %vm3253 = vmand %vm3221, %vm3189
  %vm3254 = vmand %vm3222, %vm3190
  %vm3255 = vmand %vm3223, %vm3191
  %vm3256 = vmand %vm3224, %vm3192
  %vm3257 = vmand %vm3225, %vm3193
  %vm3258 = vmand %vm3226, %vm3194
  %v3259 = vadd.s32 %v2945, 16
  %v3260 = vadd.s32 %v2952, 16
  %v3261 = vadd.s32 %v2959, 16
  %v3262 = vadd.s32 %v2966, 16
  %v3263 = vadd.s32 %v2973, 16
  %v3264 = vadd.s32 %v2980, 16
  %v3265 = vadd.s32 %v2987, 16
  %v3266 = vadd.s32 %v2994, 16
  %v3267 = vadd.s32 %v3001, 16
  %v3268 = vadd.s32 %v3008, 16
  %v3269 = vadd.s32 %v3015, 16
  %v3270 = vadd.s32 %v3022, 16
  %v3271 = vadd.s32 %v3029, 16
  %v3272 = vadd.s32 %v3036, 16
  %v3273 = vadd.s32 %v3043, 16
  %v3274 = vadd.s32 %v3050, 16
  %v3275 = vadd.s32 %v3057, 16
  %v3276 = vadd.s32 %v3064, 16
  %v3277 = vadd.s32 %v3071, 16
  %v3278 = vadd.s32 %v3078, 16
  %v3279 = vadd.s32 %v3085, 16
  %v3280 = vadd.s32 %v3092, 16
  %v3281 = vadd.s32 %v3099, 16
  %v3282 = vadd.s32 %v3106, 16
  %v3283 = vadd.s32 %v3113, 16
  %v3284 = vadd.s32 %v3120, 16
  %v3285 = vadd.s32 %v3127, 16
  %v3286 = vadd.s32 %v3134, 16
  %v3287 = vadd.s32 %v3141, 16
  %v3288 = vadd.s32 %v3148, 16
  %v3289 = vadd.s32 %v3155, 16
  %v3290 = vadd.s32 %v3162, 16
  %v3291 = vsel %vm3227, %v3259, %v2945
  %v3292 = vsel %vm3228, %v3260, %v2952
  %v3293 = vsel %vm3229, %v3261, %v2959
  %v3294 = vsel %vm3230, %v3262, %v2966
  %v3295 = vsel %vm3231, %v3263, %v2973
  %v3296 = vsel %vm3232, %v3264, %v2980
  %v3297 = vsel %vm3233, %v3265, %v2987
  %v3298 = vsel %vm3234, %v3266, %v2994
  %v3299 = vsel %vm3235, %v3267, %v3001
  %v3300 = vsel %vm3236, %v3268, %v3008
  %v3301 = vsel %vm3237, %v3269, %v3015
  %v3302 = vsel %vm3238, %v3270, %v3022
  %v3303 = vsel %vm3239, %v3271, %v3029
  %v3304 = vsel %vm3240, %v3272, %v3036
  %v3305 = vsel %vm3241, %v3273, %v3043
  %v3306 = vsel %vm3242, %v3274, %v3050
  %v3307 = vsel %vm3243, %v3275, %v3057
  %v3308 = vsel %vm3244, %v3276, %v3064
  %v3309 = vsel %vm3245, %v3277, %v3071
  %v3310 = vsel %vm3246, %v3278, %v3078
  %v3311 = vsel %vm3247, %v3279, %v3085
  %v3312 = vsel %vm3248, %v3280, %v3092
  %v3313 = vsel %vm3249, %v3281, %v3099
  %v3314 = vsel %vm3250, %v3282, %v3106
  %v3315 = vsel %vm3251, %v3283, %v3113
  %v3316 = vsel %vm3252, %v3284, %v3120
  %v3317 = vsel %vm3253, %v3285, %v3127
  %v3318 = vsel %vm3254, %v3286, %v3134
  %v3319 = vsel %vm3255, %v3287, %v3141
  %v3320 = vsel %vm3256, %v3288, %v3148
  %v3321 = vsel %vm3257, %v3289, %v3155
  %v3322 = vsel %vm3258, %v3290, %v3162
  %v3323 = vlaneseq
  %v3324 = vand.u32 %v3323, 127
  %vm3325 = vcmp.eq.s32.totalorder %v3291, %v3324
  %vm3326 = vcmp.eq.s32.totalorder %v3292, %v3324
  %vm3327 = vcmp.eq.s32.totalorder %v3293, %v3324
  %vm3328 = vcmp.eq.s32.totalorder %v3294, %v3324
  %vm3329 = vcmp.eq.s32.totalorder %v3295, %v3324
  %vm3330 = vcmp.eq.s32.totalorder %v3296, %v3324
  %vm3331 = vcmp.eq.s32.totalorder %v3297, %v3324
  %vm3332 = vcmp.eq.s32.totalorder %v3298, %v3324
  %vm3333 = vcmp.eq.s32.totalorder %v3299, %v3324
  %vm3334 = vcmp.eq.s32.totalorder %v3300, %v3324
  %vm3335 = vcmp.eq.s32.totalorder %v3301, %v3324
  %vm3336 = vcmp.eq.s32.totalorder %v3302, %v3324
  %vm3337 = vcmp.eq.s32.totalorder %v3303, %v3324
  %vm3338 = vcmp.eq.s32.totalorder %v3304, %v3324
  %vm3339 = vcmp.eq.s32.totalorder %v3305, %v3324
  %vm3340 = vcmp.eq.s32.totalorder %v3306, %v3324
  %vm3341 = vcmp.eq.s32.totalorder %v3307, %v3324
  %vm3342 = vcmp.eq.s32.totalorder %v3308, %v3324
  %vm3343 = vcmp.eq.s32.totalorder %v3309, %v3324
  %vm3344 = vcmp.eq.s32.totalorder %v3310, %v3324
  %vm3345 = vcmp.eq.s32.totalorder %v3311, %v3324
  %vm3346 = vcmp.eq.s32.totalorder %v3312, %v3324
  %vm3347 = vcmp.eq.s32.totalorder %v3313, %v3324
  %vm3348 = vcmp.eq.s32.totalorder %v3314, %v3324
  %vm3349 = vcmp.eq.s32.totalorder %v3315, %v3324
  %vm3350 = vcmp.eq.s32.totalorder %v3316, %v3324
  %vm3351 = vcmp.eq.s32.totalorder %v3317, %v3324
  %vm3352 = vcmp.eq.s32.totalorder %v3318, %v3324
  %vm3353 = vcmp.eq.s32.totalorder %v3319, %v3324
  %vm3354 = vcmp.eq.s32.totalorder %v3320, %v3324
  %vm3355 = vcmp.eq.s32.totalorder %v3321, %v3324
  %vm3356 = vcmp.eq.s32.totalorder %v3322, %v3324
  %v3357 = vsel %vm3325, 1, 0
  %v3358 = vsel %vm3326, 1, 0
  %v3359 = vsel %vm3327, 1, 0
  %v3360 = vsel %vm3328, 1, 0
  %v3361 = vsel %vm3329, 1, 0
  %v3362 = vsel %vm3330, 1, 0
  %v3363 = vsel %vm3331, 1, 0
  %v3364 = vsel %vm3332, 1, 0
  %v3365 = vsel %vm3333, 1, 0
  %v3366 = vsel %vm3334, 1, 0
  %v3367 = vsel %vm3335, 1, 0
  %v3368 = vsel %vm3336, 1, 0
  %v3369 = vsel %vm3337, 1, 0
  %v3370 = vsel %vm3338, 1, 0
  %v3371 = vsel %vm3339, 1, 0
  %v3372 = vsel %vm3340, 1, 0
  %v3373 = vsel %vm3341, 1, 0
  %v3374 = vsel %vm3342, 1, 0
  %v3375 = vsel %vm3343, 1, 0
  %v3376 = vsel %vm3344, 1, 0
  %v3377 = vsel %vm3345, 1, 0
  %v3378 = vsel %vm3346, 1, 0
  %v3379 = vsel %vm3347, 1, 0
  %v3380 = vsel %vm3348, 1, 0
  %v3381 = vsel %vm3349, 1, 0
  %v3382 = vsel %vm3350, 1, 0
  %v3383 = vsel %vm3351, 1, 0
  %v3384 = vsel %vm3352, 1, 0
  %v3385 = vsel %vm3353, 1, 0
  %v3386 = vsel %vm3354, 1, 0
  %v3387 = vsel %vm3355, 1, 0
  %v3388 = vsel %vm3356, 1, 0
  %v3389 = vcvt.s32.f32 %v3357
  %v3390 = vcvt.s32.f32 %v3358
  %v3391 = vcvt.s32.f32 %v3359
  %v3392 = vcvt.s32.f32 %v3360
  %v3393 = vcvt.s32.f32 %v3361
  %v3394 = vcvt.s32.f32 %v3362
  %v3395 = vcvt.s32.f32 %v3363
  %v3396 = vcvt.s32.f32 %v3364
  %v3397 = vcvt.s32.f32 %v3365
  %v3398 = vcvt.s32.f32 %v3366
  %v3399 = vcvt.s32.f32 %v3367
  %v3400 = vcvt.s32.f32 %v3368
  %v3401 = vcvt.s32.f32 %v3369
  %v3402 = vcvt.s32.f32 %v3370
  %v3403 = vcvt.s32.f32 %v3371
  %v3404 = vcvt.s32.f32 %v3372
  %v3405 = vcvt.s32.f32 %v3373
  %v3406 = vcvt.s32.f32 %v3374
  %v3407 = vcvt.s32.f32 %v3375
  %v3408 = vcvt.s32.f32 %v3376
  %v3409 = vcvt.s32.f32 %v3377
  %v3410 = vcvt.s32.f32 %v3378
  %v3411 = vcvt.s32.f32 %v3379
  %v3412 = vcvt.s32.f32 %v3380
  %v3413 = vcvt.s32.f32 %v3381
  %v3414 = vcvt.s32.f32 %v3382
  %v3415 = vcvt.s32.f32 %v3383
  %v3416 = vcvt.s32.f32 %v3384
  %v3417 = vcvt.s32.f32 %v3385
  %v3418 = vcvt.s32.f32 %v3386
  %v3419 = vcvt.s32.f32 %v3387
  %v3420 = vcvt.s32.f32 %v3388
  %v3421 = vadd.s32 %v3324, 128
  %vm3422 = vcmp.lt.s32.totalorder %v3324, 0
  %v3423 = vsub.s32 0, %v3324
  %v3424 = vsel %vm3422, %v3423, %v3324
  %v3425 = vshrl.u32 %v3424, 4
  %v3426 = vand.u32 %v3424, 15
  %v3427 = vsub.s32 0, %v3426
  %v3428 = vsel %vm3422, %v3427, %v3426
  %vm3429 = vcmp.lt.s32.totalorder %v3421, 0
  %v3430 = vsub.s32 0, %v3421
  %v3431 = vsel %vm3429, %v3430, %v3421
  %v3432 = vshrl.u32 %v3431, 4
  %v3433 = vand.u32 %v3431, 15
  %v3434 = vsub.s32 0, %v3433
  %v3435 = vsel %vm3429, %v3434, %v3433
  %vm3436 = vcmp.ne.s32.totalorder %v3428, 0
  %vm3437 = vcmp.ne.s32.totalorder %v3435, 0
  %vm3438 = vcmp.lt.s32.totalorder %v3428, 0
  %vm3439 = vcmp.lt.s32.totalorder %v3435, 0
  %vm3440 = vmand %vm3438, %vm3436
  %vm3441 = vmand %vm3439, %vm3437
  %v3442 = vadd.s32 %v3428, 16
  %v3443 = vadd.s32 %v3435, 16
  %v3444 = vsel %vm3440, %v3442, %v3428
  %v3445 = vsel %vm3441, %v3443, %v3435
  %vm3446 = vcmp.eq.s32.totalorder %v2907, %v3444
  %vm3447 = vcmp.eq.s32.totalorder %v2907, %v3445
  %vm3448 = vcmp.eq.s32.totalorder %v2908, %v3444
  %vm3449 = vcmp.eq.s32.totalorder %v2908, %v3445
  %v3450 = vsel %vm3446, 1, 0
  %v3451 = vsel %vm3447, 1, 0
  %v3452 = vsel %vm3448, 1, 0
  %v3453 = vsel %vm3449, 1, 0
  %v3454 = vcvt.s32.f32 %v3450
  %v3455 = vcvt.s32.f32 %v3451
  %v3456 = vcvt.s32.f32 %v3452
  %v3457 = vcvt.s32.f32 %v3453
  %v3458 = vadd.f32 %v2540, %v2542
  %v3459 = vrot.slane %v3458, 4
  %v3460 = vadd.f32 %v3458, %v3459
  %v3461 = vrot.slane %v3460, 2
  %v3462 = vadd.f32 %v3460, %v3461
  %v3463 = vrot.slane %v3462, 1
  %v3464 = vadd.f32 %v3462, %v3463
  %v3465 = vadd.f32 %v2541, %v2543
  %v3466 = vrot.slane %v3465, 4
  %v3467 = vadd.f32 %v3465, %v3466
  %v3468 = vrot.slane %v3467, 2
  %v3469 = vadd.f32 %v3467, %v3468
  %v3470 = vrot.slane %v3469, 1
  %v3471 = vadd.f32 %v3469, %v3470
  %v3472 = vmul.f32 %v2540, %v2540
  %v3473 = vmul.f32 %v2541, %v2541
  %v3474 = vmul.f32 %v2542, %v2542
  %v3475 = vmul.f32 %v2543, %v2543
  %v3476 = vadd.f32 %v3472, %v3474
  %v3477 = vrot.slane %v3476, 4
  %v3478 = vadd.f32 %v3476, %v3477
  %v3479 = vrot.slane %v3478, 2
  %v3480 = vadd.f32 %v3478, %v3479
  %v3481 = vrot.slane %v3480, 1
  %v3482 = vadd.f32 %v3480, %v3481
  %v3483 = vadd.f32 %v3473, %v3475
  %v3484 = vrot.slane %v3483, 4
  %v3485 = vadd.f32 %v3483, %v3484
  %v3486 = vrot.slane %v3485, 2
  %v3487 = vadd.f32 %v3485, %v3486
  %v3488 = vrot.slane %v3487, 1
  %v3489 = vadd.f32 %v3487, %v3488
  %v3490 = vadd.f32 %v2900, %v2902
  %v3491 = vrot.slane %v3490, 4
  %v3492 = vadd.f32 %v3490, %v3491
  %v3493 = vrot.slane %v3492, 2
  %v3494 = vadd.f32 %v3492, %v3493
  %v3495 = vrot.slane %v3494, 1
  %v3496 = vadd.f32 %v3494, %v3495
  %v3497 = vadd.f32 %v2901, %v2903
  %v3498 = vrot.slane %v3497, 4
  %v3499 = vadd.f32 %v3497, %v3498
  %v3500 = vrot.slane %v3499, 2
  %v3501 = vadd.f32 %v3499, %v3500
  %v3502 = vrot.slane %v3501, 1
  %v3503 = vadd.f32 %v3501, %v3502
  %v3504 = vadd.f32 %v3464, %v3496
  %v3505 = vadd.f32 %v3471, %v3503
  %v3506 = vmul.f32 %v2900, %v2900
  %v3507 = vmul.f32 %v2901, %v2901
  %v3508 = vmul.f32 %v2902, %v2902
  %v3509 = vmul.f32 %v2903, %v2903
  %v3510 = vadd.f32 %v3506, %v3508
  %v3511 = vrot.slane %v3510, 4
  %v3512 = vadd.f32 %v3510, %v3511
  %v3513 = vrot.slane %v3512, 2
  %v3514 = vadd.f32 %v3512, %v3513
  %v3515 = vrot.slane %v3514, 1
  %v3516 = vadd.f32 %v3514, %v3515
  %v3517 = vadd.f32 %v3507, %v3509
  %v3518 = vrot.slane %v3517, 4
  %v3519 = vadd.f32 %v3517, %v3518
  %v3520 = vrot.slane %v3519, 2
  %v3521 = vadd.f32 %v3519, %v3520
  %v3522 = vrot.slane %v3521, 1
  %v3523 = vadd.f32 %v3521, %v3522
  %v3524 = vadd.f32 %v3482, %v3516
  %v3525 = vadd.f32 %v3489, %v3523
  %3526 = vmatprep.subr.mxu0 0.0
  %3527 = vmatpush1.msra.mxu0 %v3389
  %3528 = vmatprep.subr.mxu0 0.0
  %3529 = vmatpush1.msra.mxu0 %v3390
  %3530 = vmatprep.subr.mxu0 0.0
  %3531 = vmatpush1.msra.mxu0 %v3391
  %3532 = vmatprep.subr.mxu0 0.0
  %3533 = vmatpush1.msra.mxu0 %v3392
  %3534 = vmatprep.subr.mxu0 0.0
  %3535 = vmatpush1.msra.mxu0 %v3393
  %3536 = vmatprep.subr.mxu0 0.0
  %3537 = vmatpush1.msra.mxu0 %v3394
  %3538 = vmatprep.subr.mxu0 0.0
  %3539 = vmatpush1.msra.mxu0 %v3395
  %3540 = vmatprep.subr.mxu0 0.0
  %3541 = vmatpush1.msra.mxu0 %v3396
  %3542 = vmatprep.subr.mxu0 0.0
  %3543 = vmatpush1.msra.mxu0 %v3397
  %3544 = vmatprep.subr.mxu0 0.0
  %3545 = vmatpush1.msra.mxu0 %v3398
  %3546 = vmatprep.subr.mxu0 0.0
  %3547 = vmatpush1.msra.mxu0 %v3399
  %3548 = vmatprep.subr.mxu0 0.0
  %3549 = vmatpush1.msra.mxu0 %v3400
  %3550 = vmatprep.subr.mxu0 0.0
  %3551 = vmatpush1.msra.mxu0 %v3401
  %3552 = vmatprep.subr.mxu0 0.0
  %3553 = vmatpush1.msra.mxu0 %v3402
  %3554 = vmatprep.subr.mxu0 0.0
  %3555 = vmatpush1.msra.mxu0 %v3403
  %3556 = vmatprep.subr.mxu0 0.0
  %3557 = vmatpush1.msra.mxu0 %v3404
  %3558 = vmatprep.subr.mxu0 0.0
  %3559 = vmatpush1.msra.mxu0 %v3405
  %3560 = vmatprep.subr.mxu0 0.0
  %3561 = vmatpush1.msra.mxu0 %v3406
  %3562 = vmatprep.subr.mxu0 0.0
  %3563 = vmatpush1.msra.mxu0 %v3407
  %3564 = vmatprep.subr.mxu0 0.0
  %3565 = vmatpush1.msra.mxu0 %v3408
  %3566 = vmatprep.subr.mxu0 0.0
  %3567 = vmatpush1.msra.mxu0 %v3409
  %3568 = vmatprep.subr.mxu0 0.0
  %3569 = vmatpush1.msra.mxu0 %v3410
  %3570 = vmatprep.subr.mxu0 0.0
  %3571 = vmatpush1.msra.mxu0 %v3411
  %3572 = vmatprep.subr.mxu0 0.0
  %3573 = vmatpush1.msra.mxu0 %v3412
  %3574 = vmatprep.subr.mxu0 0.0
  %3575 = vmatpush1.msra.mxu0 %v3413
  %3576 = vmatprep.subr.mxu0 0.0
  %3577 = vmatpush1.msra.mxu0 %v3414
  %3578 = vmatprep.subr.mxu0 0.0
  %3579 = vmatpush1.msra.mxu0 %v3415
  %3580 = vmatprep.subr.mxu0 0.0
  %3581 = vmatpush1.msra.mxu0 %v3416
  %3582 = vmatprep.subr.mxu0 0.0
  %3583 = vmatpush1.msra.mxu0 %v3417
  %3584 = vmatprep.subr.mxu0 0.0
  %3585 = vmatpush1.msra.mxu0 %v3418
  %3586 = vmatprep.subr.mxu0 0.0
  %3587 = vmatpush1.msra.mxu0 %v3419
  %3588 = vmatprep.subr.mxu0 0.0
  %3589 = vmatpush1.msra.mxu0 %v3420
  %3590 = vmatprep.mubr.f32.mxu0 %v3505
  %3591 = vmatmul.mubr.f32.gmra.mrb[0].mxu0 %v3504
  %v3592 = vpop.f32.mrb[0].mxu0
  %v3593 = vadd.f32 0.0, %v3592
  %v3594 = vpop.f32.mrb[0].mxu0
  %3595 = vdwg.mxu0
  %3596 = vmatprep.subr.mxu0 0.0
  %3597 = vmatpush1.msra.mxu0 %v3389
  %3598 = vmatprep.subr.mxu0 0.0
  %3599 = vmatpush1.msra.mxu0 %v3390
  %3600 = vmatprep.subr.mxu0 0.0
  %3601 = vmatpush1.msra.mxu0 %v3391
  %3602 = vmatprep.subr.mxu0 0.0
  %3603 = vmatpush1.msra.mxu0 %v3392
  %3604 = vmatprep.subr.mxu0 0.0
  %3605 = vmatpush1.msra.mxu0 %v3393
  %3606 = vmatprep.subr.mxu0 0.0
  %3607 = vmatpush1.msra.mxu0 %v3394
  %3608 = vmatprep.subr.mxu0 0.0
  %3609 = vmatpush1.msra.mxu0 %v3395
  %3610 = vmatprep.subr.mxu0 0.0
  %3611 = vmatpush1.msra.mxu0 %v3396
  %3612 = vmatprep.subr.mxu0 0.0
  %3613 = vmatpush1.msra.mxu0 %v3397
  %3614 = vmatprep.subr.mxu0 0.0
  %3615 = vmatpush1.msra.mxu0 %v3398
  %3616 = vmatprep.subr.mxu0 0.0
  %3617 = vmatpush1.msra.mxu0 %v3399
  %3618 = vmatprep.subr.mxu0 0.0
  %3619 = vmatpush1.msra.mxu0 %v3400
  %3620 = vmatprep.subr.mxu0 0.0
  %3621 = vmatpush1.msra.mxu0 %v3401
  %3622 = vmatprep.subr.mxu0 0.0
  %3623 = vmatpush1.msra.mxu0 %v3402
  %3624 = vmatprep.subr.mxu0 0.0
  %3625 = vmatpush1.msra.mxu0 %v3403
  %3626 = vmatprep.subr.mxu0 0.0
  %3627 = vmatpush1.msra.mxu0 %v3404
  %3628 = vmatprep.subr.mxu0 0.0
  %3629 = vmatpush1.msra.mxu0 %v3405
  %3630 = vmatprep.subr.mxu0 0.0
  %3631 = vmatpush1.msra.mxu0 %v3406
  %3632 = vmatprep.subr.mxu0 0.0
  %3633 = vmatpush1.msra.mxu0 %v3407
  %3634 = vmatprep.subr.mxu0 0.0
  %3635 = vmatpush1.msra.mxu0 %v3408
  %3636 = vmatprep.subr.mxu0 0.0
  %3637 = vmatpush1.msra.mxu0 %v3409
  %3638 = vmatprep.subr.mxu0 0.0
  %3639 = vmatpush1.msra.mxu0 %v3410
  %3640 = vmatprep.subr.mxu0 0.0
  %3641 = vmatpush1.msra.mxu0 %v3411
  %3642 = vmatprep.subr.mxu0 0.0
  %3643 = vmatpush1.msra.mxu0 %v3412
  %3644 = vmatprep.subr.mxu0 0.0
  %3645 = vmatpush1.msra.mxu0 %v3413
  %3646 = vmatprep.subr.mxu0 0.0
  %3647 = vmatpush1.msra.mxu0 %v3414
  %3648 = vmatprep.subr.mxu0 0.0
  %3649 = vmatpush1.msra.mxu0 %v3415
  %3650 = vmatprep.subr.mxu0 0.0
  %3651 = vmatpush1.msra.mxu0 %v3416
  %3652 = vmatprep.subr.mxu0 0.0
  %3653 = vmatpush1.msra.mxu0 %v3417
  %3654 = vmatprep.subr.mxu0 0.0
  %3655 = vmatpush1.msra.mxu0 %v3418
  %3656 = vmatprep.subr.mxu0 0.0
  %3657 = vmatpush1.msra.mxu0 %v3419
  %3658 = vmatprep.subr.mxu0 0.0
  %3659 = vmatpush1.msra.mxu0 %v3420
  %3660 = vmatprep.mubr.f32.mxu0 %v3525
  %3661 = vmatmul.mubr.f32.gmra.mrb[0].mxu0 %v3524
  %v3662 = vpop.f32.mrb[0].mxu0
  %v3663 = vadd.f32 0.0, %v3662
  %v3664 = vpop.f32.mrb[0].mxu0
  %3665 = vdwg.mxu0
  %v3666 = vrcp.pop 512.0
  %v3667 = vmul.f32 %v3593, %v3666
  %v3668 = vmul.f32 %v3663, %v3666
  %v3669 = vmul.f32 %v3667, %v3667
  %v3670 = vsub.f32 %v3668, %v3669
  %v3671 = vadd.f32 %v3670, 1e-05
  %v3672 = vrsqrt.pop %v3671
  %v3673 = vmul.f32 %v2904, %v3672
  %v3674 = vmul.f32 %v3667, %v3673
  %v3675 = vsub.f32 %v2905, %v3674
  %vm3676 = vcmask 130048
  %v3678 = vsel %vm3676, %v3673, 0
  %3680 = vmatprep.subr.mxu0 %v3455
  %3681 = vmatpush1.msra.mxu0 %v3454
  %3682 = vmatprep.subr.mxu0 %v3457
  %3683 = vmatpush1.msra.mxu0 %v3456
  %3684 = vmatprep.subr.mxu0 0.0
  %3685 = vmatpush1.msra.mxu0 0.0
  %3686 = vmatprep.subr.mxu0 0.0
  %3687 = vmatpush1.msra.mxu0 0.0
  %3688 = vmatprep.subr.mxu0 0.0
  %3689 = vmatpush1.msra.mxu0 0.0
  %3690 = vmatprep.subr.mxu0 0.0
  %3691 = vmatpush1.msra.mxu0 0.0
  %3692 = vmatprep.subr.mxu0 0.0
  %3693 = vmatpush1.msra.mxu0 0.0
  %3694 = vmatprep.subr.mxu0 0.0
  %3695 = vmatpush1.msra.mxu0 0.0
  %3696 = vmatprep.subr.mxu0 0.0
  %3697 = vmatpush1.msra.mxu0 0.0
  %3698 = vmatprep.subr.mxu0 0.0
  %3699 = vmatpush1.msra.mxu0 0.0
  %3700 = vmatprep.subr.mxu0 0.0
  %3701 = vmatpush1.msra.mxu0 0.0
  %3702 = vmatprep.subr.mxu0 0.0
  %3703 = vmatpush1.msra.mxu0 0.0
  %3704 = vmatprep.subr.mxu0 0.0
  %3705 = vmatpush1.msra.mxu0 0.0
  %3706 = vmatprep.subr.mxu0 0.0
  %3707 = vmatpush1.msra.mxu0 0.0
  %3708 = vmatprep.subr.mxu0 0.0
  %3709 = vmatpush1.msra.mxu0 0.0
  %3710 = vmatprep.subr.mxu0 0.0
  %3711 = vmatpush1.msra.mxu0 0.0
  %3712 = vmatprep.subr.mxu0 0.0
  %3713 = vmatpush1.msra.mxu0 0.0
  %3714 = vmatprep.subr.mxu0 0.0
  %3715 = vmatpush1.msra.mxu0 0.0
  %3716 = vmatprep.subr.mxu0 0.0
  %3717 = vmatpush1.msra.mxu0 0.0
  %3718 = vmatprep.subr.mxu0 0.0
  %3719 = vmatpush1.msra.mxu0 0.0
  %3720 = vmatprep.subr.mxu0 0.0
  %3721 = vmatpush1.msra.mxu0 0.0
  %3722 = vmatprep.subr.mxu0 0.0
  %3723 = vmatpush1.msra.mxu0 0.0
  %3724 = vmatprep.subr.mxu0 0.0
  %3725 = vmatpush1.msra.mxu0 0.0
  %3726 = vmatprep.subr.mxu0 0.0
  %3727 = vmatpush1.msra.mxu0 0.0
  %3728 = vmatprep.subr.mxu0 0.0
  %3729 = vmatpush1.msra.mxu0 0.0
  %3730 = vmatprep.subr.mxu0 0.0
  %3731 = vmatpush1.msra.mxu0 0.0
  %3732 = vmatprep.subr.mxu0 0.0
  %3733 = vmatpush1.msra.mxu0 0.0
  %3734 = vmatprep.subr.mxu0 0.0
  %3735 = vmatpush1.msra.mxu0 0.0
  %3736 = vmatprep.subr.mxu0 0.0
  %3737 = vmatpush1.msra.mxu0 0.0
  %3738 = vmatprep.subr.mxu0 0.0
  %3739 = vmatpush1.msra.mxu0 0.0
  %3740 = vmatprep.subr.mxu0 0.0
  %3741 = vmatpush1.msra.mxu0 0.0
  %3742 = vmatprep.subr.mxu0 0.0
  %3743 = vmatpush1.msra.mxu0 0.0
  %3744 = vmatprep.mubr.f32.mxu0 0.0
  %3745 = vmatmul.mubr.f32.gmra.mrb[0].mxu0 %v3678
  %v3746 = vpop.f32.mrb[0].mxu0
  %v3747 = vadd.f32 0.0, %v3746
  %v3748 = vpop.f32.mrb[0].mxu0
  %v3749 = vadd.f32 0.0, %v3748
  %3750 = vdwg.mxu0
  %v3752 = vsel %vm3676, %v3675, 0
  %3754 = vmatprep.subr.mxu0 %v3455
  %3755 = vmatpush1.msra.mxu0 %v3454
  %3756 = vmatprep.subr.mxu0 %v3457
  %3757 = vmatpush1.msra.mxu0 %v3456
  %3758 = vmatprep.subr.mxu0 0.0
  %3759 = vmatpush1.msra.mxu0 0.0
  %3760 = vmatprep.subr.mxu0 0.0
  %3761 = vmatpush1.msra.mxu0 0.0
  %3762 = vmatprep.subr.mxu0 0.0
  %3763 = vmatpush1.msra.mxu0 0.0
  %3764 = vmatprep.subr.mxu0 0.0
  %3765 = vmatpush1.msra.mxu0 0.0
  %3766 = vmatprep.subr.mxu0 0.0
  %3767 = vmatpush1.msra.mxu0 0.0
  %3768 = vmatprep.subr.mxu0 0.0
  %3769 = vmatpush1.msra.mxu0 0.0
  %3770 = vmatprep.subr.mxu0 0.0
  %3771 = vmatpush1.msra.mxu0 0.0
  %3772 = vmatprep.subr.mxu0 0.0
  %3773 = vmatpush1.msra.mxu0 0.0
  %3774 = vmatprep.subr.mxu0 0.0
  %3775 = vmatpush1.msra.mxu0 0.0
  %3776 = vmatprep.subr.mxu0 0.0
  %3777 = vmatpush1.msra.mxu0 0.0
  %3778 = vmatprep.subr.mxu0 0.0
  %3779 = vmatpush1.msra.mxu0 0.0
  %3780 = vmatprep.subr.mxu0 0.0
  %3781 = vmatpush1.msra.mxu0 0.0
  %3782 = vmatprep.subr.mxu0 0.0
  %3783 = vmatpush1.msra.mxu0 0.0
  %3784 = vmatprep.subr.mxu0 0.0
  %3785 = vmatpush1.msra.mxu0 0.0
  %3786 = vmatprep.subr.mxu0 0.0
  %3787 = vmatpush1.msra.mxu0 0.0
  %3788 = vmatprep.subr.mxu0 0.0
  %3789 = vmatpush1.msra.mxu0 0.0
  %3790 = vmatprep.subr.mxu0 0.0
  %3791 = vmatpush1.msra.mxu0 0.0
  %3792 = vmatprep.subr.mxu0 0.0
  %3793 = vmatpush1.msra.mxu0 0.0
  %3794 = vmatprep.subr.mxu0 0.0
  %3795 = vmatpush1.msra.mxu0 0.0
  %3796 = vmatprep.subr.mxu0 0.0
  %3797 = vmatpush1.msra.mxu0 0.0
  %3798 = vmatprep.subr.mxu0 0.0
  %3799 = vmatpush1.msra.mxu0 0.0
  %3800 = vmatprep.subr.mxu0 0.0
  %3801 = vmatpush1.msra.mxu0 0.0
  %3802 = vmatprep.subr.mxu0 0.0
  %3803 = vmatpush1.msra.mxu0 0.0
  %3804 = vmatprep.subr.mxu0 0.0
  %3805 = vmatpush1.msra.mxu0 0.0
  %3806 = vmatprep.subr.mxu0 0.0
  %3807 = vmatpush1.msra.mxu0 0.0
  %3808 = vmatprep.subr.mxu0 0.0
  %3809 = vmatpush1.msra.mxu0 0.0
  %3810 = vmatprep.subr.mxu0 0.0
  %3811 = vmatpush1.msra.mxu0 0.0
  %3812 = vmatprep.subr.mxu0 0.0
  %3813 = vmatpush1.msra.mxu0 0.0
  %3814 = vmatprep.subr.mxu0 0.0
  %3815 = vmatpush1.msra.mxu0 0.0
  %3816 = vmatprep.subr.mxu0 0.0
  %3817 = vmatpush1.msra.mxu0 0.0
  %3818 = vmatprep.mubr.f32.mxu0 0.0
  %3819 = vmatmul.mubr.f32.gmra.mrb[0].mxu0 %v3752
  %v3820 = vpop.f32.mrb[0].mxu0
  %v3821 = vadd.f32 0.0, %v3820
  %v3822 = vpop.f32.mrb[0].mxu0
  %v3823 = vadd.f32 0.0, %v3822
  %3824 = vdwg.mxu0
  %v3825 = vlaneseq
  %v3826 = vshrl.u32 %v3825, 7
  %v3827 = vsub.s32 0, %v3826
  %v3828 = vrot.slane %v3747, %v3827
  %v3829 = vlaneseq
  %v3830 = vshrl.u32 %v3829, 7
  %v3831 = vsub.s32 0, %v3830
  %v3832 = vrot.slane %v3749, %v3831
  %v3833 = vmul.f32 %v2540, %v3828
  %v3834 = vmul.f32 %v2541, %v3832
  %v3835 = vmul.f32 %v2542, %v3828
  %v3836 = vmul.f32 %v2543, %v3832
  %v3837 = vlaneseq
  %v3838 = vshrl.u32 %v3837, 7
  %v3839 = vsub.s32 0, %v3838
  %v3840 = vrot.slane %v3821, %v3839
  %v3841 = vlaneseq
  %v3842 = vshrl.u32 %v3841, 7
  %v3843 = vsub.s32 0, %v3842
  %v3844 = vrot.slane %v3823, %v3843
  %v3845 = vadd.f32 %v3833, %v3840
  %v3846 = vadd.f32 %v3834, %v3844
  %v3847 = vadd.f32 %v3835, %v3840
  %v3848 = vadd.f32 %v3836, %v3844
  %v3849 = vmul.f32 %v2900, %v3828
  %v3850 = vmul.f32 %v2901, %v3832
  %v3851 = vmul.f32 %v2902, %v3828
  %v3852 = vmul.f32 %v2903, %v3832
  %v3853 = vadd.f32 %v3849, %v3840
  %v3854 = vadd.f32 %v3850, %v3844
  %v3855 = vadd.f32 %v3851, %v3840
  %v3856 = vadd.f32 %v3852, %v3844
  %vm3857 = vcmp.gt.f32.partialorder %v3845, 0.0
  %vm3858 = vcmp.gt.f32.partialorder %v3846, 0.0
  %vm3859 = vcmp.gt.f32.partialorder %v3847, 0.0
  %vm3860 = vcmp.gt.f32.partialorder %v3848, 0.0
  %v3861 = vmul.f32 %v3845, 0.2
  %v3862 = vmul.f32 %v3846, 0.2
  %v3863 = vmul.f32 %v3847, 0.2
  %v3864 = vmul.f32 %v3848, 0.2
  %v3865 = vsel %vm3857, %v3845, %v3861
  %v3866 = vsel %vm3858, %v3846, %v3862
  %v3867 = vsel %vm3859, %v3847, %v3863
  %v3868 = vsel %vm3860, %v3848, %v3864
  %vm3869 = vcmp.gt.f32.partialorder %v3853, 0.0
  %vm3870 = vcmp.gt.f32.partialorder %v3854, 0.0
  %vm3871 = vcmp.gt.f32.partialorder %v3855, 0.0
  %vm3872 = vcmp.gt.f32.partialorder %v3856, 0.0
  %v3873 = vmul.f32 %v3853, 0.2
  %v3874 = vmul.f32 %v3854, 0.2
  %v3875 = vmul.f32 %v3855, 0.2
  %v3876 = vmul.f32 %v3856, 0.2
  %v3877 = vsel %vm3869, %v3853, %v3873
  %v3878 = vsel %vm3870, %v3854, %v3874
  %v3879 = vsel %vm3871, %v3855, %v3875
  %v3880 = vsel %vm3872, %v3856, %v3876
  %v3881 = vpack.c.bf16 %v3867, %v3865
  %v3882 = vpack.c.bf16 %v3868, %v3866
  %v3883 = vpack.c.bf16 %v3879, %v3877
  %v3884 = vpack.c.bf16 %v3880, %v3878
  %v3885 = vld [vmem:[%s3] sm:$0xf]
  %v3887 = vsel %vm3676, %v3885, 0
  %3889 = vmatprep.subr.bf16.mxu0 %v3882
  %3890 = vmatpush1.bf16.msra.mxu0 %v3881
  %3891 = vmatprep.subr.bf16.mxu0 0
  %3892 = vmatpush1.bf16.msra.mxu0 0
  %3893 = vmatprep.subr.bf16.mxu0 0
  %3894 = vmatpush1.bf16.msra.mxu0 0
  %3895 = vmatprep.subr.bf16.mxu0 0
  %3896 = vmatpush1.bf16.msra.mxu0 0
  %3897 = vmatprep.subr.bf16.mxu0 0
  %3898 = vmatpush1.bf16.msra.mxu0 0
  %3899 = vmatprep.subr.bf16.mxu0 0
  %3900 = vmatpush1.bf16.msra.mxu0 0
  %3901 = vmatprep.subr.bf16.mxu0 0
  %3902 = vmatpush1.bf16.msra.mxu0 0
  %3903 = vmatprep.subr.bf16.mxu0 0
  %3904 = vmatpush1.bf16.msra.mxu0 0
  %3905 = vmatprep.subr.bf16.mxu0 0
  %3906 = vmatpush1.bf16.msra.mxu0 0
  %3907 = vmatprep.subr.bf16.mxu0 0
  %3908 = vmatpush1.bf16.msra.mxu0 0
  %3909 = vmatprep.subr.bf16.mxu0 0
  %3910 = vmatpush1.bf16.msra.mxu0 0
  %3911 = vmatprep.subr.bf16.mxu0 0
  %3912 = vmatpush1.bf16.msra.mxu0 0
  %3913 = vmatprep.subr.bf16.mxu0 0
  %3914 = vmatpush1.bf16.msra.mxu0 0
  %3915 = vmatprep.subr.bf16.mxu0 0
  %3916 = vmatpush1.bf16.msra.mxu0 0
  %3917 = vmatprep.subr.bf16.mxu0 0
  %3918 = vmatpush1.bf16.msra.mxu0 0
  %3919 = vmatprep.subr.bf16.mxu0 0
  %3920 = vmatpush1.bf16.msra.mxu0 0
  %3921 = vmatprep.mubr.bf16.mxu0 0
  %3922 = vmatmul.mubr.bf16.gmra.mrb[0].mxu0 %v3887
  %v3923 = vpop.f32.mrb[0].mxu0
  %v3924 = vadd.f32 0.0, %v3923
  %v3925 = vpop.f32.mrb[0].mxu0
  %v3926 = vadd.f32 0.0, %v3925
  %v3927 = vpop.f32.mrb[0].mxu0
  %v3928 = vpop.f32.mrb[0].mxu0
  %3929 = vdwg.mxu0
  %v3930 = vpack.c.bf16 %v3924, %v3924
  %v3931 = vpack.c.bf16 %v3926, %v3926
  %v3932 = vld [vmem:[%s8] sm:$0xff]
  %v3933 = vld [vmem:[%s8 + $0x8] sm:$0xff]
  %v3934 = vld [vmem:[%s8 + $0x10] sm:$0xff]
  %v3935 = vld [vmem:[%s8 + $0x18] sm:$0xff]
  %v3936 = vld [vmem:[%s8 + $0x20] sm:$0xff]
  %v3937 = vld [vmem:[%s8 + $0x28] sm:$0xff]
  %v3938 = vld [vmem:[%s8 + $0x30] sm:$0xff]
  %v3939 = vld [vmem:[%s8 + $0x38] sm:$0xff]
  %v3940 = vld [vmem:[%s8 + $0x40] sm:$0xff]
  %v3941 = vld [vmem:[%s8 + $0x48] sm:$0xff]
  %v3942 = vld [vmem:[%s8 + $0x50] sm:$0xff]
  %v3943 = vld [vmem:[%s8 + $0x58] sm:$0xff]
  %v3944 = vld [vmem:[%s8 + $0x60] sm:$0xff]
  %v3945 = vld [vmem:[%s8 + $0x68] sm:$0xff]
  %v3946 = vld [vmem:[%s8 + $0x70] sm:$0xff]
  %v3947 = vld [vmem:[%s8 + $0x78] sm:$0xff]
  %v3948 = vld [vmem:[%s8 + $0x80] sm:$0xff]
  %v3949 = vld [vmem:[%s8 + $0x88] sm:$0xff]
  %v3950 = vld [vmem:[%s8 + $0x90] sm:$0xff]
  %v3951 = vld [vmem:[%s8 + $0x98] sm:$0xff]
  %v3952 = vld [vmem:[%s8 + $0xa0] sm:$0xff]
  %v3953 = vld [vmem:[%s8 + $0xa8] sm:$0xff]
  %v3954 = vld [vmem:[%s8 + $0xb0] sm:$0xff]
  %v3955 = vld [vmem:[%s8 + $0xb8] sm:$0xff]
  %v3956 = vld [vmem:[%s8 + $0xc0] sm:$0xff]
  %v3957 = vld [vmem:[%s8 + $0xc8] sm:$0xff]
  %v3958 = vld [vmem:[%s8 + $0xd0] sm:$0xff]
  %v3959 = vld [vmem:[%s8 + $0xd8] sm:$0xff]
  %v3960 = vld [vmem:[%s8 + $0xe0] sm:$0xff]
  %v3961 = vld [vmem:[%s8 + $0xe8] sm:$0xff]
  %v3962 = vld [vmem:[%s8 + $0xf0] sm:$0xff]
  %v3963 = vld [vmem:[%s8 + $0xf8] sm:$0xff]
  %s3964 = scalar_lea.vmem %s3, 4
  %v3965 = vld [vmem:[%s3964] sm:$0xf]
  %v3967 = vsel %vm3676, %v3965, 0
  %3969 = vmatprep.subr.bf16.mxu0 %v3882
  %3970 = vmatpush1.bf16.msra.mxu0 %v3881
  %3971 = vmatprep.subr.bf16.mxu0 0
  %3972 = vmatpush1.bf16.msra.mxu0 0
  %3973 = vmatprep.subr.bf16.mxu0 0
  %3974 = vmatpush1.bf16.msra.mxu0 0
  %3975 = vmatprep.subr.bf16.mxu0 0
  %3976 = vmatpush1.bf16.msra.mxu0 0
  %3977 = vmatprep.subr.bf16.mxu0 0
  %3978 = vmatpush1.bf16.msra.mxu0 0
  %3979 = vmatprep.subr.bf16.mxu0 0
  %3980 = vmatpush1.bf16.msra.mxu0 0
  %3981 = vmatprep.subr.bf16.mxu0 0
  %3982 = vmatpush1.bf16.msra.mxu0 0
  %3983 = vmatprep.subr.bf16.mxu0 0
  %3984 = vmatpush1.bf16.msra.mxu0 0
  %3985 = vmatprep.subr.bf16.mxu0 0
  %3986 = vmatpush1.bf16.msra.mxu0 0
  %3987 = vmatprep.subr.bf16.mxu0 0
  %3988 = vmatpush1.bf16.msra.mxu0 0
  %3989 = vmatprep.subr.bf16.mxu0 0
  %3990 = vmatpush1.bf16.msra.mxu0 0
  %3991 = vmatprep.subr.bf16.mxu0 0
  %3992 = vmatpush1.bf16.msra.mxu0 0
  %3993 = vmatprep.subr.bf16.mxu0 0
  %3994 = vmatpush1.bf16.msra.mxu0 0
  %3995 = vmatprep.subr.bf16.mxu0 0
  %3996 = vmatpush1.bf16.msra.mxu0 0
  %3997 = vmatprep.subr.bf16.mxu0 0
  %3998 = vmatpush1.bf16.msra.mxu0 0
  %3999 = vmatprep.subr.bf16.mxu0 0
  %4000 = vmatpush1.bf16.msra.mxu0 0
  %4001 = vmatprep.mubr.bf16.mxu0 0
  %4002 = vmatmul.mubr.bf16.gmra.mrb[0].mxu0 %v3967
  %v4003 = vpop.f32.mrb[0].mxu0
  %v4004 = vadd.f32 0.0, %v4003
  %v4005 = vpop.f32.mrb[0].mxu0
  %v4006 = vadd.f32 0.0, %v4005
  %v4007 = vpop.f32.mrb[0].mxu0
  %v4008 = vpop.f32.mrb[0].mxu0
  %4009 = vdwg.mxu0
  %v4010 = vpack.c.bf16 %v4004, %v4004
  %v4011 = vpack.c.bf16 %v4006, %v4006
  %s4012 = scalar_lea.vmem %s8, 256
  %v4013 = vld [vmem:[%s4012] sm:$0xff]
  %v4014 = vld [vmem:[%s4012 + $0x8] sm:$0xff]
  %v4015 = vld [vmem:[%s4012 + $0x10] sm:$0xff]
  %v4016 = vld [vmem:[%s4012 + $0x18] sm:$0xff]
  %v4017 = vld [vmem:[%s4012 + $0x20] sm:$0xff]
  %v4018 = vld [vmem:[%s4012 + $0x28] sm:$0xff]
  %v4019 = vld [vmem:[%s4012 + $0x30] sm:$0xff]
  %v4020 = vld [vmem:[%s4012 + $0x38] sm:$0xff]
  %v4021 = vld [vmem:[%s4012 + $0x40] sm:$0xff]
  %v4022 = vld [vmem:[%s4012 + $0x48] sm:$0xff]
  %v4023 = vld [vmem:[%s4012 + $0x50] sm:$0xff]
  %v4024 = vld [vmem:[%s4012 + $0x58] sm:$0xff]
  %v4025 = vld [vmem:[%s4012 + $0x60] sm:$0xff]
  %v4026 = vld [vmem:[%s4012 + $0x68] sm:$0xff]
  %v4027 = vld [vmem:[%s4012 + $0x70] sm:$0xff]
  %v4028 = vld [vmem:[%s4012 + $0x78] sm:$0xff]
  %v4029 = vld [vmem:[%s4012 + $0x80] sm:$0xff]
  %v4030 = vld [vmem:[%s4012 + $0x88] sm:$0xff]
  %v4031 = vld [vmem:[%s4012 + $0x90] sm:$0xff]
  %v4032 = vld [vmem:[%s4012 + $0x98] sm:$0xff]
  %v4033 = vld [vmem:[%s4012 + $0xa0] sm:$0xff]
  %v4034 = vld [vmem:[%s4012 + $0xa8] sm:$0xff]
  %v4035 = vld [vmem:[%s4012 + $0xb0] sm:$0xff]
  %v4036 = vld [vmem:[%s4012 + $0xb8] sm:$0xff]
  %v4037 = vld [vmem:[%s4012 + $0xc0] sm:$0xff]
  %v4038 = vld [vmem:[%s4012 + $0xc8] sm:$0xff]
  %v4039 = vld [vmem:[%s4012 + $0xd0] sm:$0xff]
  %v4040 = vld [vmem:[%s4012 + $0xd8] sm:$0xff]
  %v4041 = vld [vmem:[%s4012 + $0xe0] sm:$0xff]
  %v4042 = vld [vmem:[%s4012 + $0xe8] sm:$0xff]
  %v4043 = vld [vmem:[%s4012 + $0xf0] sm:$0xff]
  %v4044 = vld [vmem:[%s4012 + $0xf8] sm:$0xff]
  %v4077 = vunpack.c.l.b16 %v4013
  %v4078 = vunpack.c.h.b16 %v4013
  %v4079 = vunpack.c.l.b16 %v4014
  %v4080 = vunpack.c.h.b16 %v4014
  %v4081 = vunpack.c.l.b16 %v4015
  %v4082 = vunpack.c.h.b16 %v4015
  %v4083 = vunpack.c.l.b16 %v4016
  %v4084 = vunpack.c.h.b16 %v4016
  %v4085 = vunpack.c.l.b16 %v4017
  %v4086 = vunpack.c.h.b16 %v4017
  %v4087 = vunpack.c.l.b16 %v4018
  %v4088 = vunpack.c.h.b16 %v4018
  %v4089 = vunpack.c.l.b16 %v4019
  %v4090 = vunpack.c.h.b16 %v4019
  %v4091 = vunpack.c.l.b16 %v4020
  %v4092 = vunpack.c.h.b16 %v4020
  %v4093 = vunpack.c.l.b16 %v4021
  %v4094 = vunpack.c.h.b16 %v4021
  %v4095 = vunpack.c.l.b16 %v4022
  %v4096 = vunpack.c.h.b16 %v4022
  %v4097 = vunpack.c.l.b16 %v4023
  %v4098 = vunpack.c.h.b16 %v4023
  %v4099 = vunpack.c.l.b16 %v4024
  %v4100 = vunpack.c.h.b16 %v4024
  %v4101 = vunpack.c.l.b16 %v4025
  %v4102 = vunpack.c.h.b16 %v4025
  %v4103 = vunpack.c.l.b16 %v4026
  %v4104 = vunpack.c.h.b16 %v4026
  %v4105 = vunpack.c.l.b16 %v4027
  %v4106 = vunpack.c.h.b16 %v4027
  %v4107 = vunpack.c.l.b16 %v4028
  %v4108 = vunpack.c.h.b16 %v4028
  %v4109 = vunpack.c.l.b16 %v4029
  %v4110 = vunpack.c.h.b16 %v4029
  %v4111 = vunpack.c.l.b16 %v4030
  %v4112 = vunpack.c.h.b16 %v4030
  %v4113 = vunpack.c.l.b16 %v4031
  %v4114 = vunpack.c.h.b16 %v4031
  %v4115 = vunpack.c.l.b16 %v4032
  %v4116 = vunpack.c.h.b16 %v4032
  %v4117 = vunpack.c.l.b16 %v4033
  %v4118 = vunpack.c.h.b16 %v4033
  %v4119 = vunpack.c.l.b16 %v4034
  %v4120 = vunpack.c.h.b16 %v4034
  %v4121 = vunpack.c.l.b16 %v4035
  %v4122 = vunpack.c.h.b16 %v4035
  %v4123 = vunpack.c.l.b16 %v4036
  %v4124 = vunpack.c.h.b16 %v4036
  %v4125 = vunpack.c.l.b16 %v4037
  %v4126 = vunpack.c.h.b16 %v4037
  %v4127 = vunpack.c.l.b16 %v4038
  %v4128 = vunpack.c.h.b16 %v4038
  %v4129 = vunpack.c.l.b16 %v4039
  %v4130 = vunpack.c.h.b16 %v4039
  %v4131 = vunpack.c.l.b16 %v4040
  %v4132 = vunpack.c.h.b16 %v4040
  %v4133 = vunpack.c.l.b16 %v4041
  %v4134 = vunpack.c.h.b16 %v4041
  %v4135 = vunpack.c.l.b16 %v4042
  %v4136 = vunpack.c.h.b16 %v4042
  %v4137 = vunpack.c.l.b16 %v4043
  %v4138 = vunpack.c.h.b16 %v4043
  %v4139 = vunpack.c.l.b16 %v4044
  %v4140 = vunpack.c.h.b16 %v4044
  %v4141 = vpack.c.b16 %v4079, %v4077
  %v4142 = vpack.c.b16 %v4080, %v4078
  %v4143 = vpack.c.b16 %v4083, %v4081
  %v4144 = vpack.c.b16 %v4084, %v4082
  %v4145 = vpack.c.b16 %v4087, %v4085
  %v4146 = vpack.c.b16 %v4088, %v4086
  %v4147 = vpack.c.b16 %v4091, %v4089
  %v4148 = vpack.c.b16 %v4092, %v4090
  %v4149 = vpack.c.b16 %v4095, %v4093
  %v4150 = vpack.c.b16 %v4096, %v4094
  %v4151 = vpack.c.b16 %v4099, %v4097
  %v4152 = vpack.c.b16 %v4100, %v4098
  %v4153 = vpack.c.b16 %v4103, %v4101
  %v4154 = vpack.c.b16 %v4104, %v4102
  %v4155 = vpack.c.b16 %v4107, %v4105
  %v4156 = vpack.c.b16 %v4108, %v4106
  %v4157 = vpack.c.b16 %v4111, %v4109
  %v4158 = vpack.c.b16 %v4112, %v4110
  %v4159 = vpack.c.b16 %v4115, %v4113
  %v4160 = vpack.c.b16 %v4116, %v4114
  %v4161 = vpack.c.b16 %v4119, %v4117
  %v4162 = vpack.c.b16 %v4120, %v4118
  %v4163 = vpack.c.b16 %v4123, %v4121
  %v4164 = vpack.c.b16 %v4124, %v4122
  %v4165 = vpack.c.b16 %v4127, %v4125
  %v4166 = vpack.c.b16 %v4128, %v4126
  %v4167 = vpack.c.b16 %v4131, %v4129
  %v4168 = vpack.c.b16 %v4132, %v4130
  %v4169 = vpack.c.b16 %v4135, %v4133
  %v4170 = vpack.c.b16 %v4136, %v4134
  %v4171 = vpack.c.b16 %v4139, %v4137
  %v4172 = vpack.c.b16 %v4140, %v4138
  %4205 = vmatprep.subr.bf16.mxu0 %v4142
  %4206 = vmatpush1.bf16.msra.mxu0 %v4141
  %4207 = vmatprep.subr.bf16.mxu0 %v4144
  %4208 = vmatpush1.bf16.msra.mxu0 %v4143
  %4209 = vmatprep.subr.bf16.mxu0 %v4146
  %4210 = vmatpush1.bf16.msra.mxu0 %v4145
  %4211 = vmatprep.subr.bf16.mxu0 %v4148
  %4212 = vmatpush1.bf16.msra.mxu0 %v4147
  %4213 = vmatprep.subr.bf16.mxu0 %v4150
  %4214 = vmatpush1.bf16.msra.mxu0 %v4149
  %4215 = vmatprep.subr.bf16.mxu0 %v4152
  %4216 = vmatpush1.bf16.msra.mxu0 %v4151
  %4217 = vmatprep.subr.bf16.mxu0 %v4154
  %4218 = vmatpush1.bf16.msra.mxu0 %v4153
  %4219 = vmatprep.subr.bf16.mxu0 %v4156
  %4220 = vmatpush1.bf16.msra.mxu0 %v4155
  %4221 = vmatprep.subr.bf16.mxu0 %v4158
  %4222 = vmatpush1.bf16.msra.mxu0 %v4157
  %4223 = vmatprep.subr.bf16.mxu0 %v4160
  %4224 = vmatpush1.bf16.msra.mxu0 %v4159
  %4225 = vmatprep.subr.bf16.mxu0 %v4162
  %4226 = vmatpush1.bf16.msra.mxu0 %v4161
  %4227 = vmatprep.subr.bf16.mxu0 %v4164
  %4228 = vmatpush1.bf16.msra.mxu0 %v4163
  %4229 = vmatprep.subr.bf16.mxu0 %v4166
  %4230 = vmatpush1.bf16.msra.mxu0 %v4165
  %4231 = vmatprep.subr.bf16.mxu0 %v4168
  %4232 = vmatpush1.bf16.msra.mxu0 %v4167
  %4233 = vmatprep.subr.bf16.mxu0 %v4170
  %4234 = vmatpush1.bf16.msra.mxu0 %v4169
  %4235 = vmatprep.subr.bf16.mxu0 %v4172
  %4236 = vmatpush1.bf16.msra.mxu0 %v4171
  %4237 = vmatprep.mubr.bf16.mxu0 %v4011
  %4238 = vmatmul.mubr.bf16.gmra.mrb[0].mxu0 %v4010
  %v4239 = vpop.f32.mrb[0].mxu0
  %v4240 = vadd.f32 0.0, %v4239
  %v4241 = vpop.f32.mrb[0].mxu0
  %v4242 = vadd.f32 0.0, %v4241
  %v4243 = vpop.f32.mrb[0].mxu0
  %v4244 = vpop.f32.mrb[0].mxu0
  %4245 = vdwg.mxu0
  %v4278 = vunpack.c.l.b16 %v3932
  %v4279 = vunpack.c.h.b16 %v3932
  %v4280 = vunpack.c.l.b16 %v3933
  %v4281 = vunpack.c.h.b16 %v3933
  %v4282 = vunpack.c.l.b16 %v3934
  %v4283 = vunpack.c.h.b16 %v3934
  %v4284 = vunpack.c.l.b16 %v3935
  %v4285 = vunpack.c.h.b16 %v3935
  %v4286 = vunpack.c.l.b16 %v3936
  %v4287 = vunpack.c.h.b16 %v3936
  %v4288 = vunpack.c.l.b16 %v3937
  %v4289 = vunpack.c.h.b16 %v3937
  %v4290 = vunpack.c.l.b16 %v3938
  %v4291 = vunpack.c.h.b16 %v3938
  %v4292 = vunpack.c.l.b16 %v3939
  %v4293 = vunpack.c.h.b16 %v3939
  %v4294 = vunpack.c.l.b16 %v3940
  %v4295 = vunpack.c.h.b16 %v3940
  %v4296 = vunpack.c.l.b16 %v3941
  %v4297 = vunpack.c.h.b16 %v3941
  %v4298 = vunpack.c.l.b16 %v3942
  %v4299 = vunpack.c.h.b16 %v3942
  %v4300 = vunpack.c.l.b16 %v3943
  %v4301 = vunpack.c.h.b16 %v3943
  %v4302 = vunpack.c.l.b16 %v3944
  %v4303 = vunpack.c.h.b16 %v3944
  %v4304 = vunpack.c.l.b16 %v3945
  %v4305 = vunpack.c.h.b16 %v3945
  %v4306 = vunpack.c.l.b16 %v3946
  %v4307 = vunpack.c.h.b16 %v3946
  %v4308 = vunpack.c.l.b16 %v3947
  %v4309 = vunpack.c.h.b16 %v3947
  %v4310 = vunpack.c.l.b16 %v3948
  %v4311 = vunpack.c.h.b16 %v3948
  %v4312 = vunpack.c.l.b16 %v3949
  %v4313 = vunpack.c.h.b16 %v3949
  %v4314 = vunpack.c.l.b16 %v3950
  %v4315 = vunpack.c.h.b16 %v3950
  %v4316 = vunpack.c.l.b16 %v3951
  %v4317 = vunpack.c.h.b16 %v3951
  %v4318 = vunpack.c.l.b16 %v3952
  %v4319 = vunpack.c.h.b16 %v3952
  %v4320 = vunpack.c.l.b16 %v3953
  %v4321 = vunpack.c.h.b16 %v3953
  %v4322 = vunpack.c.l.b16 %v3954
  %v4323 = vunpack.c.h.b16 %v3954
  %v4324 = vunpack.c.l.b16 %v3955
  %v4325 = vunpack.c.h.b16 %v3955
  %v4326 = vunpack.c.l.b16 %v3956
  %v4327 = vunpack.c.h.b16 %v3956
  %v4328 = vunpack.c.l.b16 %v3957
  %v4329 = vunpack.c.h.b16 %v3957
  %v4330 = vunpack.c.l.b16 %v3958
  %v4331 = vunpack.c.h.b16 %v3958
  %v4332 = vunpack.c.l.b16 %v3959
  %v4333 = vunpack.c.h.b16 %v3959
  %v4334 = vunpack.c.l.b16 %v3960
  %v4335 = vunpack.c.h.b16 %v3960
  %v4336 = vunpack.c.l.b16 %v3961
  %v4337 = vunpack.c.h.b16 %v3961
  %v4338 = vunpack.c.l.b16 %v3962
  %v4339 = vunpack.c.h.b16 %v3962
  %v4340 = vunpack.c.l.b16 %v3963
  %v4341 = vunpack.c.h.b16 %v3963
  %v4342 = vpack.c.b16 %v4280, %v4278
  %v4343 = vpack.c.b16 %v4281, %v4279
  %v4344 = vpack.c.b16 %v4284, %v4282
  %v4345 = vpack.c.b16 %v4285, %v4283
  %v4346 = vpack.c.b16 %v4288, %v4286
  %v4347 = vpack.c.b16 %v4289, %v4287
  %v4348 = vpack.c.b16 %v4292, %v4290
  %v4349 = vpack.c.b16 %v4293, %v4291
  %v4350 = vpack.c.b16 %v4296, %v4294
  %v4351 = vpack.c.b16 %v4297, %v4295
  %v4352 = vpack.c.b16 %v4300, %v4298
  %v4353 = vpack.c.b16 %v4301, %v4299
  %v4354 = vpack.c.b16 %v4304, %v4302
  %v4355 = vpack.c.b16 %v4305, %v4303
  %v4356 = vpack.c.b16 %v4308, %v4306
  %v4357 = vpack.c.b16 %v4309, %v4307
  %v4358 = vpack.c.b16 %v4312, %v4310
  %v4359 = vpack.c.b16 %v4313, %v4311
  %v4360 = vpack.c.b16 %v4316, %v4314
  %v4361 = vpack.c.b16 %v4317, %v4315
  %v4362 = vpack.c.b16 %v4320, %v4318
  %v4363 = vpack.c.b16 %v4321, %v4319
  %v4364 = vpack.c.b16 %v4324, %v4322
  %v4365 = vpack.c.b16 %v4325, %v4323
  %v4366 = vpack.c.b16 %v4328, %v4326
  %v4367 = vpack.c.b16 %v4329, %v4327
  %v4368 = vpack.c.b16 %v4332, %v4330
  %v4369 = vpack.c.b16 %v4333, %v4331
  %v4370 = vpack.c.b16 %v4336, %v4334
  %v4371 = vpack.c.b16 %v4337, %v4335
  %v4372 = vpack.c.b16 %v4340, %v4338
  %v4373 = vpack.c.b16 %v4341, %v4339
  %4406 = vmatprep.subr.bf16.mxu0 %v4343
  %4407 = vmatpush1.bf16.msra.mxu0 %v4342
  %4408 = vmatprep.subr.bf16.mxu0 %v4345
  %4409 = vmatpush1.bf16.msra.mxu0 %v4344
  %4410 = vmatprep.subr.bf16.mxu0 %v4347
  %4411 = vmatpush1.bf16.msra.mxu0 %v4346
  %4412 = vmatprep.subr.bf16.mxu0 %v4349
  %4413 = vmatpush1.bf16.msra.mxu0 %v4348
  %4414 = vmatprep.subr.bf16.mxu0 %v4351
  %4415 = vmatpush1.bf16.msra.mxu0 %v4350
  %4416 = vmatprep.subr.bf16.mxu0 %v4353
  %4417 = vmatpush1.bf16.msra.mxu0 %v4352
  %4418 = vmatprep.subr.bf16.mxu0 %v4355
  %4419 = vmatpush1.bf16.msra.mxu0 %v4354
  %4420 = vmatprep.subr.bf16.mxu0 %v4357
  %4421 = vmatpush1.bf16.msra.mxu0 %v4356
  %4422 = vmatprep.subr.bf16.mxu0 %v4359
  %4423 = vmatpush1.bf16.msra.mxu0 %v4358
  %4424 = vmatprep.subr.bf16.mxu0 %v4361
  %4425 = vmatpush1.bf16.msra.mxu0 %v4360
  %4426 = vmatprep.subr.bf16.mxu0 %v4363
  %4427 = vmatpush1.bf16.msra.mxu0 %v4362
  %4428 = vmatprep.subr.bf16.mxu0 %v4365
  %4429 = vmatpush1.bf16.msra.mxu0 %v4364
  %4430 = vmatprep.subr.bf16.mxu0 %v4367
  %4431 = vmatpush1.bf16.msra.mxu0 %v4366
  %4432 = vmatprep.subr.bf16.mxu0 %v4369
  %4433 = vmatpush1.bf16.msra.mxu0 %v4368
  %4434 = vmatprep.subr.bf16.mxu0 %v4371
  %4435 = vmatpush1.bf16.msra.mxu0 %v4370
  %4436 = vmatprep.subr.bf16.mxu0 %v4373
  %4437 = vmatpush1.bf16.msra.mxu0 %v4372
  %4438 = vmatprep.mubr.bf16.mxu0 %v3931
  %4439 = vmatmul.mubr.bf16.gmra.mrb[0].mxu0 %v3930
  %v4440 = vpop.f32.mrb[0].mxu0
  %v4441 = vadd.f32 %v4240, %v4440
  %v4442 = vpop.f32.mrb[0].mxu0
  %v4443 = vadd.f32 %v4242, %v4442
  %v4444 = vpop.f32.mrb[0].mxu0
  %v4445 = vpop.f32.mrb[0].mxu0
  %4446 = vdwg.mxu0
  %s4447 = scalar_lea.vmem %s3, 8
  %v4448 = vld [vmem:[%s4447] sm:$0xf]
  %v4450 = vsel %vm3676, %v4448, 0
  %4452 = vmatprep.subr.bf16.mxu0 %v3882
  %4453 = vmatpush1.bf16.msra.mxu0 %v3881
  %4454 = vmatprep.subr.bf16.mxu0 0
  %4455 = vmatpush1.bf16.msra.mxu0 0
  %4456 = vmatprep.subr.bf16.mxu0 0
  %4457 = vmatpush1.bf16.msra.mxu0 0
  %4458 = vmatprep.subr.bf16.mxu0 0
  %4459 = vmatpush1.bf16.msra.mxu0 0
  %4460 = vmatprep.subr.bf16.mxu0 0
  %4461 = vmatpush1.bf16.msra.mxu0 0
  %4462 = vmatprep.subr.bf16.mxu0 0
  %4463 = vmatpush1.bf16.msra.mxu0 0
  %4464 = vmatprep.subr.bf16.mxu0 0
  %4465 = vmatpush1.bf16.msra.mxu0 0
  %4466 = vmatprep.subr.bf16.mxu0 0
  %4467 = vmatpush1.bf16.msra.mxu0 0
  %4468 = vmatprep.subr.bf16.mxu0 0
  %4469 = vmatpush1.bf16.msra.mxu0 0
  %4470 = vmatprep.subr.bf16.mxu0 0
  %4471 = vmatpush1.bf16.msra.mxu0 0
  %4472 = vmatprep.subr.bf16.mxu0 0
  %4473 = vmatpush1.bf16.msra.mxu0 0
  %4474 = vmatprep.subr.bf16.mxu0 0
  %4475 = vmatpush1.bf16.msra.mxu0 0
  %4476 = vmatprep.subr.bf16.mxu0 0
  %4477 = vmatpush1.bf16.msra.mxu0 0
  %4478 = vmatprep.subr.bf16.mxu0 0
  %4479 = vmatpush1.bf16.msra.mxu0 0
  %4480 = vmatprep.subr.bf16.mxu0 0
  %4481 = vmatpush1.bf16.msra.mxu0 0
  %4482 = vmatprep.subr.bf16.mxu0 0
  %4483 = vmatpush1.bf16.msra.mxu0 0
  %4484 = vmatprep.mubr.bf16.mxu0 0
  %4485 = vmatmul.mubr.bf16.gmra.mrb[0].mxu0 %v4450
  %v4486 = vpop.f32.mrb[0].mxu0
  %v4487 = vadd.f32 0.0, %v4486
  %v4488 = vpop.f32.mrb[0].mxu0
  %v4489 = vadd.f32 0.0, %v4488
  %v4490 = vpop.f32.mrb[0].mxu0
  %v4491 = vpop.f32.mrb[0].mxu0
  %4492 = vdwg.mxu0
  %v4493 = vpack.c.bf16 %v4487, %v4487
  %v4494 = vpack.c.bf16 %v4489, %v4489
  %s4495 = scalar_lea.vmem %s8, 512
  %v4496 = vld [vmem:[%s4495] sm:$0xff]
  %v4497 = vld [vmem:[%s4495 + $0x8] sm:$0xff]
  %v4498 = vld [vmem:[%s4495 + $0x10] sm:$0xff]
  %v4499 = vld [vmem:[%s4495 + $0x18] sm:$0xff]
  %v4500 = vld [vmem:[%s4495 + $0x20] sm:$0xff]
  %v4501 = vld [vmem:[%s4495 + $0x28] sm:$0xff]
  %v4502 = vld [vmem:[%s4495 + $0x30] sm:$0xff]
  %v4503 = vld [vmem:[%s4495 + $0x38] sm:$0xff]
  %v4504 = vld [vmem:[%s4495 + $0x40] sm:$0xff]
  %v4505 = vld [vmem:[%s4495 + $0x48] sm:$0xff]
  %v4506 = vld [vmem:[%s4495 + $0x50] sm:$0xff]
  %v4507 = vld [vmem:[%s4495 + $0x58] sm:$0xff]
  %v4508 = vld [vmem:[%s4495 + $0x60] sm:$0xff]
  %v4509 = vld [vmem:[%s4495 + $0x68] sm:$0xff]
  %v4510 = vld [vmem:[%s4495 + $0x70] sm:$0xff]
  %v4511 = vld [vmem:[%s4495 + $0x78] sm:$0xff]
  %v4512 = vld [vmem:[%s4495 + $0x80] sm:$0xff]
  %v4513 = vld [vmem:[%s4495 + $0x88] sm:$0xff]
  %v4514 = vld [vmem:[%s4495 + $0x90] sm:$0xff]
  %v4515 = vld [vmem:[%s4495 + $0x98] sm:$0xff]
  %v4516 = vld [vmem:[%s4495 + $0xa0] sm:$0xff]
  %v4517 = vld [vmem:[%s4495 + $0xa8] sm:$0xff]
  %v4518 = vld [vmem:[%s4495 + $0xb0] sm:$0xff]
  %v4519 = vld [vmem:[%s4495 + $0xb8] sm:$0xff]
  %v4520 = vld [vmem:[%s4495 + $0xc0] sm:$0xff]
  %v4521 = vld [vmem:[%s4495 + $0xc8] sm:$0xff]
  %v4522 = vld [vmem:[%s4495 + $0xd0] sm:$0xff]
  %v4523 = vld [vmem:[%s4495 + $0xd8] sm:$0xff]
  %v4524 = vld [vmem:[%s4495 + $0xe0] sm:$0xff]
  %v4525 = vld [vmem:[%s4495 + $0xe8] sm:$0xff]
  %v4526 = vld [vmem:[%s4495 + $0xf0] sm:$0xff]
  %v4527 = vld [vmem:[%s4495 + $0xf8] sm:$0xff]
  %v4560 = vunpack.c.l.b16 %v4496
  %v4561 = vunpack.c.h.b16 %v4496
  %v4562 = vunpack.c.l.b16 %v4497
  %v4563 = vunpack.c.h.b16 %v4497
  %v4564 = vunpack.c.l.b16 %v4498
  %v4565 = vunpack.c.h.b16 %v4498
  %v4566 = vunpack.c.l.b16 %v4499
  %v4567 = vunpack.c.h.b16 %v4499
  %v4568 = vunpack.c.l.b16 %v4500
  %v4569 = vunpack.c.h.b16 %v4500
  %v4570 = vunpack.c.l.b16 %v4501
  %v4571 = vunpack.c.h.b16 %v4501
  %v4572 = vunpack.c.l.b16 %v4502
  %v4573 = vunpack.c.h.b16 %v4502
  %v4574 = vunpack.c.l.b16 %v4503
  %v4575 = vunpack.c.h.b16 %v4503
  %v4576 = vunpack.c.l.b16 %v4504
  %v4577 = vunpack.c.h.b16 %v4504
  %v4578 = vunpack.c.l.b16 %v4505
  %v4579 = vunpack.c.h.b16 %v4505
  %v4580 = vunpack.c.l.b16 %v4506
  %v4581 = vunpack.c.h.b16 %v4506
  %v4582 = vunpack.c.l.b16 %v4507
  %v4583 = vunpack.c.h.b16 %v4507
  %v4584 = vunpack.c.l.b16 %v4508
  %v4585 = vunpack.c.h.b16 %v4508
  %v4586 = vunpack.c.l.b16 %v4509
  %v4587 = vunpack.c.h.b16 %v4509
  %v4588 = vunpack.c.l.b16 %v4510
  %v4589 = vunpack.c.h.b16 %v4510
  %v4590 = vunpack.c.l.b16 %v4511
  %v4591 = vunpack.c.h.b16 %v4511
  %v4592 = vunpack.c.l.b16 %v4512
  %v4593 = vunpack.c.h.b16 %v4512
  %v4594 = vunpack.c.l.b16 %v4513
  %v4595 = vunpack.c.h.b16 %v4513
  %v4596 = vunpack.c.l.b16 %v4514
  %v4597 = vunpack.c.h.b16 %v4514
  %v4598 = vunpack.c.l.b16 %v4515
  %v4599 = vunpack.c.h.b16 %v4515
  %v4600 = vunpack.c.l.b16 %v4516
  %v4601 = vunpack.c.h.b16 %v4516
  %v4602 = vunpack.c.l.b16 %v4517
  %v4603 = vunpack.c.h.b16 %v4517
  %v4604 = vunpack.c.l.b16 %v4518
  %v4605 = vunpack.c.h.b16 %v4518
  %v4606 = vunpack.c.l.b16 %v4519
  %v4607 = vunpack.c.h.b16 %v4519
  %v4608 = vunpack.c.l.b16 %v4520
  %v4609 = vunpack.c.h.b16 %v4520
  %v4610 = vunpack.c.l.b16 %v4521
  %v4611 = vunpack.c.h.b16 %v4521
  %v4612 = vunpack.c.l.b16 %v4522
  %v4613 = vunpack.c.h.b16 %v4522
  %v4614 = vunpack.c.l.b16 %v4523
  %v4615 = vunpack.c.h.b16 %v4523
  %v4616 = vunpack.c.l.b16 %v4524
  %v4617 = vunpack.c.h.b16 %v4524
  %v4618 = vunpack.c.l.b16 %v4525
  %v4619 = vunpack.c.h.b16 %v4525
  %v4620 = vunpack.c.l.b16 %v4526
  %v4621 = vunpack.c.h.b16 %v4526
  %v4622 = vunpack.c.l.b16 %v4527
  %v4623 = vunpack.c.h.b16 %v4527
  %v4624 = vpack.c.b16 %v4562, %v4560
  %v4625 = vpack.c.b16 %v4563, %v4561
  %v4626 = vpack.c.b16 %v4566, %v4564
  %v4627 = vpack.c.b16 %v4567, %v4565
  %v4628 = vpack.c.b16 %v4570, %v4568
  %v4629 = vpack.c.b16 %v4571, %v4569
  %v4630 = vpack.c.b16 %v4574, %v4572
  %v4631 = vpack.c.b16 %v4575, %v4573
  %v4632 = vpack.c.b16 %v4578, %v4576
  %v4633 = vpack.c.b16 %v4579, %v4577
  %v4634 = vpack.c.b16 %v4582, %v4580
  %v4635 = vpack.c.b16 %v4583, %v4581
  %v4636 = vpack.c.b16 %v4586, %v4584
  %v4637 = vpack.c.b16 %v4587, %v4585
  %v4638 = vpack.c.b16 %v4590, %v4588
  %v4639 = vpack.c.b16 %v4591, %v4589
  %v4640 = vpack.c.b16 %v4594, %v4592
  %v4641 = vpack.c.b16 %v4595, %v4593
  %v4642 = vpack.c.b16 %v4598, %v4596
  %v4643 = vpack.c.b16 %v4599, %v4597
  %v4644 = vpack.c.b16 %v4602, %v4600
  %v4645 = vpack.c.b16 %v4603, %v4601
  %v4646 = vpack.c.b16 %v4606, %v4604
  %v4647 = vpack.c.b16 %v4607, %v4605
  %v4648 = vpack.c.b16 %v4610, %v4608
  %v4649 = vpack.c.b16 %v4611, %v4609
  %v4650 = vpack.c.b16 %v4614, %v4612
  %v4651 = vpack.c.b16 %v4615, %v4613
  %v4652 = vpack.c.b16 %v4618, %v4616
  %v4653 = vpack.c.b16 %v4619, %v4617
  %v4654 = vpack.c.b16 %v4622, %v4620
  %v4655 = vpack.c.b16 %v4623, %v4621
  %4688 = vmatprep.subr.bf16.mxu0 %v4625
  %4689 = vmatpush1.bf16.msra.mxu0 %v4624
  %4690 = vmatprep.subr.bf16.mxu0 %v4627
  %4691 = vmatpush1.bf16.msra.mxu0 %v4626
  %4692 = vmatprep.subr.bf16.mxu0 %v4629
  %4693 = vmatpush1.bf16.msra.mxu0 %v4628
  %4694 = vmatprep.subr.bf16.mxu0 %v4631
  %4695 = vmatpush1.bf16.msra.mxu0 %v4630
  %4696 = vmatprep.subr.bf16.mxu0 %v4633
  %4697 = vmatpush1.bf16.msra.mxu0 %v4632
  %4698 = vmatprep.subr.bf16.mxu0 %v4635
  %4699 = vmatpush1.bf16.msra.mxu0 %v4634
  %4700 = vmatprep.subr.bf16.mxu0 %v4637
  %4701 = vmatpush1.bf16.msra.mxu0 %v4636
  %4702 = vmatprep.subr.bf16.mxu0 %v4639
  %4703 = vmatpush1.bf16.msra.mxu0 %v4638
  %4704 = vmatprep.subr.bf16.mxu0 %v4641
  %4705 = vmatpush1.bf16.msra.mxu0 %v4640
  %4706 = vmatprep.subr.bf16.mxu0 %v4643
  %4707 = vmatpush1.bf16.msra.mxu0 %v4642
  %4708 = vmatprep.subr.bf16.mxu0 %v4645
  %4709 = vmatpush1.bf16.msra.mxu0 %v4644
  %4710 = vmatprep.subr.bf16.mxu0 %v4647
  %4711 = vmatpush1.bf16.msra.mxu0 %v4646
  %4712 = vmatprep.subr.bf16.mxu0 %v4649
  %4713 = vmatpush1.bf16.msra.mxu0 %v4648
  %4714 = vmatprep.subr.bf16.mxu0 %v4651
  %4715 = vmatpush1.bf16.msra.mxu0 %v4650
  %4716 = vmatprep.subr.bf16.mxu0 %v4653
  %4717 = vmatpush1.bf16.msra.mxu0 %v4652
  %4718 = vmatprep.subr.bf16.mxu0 %v4655
  %4719 = vmatpush1.bf16.msra.mxu0 %v4654
  %4720 = vmatprep.mubr.bf16.mxu0 %v4494
  %4721 = vmatmul.mubr.bf16.gmra.mrb[0].mxu0 %v4493
  %v4722 = vpop.f32.mrb[0].mxu0
  %v4723 = vadd.f32 0.0, %v4722
  %v4724 = vpop.f32.mrb[0].mxu0
  %v4725 = vadd.f32 0.0, %v4724
  %v4726 = vpop.f32.mrb[0].mxu0
  %v4727 = vpop.f32.mrb[0].mxu0
  %4728 = vdwg.mxu0
  %v4729 = vadd.f32 %v4441, %v4723
  %v4730 = vadd.f32 %v4443, %v4725
  %s4731 = scalar_lea.vmem %s3, 12
  %v4732 = vld [vmem:[%s4731] sm:$0xf]
  %v4734 = vsel %vm3676, %v4732, 0
  %4736 = vmatprep.subr.bf16.mxu0 %v3882
  %4737 = vmatpush1.bf16.msra.mxu0 %v3881
  %4738 = vmatprep.subr.bf16.mxu0 0
  %4739 = vmatpush1.bf16.msra.mxu0 0
  %4740 = vmatprep.subr.bf16.mxu0 0
  %4741 = vmatpush1.bf16.msra.mxu0 0
  %4742 = vmatprep.subr.bf16.mxu0 0
  %4743 = vmatpush1.bf16.msra.mxu0 0
  %4744 = vmatprep.subr.bf16.mxu0 0
  %4745 = vmatpush1.bf16.msra.mxu0 0
  %4746 = vmatprep.subr.bf16.mxu0 0
  %4747 = vmatpush1.bf16.msra.mxu0 0
  %4748 = vmatprep.subr.bf16.mxu0 0
  %4749 = vmatpush1.bf16.msra.mxu0 0
  %4750 = vmatprep.subr.bf16.mxu0 0
  %4751 = vmatpush1.bf16.msra.mxu0 0
  %4752 = vmatprep.subr.bf16.mxu0 0
  %4753 = vmatpush1.bf16.msra.mxu0 0
  %4754 = vmatprep.subr.bf16.mxu0 0
  %4755 = vmatpush1.bf16.msra.mxu0 0
  %4756 = vmatprep.subr.bf16.mxu0 0
  %4757 = vmatpush1.bf16.msra.mxu0 0
  %4758 = vmatprep.subr.bf16.mxu0 0
  %4759 = vmatpush1.bf16.msra.mxu0 0
  %4760 = vmatprep.subr.bf16.mxu0 0
  %4761 = vmatpush1.bf16.msra.mxu0 0
  %4762 = vmatprep.subr.bf16.mxu0 0
  %4763 = vmatpush1.bf16.msra.mxu0 0
  %4764 = vmatprep.subr.bf16.mxu0 0
  %4765 = vmatpush1.bf16.msra.mxu0 0
  %4766 = vmatprep.subr.bf16.mxu0 0
  %4767 = vmatpush1.bf16.msra.mxu0 0
  %4768 = vmatprep.mubr.bf16.mxu0 0
  %4769 = vmatmul.mubr.bf16.gmra.mrb[0].mxu0 %v4734
  %v4770 = vpop.f32.mrb[0].mxu0
  %v4771 = vadd.f32 0.0, %v4770
  %v4772 = vpop.f32.mrb[0].mxu0
  %v4773 = vadd.f32 0.0, %v4772
  %v4774 = vpop.f32.mrb[0].mxu0
  %v4775 = vpop.f32.mrb[0].mxu0
  %4776 = vdwg.mxu0
  %v4777 = vpack.c.bf16 %v4771, %v4771
  %v4778 = vpack.c.bf16 %v4773, %v4773
  %s4779 = scalar_lea.vmem %s8, 768
  %v4780 = vld [vmem:[%s4779] sm:$0xff]
  %v4781 = vld [vmem:[%s4779 + $0x8] sm:$0xff]
  %v4782 = vld [vmem:[%s4779 + $0x10] sm:$0xff]
  %v4783 = vld [vmem:[%s4779 + $0x18] sm:$0xff]
  %v4784 = vld [vmem:[%s4779 + $0x20] sm:$0xff]
  %v4785 = vld [vmem:[%s4779 + $0x28] sm:$0xff]
  %v4786 = vld [vmem:[%s4779 + $0x30] sm:$0xff]
  %v4787 = vld [vmem:[%s4779 + $0x38] sm:$0xff]
  %v4788 = vld [vmem:[%s4779 + $0x40] sm:$0xff]
  %v4789 = vld [vmem:[%s4779 + $0x48] sm:$0xff]
  %v4790 = vld [vmem:[%s4779 + $0x50] sm:$0xff]
  %v4791 = vld [vmem:[%s4779 + $0x58] sm:$0xff]
  %v4792 = vld [vmem:[%s4779 + $0x60] sm:$0xff]
  %v4793 = vld [vmem:[%s4779 + $0x68] sm:$0xff]
  %v4794 = vld [vmem:[%s4779 + $0x70] sm:$0xff]
  %v4795 = vld [vmem:[%s4779 + $0x78] sm:$0xff]
  %v4796 = vld [vmem:[%s4779 + $0x80] sm:$0xff]
  %v4797 = vld [vmem:[%s4779 + $0x88] sm:$0xff]
  %v4798 = vld [vmem:[%s4779 + $0x90] sm:$0xff]
  %v4799 = vld [vmem:[%s4779 + $0x98] sm:$0xff]
  %v4800 = vld [vmem:[%s4779 + $0xa0] sm:$0xff]
  %v4801 = vld [vmem:[%s4779 + $0xa8] sm:$0xff]
  %v4802 = vld [vmem:[%s4779 + $0xb0] sm:$0xff]
  %v4803 = vld [vmem:[%s4779 + $0xb8] sm:$0xff]
  %v4804 = vld [vmem:[%s4779 + $0xc0] sm:$0xff]
  %v4805 = vld [vmem:[%s4779 + $0xc8] sm:$0xff]
  %v4806 = vld [vmem:[%s4779 + $0xd0] sm:$0xff]
  %v4807 = vld [vmem:[%s4779 + $0xd8] sm:$0xff]
  %v4808 = vld [vmem:[%s4779 + $0xe0] sm:$0xff]
  %v4809 = vld [vmem:[%s4779 + $0xe8] sm:$0xff]
  %v4810 = vld [vmem:[%s4779 + $0xf0] sm:$0xff]
  %v4811 = vld [vmem:[%s4779 + $0xf8] sm:$0xff]
  %v4844 = vunpack.c.l.b16 %v4780
  %v4845 = vunpack.c.h.b16 %v4780
  %v4846 = vunpack.c.l.b16 %v4781
  %v4847 = vunpack.c.h.b16 %v4781
  %v4848 = vunpack.c.l.b16 %v4782
  %v4849 = vunpack.c.h.b16 %v4782
  %v4850 = vunpack.c.l.b16 %v4783
  %v4851 = vunpack.c.h.b16 %v4783
  %v4852 = vunpack.c.l.b16 %v4784
  %v4853 = vunpack.c.h.b16 %v4784
  %v4854 = vunpack.c.l.b16 %v4785
  %v4855 = vunpack.c.h.b16 %v4785
  %v4856 = vunpack.c.l.b16 %v4786
  %v4857 = vunpack.c.h.b16 %v4786
  %v4858 = vunpack.c.l.b16 %v4787
  %v4859 = vunpack.c.h.b16 %v4787
  %v4860 = vunpack.c.l.b16 %v4788
  %v4861 = vunpack.c.h.b16 %v4788
  %v4862 = vunpack.c.l.b16 %v4789
  %v4863 = vunpack.c.h.b16 %v4789
  %v4864 = vunpack.c.l.b16 %v4790
  %v4865 = vunpack.c.h.b16 %v4790
  %v4866 = vunpack.c.l.b16 %v4791
  %v4867 = vunpack.c.h.b16 %v4791
  %v4868 = vunpack.c.l.b16 %v4792
  %v4869 = vunpack.c.h.b16 %v4792
  %v4870 = vunpack.c.l.b16 %v4793
  %v4871 = vunpack.c.h.b16 %v4793
  %v4872 = vunpack.c.l.b16 %v4794
  %v4873 = vunpack.c.h.b16 %v4794
  %v4874 = vunpack.c.l.b16 %v4795
  %v4875 = vunpack.c.h.b16 %v4795
  %v4876 = vunpack.c.l.b16 %v4796
  %v4877 = vunpack.c.h.b16 %v4796
  %v4878 = vunpack.c.l.b16 %v4797
  %v4879 = vunpack.c.h.b16 %v4797
  %v4880 = vunpack.c.l.b16 %v4798
  %v4881 = vunpack.c.h.b16 %v4798
  %v4882 = vunpack.c.l.b16 %v4799
  %v4883 = vunpack.c.h.b16 %v4799
  %v4884 = vunpack.c.l.b16 %v4800
  %v4885 = vunpack.c.h.b16 %v4800
  %v4886 = vunpack.c.l.b16 %v4801
  %v4887 = vunpack.c.h.b16 %v4801
  %v4888 = vunpack.c.l.b16 %v4802
  %v4889 = vunpack.c.h.b16 %v4802
  %v4890 = vunpack.c.l.b16 %v4803
  %v4891 = vunpack.c.h.b16 %v4803
  %v4892 = vunpack.c.l.b16 %v4804
  %v4893 = vunpack.c.h.b16 %v4804
  %v4894 = vunpack.c.l.b16 %v4805
  %v4895 = vunpack.c.h.b16 %v4805
  %v4896 = vunpack.c.l.b16 %v4806
  %v4897 = vunpack.c.h.b16 %v4806
  %v4898 = vunpack.c.l.b16 %v4807
  %v4899 = vunpack.c.h.b16 %v4807
  %v4900 = vunpack.c.l.b16 %v4808
  %v4901 = vunpack.c.h.b16 %v4808
  %v4902 = vunpack.c.l.b16 %v4809
  %v4903 = vunpack.c.h.b16 %v4809
  %v4904 = vunpack.c.l.b16 %v4810
  %v4905 = vunpack.c.h.b16 %v4810
  %v4906 = vunpack.c.l.b16 %v4811
  %v4907 = vunpack.c.h.b16 %v4811
  %v4908 = vpack.c.b16 %v4846, %v4844
  %v4909 = vpack.c.b16 %v4847, %v4845
  %v4910 = vpack.c.b16 %v4850, %v4848
  %v4911 = vpack.c.b16 %v4851, %v4849
  %v4912 = vpack.c.b16 %v4854, %v4852
  %v4913 = vpack.c.b16 %v4855, %v4853
  %v4914 = vpack.c.b16 %v4858, %v4856
  %v4915 = vpack.c.b16 %v4859, %v4857
  %v4916 = vpack.c.b16 %v4862, %v4860
  %v4917 = vpack.c.b16 %v4863, %v4861
  %v4918 = vpack.c.b16 %v4866, %v4864
  %v4919 = vpack.c.b16 %v4867, %v4865
  %v4920 = vpack.c.b16 %v4870, %v4868
  %v4921 = vpack.c.b16 %v4871, %v4869
  %v4922 = vpack.c.b16 %v4874, %v4872
  %v4923 = vpack.c.b16 %v4875, %v4873
  %v4924 = vpack.c.b16 %v4878, %v4876
  %v4925 = vpack.c.b16 %v4879, %v4877
  %v4926 = vpack.c.b16 %v4882, %v4880
  %v4927 = vpack.c.b16 %v4883, %v4881
  %v4928 = vpack.c.b16 %v4886, %v4884
  %v4929 = vpack.c.b16 %v4887, %v4885
  %v4930 = vpack.c.b16 %v4890, %v4888
  %v4931 = vpack.c.b16 %v4891, %v4889
  %v4932 = vpack.c.b16 %v4894, %v4892
  %v4933 = vpack.c.b16 %v4895, %v4893
  %v4934 = vpack.c.b16 %v4898, %v4896
  %v4935 = vpack.c.b16 %v4899, %v4897
  %v4936 = vpack.c.b16 %v4902, %v4900
  %v4937 = vpack.c.b16 %v4903, %v4901
  %v4938 = vpack.c.b16 %v4906, %v4904
  %v4939 = vpack.c.b16 %v4907, %v4905
  %4972 = vmatprep.subr.bf16.mxu0 %v4909
  %4973 = vmatpush1.bf16.msra.mxu0 %v4908
  %4974 = vmatprep.subr.bf16.mxu0 %v4911
  %4975 = vmatpush1.bf16.msra.mxu0 %v4910
  %4976 = vmatprep.subr.bf16.mxu0 %v4913
  %4977 = vmatpush1.bf16.msra.mxu0 %v4912
  %4978 = vmatprep.subr.bf16.mxu0 %v4915
  %4979 = vmatpush1.bf16.msra.mxu0 %v4914
  %4980 = vmatprep.subr.bf16.mxu0 %v4917
  %4981 = vmatpush1.bf16.msra.mxu0 %v4916
  %4982 = vmatprep.subr.bf16.mxu0 %v4919
  %4983 = vmatpush1.bf16.msra.mxu0 %v4918
  %4984 = vmatprep.subr.bf16.mxu0 %v4921
  %4985 = vmatpush1.bf16.msra.mxu0 %v4920
  %4986 = vmatprep.subr.bf16.mxu0 %v4923
  %4987 = vmatpush1.bf16.msra.mxu0 %v4922
  %4988 = vmatprep.subr.bf16.mxu0 %v4925
  %4989 = vmatpush1.bf16.msra.mxu0 %v4924
  %4990 = vmatprep.subr.bf16.mxu0 %v4927
  %4991 = vmatpush1.bf16.msra.mxu0 %v4926
  %4992 = vmatprep.subr.bf16.mxu0 %v4929
  %4993 = vmatpush1.bf16.msra.mxu0 %v4928
  %4994 = vmatprep.subr.bf16.mxu0 %v4931
  %4995 = vmatpush1.bf16.msra.mxu0 %v4930
  %4996 = vmatprep.subr.bf16.mxu0 %v4933
  %4997 = vmatpush1.bf16.msra.mxu0 %v4932
  %4998 = vmatprep.subr.bf16.mxu0 %v4935
  %4999 = vmatpush1.bf16.msra.mxu0 %v4934
  %5000 = vmatprep.subr.bf16.mxu0 %v4937
  %5001 = vmatpush1.bf16.msra.mxu0 %v4936
  %5002 = vmatprep.subr.bf16.mxu0 %v4939
  %5003 = vmatpush1.bf16.msra.mxu0 %v4938
  %5004 = vmatprep.mubr.bf16.mxu0 %v4778
  %5005 = vmatmul.mubr.bf16.gmra.mrb[0].mxu0 %v4777
  %v5006 = vpop.f32.mrb[0].mxu0
  %v5007 = vadd.f32 0.0, %v5006
  %v5008 = vpop.f32.mrb[0].mxu0
  %v5009 = vadd.f32 0.0, %v5008
  %v5010 = vpop.f32.mrb[0].mxu0
  %v5011 = vpop.f32.mrb[0].mxu0
  %5012 = vdwg.mxu0
  %v5013 = vadd.f32 %v4729, %v5007
  %v5014 = vadd.f32 %v4730, %v5009
  %5015 = vmatprep.subr.bf16.mxu0 %v3884
  %5016 = vmatpush1.bf16.msra.mxu0 %v3883
  %5017 = vmatprep.subr.bf16.mxu0 0
  %5018 = vmatpush1.bf16.msra.mxu0 0
  %5019 = vmatprep.subr.bf16.mxu0 0
  %5020 = vmatpush1.bf16.msra.mxu0 0
  %5021 = vmatprep.subr.bf16.mxu0 0
  %5022 = vmatpush1.bf16.msra.mxu0 0
  %5023 = vmatprep.subr.bf16.mxu0 0
  %5024 = vmatpush1.bf16.msra.mxu0 0
  %5025 = vmatprep.subr.bf16.mxu0 0
  %5026 = vmatpush1.bf16.msra.mxu0 0
  %5027 = vmatprep.subr.bf16.mxu0 0
  %5028 = vmatpush1.bf16.msra.mxu0 0
  %5029 = vmatprep.subr.bf16.mxu0 0
  %5030 = vmatpush1.bf16.msra.mxu0 0
  %5031 = vmatprep.subr.bf16.mxu0 0
  %5032 = vmatpush1.bf16.msra.mxu0 0
  %5033 = vmatprep.subr.bf16.mxu0 0
  %5034 = vmatpush1.bf16.msra.mxu0 0
  %5035 = vmatprep.subr.bf16.mxu0 0
  %5036 = vmatpush1.bf16.msra.mxu0 0
  %5037 = vmatprep.subr.bf16.mxu0 0
  %5038 = vmatpush1.bf16.msra.mxu0 0
  %5039 = vmatprep.subr.bf16.mxu0 0
  %5040 = vmatpush1.bf16.msra.mxu0 0
  %5041 = vmatprep.subr.bf16.mxu0 0
  %5042 = vmatpush1.bf16.msra.mxu0 0
  %5043 = vmatprep.subr.bf16.mxu0 0
  %5044 = vmatpush1.bf16.msra.mxu0 0
  %5045 = vmatprep.subr.bf16.mxu0 0
  %5046 = vmatpush1.bf16.msra.mxu0 0
  %5047 = vmatprep.mubr.bf16.mxu0 0
  %5048 = vmatmul.mubr.bf16.gmra.mrb[0].mxu0 %v3887
  %v5049 = vpop.f32.mrb[0].mxu0
  %v5050 = vadd.f32 0.0, %v5049
  %v5051 = vpop.f32.mrb[0].mxu0
  %v5052 = vadd.f32 0.0, %v5051
  %v5053 = vpop.f32.mrb[0].mxu0
  %v5054 = vpop.f32.mrb[0].mxu0
  %5055 = vdwg.mxu0
  %v5056 = vpack.c.bf16 %v5050, %v5050
  %v5057 = vpack.c.bf16 %v5052, %v5052
  %5058 = vmatprep.subr.bf16.mxu0 %v3884
  %5059 = vmatpush1.bf16.msra.mxu0 %v3883
  %5060 = vmatprep.subr.bf16.mxu0 0
  %5061 = vmatpush1.bf16.msra.mxu0 0
  %5062 = vmatprep.subr.bf16.mxu0 0
  %5063 = vmatpush1.bf16.msra.mxu0 0
  %5064 = vmatprep.subr.bf16.mxu0 0
  %5065 = vmatpush1.bf16.msra.mxu0 0
  %5066 = vmatprep.subr.bf16.mxu0 0
  %5067 = vmatpush1.bf16.msra.mxu0 0
  %5068 = vmatprep.subr.bf16.mxu0 0
  %5069 = vmatpush1.bf16.msra.mxu0 0
  %5070 = vmatprep.subr.bf16.mxu0 0
  %5071 = vmatpush1.bf16.msra.mxu0 0
  %5072 = vmatprep.subr.bf16.mxu0 0
  %5073 = vmatpush1.bf16.msra.mxu0 0
  %5074 = vmatprep.subr.bf16.mxu0 0
  %5075 = vmatpush1.bf16.msra.mxu0 0
  %5076 = vmatprep.subr.bf16.mxu0 0
  %5077 = vmatpush1.bf16.msra.mxu0 0
  %5078 = vmatprep.subr.bf16.mxu0 0
  %5079 = vmatpush1.bf16.msra.mxu0 0
  %5080 = vmatprep.subr.bf16.mxu0 0
  %5081 = vmatpush1.bf16.msra.mxu0 0
  %5082 = vmatprep.subr.bf16.mxu0 0
  %5083 = vmatpush1.bf16.msra.mxu0 0
  %5084 = vmatprep.subr.bf16.mxu0 0
  %5085 = vmatpush1.bf16.msra.mxu0 0
  %5086 = vmatprep.subr.bf16.mxu0 0
  %5087 = vmatpush1.bf16.msra.mxu0 0
  %5088 = vmatprep.subr.bf16.mxu0 0
  %5089 = vmatpush1.bf16.msra.mxu0 0
  %5090 = vmatprep.mubr.bf16.mxu0 0
  %5091 = vmatmul.mubr.bf16.gmra.mrb[0].mxu0 %v3967
  %v5092 = vpop.f32.mrb[0].mxu0
  %v5093 = vadd.f32 0.0, %v5092
  %v5094 = vpop.f32.mrb[0].mxu0
  %v5095 = vadd.f32 0.0, %v5094
  %v5096 = vpop.f32.mrb[0].mxu0
  %v5097 = vpop.f32.mrb[0].mxu0
  %5098 = vdwg.mxu0
  %v5099 = vpack.c.bf16 %v5093, %v5093
  %v5100 = vpack.c.bf16 %v5095, %v5095
  %5101 = vmatprep.subr.bf16.mxu0 %v4142
  %5102 = vmatpush1.bf16.msra.mxu0 %v4141
  %5103 = vmatprep.subr.bf16.mxu0 %v4144
  %5104 = vmatpush1.bf16.msra.mxu0 %v4143
  %5105 = vmatprep.subr.bf16.mxu0 %v4146
  %5106 = vmatpush1.bf16.msra.mxu0 %v4145
  %5107 = vmatprep.subr.bf16.mxu0 %v4148
  %5108 = vmatpush1.bf16.msra.mxu0 %v4147
  %5109 = vmatprep.subr.bf16.mxu0 %v4150
  %5110 = vmatpush1.bf16.msra.mxu0 %v4149
  %5111 = vmatprep.subr.bf16.mxu0 %v4152
  %5112 = vmatpush1.bf16.msra.mxu0 %v4151
  %5113 = vmatprep.subr.bf16.mxu0 %v4154
  %5114 = vmatpush1.bf16.msra.mxu0 %v4153
  %5115 = vmatprep.subr.bf16.mxu0 %v4156
  %5116 = vmatpush1.bf16.msra.mxu0 %v4155
  %5117 = vmatprep.subr.bf16.mxu0 %v4158
  %5118 = vmatpush1.bf16.msra.mxu0 %v4157
  %5119 = vmatprep.subr.bf16.mxu0 %v4160
  %5120 = vmatpush1.bf16.msra.mxu0 %v4159
  %5121 = vmatprep.subr.bf16.mxu0 %v4162
  %5122 = vmatpush1.bf16.msra.mxu0 %v4161
  %5123 = vmatprep.subr.bf16.mxu0 %v4164
  %5124 = vmatpush1.bf16.msra.mxu0 %v4163
  %5125 = vmatprep.subr.bf16.mxu0 %v4166
  %5126 = vmatpush1.bf16.msra.mxu0 %v4165
  %5127 = vmatprep.subr.bf16.mxu0 %v4168
  %5128 = vmatpush1.bf16.msra.mxu0 %v4167
  %5129 = vmatprep.subr.bf16.mxu0 %v4170
  %5130 = vmatpush1.bf16.msra.mxu0 %v4169
  %5131 = vmatprep.subr.bf16.mxu0 %v4172
  %5132 = vmatpush1.bf16.msra.mxu0 %v4171
  %5133 = vmatprep.mubr.bf16.mxu0 %v5100
  %5134 = vmatmul.mubr.bf16.gmra.mrb[0].mxu0 %v5099
  %v5135 = vpop.f32.mrb[0].mxu0
  %v5136 = vadd.f32 0.0, %v5135
  %v5137 = vpop.f32.mrb[0].mxu0
  %v5138 = vadd.f32 0.0, %v5137
  %v5139 = vpop.f32.mrb[0].mxu0
  %v5140 = vpop.f32.mrb[0].mxu0
  %5141 = vdwg.mxu0
  %5142 = vmatprep.subr.bf16.mxu0 %v4343
  %5143 = vmatpush1.bf16.msra.mxu0 %v4342
  %5144 = vmatprep.subr.bf16.mxu0 %v4345
  %5145 = vmatpush1.bf16.msra.mxu0 %v4344
  %5146 = vmatprep.subr.bf16.mxu0 %v4347
  %5147 = vmatpush1.bf16.msra.mxu0 %v4346
  %5148 = vmatprep.subr.bf16.mxu0 %v4349
  %5149 = vmatpush1.bf16.msra.mxu0 %v4348
  %5150 = vmatprep.subr.bf16.mxu0 %v4351
  %5151 = vmatpush1.bf16.msra.mxu0 %v4350
  %5152 = vmatprep.subr.bf16.mxu0 %v4353
  %5153 = vmatpush1.bf16.msra.mxu0 %v4352
  %5154 = vmatprep.subr.bf16.mxu0 %v4355
  %5155 = vmatpush1.bf16.msra.mxu0 %v4354
  %5156 = vmatprep.subr.bf16.mxu0 %v4357
  %5157 = vmatpush1.bf16.msra.mxu0 %v4356
  %5158 = vmatprep.subr.bf16.mxu0 %v4359
  %5159 = vmatpush1.bf16.msra.mxu0 %v4358
  %5160 = vmatprep.subr.bf16.mxu0 %v4361
  %5161 = vmatpush1.bf16.msra.mxu0 %v4360
  %5162 = vmatprep.subr.bf16.mxu0 %v4363
  %5163 = vmatpush1.bf16.msra.mxu0 %v4362
  %5164 = vmatprep.subr.bf16.mxu0 %v4365
  %5165 = vmatpush1.bf16.msra.mxu0 %v4364
  %5166 = vmatprep.subr.bf16.mxu0 %v4367
  %5167 = vmatpush1.bf16.msra.mxu0 %v4366
  %5168 = vmatprep.subr.bf16.mxu0 %v4369
  %5169 = vmatpush1.bf16.msra.mxu0 %v4368
  %5170 = vmatprep.subr.bf16.mxu0 %v4371
  %5171 = vmatpush1.bf16.msra.mxu0 %v4370
  %5172 = vmatprep.subr.bf16.mxu0 %v4373
  %5173 = vmatpush1.bf16.msra.mxu0 %v4372
  %5174 = vmatprep.mubr.bf16.mxu0 %v5057
  %5175 = vmatmul.mubr.bf16.gmra.mrb[0].mxu0 %v5056
  %v5176 = vpop.f32.mrb[0].mxu0
  %v5177 = vadd.f32 %v5136, %v5176
  %v5178 = vpop.f32.mrb[0].mxu0
  %v5179 = vadd.f32 %v5138, %v5178
  %v5180 = vpop.f32.mrb[0].mxu0
  %v5181 = vpop.f32.mrb[0].mxu0
  %5182 = vdwg.mxu0
  %5183 = vmatprep.subr.bf16.mxu0 %v3884
  %5184 = vmatpush1.bf16.msra.mxu0 %v3883
  %5185 = vmatprep.subr.bf16.mxu0 0
  %5186 = vmatpush1.bf16.msra.mxu0 0
  %5187 = vmatprep.subr.bf16.mxu0 0
  %5188 = vmatpush1.bf16.msra.mxu0 0
  %5189 = vmatprep.subr.bf16.mxu0 0
  %5190 = vmatpush1.bf16.msra.mxu0 0
  %5191 = vmatprep.subr.bf16.mxu0 0
  %5192 = vmatpush1.bf16.msra.mxu0 0
  %5193 = vmatprep.subr.bf16.mxu0 0
  %5194 = vmatpush1.bf16.msra.mxu0 0
  %5195 = vmatprep.subr.bf16.mxu0 0
  %5196 = vmatpush1.bf16.msra.mxu0 0
  %5197 = vmatprep.subr.bf16.mxu0 0
  %5198 = vmatpush1.bf16.msra.mxu0 0
  %5199 = vmatprep.subr.bf16.mxu0 0
  %5200 = vmatpush1.bf16.msra.mxu0 0
  %5201 = vmatprep.subr.bf16.mxu0 0
  %5202 = vmatpush1.bf16.msra.mxu0 0
  %5203 = vmatprep.subr.bf16.mxu0 0
  %5204 = vmatpush1.bf16.msra.mxu0 0
  %5205 = vmatprep.subr.bf16.mxu0 0
  %5206 = vmatpush1.bf16.msra.mxu0 0
  %5207 = vmatprep.subr.bf16.mxu0 0
  %5208 = vmatpush1.bf16.msra.mxu0 0
  %5209 = vmatprep.subr.bf16.mxu0 0
  %5210 = vmatpush1.bf16.msra.mxu0 0
  %5211 = vmatprep.subr.bf16.mxu0 0
  %5212 = vmatpush1.bf16.msra.mxu0 0
  %5213 = vmatprep.subr.bf16.mxu0 0
  %5214 = vmatpush1.bf16.msra.mxu0 0
  %5215 = vmatprep.mubr.bf16.mxu0 0
  %5216 = vmatmul.mubr.bf16.gmra.mrb[0].mxu0 %v4450
  %v5217 = vpop.f32.mrb[0].mxu0
  %v5218 = vadd.f32 0.0, %v5217
  %v5219 = vpop.f32.mrb[0].mxu0
  %v5220 = vadd.f32 0.0, %v5219
  %v5221 = vpop.f32.mrb[0].mxu0
  %v5222 = vpop.f32.mrb[0].mxu0
  %5223 = vdwg.mxu0
  %v5224 = vpack.c.bf16 %v5218, %v5218
  %v5225 = vpack.c.bf16 %v5220, %v5220
  %5226 = vmatprep.subr.bf16.mxu0 %v4625
  %5227 = vmatpush1.bf16.msra.mxu0 %v4624
  %5228 = vmatprep.subr.bf16.mxu0 %v4627
  %5229 = vmatpush1.bf16.msra.mxu0 %v4626
  %5230 = vmatprep.subr.bf16.mxu0 %v4629
  %5231 = vmatpush1.bf16.msra.mxu0 %v4628
  %5232 = vmatprep.subr.bf16.mxu0 %v4631
  %5233 = vmatpush1.bf16.msra.mxu0 %v4630
  %5234 = vmatprep.subr.bf16.mxu0 %v4633
  %5235 = vmatpush1.bf16.msra.mxu0 %v4632
  %5236 = vmatprep.subr.bf16.mxu0 %v4635
  %5237 = vmatpush1.bf16.msra.mxu0 %v4634
  %5238 = vmatprep.subr.bf16.mxu0 %v4637
  %5239 = vmatpush1.bf16.msra.mxu0 %v4636
  %5240 = vmatprep.subr.bf16.mxu0 %v4639
  %5241 = vmatpush1.bf16.msra.mxu0 %v4638
  %5242 = vmatprep.subr.bf16.mxu0 %v4641
  %5243 = vmatpush1.bf16.msra.mxu0 %v4640
  %5244 = vmatprep.subr.bf16.mxu0 %v4643
  %5245 = vmatpush1.bf16.msra.mxu0 %v4642
  %5246 = vmatprep.subr.bf16.mxu0 %v4645
  %5247 = vmatpush1.bf16.msra.mxu0 %v4644
  %5248 = vmatprep.subr.bf16.mxu0 %v4647
  %5249 = vmatpush1.bf16.msra.mxu0 %v4646
  %5250 = vmatprep.subr.bf16.mxu0 %v4649
  %5251 = vmatpush1.bf16.msra.mxu0 %v4648
  %5252 = vmatprep.subr.bf16.mxu0 %v4651
  %5253 = vmatpush1.bf16.msra.mxu0 %v4650
  %5254 = vmatprep.subr.bf16.mxu0 %v4653
  %5255 = vmatpush1.bf16.msra.mxu0 %v4652
  %5256 = vmatprep.subr.bf16.mxu0 %v4655
  %5257 = vmatpush1.bf16.msra.mxu0 %v4654
  %5258 = vmatprep.mubr.bf16.mxu0 %v5225
  %5259 = vmatmul.mubr.bf16.gmra.mrb[0].mxu0 %v5224
  %v5260 = vpop.f32.mrb[0].mxu0
  %v5261 = vadd.f32 0.0, %v5260
  %v5262 = vpop.f32.mrb[0].mxu0
  %v5263 = vadd.f32 0.0, %v5262
  %v5264 = vpop.f32.mrb[0].mxu0
  %v5265 = vpop.f32.mrb[0].mxu0
  %5266 = vdwg.mxu0
  %v5267 = vadd.f32 %v5177, %v5261
  %v5268 = vadd.f32 %v5179, %v5263
  %5269 = vmatprep.subr.bf16.mxu0 %v3884
  %5270 = vmatpush1.bf16.msra.mxu0 %v3883
  %5271 = vmatprep.subr.bf16.mxu0 0
  %5272 = vmatpush1.bf16.msra.mxu0 0
  %5273 = vmatprep.subr.bf16.mxu0 0
  %5274 = vmatpush1.bf16.msra.mxu0 0
  %5275 = vmatprep.subr.bf16.mxu0 0
  %5276 = vmatpush1.bf16.msra.mxu0 0
  %5277 = vmatprep.subr.bf16.mxu0 0
  %5278 = vmatpush1.bf16.msra.mxu0 0
  %5279 = vmatprep.subr.bf16.mxu0 0
  %5280 = vmatpush1.bf16.msra.mxu0 0
  %5281 = vmatprep.subr.bf16.mxu0 0
  %5282 = vmatpush1.bf16.msra.mxu0 0
  %5283 = vmatprep.subr.bf16.mxu0 0
  %5284 = vmatpush1.bf16.msra.mxu0 0
  %5285 = vmatprep.subr.bf16.mxu0 0
  %5286 = vmatpush1.bf16.msra.mxu0 0
  %5287 = vmatprep.subr.bf16.mxu0 0
  %5288 = vmatpush1.bf16.msra.mxu0 0
  %5289 = vmatprep.subr.bf16.mxu0 0
  %5290 = vmatpush1.bf16.msra.mxu0 0
  %5291 = vmatprep.subr.bf16.mxu0 0
  %5292 = vmatpush1.bf16.msra.mxu0 0
  %5293 = vmatprep.subr.bf16.mxu0 0
  %5294 = vmatpush1.bf16.msra.mxu0 0
  %5295 = vmatprep.subr.bf16.mxu0 0
  %5296 = vmatpush1.bf16.msra.mxu0 0
  %5297 = vmatprep.subr.bf16.mxu0 0
  %5298 = vmatpush1.bf16.msra.mxu0 0
  %5299 = vmatprep.subr.bf16.mxu0 0
  %5300 = vmatpush1.bf16.msra.mxu0 0
  %5301 = vmatprep.mubr.bf16.mxu0 0
  %5302 = vmatmul.mubr.bf16.gmra.mrb[0].mxu0 %v4734
  %v5303 = vpop.f32.mrb[0].mxu0
  %v5304 = vadd.f32 0.0, %v5303
  %v5305 = vpop.f32.mrb[0].mxu0
  %v5306 = vadd.f32 0.0, %v5305
  %v5307 = vpop.f32.mrb[0].mxu0
  %v5308 = vpop.f32.mrb[0].mxu0
  %5309 = vdwg.mxu0
  %v5310 = vpack.c.bf16 %v5304, %v5304
  %v5311 = vpack.c.bf16 %v5306, %v5306
  %5312 = vmatprep.subr.bf16.mxu0 %v4909
  %5313 = vmatpush1.bf16.msra.mxu0 %v4908
  %5314 = vmatprep.subr.bf16.mxu0 %v4911
  %5315 = vmatpush1.bf16.msra.mxu0 %v4910
  %5316 = vmatprep.subr.bf16.mxu0 %v4913
  %5317 = vmatpush1.bf16.msra.mxu0 %v4912
  %5318 = vmatprep.subr.bf16.mxu0 %v4915
  %5319 = vmatpush1.bf16.msra.mxu0 %v4914
  %5320 = vmatprep.subr.bf16.mxu0 %v4917
  %5321 = vmatpush1.bf16.msra.mxu0 %v4916
  %5322 = vmatprep.subr.bf16.mxu0 %v4919
  %5323 = vmatpush1.bf16.msra.mxu0 %v4918
  %5324 = vmatprep.subr.bf16.mxu0 %v4921
  %5325 = vmatpush1.bf16.msra.mxu0 %v4920
  %5326 = vmatprep.subr.bf16.mxu0 %v4923
  %5327 = vmatpush1.bf16.msra.mxu0 %v4922
  %5328 = vmatprep.subr.bf16.mxu0 %v4925
  %5329 = vmatpush1.bf16.msra.mxu0 %v4924
  %5330 = vmatprep.subr.bf16.mxu0 %v4927
  %5331 = vmatpush1.bf16.msra.mxu0 %v4926
  %5332 = vmatprep.subr.bf16.mxu0 %v4929
  %5333 = vmatpush1.bf16.msra.mxu0 %v4928
  %5334 = vmatprep.subr.bf16.mxu0 %v4931
  %5335 = vmatpush1.bf16.msra.mxu0 %v4930
  %5336 = vmatprep.subr.bf16.mxu0 %v4933
  %5337 = vmatpush1.bf16.msra.mxu0 %v4932
  %5338 = vmatprep.subr.bf16.mxu0 %v4935
  %5339 = vmatpush1.bf16.msra.mxu0 %v4934
  %5340 = vmatprep.subr.bf16.mxu0 %v4937
  %5341 = vmatpush1.bf16.msra.mxu0 %v4936
  %5342 = vmatprep.subr.bf16.mxu0 %v4939
  %5343 = vmatpush1.bf16.msra.mxu0 %v4938
  %5344 = vmatprep.mubr.bf16.mxu0 %v5311
  %5345 = vmatmul.mubr.bf16.gmra.mrb[0].mxu0 %v5310
  %v5346 = vpop.f32.mrb[0].mxu0
  %v5347 = vadd.f32 0.0, %v5346
  %v5348 = vpop.f32.mrb[0].mxu0
  %v5349 = vadd.f32 0.0, %v5348
  %v5350 = vpop.f32.mrb[0].mxu0
  %v5351 = vpop.f32.mrb[0].mxu0
  %5352 = vdwg.mxu0
  %v5353 = vadd.f32 %v5267, %v5347
  %v5354 = vadd.f32 %v5268, %v5349
  %v5355 = vld [vmem:[%s13] sm:$0x1]
  %v5356 = vld [vmem:[%s14] sm:$0x1]
  %vm5357 = vcmp.lt.s32.totalorder %v2907, 0
  %v5358 = vsub.s32 0, %v2907
  %v5359 = vsel %vm5357, %v5358, %v2907
  %v5360 = vshrl.u32 %v5359, 5
  %v5361 = vand.u32 %v5359, 31
  %v5362 = vsub.s32 0, %v5361
  %v5363 = vsel %vm5357, %v5362, %v5361
  %vm5364 = vcmp.lt.s32.totalorder %v2908, 0
  %v5365 = vsub.s32 0, %v2908
  %v5366 = vsel %vm5364, %v5365, %v2908
  %v5367 = vshrl.u32 %v5366, 5
  %v5368 = vand.u32 %v5366, 31
  %v5369 = vsub.s32 0, %v5368
  %v5370 = vsel %vm5364, %v5369, %v5368
  %vm5371 = vcmp.lt.s32.totalorder %v2909, 0
  %v5372 = vsub.s32 0, %v2909
  %v5373 = vsel %vm5371, %v5372, %v2909
  %v5374 = vshrl.u32 %v5373, 5
  %v5375 = vand.u32 %v5373, 31
  %v5376 = vsub.s32 0, %v5375
  %v5377 = vsel %vm5371, %v5376, %v5375
  %vm5378 = vcmp.lt.s32.totalorder %v2910, 0
  %v5379 = vsub.s32 0, %v2910
  %v5380 = vsel %vm5378, %v5379, %v2910
  %v5381 = vshrl.u32 %v5380, 5
  %v5382 = vand.u32 %v5380, 31
  %v5383 = vsub.s32 0, %v5382
  %v5384 = vsel %vm5378, %v5383, %v5382
  %vm5385 = vcmp.lt.s32.totalorder %v2911, 0
  %v5386 = vsub.s32 0, %v2911
  %v5387 = vsel %vm5385, %v5386, %v2911
  %v5388 = vshrl.u32 %v5387, 5
  %v5389 = vand.u32 %v5387, 31
  %v5390 = vsub.s32 0, %v5389
  %v5391 = vsel %vm5385, %v5390, %v5389
  %vm5392 = vcmp.lt.s32.totalorder %v2912, 0
  %v5393 = vsub.s32 0, %v2912
  %v5394 = vsel %vm5392, %v5393, %v2912
  %v5395 = vshrl.u32 %v5394, 5
  %v5396 = vand.u32 %v5394, 31
  %v5397 = vsub.s32 0, %v5396
  %v5398 = vsel %vm5392, %v5397, %v5396
  %vm5399 = vcmp.lt.s32.totalorder %v2913, 0
  %v5400 = vsub.s32 0, %v2913
  %v5401 = vsel %vm5399, %v5400, %v2913
  %v5402 = vshrl.u32 %v5401, 5
  %v5403 = vand.u32 %v5401, 31
  %v5404 = vsub.s32 0, %v5403
  %v5405 = vsel %vm5399, %v5404, %v5403
  %vm5406 = vcmp.lt.s32.totalorder %v2914, 0
  %v5407 = vsub.s32 0, %v2914
  %v5408 = vsel %vm5406, %v5407, %v2914
  %v5409 = vshrl.u32 %v5408, 5
  %v5410 = vand.u32 %v5408, 31
  %v5411 = vsub.s32 0, %v5410
  %v5412 = vsel %vm5406, %v5411, %v5410
  %vm5413 = vcmp.lt.s32.totalorder %v2915, 0
  %v5414 = vsub.s32 0, %v2915
  %v5415 = vsel %vm5413, %v5414, %v2915
  %v5416 = vshrl.u32 %v5415, 5
  %v5417 = vand.u32 %v5415, 31
  %v5418 = vsub.s32 0, %v5417
  %v5419 = vsel %vm5413, %v5418, %v5417
  %vm5420 = vcmp.lt.s32.totalorder %v2916, 0
  %v5421 = vsub.s32 0, %v2916
  %v5422 = vsel %vm5420, %v5421, %v2916
  %v5423 = vshrl.u32 %v5422, 5
  %v5424 = vand.u32 %v5422, 31
  %v5425 = vsub.s32 0, %v5424
  %v5426 = vsel %vm5420, %v5425, %v5424
  %vm5427 = vcmp.lt.s32.totalorder %v2917, 0
  %v5428 = vsub.s32 0, %v2917
  %v5429 = vsel %vm5427, %v5428, %v2917
  %v5430 = vshrl.u32 %v5429, 5
  %v5431 = vand.u32 %v5429, 31
  %v5432 = vsub.s32 0, %v5431
  %v5433 = vsel %vm5427, %v5432, %v5431
  %vm5434 = vcmp.lt.s32.totalorder %v2918, 0
  %v5435 = vsub.s32 0, %v2918
  %v5436 = vsel %vm5434, %v5435, %v2918
  %v5437 = vshrl.u32 %v5436, 5
  %v5438 = vand.u32 %v5436, 31
  %v5439 = vsub.s32 0, %v5438
  %v5440 = vsel %vm5434, %v5439, %v5438
  %vm5441 = vcmp.lt.s32.totalorder %v2919, 0
  %v5442 = vsub.s32 0, %v2919
  %v5443 = vsel %vm5441, %v5442, %v2919
  %v5444 = vshrl.u32 %v5443, 5
  %v5445 = vand.u32 %v5443, 31
  %v5446 = vsub.s32 0, %v5445
  %v5447 = vsel %vm5441, %v5446, %v5445
  %vm5448 = vcmp.lt.s32.totalorder %v2920, 0
  %v5449 = vsub.s32 0, %v2920
  %v5450 = vsel %vm5448, %v5449, %v2920
  %v5451 = vshrl.u32 %v5450, 5
  %v5452 = vand.u32 %v5450, 31
  %v5453 = vsub.s32 0, %v5452
  %v5454 = vsel %vm5448, %v5453, %v5452
  %vm5455 = vcmp.lt.s32.totalorder %v2921, 0
  %v5456 = vsub.s32 0, %v2921
  %v5457 = vsel %vm5455, %v5456, %v2921
  %v5458 = vshrl.u32 %v5457, 5
  %v5459 = vand.u32 %v5457, 31
  %v5460 = vsub.s32 0, %v5459
  %v5461 = vsel %vm5455, %v5460, %v5459
  %vm5462 = vcmp.lt.s32.totalorder %v2922, 0
  %v5463 = vsub.s32 0, %v2922
  %v5464 = vsel %vm5462, %v5463, %v2922
  %v5465 = vshrl.u32 %v5464, 5
  %v5466 = vand.u32 %v5464, 31
  %v5467 = vsub.s32 0, %v5466
  %v5468 = vsel %vm5462, %v5467, %v5466
  %vm5469 = vcmp.lt.s32.totalorder %v2923, 0
  %v5470 = vsub.s32 0, %v2923
  %v5471 = vsel %vm5469, %v5470, %v2923
  %v5472 = vshrl.u32 %v5471, 5
  %v5473 = vand.u32 %v5471, 31
  %v5474 = vsub.s32 0, %v5473
  %v5475 = vsel %vm5469, %v5474, %v5473
  %vm5476 = vcmp.lt.s32.totalorder %v2924, 0
  %v5477 = vsub.s32 0, %v2924
  %v5478 = vsel %vm5476, %v5477, %v2924
  %v5479 = vshrl.u32 %v5478, 5
  %v5480 = vand.u32 %v5478, 31
  %v5481 = vsub.s32 0, %v5480
  %v5482 = vsel %vm5476, %v5481, %v5480
  %vm5483 = vcmp.lt.s32.totalorder %v2925, 0
  %v5484 = vsub.s32 0, %v2925
  %v5485 = vsel %vm5483, %v5484, %v2925
  %v5486 = vshrl.u32 %v5485, 5
  %v5487 = vand.u32 %v5485, 31
  %v5488 = vsub.s32 0, %v5487
  %v5489 = vsel %vm5483, %v5488, %v5487
  %vm5490 = vcmp.lt.s32.totalorder %v2926, 0
  %v5491 = vsub.s32 0, %v2926
  %v5492 = vsel %vm5490, %v5491, %v2926
  %v5493 = vshrl.u32 %v5492, 5
  %v5494 = vand.u32 %v5492, 31
  %v5495 = vsub.s32 0, %v5494
  %v5496 = vsel %vm5490, %v5495, %v5494
  %vm5497 = vcmp.lt.s32.totalorder %v2927, 0
  %v5498 = vsub.s32 0, %v2927
  %v5499 = vsel %vm5497, %v5498, %v2927
  %v5500 = vshrl.u32 %v5499, 5
  %v5501 = vand.u32 %v5499, 31
  %v5502 = vsub.s32 0, %v5501
  %v5503 = vsel %vm5497, %v5502, %v5501
  %vm5504 = vcmp.lt.s32.totalorder %v2928, 0
  %v5505 = vsub.s32 0, %v2928
  %v5506 = vsel %vm5504, %v5505, %v2928
  %v5507 = vshrl.u32 %v5506, 5
  %v5508 = vand.u32 %v5506, 31
  %v5509 = vsub.s32 0, %v5508
  %v5510 = vsel %vm5504, %v5509, %v5508
  %vm5511 = vcmp.lt.s32.totalorder %v2929, 0
  %v5512 = vsub.s32 0, %v2929
  %v5513 = vsel %vm5511, %v5512, %v2929
  %v5514 = vshrl.u32 %v5513, 5
  %v5515 = vand.u32 %v5513, 31
  %v5516 = vsub.s32 0, %v5515
  %v5517 = vsel %vm5511, %v5516, %v5515
  %vm5518 = vcmp.lt.s32.totalorder %v2930, 0
  %v5519 = vsub.s32 0, %v2930
  %v5520 = vsel %vm5518, %v5519, %v2930
  %v5521 = vshrl.u32 %v5520, 5
  %v5522 = vand.u32 %v5520, 31
  %v5523 = vsub.s32 0, %v5522
  %v5524 = vsel %vm5518, %v5523, %v5522
  %vm5525 = vcmp.lt.s32.totalorder %v2931, 0
  %v5526 = vsub.s32 0, %v2931
  %v5527 = vsel %vm5525, %v5526, %v2931
  %v5528 = vshrl.u32 %v5527, 5
  %v5529 = vand.u32 %v5527, 31
  %v5530 = vsub.s32 0, %v5529
  %v5531 = vsel %vm5525, %v5530, %v5529
  %vm5532 = vcmp.lt.s32.totalorder %v2932, 0
  %v5533 = vsub.s32 0, %v2932
  %v5534 = vsel %vm5532, %v5533, %v2932
  %v5535 = vshrl.u32 %v5534, 5
  %v5536 = vand.u32 %v5534, 31
  %v5537 = vsub.s32 0, %v5536
  %v5538 = vsel %vm5532, %v5537, %v5536
  %vm5539 = vcmp.lt.s32.totalorder %v2933, 0
  %v5540 = vsub.s32 0, %v2933
  %v5541 = vsel %vm5539, %v5540, %v2933
  %v5542 = vshrl.u32 %v5541, 5
  %v5543 = vand.u32 %v5541, 31
  %v5544 = vsub.s32 0, %v5543
  %v5545 = vsel %vm5539, %v5544, %v5543
  %vm5546 = vcmp.lt.s32.totalorder %v2934, 0
  %v5547 = vsub.s32 0, %v2934
  %v5548 = vsel %vm5546, %v5547, %v2934
  %v5549 = vshrl.u32 %v5548, 5
  %v5550 = vand.u32 %v5548, 31
  %v5551 = vsub.s32 0, %v5550
  %v5552 = vsel %vm5546, %v5551, %v5550
  %vm5553 = vcmp.lt.s32.totalorder %v2935, 0
  %v5554 = vsub.s32 0, %v2935
  %v5555 = vsel %vm5553, %v5554, %v2935
  %v5556 = vshrl.u32 %v5555, 5
  %v5557 = vand.u32 %v5555, 31
  %v5558 = vsub.s32 0, %v5557
  %v5559 = vsel %vm5553, %v5558, %v5557
  %vm5560 = vcmp.lt.s32.totalorder %v2936, 0
  %v5561 = vsub.s32 0, %v2936
  %v5562 = vsel %vm5560, %v5561, %v2936
  %v5563 = vshrl.u32 %v5562, 5
  %v5564 = vand.u32 %v5562, 31
  %v5565 = vsub.s32 0, %v5564
  %v5566 = vsel %vm5560, %v5565, %v5564
  %vm5567 = vcmp.lt.s32.totalorder %v2937, 0
  %v5568 = vsub.s32 0, %v2937
  %v5569 = vsel %vm5567, %v5568, %v2937
  %v5570 = vshrl.u32 %v5569, 5
  %v5571 = vand.u32 %v5569, 31
  %v5572 = vsub.s32 0, %v5571
  %v5573 = vsel %vm5567, %v5572, %v5571
  %vm5574 = vcmp.lt.s32.totalorder %v2938, 0
  %v5575 = vsub.s32 0, %v2938
  %v5576 = vsel %vm5574, %v5575, %v2938
  %v5577 = vshrl.u32 %v5576, 5
  %v5578 = vand.u32 %v5576, 31
  %v5579 = vsub.s32 0, %v5578
  %v5580 = vsel %vm5574, %v5579, %v5578
  %vm5581 = vcmp.ne.s32.totalorder %v5363, 0
  %vm5582 = vcmp.ne.s32.totalorder %v5370, 0
  %vm5583 = vcmp.ne.s32.totalorder %v5377, 0
  %vm5584 = vcmp.ne.s32.totalorder %v5384, 0
  %vm5585 = vcmp.ne.s32.totalorder %v5391, 0
  %vm5586 = vcmp.ne.s32.totalorder %v5398, 0
  %vm5587 = vcmp.ne.s32.totalorder %v5405, 0
  %vm5588 = vcmp.ne.s32.totalorder %v5412, 0
  %vm5589 = vcmp.ne.s32.totalorder %v5419, 0
  %vm5590 = vcmp.ne.s32.totalorder %v5426, 0
  %vm5591 = vcmp.ne.s32.totalorder %v5433, 0
  %vm5592 = vcmp.ne.s32.totalorder %v5440, 0
  %vm5593 = vcmp.ne.s32.totalorder %v5447, 0
  %vm5594 = vcmp.ne.s32.totalorder %v5454, 0
  %vm5595 = vcmp.ne.s32.totalorder %v5461, 0
  %vm5596 = vcmp.ne.s32.totalorder %v5468, 0
  %vm5597 = vcmp.ne.s32.totalorder %v5475, 0
  %vm5598 = vcmp.ne.s32.totalorder %v5482, 0
  %vm5599 = vcmp.ne.s32.totalorder %v5489, 0
  %vm5600 = vcmp.ne.s32.totalorder %v5496, 0
  %vm5601 = vcmp.ne.s32.totalorder %v5503, 0
  %vm5602 = vcmp.ne.s32.totalorder %v5510, 0
  %vm5603 = vcmp.ne.s32.totalorder %v5517, 0
  %vm5604 = vcmp.ne.s32.totalorder %v5524, 0
  %vm5605 = vcmp.ne.s32.totalorder %v5531, 0
  %vm5606 = vcmp.ne.s32.totalorder %v5538, 0
  %vm5607 = vcmp.ne.s32.totalorder %v5545, 0
  %vm5608 = vcmp.ne.s32.totalorder %v5552, 0
  %vm5609 = vcmp.ne.s32.totalorder %v5559, 0
  %vm5610 = vcmp.ne.s32.totalorder %v5566, 0
  %vm5611 = vcmp.ne.s32.totalorder %v5573, 0
  %vm5612 = vcmp.ne.s32.totalorder %v5580, 0
  %vm5613 = vcmp.lt.s32.totalorder %v5363, 0
  %vm5614 = vcmp.lt.s32.totalorder %v5370, 0
  %vm5615 = vcmp.lt.s32.totalorder %v5377, 0
  %vm5616 = vcmp.lt.s32.totalorder %v5384, 0
  %vm5617 = vcmp.lt.s32.totalorder %v5391, 0
  %vm5618 = vcmp.lt.s32.totalorder %v5398, 0
  %vm5619 = vcmp.lt.s32.totalorder %v5405, 0
  %vm5620 = vcmp.lt.s32.totalorder %v5412, 0
  %vm5621 = vcmp.lt.s32.totalorder %v5419, 0
  %vm5622 = vcmp.lt.s32.totalorder %v5426, 0
  %vm5623 = vcmp.lt.s32.totalorder %v5433, 0
  %vm5624 = vcmp.lt.s32.totalorder %v5440, 0
  %vm5625 = vcmp.lt.s32.totalorder %v5447, 0
  %vm5626 = vcmp.lt.s32.totalorder %v5454, 0
  %vm5627 = vcmp.lt.s32.totalorder %v5461, 0
  %vm5628 = vcmp.lt.s32.totalorder %v5468, 0
  %vm5629 = vcmp.lt.s32.totalorder %v5475, 0
  %vm5630 = vcmp.lt.s32.totalorder %v5482, 0
  %vm5631 = vcmp.lt.s32.totalorder %v5489, 0
  %vm5632 = vcmp.lt.s32.totalorder %v5496, 0
  %vm5633 = vcmp.lt.s32.totalorder %v5503, 0
  %vm5634 = vcmp.lt.s32.totalorder %v5510, 0
  %vm5635 = vcmp.lt.s32.totalorder %v5517, 0
  %vm5636 = vcmp.lt.s32.totalorder %v5524, 0
  %vm5637 = vcmp.lt.s32.totalorder %v5531, 0
  %vm5638 = vcmp.lt.s32.totalorder %v5538, 0
  %vm5639 = vcmp.lt.s32.totalorder %v5545, 0
  %vm5640 = vcmp.lt.s32.totalorder %v5552, 0
  %vm5641 = vcmp.lt.s32.totalorder %v5559, 0
  %vm5642 = vcmp.lt.s32.totalorder %v5566, 0
  %vm5643 = vcmp.lt.s32.totalorder %v5573, 0
  %vm5644 = vcmp.lt.s32.totalorder %v5580, 0
  %vm5645 = vmand %vm5613, %vm5581
  %vm5646 = vmand %vm5614, %vm5582
  %vm5647 = vmand %vm5615, %vm5583
  %vm5648 = vmand %vm5616, %vm5584
  %vm5649 = vmand %vm5617, %vm5585
  %vm5650 = vmand %vm5618, %vm5586
  %vm5651 = vmand %vm5619, %vm5587
  %vm5652 = vmand %vm5620, %vm5588
  %vm5653 = vmand %vm5621, %vm5589
  %vm5654 = vmand %vm5622, %vm5590
  %vm5655 = vmand %vm5623, %vm5591
  %vm5656 = vmand %vm5624, %vm5592
  %vm5657 = vmand %vm5625, %vm5593
  %vm5658 = vmand %vm5626, %vm5594
  %vm5659 = vmand %vm5627, %vm5595
  %vm5660 = vmand %vm5628, %vm5596
  %vm5661 = vmand %vm5629, %vm5597
  %vm5662 = vmand %vm5630, %vm5598
  %vm5663 = vmand %vm5631, %vm5599
  %vm5664 = vmand %vm5632, %vm5600
  %vm5665 = vmand %vm5633, %vm5601
  %vm5666 = vmand %vm5634, %vm5602
  %vm5667 = vmand %vm5635, %vm5603
  %vm5668 = vmand %vm5636, %vm5604
  %vm5669 = vmand %vm5637, %vm5605
  %vm5670 = vmand %vm5638, %vm5606
  %vm5671 = vmand %vm5639, %vm5607
  %vm5672 = vmand %vm5640, %vm5608
  %vm5673 = vmand %vm5641, %vm5609
  %vm5674 = vmand %vm5642, %vm5610
  %vm5675 = vmand %vm5643, %vm5611
  %vm5676 = vmand %vm5644, %vm5612
  %v5677 = vadd.s32 %v5363, 32
  %v5678 = vadd.s32 %v5370, 32
  %v5679 = vadd.s32 %v5377, 32
  %v5680 = vadd.s32 %v5384, 32
  %v5681 = vadd.s32 %v5391, 32
  %v5682 = vadd.s32 %v5398, 32
  %v5683 = vadd.s32 %v5405, 32
  %v5684 = vadd.s32 %v5412, 32
  %v5685 = vadd.s32 %v5419, 32
  %v5686 = vadd.s32 %v5426, 32
  %v5687 = vadd.s32 %v5433, 32
  %v5688 = vadd.s32 %v5440, 32
  %v5689 = vadd.s32 %v5447, 32
  %v5690 = vadd.s32 %v5454, 32
  %v5691 = vadd.s32 %v5461, 32
  %v5692 = vadd.s32 %v5468, 32
  %v5693 = vadd.s32 %v5475, 32
  %v5694 = vadd.s32 %v5482, 32
  %v5695 = vadd.s32 %v5489, 32
  %v5696 = vadd.s32 %v5496, 32
  %v5697 = vadd.s32 %v5503, 32
  %v5698 = vadd.s32 %v5510, 32
  %v5699 = vadd.s32 %v5517, 32
  %v5700 = vadd.s32 %v5524, 32
  %v5701 = vadd.s32 %v5531, 32
  %v5702 = vadd.s32 %v5538, 32
  %v5703 = vadd.s32 %v5545, 32
  %v5704 = vadd.s32 %v5552, 32
  %v5705 = vadd.s32 %v5559, 32
  %v5706 = vadd.s32 %v5566, 32
  %v5707 = vadd.s32 %v5573, 32
  %v5708 = vadd.s32 %v5580, 32
  %v5709 = vsel %vm5645, %v5677, %v5363
  %v5710 = vsel %vm5646, %v5678, %v5370
  %v5711 = vsel %vm5647, %v5679, %v5377
  %v5712 = vsel %vm5648, %v5680, %v5384
  %v5713 = vsel %vm5649, %v5681, %v5391
  %v5714 = vsel %vm5650, %v5682, %v5398
  %v5715 = vsel %vm5651, %v5683, %v5405
  %v5716 = vsel %vm5652, %v5684, %v5412
  %v5717 = vsel %vm5653, %v5685, %v5419
  %v5718 = vsel %vm5654, %v5686, %v5426
  %v5719 = vsel %vm5655, %v5687, %v5433
  %v5720 = vsel %vm5656, %v5688, %v5440
  %v5721 = vsel %vm5657, %v5689, %v5447
  %v5722 = vsel %vm5658, %v5690, %v5454
  %v5723 = vsel %vm5659, %v5691, %v5461
  %v5724 = vsel %vm5660, %v5692, %v5468
  %v5725 = vsel %vm5661, %v5693, %v5475
  %v5726 = vsel %vm5662, %v5694, %v5482
  %v5727 = vsel %vm5663, %v5695, %v5489
  %v5728 = vsel %vm5664, %v5696, %v5496
  %v5729 = vsel %vm5665, %v5697, %v5503
  %v5730 = vsel %vm5666, %v5698, %v5510
  %v5731 = vsel %vm5667, %v5699, %v5517
  %v5732 = vsel %vm5668, %v5700, %v5524
  %v5733 = vsel %vm5669, %v5701, %v5531
  %v5734 = vsel %vm5670, %v5702, %v5538
  %v5735 = vsel %vm5671, %v5703, %v5545
  %v5736 = vsel %vm5672, %v5704, %v5552
  %v5737 = vsel %vm5673, %v5705, %v5559
  %v5738 = vsel %vm5674, %v5706, %v5566
  %v5739 = vsel %vm5675, %v5707, %v5573
  %v5740 = vsel %vm5676, %v5708, %v5580
  %vm5741 = vcmp.eq.s32.totalorder %v5709, %v3324
  %vm5742 = vcmp.eq.s32.totalorder %v5710, %v3324
  %vm5743 = vcmp.eq.s32.totalorder %v5711, %v3324
  %vm5744 = vcmp.eq.s32.totalorder %v5712, %v3324
  %vm5745 = vcmp.eq.s32.totalorder %v5713, %v3324
  %vm5746 = vcmp.eq.s32.totalorder %v5714, %v3324
  %vm5747 = vcmp.eq.s32.totalorder %v5715, %v3324
  %vm5748 = vcmp.eq.s32.totalorder %v5716, %v3324
  %vm5749 = vcmp.eq.s32.totalorder %v5717, %v3324
  %vm5750 = vcmp.eq.s32.totalorder %v5718, %v3324
  %vm5751 = vcmp.eq.s32.totalorder %v5719, %v3324
  %vm5752 = vcmp.eq.s32.totalorder %v5720, %v3324
  %vm5753 = vcmp.eq.s32.totalorder %v5721, %v3324
  %vm5754 = vcmp.eq.s32.totalorder %v5722, %v3324
  %vm5755 = vcmp.eq.s32.totalorder %v5723, %v3324
  %vm5756 = vcmp.eq.s32.totalorder %v5724, %v3324
  %vm5757 = vcmp.eq.s32.totalorder %v5725, %v3324
  %vm5758 = vcmp.eq.s32.totalorder %v5726, %v3324
  %vm5759 = vcmp.eq.s32.totalorder %v5727, %v3324
  %vm5760 = vcmp.eq.s32.totalorder %v5728, %v3324
  %vm5761 = vcmp.eq.s32.totalorder %v5729, %v3324
  %vm5762 = vcmp.eq.s32.totalorder %v5730, %v3324
  %vm5763 = vcmp.eq.s32.totalorder %v5731, %v3324
  %vm5764 = vcmp.eq.s32.totalorder %v5732, %v3324
  %vm5765 = vcmp.eq.s32.totalorder %v5733, %v3324
  %vm5766 = vcmp.eq.s32.totalorder %v5734, %v3324
  %vm5767 = vcmp.eq.s32.totalorder %v5735, %v3324
  %vm5768 = vcmp.eq.s32.totalorder %v5736, %v3324
  %vm5769 = vcmp.eq.s32.totalorder %v5737, %v3324
  %vm5770 = vcmp.eq.s32.totalorder %v5738, %v3324
  %vm5771 = vcmp.eq.s32.totalorder %v5739, %v3324
  %vm5772 = vcmp.eq.s32.totalorder %v5740, %v3324
  %v5773 = vsel %vm5741, 1, 0
  %v5774 = vsel %vm5742, 1, 0
  %v5775 = vsel %vm5743, 1, 0
  %v5776 = vsel %vm5744, 1, 0
  %v5777 = vsel %vm5745, 1, 0
  %v5778 = vsel %vm5746, 1, 0
  %v5779 = vsel %vm5747, 1, 0
  %v5780 = vsel %vm5748, 1, 0
  %v5781 = vsel %vm5749, 1, 0
  %v5782 = vsel %vm5750, 1, 0
  %v5783 = vsel %vm5751, 1, 0
  %v5784 = vsel %vm5752, 1, 0
  %v5785 = vsel %vm5753, 1, 0
  %v5786 = vsel %vm5754, 1, 0
  %v5787 = vsel %vm5755, 1, 0
  %v5788 = vsel %vm5756, 1, 0
  %v5789 = vsel %vm5757, 1, 0
  %v5790 = vsel %vm5758, 1, 0
  %v5791 = vsel %vm5759, 1, 0
  %v5792 = vsel %vm5760, 1, 0
  %v5793 = vsel %vm5761, 1, 0
  %v5794 = vsel %vm5762, 1, 0
  %v5795 = vsel %vm5763, 1, 0
  %v5796 = vsel %vm5764, 1, 0
  %v5797 = vsel %vm5765, 1, 0
  %v5798 = vsel %vm5766, 1, 0
  %v5799 = vsel %vm5767, 1, 0
  %v5800 = vsel %vm5768, 1, 0
  %v5801 = vsel %vm5769, 1, 0
  %v5802 = vsel %vm5770, 1, 0
  %v5803 = vsel %vm5771, 1, 0
  %v5804 = vsel %vm5772, 1, 0
  %v5805 = vcvt.s32.f32 %v5773
  %v5806 = vcvt.s32.f32 %v5774
  %v5807 = vcvt.s32.f32 %v5775
  %v5808 = vcvt.s32.f32 %v5776
  %v5809 = vcvt.s32.f32 %v5777
  %v5810 = vcvt.s32.f32 %v5778
  %v5811 = vcvt.s32.f32 %v5779
  %v5812 = vcvt.s32.f32 %v5780
  %v5813 = vcvt.s32.f32 %v5781
  %v5814 = vcvt.s32.f32 %v5782
  %v5815 = vcvt.s32.f32 %v5783
  %v5816 = vcvt.s32.f32 %v5784
  %v5817 = vcvt.s32.f32 %v5785
  %v5818 = vcvt.s32.f32 %v5786
  %v5819 = vcvt.s32.f32 %v5787
  %v5820 = vcvt.s32.f32 %v5788
  %v5821 = vcvt.s32.f32 %v5789
  %v5822 = vcvt.s32.f32 %v5790
  %v5823 = vcvt.s32.f32 %v5791
  %v5824 = vcvt.s32.f32 %v5792
  %v5825 = vcvt.s32.f32 %v5793
  %v5826 = vcvt.s32.f32 %v5794
  %v5827 = vcvt.s32.f32 %v5795
  %v5828 = vcvt.s32.f32 %v5796
  %v5829 = vcvt.s32.f32 %v5797
  %v5830 = vcvt.s32.f32 %v5798
  %v5831 = vcvt.s32.f32 %v5799
  %v5832 = vcvt.s32.f32 %v5800
  %v5833 = vcvt.s32.f32 %v5801
  %v5834 = vcvt.s32.f32 %v5802
  %v5835 = vcvt.s32.f32 %v5803
  %v5836 = vcvt.s32.f32 %v5804
  %vm5837 = vcmp.lt.s32.totalorder %v3324, 0
  %v5838 = vsub.s32 0, %v3324
  %v5839 = vsel %vm5837, %v5838, %v3324
  %v5840 = vshrl.u32 %v5839, 5
  %v5841 = vand.u32 %v5839, 31
  %v5842 = vsub.s32 0, %v5841
  %v5843 = vsel %vm5837, %v5842, %v5841
  %vm5844 = vcmp.lt.s32.totalorder %v3421, 0
  %v5845 = vsub.s32 0, %v3421
  %v5846 = vsel %vm5844, %v5845, %v3421
  %v5847 = vshrl.u32 %v5846, 5
  %v5848 = vand.u32 %v5846, 31
  %v5849 = vsub.s32 0, %v5848
  %v5850 = vsel %vm5844, %v5849, %v5848
  %vm5851 = vcmp.ne.s32.totalorder %v5843, 0
  %vm5852 = vcmp.ne.s32.totalorder %v5850, 0
  %vm5853 = vcmp.lt.s32.totalorder %v5843, 0
  %vm5854 = vcmp.lt.s32.totalorder %v5850, 0
  %vm5855 = vmand %vm5853, %vm5851
  %vm5856 = vmand %vm5854, %vm5852
  %v5857 = vadd.s32 %v5843, 32
  %v5858 = vadd.s32 %v5850, 32
  %v5859 = vsel %vm5855, %v5857, %v5843
  %v5860 = vsel %vm5856, %v5858, %v5850
  %vm5861 = vcmp.eq.s32.totalorder %v2907, %v5859
  %vm5862 = vcmp.eq.s32.totalorder %v2907, %v5860
  %vm5863 = vcmp.eq.s32.totalorder %v2908, %v5859
  %vm5864 = vcmp.eq.s32.totalorder %v2908, %v5860
  %vm5865 = vcmp.eq.s32.totalorder %v2909, %v5859
  %vm5866 = vcmp.eq.s32.totalorder %v2909, %v5860
  %vm5867 = vcmp.eq.s32.totalorder %v2910, %v5859
  %vm5868 = vcmp.eq.s32.totalorder %v2910, %v5860
  %v5869 = vsel %vm5861, 1, 0
  %v5870 = vsel %vm5862, 1, 0
  %v5871 = vsel %vm5863, 1, 0
  %v5872 = vsel %vm5864, 1, 0
  %v5873 = vsel %vm5865, 1, 0
  %v5874 = vsel %vm5866, 1, 0
  %v5875 = vsel %vm5867, 1, 0
  %v5876 = vsel %vm5868, 1, 0
  %v5877 = vcvt.s32.f32 %v5869
  %v5878 = vcvt.s32.f32 %v5870
  %v5879 = vcvt.s32.f32 %v5871
  %v5880 = vcvt.s32.f32 %v5872
  %v5881 = vcvt.s32.f32 %v5873
  %v5882 = vcvt.s32.f32 %v5874
  %v5883 = vcvt.s32.f32 %v5875
  %v5884 = vcvt.s32.f32 %v5876
  %v5885 = vrot.slane %v5013, 4
  %v5886 = vadd.f32 %v5013, %v5885
  %v5887 = vrot.slane %v5886, 2
  %v5888 = vadd.f32 %v5886, %v5887
  %v5889 = vrot.slane %v5888, 1
  %v5890 = vadd.f32 %v5888, %v5889
  %v5891 = vrot.slane %v5014, 4
  %v5892 = vadd.f32 %v5014, %v5891
  %v5893 = vrot.slane %v5892, 2
  %v5894 = vadd.f32 %v5892, %v5893
  %v5895 = vrot.slane %v5894, 1
  %v5896 = vadd.f32 %v5894, %v5895
  %v5897 = vmul.f32 %v5013, %v5013
  %v5898 = vmul.f32 %v5014, %v5014
  %v5899 = vrot.slane %v5897, 4
  %v5900 = vadd.f32 %v5897, %v5899
  %v5901 = vrot.slane %v5900, 2
  %v5902 = vadd.f32 %v5900, %v5901
  %v5903 = vrot.slane %v5902, 1
  %v5904 = vadd.f32 %v5902, %v5903
  %v5905 = vrot.slane %v5898, 4
  %v5906 = vadd.f32 %v5898, %v5905
  %v5907 = vrot.slane %v5906, 2
  %v5908 = vadd.f32 %v5906, %v5907
  %v5909 = vrot.slane %v5908, 1
  %v5910 = vadd.f32 %v5908, %v5909
  %v5911 = vrot.slane %v5353, 4
  %v5912 = vadd.f32 %v5353, %v5911
  %v5913 = vrot.slane %v5912, 2
  %v5914 = vadd.f32 %v5912, %v5913
  %v5915 = vrot.slane %v5914, 1
  %v5916 = vadd.f32 %v5914, %v5915
  %v5917 = vrot.slane %v5354, 4
  %v5918 = vadd.f32 %v5354, %v5917
  %v5919 = vrot.slane %v5918, 2
  %v5920 = vadd.f32 %v5918, %v5919
  %v5921 = vrot.slane %v5920, 1
  %v5922 = vadd.f32 %v5920, %v5921
  %v5923 = vadd.f32 %v5890, %v5916
  %v5924 = vadd.f32 %v5896, %v5922
  %v5925 = vmul.f32 %v5353, %v5353
  %v5926 = vmul.f32 %v5354, %v5354
  %v5927 = vrot.slane %v5925, 4
  %v5928 = vadd.f32 %v5925, %v5927
  %v5929 = vrot.slane %v5928, 2
  %v5930 = vadd.f32 %v5928, %v5929
  %v5931 = vrot.slane %v5930, 1
  %v5932 = vadd.f32 %v5930, %v5931
  %v5933 = vrot.slane %v5926, 4
  %v5934 = vadd.f32 %v5926, %v5933
  %v5935 = vrot.slane %v5934, 2
  %v5936 = vadd.f32 %v5934, %v5935
  %v5937 = vrot.slane %v5936, 1
  %v5938 = vadd.f32 %v5936, %v5937
  %v5939 = vadd.f32 %v5904, %v5932
  %v5940 = vadd.f32 %v5910, %v5938
  %5941 = vmatprep.subr.mxu0 0.0
  %5942 = vmatpush1.msra.mxu0 %v5805
  %5943 = vmatprep.subr.mxu0 0.0
  %5944 = vmatpush1.msra.mxu0 %v5806
  %5945 = vmatprep.subr.mxu0 0.0
  %5946 = vmatpush1.msra.mxu0 %v5807
  %5947 = vmatprep.subr.mxu0 0.0
  %5948 = vmatpush1.msra.mxu0 %v5808
  %5949 = vmatprep.subr.mxu0 0.0
  %5950 = vmatpush1.msra.mxu0 %v5809
  %5951 = vmatprep.subr.mxu0 0.0
  %5952 = vmatpush1.msra.mxu0 %v5810
  %5953 = vmatprep.subr.mxu0 0.0
  %5954 = vmatpush1.msra.mxu0 %v5811
  %5955 = vmatprep.subr.mxu0 0.0
  %5956 = vmatpush1.msra.mxu0 %v5812
  %5957 = vmatprep.subr.mxu0 0.0
  %5958 = vmatpush1.msra.mxu0 %v5813
  %5959 = vmatprep.subr.mxu0 0.0
  %5960 = vmatpush1.msra.mxu0 %v5814
  %5961 = vmatprep.subr.mxu0 0.0
  %5962 = vmatpush1.msra.mxu0 %v5815
  %5963 = vmatprep.subr.mxu0 0.0
  %5964 = vmatpush1.msra.mxu0 %v5816
  %5965 = vmatprep.subr.mxu0 0.0
  %5966 = vmatpush1.msra.mxu0 %v5817
  %5967 = vmatprep.subr.mxu0 0.0
  %5968 = vmatpush1.msra.mxu0 %v5818
  %5969 = vmatprep.subr.mxu0 0.0
  %5970 = vmatpush1.msra.mxu0 %v5819
  %5971 = vmatprep.subr.mxu0 0.0
  %5972 = vmatpush1.msra.mxu0 %v5820
  %5973 = vmatprep.subr.mxu0 0.0
  %5974 = vmatpush1.msra.mxu0 %v5821
  %5975 = vmatprep.subr.mxu0 0.0
  %5976 = vmatpush1.msra.mxu0 %v5822
  %5977 = vmatprep.subr.mxu0 0.0
  %5978 = vmatpush1.msra.mxu0 %v5823
  %5979 = vmatprep.subr.mxu0 0.0
  %5980 = vmatpush1.msra.mxu0 %v5824
  %5981 = vmatprep.subr.mxu0 0.0
  %5982 = vmatpush1.msra.mxu0 %v5825
  %5983 = vmatprep.subr.mxu0 0.0
  %5984 = vmatpush1.msra.mxu0 %v5826
  %5985 = vmatprep.subr.mxu0 0.0
  %5986 = vmatpush1.msra.mxu0 %v5827
  %5987 = vmatprep.subr.mxu0 0.0
  %5988 = vmatpush1.msra.mxu0 %v5828
  %5989 = vmatprep.subr.mxu0 0.0
  %5990 = vmatpush1.msra.mxu0 %v5829
  %5991 = vmatprep.subr.mxu0 0.0
  %5992 = vmatpush1.msra.mxu0 %v5830
  %5993 = vmatprep.subr.mxu0 0.0
  %5994 = vmatpush1.msra.mxu0 %v5831
  %5995 = vmatprep.subr.mxu0 0.0
  %5996 = vmatpush1.msra.mxu0 %v5832
  %5997 = vmatprep.subr.mxu0 0.0
  %5998 = vmatpush1.msra.mxu0 %v5833
  %5999 = vmatprep.subr.mxu0 0.0
  %6000 = vmatpush1.msra.mxu0 %v5834
  %6001 = vmatprep.subr.mxu0 0.0
  %6002 = vmatpush1.msra.mxu0 %v5835
  %6003 = vmatprep.subr.mxu0 0.0
  %6004 = vmatpush1.msra.mxu0 %v5836
  %6005 = vmatprep.mubr.f32.mxu0 %v5924
  %6006 = vmatmul.mubr.f32.gmra.mrb[0].mxu0 %v5923
  %v6007 = vpop.f32.mrb[0].mxu0
  %v6008 = vadd.f32 0.0, %v6007
  %v6009 = vpop.f32.mrb[0].mxu0
  %6010 = vdwg.mxu0
  %6011 = vmatprep.subr.mxu0 0.0
  %6012 = vmatpush1.msra.mxu0 %v5805
  %6013 = vmatprep.subr.mxu0 0.0
  %6014 = vmatpush1.msra.mxu0 %v5806
  %6015 = vmatprep.subr.mxu0 0.0
  %6016 = vmatpush1.msra.mxu0 %v5807
  %6017 = vmatprep.subr.mxu0 0.0
  %6018 = vmatpush1.msra.mxu0 %v5808
  %6019 = vmatprep.subr.mxu0 0.0
  %6020 = vmatpush1.msra.mxu0 %v5809
  %6021 = vmatprep.subr.mxu0 0.0
  %6022 = vmatpush1.msra.mxu0 %v5810
  %6023 = vmatprep.subr.mxu0 0.0
  %6024 = vmatpush1.msra.mxu0 %v5811
  %6025 = vmatprep.subr.mxu0 0.0
  %6026 = vmatpush1.msra.mxu0 %v5812
  %6027 = vmatprep.subr.mxu0 0.0
  %6028 = vmatpush1.msra.mxu0 %v5813
  %6029 = vmatprep.subr.mxu0 0.0
  %6030 = vmatpush1.msra.mxu0 %v5814
  %6031 = vmatprep.subr.mxu0 0.0
  %6032 = vmatpush1.msra.mxu0 %v5815
  %6033 = vmatprep.subr.mxu0 0.0
  %6034 = vmatpush1.msra.mxu0 %v5816
  %6035 = vmatprep.subr.mxu0 0.0
  %6036 = vmatpush1.msra.mxu0 %v5817
  %6037 = vmatprep.subr.mxu0 0.0
  %6038 = vmatpush1.msra.mxu0 %v5818
  %6039 = vmatprep.subr.mxu0 0.0
  %6040 = vmatpush1.msra.mxu0 %v5819
  %6041 = vmatprep.subr.mxu0 0.0
  %6042 = vmatpush1.msra.mxu0 %v5820
  %6043 = vmatprep.subr.mxu0 0.0
  %6044 = vmatpush1.msra.mxu0 %v5821
  %6045 = vmatprep.subr.mxu0 0.0
  %6046 = vmatpush1.msra.mxu0 %v5822
  %6047 = vmatprep.subr.mxu0 0.0
  %6048 = vmatpush1.msra.mxu0 %v5823
  %6049 = vmatprep.subr.mxu0 0.0
  %6050 = vmatpush1.msra.mxu0 %v5824
  %6051 = vmatprep.subr.mxu0 0.0
  %6052 = vmatpush1.msra.mxu0 %v5825
  %6053 = vmatprep.subr.mxu0 0.0
  %6054 = vmatpush1.msra.mxu0 %v5826
  %6055 = vmatprep.subr.mxu0 0.0
  %6056 = vmatpush1.msra.mxu0 %v5827
  %6057 = vmatprep.subr.mxu0 0.0
  %6058 = vmatpush1.msra.mxu0 %v5828
  %6059 = vmatprep.subr.mxu0 0.0
  %6060 = vmatpush1.msra.mxu0 %v5829
  %6061 = vmatprep.subr.mxu0 0.0
  %6062 = vmatpush1.msra.mxu0 %v5830
  %6063 = vmatprep.subr.mxu0 0.0
  %6064 = vmatpush1.msra.mxu0 %v5831
  %6065 = vmatprep.subr.mxu0 0.0
  %6066 = vmatpush1.msra.mxu0 %v5832
  %6067 = vmatprep.subr.mxu0 0.0
  %6068 = vmatpush1.msra.mxu0 %v5833
  %6069 = vmatprep.subr.mxu0 0.0
  %6070 = vmatpush1.msra.mxu0 %v5834
  %6071 = vmatprep.subr.mxu0 0.0
  %6072 = vmatpush1.msra.mxu0 %v5835
  %6073 = vmatprep.subr.mxu0 0.0
  %6074 = vmatpush1.msra.mxu0 %v5836
  %6075 = vmatprep.mubr.f32.mxu0 %v5940
  %6076 = vmatmul.mubr.f32.gmra.mrb[0].mxu0 %v5939
  %v6077 = vpop.f32.mrb[0].mxu0
  %v6078 = vadd.f32 0.0, %v6077
  %v6079 = vpop.f32.mrb[0].mxu0
  %6080 = vdwg.mxu0
  %v6081 = vrcp.pop 128.0
  %v6082 = vmul.f32 %v6008, %v6081
  %v6083 = vmul.f32 %v6078, %v6081
  %v6084 = vmul.f32 %v6082, %v6082
  %v6085 = vsub.f32 %v6083, %v6084
  %v6086 = vadd.f32 %v6085, 1e-05
  %v6087 = vrsqrt.pop %v6086
  %v6088 = vmul.f32 %v5355, %v6087
  %v6089 = vmul.f32 %v6082, %v6088
  %v6090 = vsub.f32 %v5356, %v6089
  %v6092 = vsel %vm1376, %v6088, 0
  %6094 = vmatprep.subr.mxu0 %v5878
  %6095 = vmatpush1.msra.mxu0 %v5877
  %6096 = vmatprep.subr.mxu0 %v5880
  %6097 = vmatpush1.msra.mxu0 %v5879
  %6098 = vmatprep.subr.mxu0 %v5882
  %6099 = vmatpush1.msra.mxu0 %v5881
  %6100 = vmatprep.subr.mxu0 %v5884
  %6101 = vmatpush1.msra.mxu0 %v5883
  %6102 = vmatprep.subr.mxu0 0.0
  %6103 = vmatpush1.msra.mxu0 0.0
  %6104 = vmatprep.subr.mxu0 0.0
  %6105 = vmatpush1.msra.mxu0 0.0
  %6106 = vmatprep.subr.mxu0 0.0
  %6107 = vmatpush1.msra.mxu0 0.0
  %6108 = vmatprep.subr.mxu0 0.0
  %6109 = vmatpush1.msra.mxu0 0.0
  %6110 = vmatprep.subr.mxu0 0.0
  %6111 = vmatpush1.msra.mxu0 0.0
  %6112 = vmatprep.subr.mxu0 0.0
  %6113 = vmatpush1.msra.mxu0 0.0
  %6114 = vmatprep.subr.mxu0 0.0
  %6115 = vmatpush1.msra.mxu0 0.0
  %6116 = vmatprep.subr.mxu0 0.0
  %6117 = vmatpush1.msra.mxu0 0.0
  %6118 = vmatprep.subr.mxu0 0.0
  %6119 = vmatpush1.msra.mxu0 0.0
  %6120 = vmatprep.subr.mxu0 0.0
  %6121 = vmatpush1.msra.mxu0 0.0
  %6122 = vmatprep.subr.mxu0 0.0
  %6123 = vmatpush1.msra.mxu0 0.0
  %6124 = vmatprep.subr.mxu0 0.0
  %6125 = vmatpush1.msra.mxu0 0.0
  %6126 = vmatprep.subr.mxu0 0.0
  %6127 = vmatpush1.msra.mxu0 0.0
  %6128 = vmatprep.subr.mxu0 0.0
  %6129 = vmatpush1.msra.mxu0 0.0
  %6130 = vmatprep.subr.mxu0 0.0
  %6131 = vmatpush1.msra.mxu0 0.0
  %6132 = vmatprep.subr.mxu0 0.0
  %6133 = vmatpush1.msra.mxu0 0.0
  %6134 = vmatprep.subr.mxu0 0.0
  %6135 = vmatpush1.msra.mxu0 0.0
  %6136 = vmatprep.subr.mxu0 0.0
  %6137 = vmatpush1.msra.mxu0 0.0
  %6138 = vmatprep.subr.mxu0 0.0
  %6139 = vmatpush1.msra.mxu0 0.0
  %6140 = vmatprep.subr.mxu0 0.0
  %6141 = vmatpush1.msra.mxu0 0.0
  %6142 = vmatprep.subr.mxu0 0.0
  %6143 = vmatpush1.msra.mxu0 0.0
  %6144 = vmatprep.subr.mxu0 0.0
  %6145 = vmatpush1.msra.mxu0 0.0
  %6146 = vmatprep.subr.mxu0 0.0
  %6147 = vmatpush1.msra.mxu0 0.0
  %6148 = vmatprep.subr.mxu0 0.0
  %6149 = vmatpush1.msra.mxu0 0.0
  %6150 = vmatprep.subr.mxu0 0.0
  %6151 = vmatpush1.msra.mxu0 0.0
  %6152 = vmatprep.subr.mxu0 0.0
  %6153 = vmatpush1.msra.mxu0 0.0
  %6154 = vmatprep.subr.mxu0 0.0
  %6155 = vmatpush1.msra.mxu0 0.0
  %6156 = vmatprep.subr.mxu0 0.0
  %6157 = vmatpush1.msra.mxu0 0.0
  %6158 = vmatprep.mubr.f32.mxu0 0.0
  %6159 = vmatmul.mubr.f32.gmra.mrb[0].mxu0 %v6092
  %v6160 = vpop.f32.mrb[0].mxu0
  %v6161 = vadd.f32 0.0, %v6160
  %v6162 = vpop.f32.mrb[0].mxu0
  %v6163 = vadd.f32 0.0, %v6162
  %6164 = vdwg.mxu0
  %v6166 = vsel %vm1376, %v6090, 0
  %6168 = vmatprep.subr.mxu0 %v5878
  %6169 = vmatpush1.msra.mxu0 %v5877
  %6170 = vmatprep.subr.mxu0 %v5880
  %6171 = vmatpush1.msra.mxu0 %v5879
  %6172 = vmatprep.subr.mxu0 %v5882
  %6173 = vmatpush1.msra.mxu0 %v5881
  %6174 = vmatprep.subr.mxu0 %v5884
  %6175 = vmatpush1.msra.mxu0 %v5883
  %6176 = vmatprep.subr.mxu0 0.0
  %6177 = vmatpush1.msra.mxu0 0.0
  %6178 = vmatprep.subr.mxu0 0.0
  %6179 = vmatpush1.msra.mxu0 0.0
  %6180 = vmatprep.subr.mxu0 0.0
  %6181 = vmatpush1.msra.mxu0 0.0
  %6182 = vmatprep.subr.mxu0 0.0
  %6183 = vmatpush1.msra.mxu0 0.0
  %6184 = vmatprep.subr.mxu0 0.0
  %6185 = vmatpush1.msra.mxu0 0.0
  %6186 = vmatprep.subr.mxu0 0.0
  %6187 = vmatpush1.msra.mxu0 0.0
  %6188 = vmatprep.subr.mxu0 0.0
  %6189 = vmatpush1.msra.mxu0 0.0
  %6190 = vmatprep.subr.mxu0 0.0
  %6191 = vmatpush1.msra.mxu0 0.0
  %6192 = vmatprep.subr.mxu0 0.0
  %6193 = vmatpush1.msra.mxu0 0.0
  %6194 = vmatprep.subr.mxu0 0.0
  %6195 = vmatpush1.msra.mxu0 0.0
  %6196 = vmatprep.subr.mxu0 0.0
  %6197 = vmatpush1.msra.mxu0 0.0
  %6198 = vmatprep.subr.mxu0 0.0
  %6199 = vmatpush1.msra.mxu0 0.0
  %6200 = vmatprep.subr.mxu0 0.0
  %6201 = vmatpush1.msra.mxu0 0.0
  %6202 = vmatprep.subr.mxu0 0.0
  %6203 = vmatpush1.msra.mxu0 0.0
  %6204 = vmatprep.subr.mxu0 0.0
  %6205 = vmatpush1.msra.mxu0 0.0
  %6206 = vmatprep.subr.mxu0 0.0
  %6207 = vmatpush1.msra.mxu0 0.0
  %6208 = vmatprep.subr.mxu0 0.0
  %6209 = vmatpush1.msra.mxu0 0.0
  %6210 = vmatprep.subr.mxu0 0.0
  %6211 = vmatpush1.msra.mxu0 0.0
  %6212 = vmatprep.subr.mxu0 0.0
  %6213 = vmatpush1.msra.mxu0 0.0
  %6214 = vmatprep.subr.mxu0 0.0
  %6215 = vmatpush1.msra.mxu0 0.0
  %6216 = vmatprep.subr.mxu0 0.0
  %6217 = vmatpush1.msra.mxu0 0.0
  %6218 = vmatprep.subr.mxu0 0.0
  %6219 = vmatpush1.msra.mxu0 0.0
  %6220 = vmatprep.subr.mxu0 0.0
  %6221 = vmatpush1.msra.mxu0 0.0
  %6222 = vmatprep.subr.mxu0 0.0
  %6223 = vmatpush1.msra.mxu0 0.0
  %6224 = vmatprep.subr.mxu0 0.0
  %6225 = vmatpush1.msra.mxu0 0.0
  %6226 = vmatprep.subr.mxu0 0.0
  %6227 = vmatpush1.msra.mxu0 0.0
  %6228 = vmatprep.subr.mxu0 0.0
  %6229 = vmatpush1.msra.mxu0 0.0
  %6230 = vmatprep.subr.mxu0 0.0
  %6231 = vmatpush1.msra.mxu0 0.0
  %6232 = vmatprep.mubr.f32.mxu0 0.0
  %6233 = vmatmul.mubr.f32.gmra.mrb[0].mxu0 %v6166
  %v6234 = vpop.f32.mrb[0].mxu0
  %v6235 = vadd.f32 0.0, %v6234
  %v6236 = vpop.f32.mrb[0].mxu0
  %v6237 = vadd.f32 0.0, %v6236
  %6238 = vdwg.mxu0
  %v6239 = vlaneseq
  %v6240 = vshrl.u32 %v6239, 7
  %v6241 = vsub.s32 0, %v6240
  %v6242 = vrot.slane %v6161, %v6241
  %v6243 = vlaneseq
  %v6244 = vshrl.u32 %v6243, 7
  %v6245 = vsub.s32 0, %v6244
  %v6246 = vrot.slane %v6163, %v6245
  %v6247 = vmul.f32 %v5013, %v6242
  %v6248 = vmul.f32 %v5014, %v6246
  %v6249 = vlaneseq
  %v6250 = vshrl.u32 %v6249, 7
  %v6251 = vsub.s32 0, %v6250
  %v6252 = vrot.slane %v6235, %v6251
  %v6253 = vlaneseq
  %v6254 = vshrl.u32 %v6253, 7
  %v6255 = vsub.s32 0, %v6254
  %v6256 = vrot.slane %v6237, %v6255
  %v6257 = vadd.f32 %v6247, %v6252
  %v6258 = vadd.f32 %v6248, %v6256
  %v6259 = vmul.f32 %v5353, %v6242
  %v6260 = vmul.f32 %v5354, %v6246
  %v6261 = vadd.f32 %v6259, %v6252
  %v6262 = vadd.f32 %v6260, %v6256
  %vm6263 = vcmp.gt.f32.partialorder %v6257, 0.0
  %vm6264 = vcmp.gt.f32.partialorder %v6258, 0.0
  %v6265 = vmul.f32 %v6257, 0.2
  %v6266 = vmul.f32 %v6258, 0.2
  %v6267 = vsel %vm6263, %v6257, %v6265
  %v6268 = vsel %vm6264, %v6258, %v6266
  %vm6269 = vcmp.gt.f32.partialorder %v6261, 0.0
  %vm6270 = vcmp.gt.f32.partialorder %v6262, 0.0
  %v6271 = vmul.f32 %v6261, 0.2
  %v6272 = vmul.f32 %v6262, 0.2
  %v6273 = vsel %vm6269, %v6261, %v6271
  %v6274 = vsel %vm6270, %v6262, %v6272
  %v6275 = vpack.c.bf16 %v6267, %v6267
  %v6276 = vpack.c.bf16 %v6268, %v6268
  %v6277 = vpack.c.bf16 %v6273, %v6273
  %v6278 = vpack.c.bf16 %v6274, %v6274
  %v6279 = vld [vmem:[%s4] sm:$0x3]
  %vm6280 = vcmask 64512
  %v6282 = vsel %vm6280, %v6279, 0
  %vm6284 = vcmask 1043456
  %v6286 = vsel %vm6284, %v6275, 0
  %v6289 = vsel %vm6284, %v6276, 0
  %6291 = vmatprep.subr.bf16.mxu0 %v6289
  %6292 = vmatpush1.bf16.msra.mxu0 %v6286
  %6293 = vmatprep.subr.bf16.mxu0 0
  %6294 = vmatpush1.bf16.msra.mxu0 0
  %6295 = vmatprep.subr.bf16.mxu0 0
  %6296 = vmatpush1.bf16.msra.mxu0 0
  %6297 = vmatprep.subr.bf16.mxu0 0
  %6298 = vmatpush1.bf16.msra.mxu0 0
  %6299 = vmatprep.subr.bf16.mxu0 0
  %6300 = vmatpush1.bf16.msra.mxu0 0
  %6301 = vmatprep.subr.bf16.mxu0 0
  %6302 = vmatpush1.bf16.msra.mxu0 0
  %6303 = vmatprep.subr.bf16.mxu0 0
  %6304 = vmatpush1.bf16.msra.mxu0 0
  %6305 = vmatprep.subr.bf16.mxu0 0
  %6306 = vmatpush1.bf16.msra.mxu0 0
  %6307 = vmatprep.subr.bf16.mxu0 0
  %6308 = vmatpush1.bf16.msra.mxu0 0
  %6309 = vmatprep.subr.bf16.mxu0 0
  %6310 = vmatpush1.bf16.msra.mxu0 0
  %6311 = vmatprep.subr.bf16.mxu0 0
  %6312 = vmatpush1.bf16.msra.mxu0 0
  %6313 = vmatprep.subr.bf16.mxu0 0
  %6314 = vmatpush1.bf16.msra.mxu0 0
  %6315 = vmatprep.subr.bf16.mxu0 0
  %6316 = vmatpush1.bf16.msra.mxu0 0
  %6317 = vmatprep.subr.bf16.mxu0 0
  %6318 = vmatpush1.bf16.msra.mxu0 0
  %6319 = vmatprep.subr.bf16.mxu0 0
  %6320 = vmatpush1.bf16.msra.mxu0 0
  %6321 = vmatprep.subr.bf16.mxu0 0
  %6322 = vmatpush1.bf16.msra.mxu0 0
  %6323 = vmatprep.mubr.bf16.mxu0 0
  %6324 = vmatmul.mubr.bf16.gmra.mrb[0].mxu0 %v6282
  %v6325 = vpop.f32.mrb[0].mxu0
  %v6326 = vadd.f32 0.0, %v6325
  %v6327 = vpop.f32.mrb[0].mxu0
  %v6328 = vadd.f32 0.0, %v6327
  %v6329 = vpop.f32.mrb[0].mxu0
  %v6330 = vpop.f32.mrb[0].mxu0
  %6331 = vdwg.mxu0
  %v6332 = vpack.c.bf16 %v6326, %v6326
  %v6333 = vpack.c.bf16 %v6328, %v6328
  %v6334 = vld [vmem:[%s9] sm:$0xff]
  %v6335 = vld [vmem:[%s9 + $0x8] sm:$0xff]
  %v6336 = vld [vmem:[%s9 + $0x10] sm:$0xff]
  %v6337 = vld [vmem:[%s9 + $0x18] sm:$0xff]
  %v6338 = vld [vmem:[%s9 + $0x20] sm:$0xff]
  %v6339 = vld [vmem:[%s9 + $0x28] sm:$0xff]
  %v6340 = vld [vmem:[%s9 + $0x30] sm:$0xff]
  %v6341 = vld [vmem:[%s9 + $0x38] sm:$0xff]
  %v6342 = vld [vmem:[%s9 + $0x40] sm:$0xff]
  %v6343 = vld [vmem:[%s9 + $0x48] sm:$0xff]
  %v6344 = vld [vmem:[%s9 + $0x50] sm:$0xff]
  %v6345 = vld [vmem:[%s9 + $0x58] sm:$0xff]
  %v6346 = vld [vmem:[%s9 + $0x60] sm:$0xff]
  %v6347 = vld [vmem:[%s9 + $0x68] sm:$0xff]
  %v6348 = vld [vmem:[%s9 + $0x70] sm:$0xff]
  %v6349 = vld [vmem:[%s9 + $0x78] sm:$0xff]
  %v6350 = vld [vmem:[%s9 + $0x80] sm:$0xff]
  %v6351 = vld [vmem:[%s9 + $0x88] sm:$0xff]
  %v6352 = vld [vmem:[%s9 + $0x90] sm:$0xff]
  %v6353 = vld [vmem:[%s9 + $0x98] sm:$0xff]
  %v6354 = vld [vmem:[%s9 + $0xa0] sm:$0xff]
  %v6355 = vld [vmem:[%s9 + $0xa8] sm:$0xff]
  %v6356 = vld [vmem:[%s9 + $0xb0] sm:$0xff]
  %v6357 = vld [vmem:[%s9 + $0xb8] sm:$0xff]
  %v6358 = vld [vmem:[%s9 + $0xc0] sm:$0xff]
  %v6359 = vld [vmem:[%s9 + $0xc8] sm:$0xff]
  %v6360 = vld [vmem:[%s9 + $0xd0] sm:$0xff]
  %v6361 = vld [vmem:[%s9 + $0xd8] sm:$0xff]
  %v6362 = vld [vmem:[%s9 + $0xe0] sm:$0xff]
  %v6363 = vld [vmem:[%s9 + $0xe8] sm:$0xff]
  %v6364 = vld [vmem:[%s9 + $0xf0] sm:$0xff]
  %v6365 = vld [vmem:[%s9 + $0xf8] sm:$0xff]
  %s6366 = scalar_lea.vmem %s4, 2
  %v6367 = vld [vmem:[%s6366] sm:$0x3]
  %v6369 = vsel %vm6280, %v6367, 0
  %6371 = vmatprep.subr.bf16.mxu0 %v6289
  %6372 = vmatpush1.bf16.msra.mxu0 %v6286
  %6373 = vmatprep.subr.bf16.mxu0 0
  %6374 = vmatpush1.bf16.msra.mxu0 0
  %6375 = vmatprep.subr.bf16.mxu0 0
  %6376 = vmatpush1.bf16.msra.mxu0 0
  %6377 = vmatprep.subr.bf16.mxu0 0
  %6378 = vmatpush1.bf16.msra.mxu0 0
  %6379 = vmatprep.subr.bf16.mxu0 0
  %6380 = vmatpush1.bf16.msra.mxu0 0
  %6381 = vmatprep.subr.bf16.mxu0 0
  %6382 = vmatpush1.bf16.msra.mxu0 0
  %6383 = vmatprep.subr.bf16.mxu0 0
  %6384 = vmatpush1.bf16.msra.mxu0 0
  %6385 = vmatprep.subr.bf16.mxu0 0
  %6386 = vmatpush1.bf16.msra.mxu0 0
  %6387 = vmatprep.subr.bf16.mxu0 0
  %6388 = vmatpush1.bf16.msra.mxu0 0
  %6389 = vmatprep.subr.bf16.mxu0 0
  %6390 = vmatpush1.bf16.msra.mxu0 0
  %6391 = vmatprep.subr.bf16.mxu0 0
  %6392 = vmatpush1.bf16.msra.mxu0 0
  %6393 = vmatprep.subr.bf16.mxu0 0
  %6394 = vmatpush1.bf16.msra.mxu0 0
  %6395 = vmatprep.subr.bf16.mxu0 0
  %6396 = vmatpush1.bf16.msra.mxu0 0
  %6397 = vmatprep.subr.bf16.mxu0 0
  %6398 = vmatpush1.bf16.msra.mxu0 0
  %6399 = vmatprep.subr.bf16.mxu0 0
  %6400 = vmatpush1.bf16.msra.mxu0 0
  %6401 = vmatprep.subr.bf16.mxu0 0
  %6402 = vmatpush1.bf16.msra.mxu0 0
  %6403 = vmatprep.mubr.bf16.mxu0 0
  %6404 = vmatmul.mubr.bf16.gmra.mrb[0].mxu0 %v6369
  %v6405 = vpop.f32.mrb[0].mxu0
  %v6406 = vadd.f32 0.0, %v6405
  %v6407 = vpop.f32.mrb[0].mxu0
  %v6408 = vadd.f32 0.0, %v6407
  %v6409 = vpop.f32.mrb[0].mxu0
  %v6410 = vpop.f32.mrb[0].mxu0
  %6411 = vdwg.mxu0
  %v6412 = vpack.c.bf16 %v6406, %v6406
  %v6413 = vpack.c.bf16 %v6408, %v6408
  %s6414 = scalar_lea.vmem %s9, 256
  %v6415 = vld [vmem:[%s6414] sm:$0xff]
  %v6416 = vld [vmem:[%s6414 + $0x8] sm:$0xff]
  %v6417 = vld [vmem:[%s6414 + $0x10] sm:$0xff]
  %v6418 = vld [vmem:[%s6414 + $0x18] sm:$0xff]
  %v6419 = vld [vmem:[%s6414 + $0x20] sm:$0xff]
  %v6420 = vld [vmem:[%s6414 + $0x28] sm:$0xff]
  %v6421 = vld [vmem:[%s6414 + $0x30] sm:$0xff]
  %v6422 = vld [vmem:[%s6414 + $0x38] sm:$0xff]
  %v6423 = vld [vmem:[%s6414 + $0x40] sm:$0xff]
  %v6424 = vld [vmem:[%s6414 + $0x48] sm:$0xff]
  %v6425 = vld [vmem:[%s6414 + $0x50] sm:$0xff]
  %v6426 = vld [vmem:[%s6414 + $0x58] sm:$0xff]
  %v6427 = vld [vmem:[%s6414 + $0x60] sm:$0xff]
  %v6428 = vld [vmem:[%s6414 + $0x68] sm:$0xff]
  %v6429 = vld [vmem:[%s6414 + $0x70] sm:$0xff]
  %v6430 = vld [vmem:[%s6414 + $0x78] sm:$0xff]
  %v6431 = vld [vmem:[%s6414 + $0x80] sm:$0xff]
  %v6432 = vld [vmem:[%s6414 + $0x88] sm:$0xff]
  %v6433 = vld [vmem:[%s6414 + $0x90] sm:$0xff]
  %v6434 = vld [vmem:[%s6414 + $0x98] sm:$0xff]
  %v6435 = vld [vmem:[%s6414 + $0xa0] sm:$0xff]
  %v6436 = vld [vmem:[%s6414 + $0xa8] sm:$0xff]
  %v6437 = vld [vmem:[%s6414 + $0xb0] sm:$0xff]
  %v6438 = vld [vmem:[%s6414 + $0xb8] sm:$0xff]
  %v6439 = vld [vmem:[%s6414 + $0xc0] sm:$0xff]
  %v6440 = vld [vmem:[%s6414 + $0xc8] sm:$0xff]
  %v6441 = vld [vmem:[%s6414 + $0xd0] sm:$0xff]
  %v6442 = vld [vmem:[%s6414 + $0xd8] sm:$0xff]
  %v6443 = vld [vmem:[%s6414 + $0xe0] sm:$0xff]
  %v6444 = vld [vmem:[%s6414 + $0xe8] sm:$0xff]
  %v6445 = vld [vmem:[%s6414 + $0xf0] sm:$0xff]
  %v6446 = vld [vmem:[%s6414 + $0xf8] sm:$0xff]
  %v6479 = vunpack.c.l.b16 %v6415
  %v6480 = vunpack.c.h.b16 %v6415
  %v6481 = vunpack.c.l.b16 %v6416
  %v6482 = vunpack.c.h.b16 %v6416
  %v6483 = vunpack.c.l.b16 %v6417
  %v6484 = vunpack.c.h.b16 %v6417
  %v6485 = vunpack.c.l.b16 %v6418
  %v6486 = vunpack.c.h.b16 %v6418
  %v6487 = vunpack.c.l.b16 %v6419
  %v6488 = vunpack.c.h.b16 %v6419
  %v6489 = vunpack.c.l.b16 %v6420
  %v6490 = vunpack.c.h.b16 %v6420
  %v6491 = vunpack.c.l.b16 %v6421
  %v6492 = vunpack.c.h.b16 %v6421
  %v6493 = vunpack.c.l.b16 %v6422
  %v6494 = vunpack.c.h.b16 %v6422
  %v6495 = vunpack.c.l.b16 %v6423
  %v6496 = vunpack.c.h.b16 %v6423
  %v6497 = vunpack.c.l.b16 %v6424
  %v6498 = vunpack.c.h.b16 %v6424
  %v6499 = vunpack.c.l.b16 %v6425
  %v6500 = vunpack.c.h.b16 %v6425
  %v6501 = vunpack.c.l.b16 %v6426
  %v6502 = vunpack.c.h.b16 %v6426
  %v6503 = vunpack.c.l.b16 %v6427
  %v6504 = vunpack.c.h.b16 %v6427
  %v6505 = vunpack.c.l.b16 %v6428
  %v6506 = vunpack.c.h.b16 %v6428
  %v6507 = vunpack.c.l.b16 %v6429
  %v6508 = vunpack.c.h.b16 %v6429
  %v6509 = vunpack.c.l.b16 %v6430
  %v6510 = vunpack.c.h.b16 %v6430
  %v6511 = vunpack.c.l.b16 %v6431
  %v6512 = vunpack.c.h.b16 %v6431
  %v6513 = vunpack.c.l.b16 %v6432
  %v6514 = vunpack.c.h.b16 %v6432
  %v6515 = vunpack.c.l.b16 %v6433
  %v6516 = vunpack.c.h.b16 %v6433
  %v6517 = vunpack.c.l.b16 %v6434
  %v6518 = vunpack.c.h.b16 %v6434
  %v6519 = vunpack.c.l.b16 %v6435
  %v6520 = vunpack.c.h.b16 %v6435
  %v6521 = vunpack.c.l.b16 %v6436
  %v6522 = vunpack.c.h.b16 %v6436
  %v6523 = vunpack.c.l.b16 %v6437
  %v6524 = vunpack.c.h.b16 %v6437
  %v6525 = vunpack.c.l.b16 %v6438
  %v6526 = vunpack.c.h.b16 %v6438
  %v6527 = vunpack.c.l.b16 %v6439
  %v6528 = vunpack.c.h.b16 %v6439
  %v6529 = vunpack.c.l.b16 %v6440
  %v6530 = vunpack.c.h.b16 %v6440
  %v6531 = vunpack.c.l.b16 %v6441
  %v6532 = vunpack.c.h.b16 %v6441
  %v6533 = vunpack.c.l.b16 %v6442
  %v6534 = vunpack.c.h.b16 %v6442
  %v6535 = vunpack.c.l.b16 %v6443
  %v6536 = vunpack.c.h.b16 %v6443
  %v6537 = vunpack.c.l.b16 %v6444
  %v6538 = vunpack.c.h.b16 %v6444
  %v6539 = vunpack.c.l.b16 %v6445
  %v6540 = vunpack.c.h.b16 %v6445
  %v6541 = vunpack.c.l.b16 %v6446
  %v6542 = vunpack.c.h.b16 %v6446
  %v6543 = vpack.c.b16 %v6481, %v6479
  %v6544 = vpack.c.b16 %v6482, %v6480
  %v6545 = vpack.c.b16 %v6485, %v6483
  %v6546 = vpack.c.b16 %v6486, %v6484
  %v6547 = vpack.c.b16 %v6489, %v6487
  %v6548 = vpack.c.b16 %v6490, %v6488
  %v6549 = vpack.c.b16 %v6493, %v6491
  %v6550 = vpack.c.b16 %v6494, %v6492
  %v6551 = vpack.c.b16 %v6497, %v6495
  %v6552 = vpack.c.b16 %v6498, %v6496
  %v6553 = vpack.c.b16 %v6501, %v6499
  %v6554 = vpack.c.b16 %v6502, %v6500
  %v6555 = vpack.c.b16 %v6505, %v6503
  %v6556 = vpack.c.b16 %v6506, %v6504
  %v6557 = vpack.c.b16 %v6509, %v6507
  %v6558 = vpack.c.b16 %v6510, %v6508
  %v6559 = vpack.c.b16 %v6513, %v6511
  %v6560 = vpack.c.b16 %v6514, %v6512
  %v6561 = vpack.c.b16 %v6517, %v6515
  %v6562 = vpack.c.b16 %v6518, %v6516
  %v6563 = vpack.c.b16 %v6521, %v6519
  %v6564 = vpack.c.b16 %v6522, %v6520
  %v6565 = vpack.c.b16 %v6525, %v6523
  %v6566 = vpack.c.b16 %v6526, %v6524
  %v6567 = vpack.c.b16 %v6529, %v6527
  %v6568 = vpack.c.b16 %v6530, %v6528
  %v6569 = vpack.c.b16 %v6533, %v6531
  %v6570 = vpack.c.b16 %v6534, %v6532
  %v6571 = vpack.c.b16 %v6537, %v6535
  %v6572 = vpack.c.b16 %v6538, %v6536
  %v6573 = vpack.c.b16 %v6541, %v6539
  %v6574 = vpack.c.b16 %v6542, %v6540
  %6607 = vmatprep.subr.bf16.mxu0 %v6544
  %6608 = vmatpush1.bf16.msra.mxu0 %v6543
  %6609 = vmatprep.subr.bf16.mxu0 %v6546
  %6610 = vmatpush1.bf16.msra.mxu0 %v6545
  %6611 = vmatprep.subr.bf16.mxu0 %v6548
  %6612 = vmatpush1.bf16.msra.mxu0 %v6547
  %6613 = vmatprep.subr.bf16.mxu0 %v6550
  %6614 = vmatpush1.bf16.msra.mxu0 %v6549
  %6615 = vmatprep.subr.bf16.mxu0 %v6552
  %6616 = vmatpush1.bf16.msra.mxu0 %v6551
  %6617 = vmatprep.subr.bf16.mxu0 %v6554
  %6618 = vmatpush1.bf16.msra.mxu0 %v6553
  %6619 = vmatprep.subr.bf16.mxu0 %v6556
  %6620 = vmatpush1.bf16.msra.mxu0 %v6555
  %6621 = vmatprep.subr.bf16.mxu0 %v6558
  %6622 = vmatpush1.bf16.msra.mxu0 %v6557
  %6623 = vmatprep.subr.bf16.mxu0 %v6560
  %6624 = vmatpush1.bf16.msra.mxu0 %v6559
  %6625 = vmatprep.subr.bf16.mxu0 %v6562
  %6626 = vmatpush1.bf16.msra.mxu0 %v6561
  %6627 = vmatprep.subr.bf16.mxu0 %v6564
  %6628 = vmatpush1.bf16.msra.mxu0 %v6563
  %6629 = vmatprep.subr.bf16.mxu0 %v6566
  %6630 = vmatpush1.bf16.msra.mxu0 %v6565
  %6631 = vmatprep.subr.bf16.mxu0 %v6568
  %6632 = vmatpush1.bf16.msra.mxu0 %v6567
  %6633 = vmatprep.subr.bf16.mxu0 %v6570
  %6634 = vmatpush1.bf16.msra.mxu0 %v6569
  %6635 = vmatprep.subr.bf16.mxu0 %v6572
  %6636 = vmatpush1.bf16.msra.mxu0 %v6571
  %6637 = vmatprep.subr.bf16.mxu0 %v6574
  %6638 = vmatpush1.bf16.msra.mxu0 %v6573
  %6639 = vmatprep.mubr.bf16.mxu0 %v6413
  %6640 = vmatmul.mubr.bf16.gmra.mrb[0].mxu0 %v6412
  %v6641 = vpop.f32.mrb[0].mxu0
  %v6642 = vadd.f32 0.0, %v6641
  %v6643 = vpop.f32.mrb[0].mxu0
  %v6644 = vadd.f32 0.0, %v6643
  %v6645 = vpop.f32.mrb[0].mxu0
  %v6646 = vpop.f32.mrb[0].mxu0
  %6647 = vdwg.mxu0
  %v6680 = vunpack.c.l.b16 %v6334
  %v6681 = vunpack.c.h.b16 %v6334
  %v6682 = vunpack.c.l.b16 %v6335
  %v6683 = vunpack.c.h.b16 %v6335
  %v6684 = vunpack.c.l.b16 %v6336
  %v6685 = vunpack.c.h.b16 %v6336
  %v6686 = vunpack.c.l.b16 %v6337
  %v6687 = vunpack.c.h.b16 %v6337
  %v6688 = vunpack.c.l.b16 %v6338
  %v6689 = vunpack.c.h.b16 %v6338
  %v6690 = vunpack.c.l.b16 %v6339
  %v6691 = vunpack.c.h.b16 %v6339
  %v6692 = vunpack.c.l.b16 %v6340
  %v6693 = vunpack.c.h.b16 %v6340
  %v6694 = vunpack.c.l.b16 %v6341
  %v6695 = vunpack.c.h.b16 %v6341
  %v6696 = vunpack.c.l.b16 %v6342
  %v6697 = vunpack.c.h.b16 %v6342
  %v6698 = vunpack.c.l.b16 %v6343
  %v6699 = vunpack.c.h.b16 %v6343
  %v6700 = vunpack.c.l.b16 %v6344
  %v6701 = vunpack.c.h.b16 %v6344
  %v6702 = vunpack.c.l.b16 %v6345
  %v6703 = vunpack.c.h.b16 %v6345
  %v6704 = vunpack.c.l.b16 %v6346
  %v6705 = vunpack.c.h.b16 %v6346
  %v6706 = vunpack.c.l.b16 %v6347
  %v6707 = vunpack.c.h.b16 %v6347
  %v6708 = vunpack.c.l.b16 %v6348
  %v6709 = vunpack.c.h.b16 %v6348
  %v6710 = vunpack.c.l.b16 %v6349
  %v6711 = vunpack.c.h.b16 %v6349
  %v6712 = vunpack.c.l.b16 %v6350
  %v6713 = vunpack.c.h.b16 %v6350
  %v6714 = vunpack.c.l.b16 %v6351
  %v6715 = vunpack.c.h.b16 %v6351
  %v6716 = vunpack.c.l.b16 %v6352
  %v6717 = vunpack.c.h.b16 %v6352
  %v6718 = vunpack.c.l.b16 %v6353
  %v6719 = vunpack.c.h.b16 %v6353
  %v6720 = vunpack.c.l.b16 %v6354
  %v6721 = vunpack.c.h.b16 %v6354
  %v6722 = vunpack.c.l.b16 %v6355
  %v6723 = vunpack.c.h.b16 %v6355
  %v6724 = vunpack.c.l.b16 %v6356
  %v6725 = vunpack.c.h.b16 %v6356
  %v6726 = vunpack.c.l.b16 %v6357
  %v6727 = vunpack.c.h.b16 %v6357
  %v6728 = vunpack.c.l.b16 %v6358
  %v6729 = vunpack.c.h.b16 %v6358
  %v6730 = vunpack.c.l.b16 %v6359
  %v6731 = vunpack.c.h.b16 %v6359
  %v6732 = vunpack.c.l.b16 %v6360
  %v6733 = vunpack.c.h.b16 %v6360
  %v6734 = vunpack.c.l.b16 %v6361
  %v6735 = vunpack.c.h.b16 %v6361
  %v6736 = vunpack.c.l.b16 %v6362
  %v6737 = vunpack.c.h.b16 %v6362
  %v6738 = vunpack.c.l.b16 %v6363
  %v6739 = vunpack.c.h.b16 %v6363
  %v6740 = vunpack.c.l.b16 %v6364
  %v6741 = vunpack.c.h.b16 %v6364
  %v6742 = vunpack.c.l.b16 %v6365
  %v6743 = vunpack.c.h.b16 %v6365
  %v6744 = vpack.c.b16 %v6682, %v6680
  %v6745 = vpack.c.b16 %v6683, %v6681
  %v6746 = vpack.c.b16 %v6686, %v6684
  %v6747 = vpack.c.b16 %v6687, %v6685
  %v6748 = vpack.c.b16 %v6690, %v6688
  %v6749 = vpack.c.b16 %v6691, %v6689
  %v6750 = vpack.c.b16 %v6694, %v6692
  %v6751 = vpack.c.b16 %v6695, %v6693
  %v6752 = vpack.c.b16 %v6698, %v6696
  %v6753 = vpack.c.b16 %v6699, %v6697
  %v6754 = vpack.c.b16 %v6702, %v6700
  %v6755 = vpack.c.b16 %v6703, %v6701
  %v6756 = vpack.c.b16 %v6706, %v6704
  %v6757 = vpack.c.b16 %v6707, %v6705
  %v6758 = vpack.c.b16 %v6710, %v6708
  %v6759 = vpack.c.b16 %v6711, %v6709
  %v6760 = vpack.c.b16 %v6714, %v6712
  %v6761 = vpack.c.b16 %v6715, %v6713
  %v6762 = vpack.c.b16 %v6718, %v6716
  %v6763 = vpack.c.b16 %v6719, %v6717
  %v6764 = vpack.c.b16 %v6722, %v6720
  %v6765 = vpack.c.b16 %v6723, %v6721
  %v6766 = vpack.c.b16 %v6726, %v6724
  %v6767 = vpack.c.b16 %v6727, %v6725
  %v6768 = vpack.c.b16 %v6730, %v6728
  %v6769 = vpack.c.b16 %v6731, %v6729
  %v6770 = vpack.c.b16 %v6734, %v6732
  %v6771 = vpack.c.b16 %v6735, %v6733
  %v6772 = vpack.c.b16 %v6738, %v6736
  %v6773 = vpack.c.b16 %v6739, %v6737
  %v6774 = vpack.c.b16 %v6742, %v6740
  %v6775 = vpack.c.b16 %v6743, %v6741
  %6808 = vmatprep.subr.bf16.mxu0 %v6745
  %6809 = vmatpush1.bf16.msra.mxu0 %v6744
  %6810 = vmatprep.subr.bf16.mxu0 %v6747
  %6811 = vmatpush1.bf16.msra.mxu0 %v6746
  %6812 = vmatprep.subr.bf16.mxu0 %v6749
  %6813 = vmatpush1.bf16.msra.mxu0 %v6748
  %6814 = vmatprep.subr.bf16.mxu0 %v6751
  %6815 = vmatpush1.bf16.msra.mxu0 %v6750
  %6816 = vmatprep.subr.bf16.mxu0 %v6753
  %6817 = vmatpush1.bf16.msra.mxu0 %v6752
  %6818 = vmatprep.subr.bf16.mxu0 %v6755
  %6819 = vmatpush1.bf16.msra.mxu0 %v6754
  %6820 = vmatprep.subr.bf16.mxu0 %v6757
  %6821 = vmatpush1.bf16.msra.mxu0 %v6756
  %6822 = vmatprep.subr.bf16.mxu0 %v6759
  %6823 = vmatpush1.bf16.msra.mxu0 %v6758
  %6824 = vmatprep.subr.bf16.mxu0 %v6761
  %6825 = vmatpush1.bf16.msra.mxu0 %v6760
  %6826 = vmatprep.subr.bf16.mxu0 %v6763
  %6827 = vmatpush1.bf16.msra.mxu0 %v6762
  %6828 = vmatprep.subr.bf16.mxu0 %v6765
  %6829 = vmatpush1.bf16.msra.mxu0 %v6764
  %6830 = vmatprep.subr.bf16.mxu0 %v6767
  %6831 = vmatpush1.bf16.msra.mxu0 %v6766
  %6832 = vmatprep.subr.bf16.mxu0 %v6769
  %6833 = vmatpush1.bf16.msra.mxu0 %v6768
  %6834 = vmatprep.subr.bf16.mxu0 %v6771
  %6835 = vmatpush1.bf16.msra.mxu0 %v6770
  %6836 = vmatprep.subr.bf16.mxu0 %v6773
  %6837 = vmatpush1.bf16.msra.mxu0 %v6772
  %6838 = vmatprep.subr.bf16.mxu0 %v6775
  %6839 = vmatpush1.bf16.msra.mxu0 %v6774
  %6840 = vmatprep.mubr.bf16.mxu0 %v6333
  %6841 = vmatmul.mubr.bf16.gmra.mrb[0].mxu0 %v6332
  %v6842 = vpop.f32.mrb[0].mxu0
  %v6843 = vadd.f32 %v6642, %v6842
  %v6844 = vpop.f32.mrb[0].mxu0
  %v6845 = vadd.f32 %v6644, %v6844
  %v6846 = vpop.f32.mrb[0].mxu0
  %v6847 = vpop.f32.mrb[0].mxu0
  %6848 = vdwg.mxu0
  %s6849 = scalar_lea.vmem %s4, 4
  %v6850 = vld [vmem:[%s6849] sm:$0x3]
  %v6852 = vsel %vm6280, %v6850, 0
  %6854 = vmatprep.subr.bf16.mxu0 %v6289
  %6855 = vmatpush1.bf16.msra.mxu0 %v6286
  %6856 = vmatprep.subr.bf16.mxu0 0
  %6857 = vmatpush1.bf16.msra.mxu0 0
  %6858 = vmatprep.subr.bf16.mxu0 0
  %6859 = vmatpush1.bf16.msra.mxu0 0
  %6860 = vmatprep.subr.bf16.mxu0 0
  %6861 = vmatpush1.bf16.msra.mxu0 0
  %6862 = vmatprep.subr.bf16.mxu0 0
  %6863 = vmatpush1.bf16.msra.mxu0 0
  %6864 = vmatprep.subr.bf16.mxu0 0
  %6865 = vmatpush1.bf16.msra.mxu0 0
  %6866 = vmatprep.subr.bf16.mxu0 0
  %6867 = vmatpush1.bf16.msra.mxu0 0
  %6868 = vmatprep.subr.bf16.mxu0 0
  %6869 = vmatpush1.bf16.msra.mxu0 0
  %6870 = vmatprep.subr.bf16.mxu0 0
  %6871 = vmatpush1.bf16.msra.mxu0 0
  %6872 = vmatprep.subr.bf16.mxu0 0
  %6873 = vmatpush1.bf16.msra.mxu0 0
  %6874 = vmatprep.subr.bf16.mxu0 0
  %6875 = vmatpush1.bf16.msra.mxu0 0
  %6876 = vmatprep.subr.bf16.mxu0 0
  %6877 = vmatpush1.bf16.msra.mxu0 0
  %6878 = vmatprep.subr.bf16.mxu0 0
  %6879 = vmatpush1.bf16.msra.mxu0 0
  %6880 = vmatprep.subr.bf16.mxu0 0
  %6881 = vmatpush1.bf16.msra.mxu0 0
  %6882 = vmatprep.subr.bf16.mxu0 0
  %6883 = vmatpush1.bf16.msra.mxu0 0
  %6884 = vmatprep.subr.bf16.mxu0 0
  %6885 = vmatpush1.bf16.msra.mxu0 0
  %6886 = vmatprep.mubr.bf16.mxu0 0
  %6887 = vmatmul.mubr.bf16.gmra.mrb[0].mxu0 %v6852
  %v6888 = vpop.f32.mrb[0].mxu0
  %v6889 = vadd.f32 0.0, %v6888
  %v6890 = vpop.f32.mrb[0].mxu0
  %v6891 = vadd.f32 0.0, %v6890
  %v6892 = vpop.f32.mrb[0].mxu0
  %v6893 = vpop.f32.mrb[0].mxu0
  %6894 = vdwg.mxu0
  %v6895 = vpack.c.bf16 %v6889, %v6889
  %v6896 = vpack.c.bf16 %v6891, %v6891
  %s6897 = scalar_lea.vmem %s9, 512
  %v6898 = vld [vmem:[%s6897] sm:$0xff]
  %v6899 = vld [vmem:[%s6897 + $0x8] sm:$0xff]
  %v6900 = vld [vmem:[%s6897 + $0x10] sm:$0xff]
  %v6901 = vld [vmem:[%s6897 + $0x18] sm:$0xff]
  %v6902 = vld [vmem:[%s6897 + $0x20] sm:$0xff]
  %v6903 = vld [vmem:[%s6897 + $0x28] sm:$0xff]
  %v6904 = vld [vmem:[%s6897 + $0x30] sm:$0xff]
  %v6905 = vld [vmem:[%s6897 + $0x38] sm:$0xff]
  %v6906 = vld [vmem:[%s6897 + $0x40] sm:$0xff]
  %v6907 = vld [vmem:[%s6897 + $0x48] sm:$0xff]
  %v6908 = vld [vmem:[%s6897 + $0x50] sm:$0xff]
  %v6909 = vld [vmem:[%s6897 + $0x58] sm:$0xff]
  %v6910 = vld [vmem:[%s6897 + $0x60] sm:$0xff]
  %v6911 = vld [vmem:[%s6897 + $0x68] sm:$0xff]
  %v6912 = vld [vmem:[%s6897 + $0x70] sm:$0xff]
  %v6913 = vld [vmem:[%s6897 + $0x78] sm:$0xff]
  %v6914 = vld [vmem:[%s6897 + $0x80] sm:$0xff]
  %v6915 = vld [vmem:[%s6897 + $0x88] sm:$0xff]
  %v6916 = vld [vmem:[%s6897 + $0x90] sm:$0xff]
  %v6917 = vld [vmem:[%s6897 + $0x98] sm:$0xff]
  %v6918 = vld [vmem:[%s6897 + $0xa0] sm:$0xff]
  %v6919 = vld [vmem:[%s6897 + $0xa8] sm:$0xff]
  %v6920 = vld [vmem:[%s6897 + $0xb0] sm:$0xff]
  %v6921 = vld [vmem:[%s6897 + $0xb8] sm:$0xff]
  %v6922 = vld [vmem:[%s6897 + $0xc0] sm:$0xff]
  %v6923 = vld [vmem:[%s6897 + $0xc8] sm:$0xff]
  %v6924 = vld [vmem:[%s6897 + $0xd0] sm:$0xff]
  %v6925 = vld [vmem:[%s6897 + $0xd8] sm:$0xff]
  %v6926 = vld [vmem:[%s6897 + $0xe0] sm:$0xff]
  %v6927 = vld [vmem:[%s6897 + $0xe8] sm:$0xff]
  %v6928 = vld [vmem:[%s6897 + $0xf0] sm:$0xff]
  %v6929 = vld [vmem:[%s6897 + $0xf8] sm:$0xff]
  %v6962 = vunpack.c.l.b16 %v6898
  %v6963 = vunpack.c.h.b16 %v6898
  %v6964 = vunpack.c.l.b16 %v6899
  %v6965 = vunpack.c.h.b16 %v6899
  %v6966 = vunpack.c.l.b16 %v6900
  %v6967 = vunpack.c.h.b16 %v6900
  %v6968 = vunpack.c.l.b16 %v6901
  %v6969 = vunpack.c.h.b16 %v6901
  %v6970 = vunpack.c.l.b16 %v6902
  %v6971 = vunpack.c.h.b16 %v6902
  %v6972 = vunpack.c.l.b16 %v6903
  %v6973 = vunpack.c.h.b16 %v6903
  %v6974 = vunpack.c.l.b16 %v6904
  %v6975 = vunpack.c.h.b16 %v6904
  %v6976 = vunpack.c.l.b16 %v6905
  %v6977 = vunpack.c.h.b16 %v6905
  %v6978 = vunpack.c.l.b16 %v6906
  %v6979 = vunpack.c.h.b16 %v6906
  %v6980 = vunpack.c.l.b16 %v6907
  %v6981 = vunpack.c.h.b16 %v6907
  %v6982 = vunpack.c.l.b16 %v6908
  %v6983 = vunpack.c.h.b16 %v6908
  %v6984 = vunpack.c.l.b16 %v6909
  %v6985 = vunpack.c.h.b16 %v6909
  %v6986 = vunpack.c.l.b16 %v6910
  %v6987 = vunpack.c.h.b16 %v6910
  %v6988 = vunpack.c.l.b16 %v6911
  %v6989 = vunpack.c.h.b16 %v6911
  %v6990 = vunpack.c.l.b16 %v6912
  %v6991 = vunpack.c.h.b16 %v6912
  %v6992 = vunpack.c.l.b16 %v6913
  %v6993 = vunpack.c.h.b16 %v6913
  %v6994 = vunpack.c.l.b16 %v6914
  %v6995 = vunpack.c.h.b16 %v6914
  %v6996 = vunpack.c.l.b16 %v6915
  %v6997 = vunpack.c.h.b16 %v6915
  %v6998 = vunpack.c.l.b16 %v6916
  %v6999 = vunpack.c.h.b16 %v6916
  %v7000 = vunpack.c.l.b16 %v6917
  %v7001 = vunpack.c.h.b16 %v6917
  %v7002 = vunpack.c.l.b16 %v6918
  %v7003 = vunpack.c.h.b16 %v6918
  %v7004 = vunpack.c.l.b16 %v6919
  %v7005 = vunpack.c.h.b16 %v6919
  %v7006 = vunpack.c.l.b16 %v6920
  %v7007 = vunpack.c.h.b16 %v6920
  %v7008 = vunpack.c.l.b16 %v6921
  %v7009 = vunpack.c.h.b16 %v6921
  %v7010 = vunpack.c.l.b16 %v6922
  %v7011 = vunpack.c.h.b16 %v6922
  %v7012 = vunpack.c.l.b16 %v6923
  %v7013 = vunpack.c.h.b16 %v6923
  %v7014 = vunpack.c.l.b16 %v6924
  %v7015 = vunpack.c.h.b16 %v6924
  %v7016 = vunpack.c.l.b16 %v6925
  %v7017 = vunpack.c.h.b16 %v6925
  %v7018 = vunpack.c.l.b16 %v6926
  %v7019 = vunpack.c.h.b16 %v6926
  %v7020 = vunpack.c.l.b16 %v6927
  %v7021 = vunpack.c.h.b16 %v6927
  %v7022 = vunpack.c.l.b16 %v6928
  %v7023 = vunpack.c.h.b16 %v6928
  %v7024 = vunpack.c.l.b16 %v6929
  %v7025 = vunpack.c.h.b16 %v6929
  %v7026 = vpack.c.b16 %v6964, %v6962
  %v7027 = vpack.c.b16 %v6965, %v6963
  %v7028 = vpack.c.b16 %v6968, %v6966
  %v7029 = vpack.c.b16 %v6969, %v6967
  %v7030 = vpack.c.b16 %v6972, %v6970
  %v7031 = vpack.c.b16 %v6973, %v6971
  %v7032 = vpack.c.b16 %v6976, %v6974
  %v7033 = vpack.c.b16 %v6977, %v6975
  %v7034 = vpack.c.b16 %v6980, %v6978
  %v7035 = vpack.c.b16 %v6981, %v6979
  %v7036 = vpack.c.b16 %v6984, %v6982
  %v7037 = vpack.c.b16 %v6985, %v6983
  %v7038 = vpack.c.b16 %v6988, %v6986
  %v7039 = vpack.c.b16 %v6989, %v6987
  %v7040 = vpack.c.b16 %v6992, %v6990
  %v7041 = vpack.c.b16 %v6993, %v6991
  %v7042 = vpack.c.b16 %v6996, %v6994
  %v7043 = vpack.c.b16 %v6997, %v6995
  %v7044 = vpack.c.b16 %v7000, %v6998
  %v7045 = vpack.c.b16 %v7001, %v6999
  %v7046 = vpack.c.b16 %v7004, %v7002
  %v7047 = vpack.c.b16 %v7005, %v7003
  %v7048 = vpack.c.b16 %v7008, %v7006
  %v7049 = vpack.c.b16 %v7009, %v7007
  %v7050 = vpack.c.b16 %v7012, %v7010
  %v7051 = vpack.c.b16 %v7013, %v7011
  %v7052 = vpack.c.b16 %v7016, %v7014
  %v7053 = vpack.c.b16 %v7017, %v7015
  %v7054 = vpack.c.b16 %v7020, %v7018
  %v7055 = vpack.c.b16 %v7021, %v7019
  %v7056 = vpack.c.b16 %v7024, %v7022
  %v7057 = vpack.c.b16 %v7025, %v7023
  %7090 = vmatprep.subr.bf16.mxu0 %v7027
  %7091 = vmatpush1.bf16.msra.mxu0 %v7026
  %7092 = vmatprep.subr.bf16.mxu0 %v7029
  %7093 = vmatpush1.bf16.msra.mxu0 %v7028
  %7094 = vmatprep.subr.bf16.mxu0 %v7031
  %7095 = vmatpush1.bf16.msra.mxu0 %v7030
  %7096 = vmatprep.subr.bf16.mxu0 %v7033
  %7097 = vmatpush1.bf16.msra.mxu0 %v7032
  %7098 = vmatprep.subr.bf16.mxu0 %v7035
  %7099 = vmatpush1.bf16.msra.mxu0 %v7034
  %7100 = vmatprep.subr.bf16.mxu0 %v7037
  %7101 = vmatpush1.bf16.msra.mxu0 %v7036
  %7102 = vmatprep.subr.bf16.mxu0 %v7039
  %7103 = vmatpush1.bf16.msra.mxu0 %v7038
  %7104 = vmatprep.subr.bf16.mxu0 %v7041
  %7105 = vmatpush1.bf16.msra.mxu0 %v7040
  %7106 = vmatprep.subr.bf16.mxu0 %v7043
  %7107 = vmatpush1.bf16.msra.mxu0 %v7042
  %7108 = vmatprep.subr.bf16.mxu0 %v7045
  %7109 = vmatpush1.bf16.msra.mxu0 %v7044
  %7110 = vmatprep.subr.bf16.mxu0 %v7047
  %7111 = vmatpush1.bf16.msra.mxu0 %v7046
  %7112 = vmatprep.subr.bf16.mxu0 %v7049
  %7113 = vmatpush1.bf16.msra.mxu0 %v7048
  %7114 = vmatprep.subr.bf16.mxu0 %v7051
  %7115 = vmatpush1.bf16.msra.mxu0 %v7050
  %7116 = vmatprep.subr.bf16.mxu0 %v7053
  %7117 = vmatpush1.bf16.msra.mxu0 %v7052
  %7118 = vmatprep.subr.bf16.mxu0 %v7055
  %7119 = vmatpush1.bf16.msra.mxu0 %v7054
  %7120 = vmatprep.subr.bf16.mxu0 %v7057
  %7121 = vmatpush1.bf16.msra.mxu0 %v7056
  %7122 = vmatprep.mubr.bf16.mxu0 %v6896
  %7123 = vmatmul.mubr.bf16.gmra.mrb[0].mxu0 %v6895
  %v7124 = vpop.f32.mrb[0].mxu0
  %v7125 = vadd.f32 0.0, %v7124
  %v7126 = vpop.f32.mrb[0].mxu0
  %v7127 = vadd.f32 0.0, %v7126
  %v7128 = vpop.f32.mrb[0].mxu0
  %v7129 = vpop.f32.mrb[0].mxu0
  %7130 = vdwg.mxu0
  %v7131 = vadd.f32 %v6843, %v7125
  %v7132 = vadd.f32 %v6845, %v7127
  %s7133 = scalar_lea.vmem %s4, 6
  %v7134 = vld [vmem:[%s7133] sm:$0x3]
  %v7136 = vsel %vm6280, %v7134, 0
  %7138 = vmatprep.subr.bf16.mxu0 %v6289
  %7139 = vmatpush1.bf16.msra.mxu0 %v6286
  %7140 = vmatprep.subr.bf16.mxu0 0
  %7141 = vmatpush1.bf16.msra.mxu0 0
  %7142 = vmatprep.subr.bf16.mxu0 0
  %7143 = vmatpush1.bf16.msra.mxu0 0
  %7144 = vmatprep.subr.bf16.mxu0 0
  %7145 = vmatpush1.bf16.msra.mxu0 0
  %7146 = vmatprep.subr.bf16.mxu0 0
  %7147 = vmatpush1.bf16.msra.mxu0 0
  %7148 = vmatprep.subr.bf16.mxu0 0
  %7149 = vmatpush1.bf16.msra.mxu0 0
  %7150 = vmatprep.subr.bf16.mxu0 0
  %7151 = vmatpush1.bf16.msra.mxu0 0
  %7152 = vmatprep.subr.bf16.mxu0 0
  %7153 = vmatpush1.bf16.msra.mxu0 0
  %7154 = vmatprep.subr.bf16.mxu0 0
  %7155 = vmatpush1.bf16.msra.mxu0 0
  %7156 = vmatprep.subr.bf16.mxu0 0
  %7157 = vmatpush1.bf16.msra.mxu0 0
  %7158 = vmatprep.subr.bf16.mxu0 0
  %7159 = vmatpush1.bf16.msra.mxu0 0
  %7160 = vmatprep.subr.bf16.mxu0 0
  %7161 = vmatpush1.bf16.msra.mxu0 0
  %7162 = vmatprep.subr.bf16.mxu0 0
  %7163 = vmatpush1.bf16.msra.mxu0 0
  %7164 = vmatprep.subr.bf16.mxu0 0
  %7165 = vmatpush1.bf16.msra.mxu0 0
  %7166 = vmatprep.subr.bf16.mxu0 0
  %7167 = vmatpush1.bf16.msra.mxu0 0
  %7168 = vmatprep.subr.bf16.mxu0 0
  %7169 = vmatpush1.bf16.msra.mxu0 0
  %7170 = vmatprep.mubr.bf16.mxu0 0
  %7171 = vmatmul.mubr.bf16.gmra.mrb[0].mxu0 %v7136
  %v7172 = vpop.f32.mrb[0].mxu0
  %v7173 = vadd.f32 0.0, %v7172
  %v7174 = vpop.f32.mrb[0].mxu0
  %v7175 = vadd.f32 0.0, %v7174
  %v7176 = vpop.f32.mrb[0].mxu0
  %v7177 = vpop.f32.mrb[0].mxu0
  %7178 = vdwg.mxu0
  %v7179 = vpack.c.bf16 %v7173, %v7173
  %v7180 = vpack.c.bf16 %v7175, %v7175
  %s7181 = scalar_lea.vmem %s9, 768
  %v7182 = vld [vmem:[%s7181] sm:$0xff]
  %v7183 = vld [vmem:[%s7181 + $0x8] sm:$0xff]
  %v7184 = vld [vmem:[%s7181 + $0x10] sm:$0xff]
  %v7185 = vld [vmem:[%s7181 + $0x18] sm:$0xff]
  %v7186 = vld [vmem:[%s7181 + $0x20] sm:$0xff]
  %v7187 = vld [vmem:[%s7181 + $0x28] sm:$0xff]
  %v7188 = vld [vmem:[%s7181 + $0x30] sm:$0xff]
  %v7189 = vld [vmem:[%s7181 + $0x38] sm:$0xff]
  %v7190 = vld [vmem:[%s7181 + $0x40] sm:$0xff]
  %v7191 = vld [vmem:[%s7181 + $0x48] sm:$0xff]
  %v7192 = vld [vmem:[%s7181 + $0x50] sm:$0xff]
  %v7193 = vld [vmem:[%s7181 + $0x58] sm:$0xff]
  %v7194 = vld [vmem:[%s7181 + $0x60] sm:$0xff]
  %v7195 = vld [vmem:[%s7181 + $0x68] sm:$0xff]
  %v7196 = vld [vmem:[%s7181 + $0x70] sm:$0xff]
  %v7197 = vld [vmem:[%s7181 + $0x78] sm:$0xff]
  %v7198 = vld [vmem:[%s7181 + $0x80] sm:$0xff]
  %v7199 = vld [vmem:[%s7181 + $0x88] sm:$0xff]
  %v7200 = vld [vmem:[%s7181 + $0x90] sm:$0xff]
  %v7201 = vld [vmem:[%s7181 + $0x98] sm:$0xff]
  %v7202 = vld [vmem:[%s7181 + $0xa0] sm:$0xff]
  %v7203 = vld [vmem:[%s7181 + $0xa8] sm:$0xff]
  %v7204 = vld [vmem:[%s7181 + $0xb0] sm:$0xff]
  %v7205 = vld [vmem:[%s7181 + $0xb8] sm:$0xff]
  %v7206 = vld [vmem:[%s7181 + $0xc0] sm:$0xff]
  %v7207 = vld [vmem:[%s7181 + $0xc8] sm:$0xff]
  %v7208 = vld [vmem:[%s7181 + $0xd0] sm:$0xff]
  %v7209 = vld [vmem:[%s7181 + $0xd8] sm:$0xff]
  %v7210 = vld [vmem:[%s7181 + $0xe0] sm:$0xff]
  %v7211 = vld [vmem:[%s7181 + $0xe8] sm:$0xff]
  %v7212 = vld [vmem:[%s7181 + $0xf0] sm:$0xff]
  %v7213 = vld [vmem:[%s7181 + $0xf8] sm:$0xff]
  %v7246 = vunpack.c.l.b16 %v7182
  %v7247 = vunpack.c.h.b16 %v7182
  %v7248 = vunpack.c.l.b16 %v7183
  %v7249 = vunpack.c.h.b16 %v7183
  %v7250 = vunpack.c.l.b16 %v7184
  %v7251 = vunpack.c.h.b16 %v7184
  %v7252 = vunpack.c.l.b16 %v7185
  %v7253 = vunpack.c.h.b16 %v7185
  %v7254 = vunpack.c.l.b16 %v7186
  %v7255 = vunpack.c.h.b16 %v7186
  %v7256 = vunpack.c.l.b16 %v7187
  %v7257 = vunpack.c.h.b16 %v7187
  %v7258 = vunpack.c.l.b16 %v7188
  %v7259 = vunpack.c.h.b16 %v7188
  %v7260 = vunpack.c.l.b16 %v7189
  %v7261 = vunpack.c.h.b16 %v7189
  %v7262 = vunpack.c.l.b16 %v7190
  %v7263 = vunpack.c.h.b16 %v7190
  %v7264 = vunpack.c.l.b16 %v7191
  %v7265 = vunpack.c.h.b16 %v7191
  %v7266 = vunpack.c.l.b16 %v7192
  %v7267 = vunpack.c.h.b16 %v7192
  %v7268 = vunpack.c.l.b16 %v7193
  %v7269 = vunpack.c.h.b16 %v7193
  %v7270 = vunpack.c.l.b16 %v7194
  %v7271 = vunpack.c.h.b16 %v7194
  %v7272 = vunpack.c.l.b16 %v7195
  %v7273 = vunpack.c.h.b16 %v7195
  %v7274 = vunpack.c.l.b16 %v7196
  %v7275 = vunpack.c.h.b16 %v7196
  %v7276 = vunpack.c.l.b16 %v7197
  %v7277 = vunpack.c.h.b16 %v7197
  %v7278 = vunpack.c.l.b16 %v7198
  %v7279 = vunpack.c.h.b16 %v7198
  %v7280 = vunpack.c.l.b16 %v7199
  %v7281 = vunpack.c.h.b16 %v7199
  %v7282 = vunpack.c.l.b16 %v7200
  %v7283 = vunpack.c.h.b16 %v7200
  %v7284 = vunpack.c.l.b16 %v7201
  %v7285 = vunpack.c.h.b16 %v7201
  %v7286 = vunpack.c.l.b16 %v7202
  %v7287 = vunpack.c.h.b16 %v7202
  %v7288 = vunpack.c.l.b16 %v7203
  %v7289 = vunpack.c.h.b16 %v7203
  %v7290 = vunpack.c.l.b16 %v7204
  %v7291 = vunpack.c.h.b16 %v7204
  %v7292 = vunpack.c.l.b16 %v7205
  %v7293 = vunpack.c.h.b16 %v7205
  %v7294 = vunpack.c.l.b16 %v7206
  %v7295 = vunpack.c.h.b16 %v7206
  %v7296 = vunpack.c.l.b16 %v7207
  %v7297 = vunpack.c.h.b16 %v7207
  %v7298 = vunpack.c.l.b16 %v7208
  %v7299 = vunpack.c.h.b16 %v7208
  %v7300 = vunpack.c.l.b16 %v7209
  %v7301 = vunpack.c.h.b16 %v7209
  %v7302 = vunpack.c.l.b16 %v7210
  %v7303 = vunpack.c.h.b16 %v7210
  %v7304 = vunpack.c.l.b16 %v7211
  %v7305 = vunpack.c.h.b16 %v7211
  %v7306 = vunpack.c.l.b16 %v7212
  %v7307 = vunpack.c.h.b16 %v7212
  %v7308 = vunpack.c.l.b16 %v7213
  %v7309 = vunpack.c.h.b16 %v7213
  %v7310 = vpack.c.b16 %v7248, %v7246
  %v7311 = vpack.c.b16 %v7249, %v7247
  %v7312 = vpack.c.b16 %v7252, %v7250
  %v7313 = vpack.c.b16 %v7253, %v7251
  %v7314 = vpack.c.b16 %v7256, %v7254
  %v7315 = vpack.c.b16 %v7257, %v7255
  %v7316 = vpack.c.b16 %v7260, %v7258
  %v7317 = vpack.c.b16 %v7261, %v7259
  %v7318 = vpack.c.b16 %v7264, %v7262
  %v7319 = vpack.c.b16 %v7265, %v7263
  %v7320 = vpack.c.b16 %v7268, %v7266
  %v7321 = vpack.c.b16 %v7269, %v7267
  %v7322 = vpack.c.b16 %v7272, %v7270
  %v7323 = vpack.c.b16 %v7273, %v7271
  %v7324 = vpack.c.b16 %v7276, %v7274
  %v7325 = vpack.c.b16 %v7277, %v7275
  %v7326 = vpack.c.b16 %v7280, %v7278
  %v7327 = vpack.c.b16 %v7281, %v7279
  %v7328 = vpack.c.b16 %v7284, %v7282
  %v7329 = vpack.c.b16 %v7285, %v7283
  %v7330 = vpack.c.b16 %v7288, %v7286
  %v7331 = vpack.c.b16 %v7289, %v7287
  %v7332 = vpack.c.b16 %v7292, %v7290
  %v7333 = vpack.c.b16 %v7293, %v7291
  %v7334 = vpack.c.b16 %v7296, %v7294
  %v7335 = vpack.c.b16 %v7297, %v7295
  %v7336 = vpack.c.b16 %v7300, %v7298
  %v7337 = vpack.c.b16 %v7301, %v7299
  %v7338 = vpack.c.b16 %v7304, %v7302
  %v7339 = vpack.c.b16 %v7305, %v7303
  %v7340 = vpack.c.b16 %v7308, %v7306
  %v7341 = vpack.c.b16 %v7309, %v7307
  %7374 = vmatprep.subr.bf16.mxu0 %v7311
  %7375 = vmatpush1.bf16.msra.mxu0 %v7310
  %7376 = vmatprep.subr.bf16.mxu0 %v7313
  %7377 = vmatpush1.bf16.msra.mxu0 %v7312
  %7378 = vmatprep.subr.bf16.mxu0 %v7315
  %7379 = vmatpush1.bf16.msra.mxu0 %v7314
  %7380 = vmatprep.subr.bf16.mxu0 %v7317
  %7381 = vmatpush1.bf16.msra.mxu0 %v7316
  %7382 = vmatprep.subr.bf16.mxu0 %v7319
  %7383 = vmatpush1.bf16.msra.mxu0 %v7318
  %7384 = vmatprep.subr.bf16.mxu0 %v7321
  %7385 = vmatpush1.bf16.msra.mxu0 %v7320
  %7386 = vmatprep.subr.bf16.mxu0 %v7323
  %7387 = vmatpush1.bf16.msra.mxu0 %v7322
  %7388 = vmatprep.subr.bf16.mxu0 %v7325
  %7389 = vmatpush1.bf16.msra.mxu0 %v7324
  %7390 = vmatprep.subr.bf16.mxu0 %v7327
  %7391 = vmatpush1.bf16.msra.mxu0 %v7326
  %7392 = vmatprep.subr.bf16.mxu0 %v7329
  %7393 = vmatpush1.bf16.msra.mxu0 %v7328
  %7394 = vmatprep.subr.bf16.mxu0 %v7331
  %7395 = vmatpush1.bf16.msra.mxu0 %v7330
  %7396 = vmatprep.subr.bf16.mxu0 %v7333
  %7397 = vmatpush1.bf16.msra.mxu0 %v7332
  %7398 = vmatprep.subr.bf16.mxu0 %v7335
  %7399 = vmatpush1.bf16.msra.mxu0 %v7334
  %7400 = vmatprep.subr.bf16.mxu0 %v7337
  %7401 = vmatpush1.bf16.msra.mxu0 %v7336
  %7402 = vmatprep.subr.bf16.mxu0 %v7339
  %7403 = vmatpush1.bf16.msra.mxu0 %v7338
  %7404 = vmatprep.subr.bf16.mxu0 %v7341
  %7405 = vmatpush1.bf16.msra.mxu0 %v7340
  %7406 = vmatprep.mubr.bf16.mxu0 %v7180
  %7407 = vmatmul.mubr.bf16.gmra.mrb[0].mxu0 %v7179
  %v7408 = vpop.f32.mrb[0].mxu0
  %v7409 = vadd.f32 0.0, %v7408
  %v7410 = vpop.f32.mrb[0].mxu0
  %v7411 = vadd.f32 0.0, %v7410
  %v7412 = vpop.f32.mrb[0].mxu0
  %v7413 = vpop.f32.mrb[0].mxu0
  %7414 = vdwg.mxu0
  %v7415 = vadd.f32 %v7131, %v7409
  %v7416 = vadd.f32 %v7132, %v7411
  %v7418 = vsel %vm6284, %v6277, 0
  %v7421 = vsel %vm6284, %v6278, 0
  %7423 = vmatprep.subr.bf16.mxu0 %v7421
  %7424 = vmatpush1.bf16.msra.mxu0 %v7418
  %7425 = vmatprep.subr.bf16.mxu0 0
  %7426 = vmatpush1.bf16.msra.mxu0 0
  %7427 = vmatprep.subr.bf16.mxu0 0
  %7428 = vmatpush1.bf16.msra.mxu0 0
  %7429 = vmatprep.subr.bf16.mxu0 0
  %7430 = vmatpush1.bf16.msra.mxu0 0
  %7431 = vmatprep.subr.bf16.mxu0 0
  %7432 = vmatpush1.bf16.msra.mxu0 0
  %7433 = vmatprep.subr.bf16.mxu0 0
  %7434 = vmatpush1.bf16.msra.mxu0 0
  %7435 = vmatprep.subr.bf16.mxu0 0
  %7436 = vmatpush1.bf16.msra.mxu0 0
  %7437 = vmatprep.subr.bf16.mxu0 0
  %7438 = vmatpush1.bf16.msra.mxu0 0
  %7439 = vmatprep.subr.bf16.mxu0 0
  %7440 = vmatpush1.bf16.msra.mxu0 0
  %7441 = vmatprep.subr.bf16.mxu0 0
  %7442 = vmatpush1.bf16.msra.mxu0 0
  %7443 = vmatprep.subr.bf16.mxu0 0
  %7444 = vmatpush1.bf16.msra.mxu0 0
  %7445 = vmatprep.subr.bf16.mxu0 0
  %7446 = vmatpush1.bf16.msra.mxu0 0
  %7447 = vmatprep.subr.bf16.mxu0 0
  %7448 = vmatpush1.bf16.msra.mxu0 0
  %7449 = vmatprep.subr.bf16.mxu0 0
  %7450 = vmatpush1.bf16.msra.mxu0 0
  %7451 = vmatprep.subr.bf16.mxu0 0
  %7452 = vmatpush1.bf16.msra.mxu0 0
  %7453 = vmatprep.subr.bf16.mxu0 0
  %7454 = vmatpush1.bf16.msra.mxu0 0
  %7455 = vmatprep.mubr.bf16.mxu0 0
  %7456 = vmatmul.mubr.bf16.gmra.mrb[0].mxu0 %v6282
  %v7457 = vpop.f32.mrb[0].mxu0
  %v7458 = vadd.f32 0.0, %v7457
  %v7459 = vpop.f32.mrb[0].mxu0
  %v7460 = vadd.f32 0.0, %v7459
  %v7461 = vpop.f32.mrb[0].mxu0
  %v7462 = vpop.f32.mrb[0].mxu0
  %7463 = vdwg.mxu0
  %v7464 = vpack.c.bf16 %v7458, %v7458
  %v7465 = vpack.c.bf16 %v7460, %v7460
  %7466 = vmatprep.subr.bf16.mxu0 %v7421
  %7467 = vmatpush1.bf16.msra.mxu0 %v7418
  %7468 = vmatprep.subr.bf16.mxu0 0
  %7469 = vmatpush1.bf16.msra.mxu0 0
  %7470 = vmatprep.subr.bf16.mxu0 0
  %7471 = vmatpush1.bf16.msra.mxu0 0
  %7472 = vmatprep.subr.bf16.mxu0 0
  %7473 = vmatpush1.bf16.msra.mxu0 0
  %7474 = vmatprep.subr.bf16.mxu0 0
  %7475 = vmatpush1.bf16.msra.mxu0 0
  %7476 = vmatprep.subr.bf16.mxu0 0
  %7477 = vmatpush1.bf16.msra.mxu0 0
  %7478 = vmatprep.subr.bf16.mxu0 0
  %7479 = vmatpush1.bf16.msra.mxu0 0
  %7480 = vmatprep.subr.bf16.mxu0 0
  %7481 = vmatpush1.bf16.msra.mxu0 0
  %7482 = vmatprep.subr.bf16.mxu0 0
  %7483 = vmatpush1.bf16.msra.mxu0 0
  %7484 = vmatprep.subr.bf16.mxu0 0
  %7485 = vmatpush1.bf16.msra.mxu0 0
  %7486 = vmatprep.subr.bf16.mxu0 0
  %7487 = vmatpush1.bf16.msra.mxu0 0
  %7488 = vmatprep.subr.bf16.mxu0 0
  %7489 = vmatpush1.bf16.msra.mxu0 0
  %7490 = vmatprep.subr.bf16.mxu0 0
  %7491 = vmatpush1.bf16.msra.mxu0 0
  %7492 = vmatprep.subr.bf16.mxu0 0
  %7493 = vmatpush1.bf16.msra.mxu0 0
  %7494 = vmatprep.subr.bf16.mxu0 0
  %7495 = vmatpush1.bf16.msra.mxu0 0
  %7496 = vmatprep.subr.bf16.mxu0 0
  %7497 = vmatpush1.bf16.msra.mxu0 0
  %7498 = vmatprep.mubr.bf16.mxu0 0
  %7499 = vmatmul.mubr.bf16.gmra.mrb[0].mxu0 %v6369
  %v7500 = vpop.f32.mrb[0].mxu0
  %v7501 = vadd.f32 0.0, %v7500
  %v7502 = vpop.f32.mrb[0].mxu0
  %v7503 = vadd.f32 0.0, %v7502
  %v7504 = vpop.f32.mrb[0].mxu0
  %v7505 = vpop.f32.mrb[0].mxu0
  %7506 = vdwg.mxu0
  %v7507 = vpack.c.bf16 %v7501, %v7501
  %v7508 = vpack.c.bf16 %v7503, %v7503
  %7509 = vmatprep.subr.bf16.mxu0 %v6544
  %7510 = vmatpush1.bf16.msra.mxu0 %v6543
  %7511 = vmatprep.subr.bf16.mxu0 %v6546
  %7512 = vmatpush1.bf16.msra.mxu0 %v6545
  %7513 = vmatprep.subr.bf16.mxu0 %v6548
  %7514 = vmatpush1.bf16.msra.mxu0 %v6547
  %7515 = vmatprep.subr.bf16.mxu0 %v6550
  %7516 = vmatpush1.bf16.msra.mxu0 %v6549
  %7517 = vmatprep.subr.bf16.mxu0 %v6552
  %7518 = vmatpush1.bf16.msra.mxu0 %v6551
  %7519 = vmatprep.subr.bf16.mxu0 %v6554
  %7520 = vmatpush1.bf16.msra.mxu0 %v6553
  %7521 = vmatprep.subr.bf16.mxu0 %v6556
  %7522 = vmatpush1.bf16.msra.mxu0 %v6555
  %7523 = vmatprep.subr.bf16.mxu0 %v6558
  %7524 = vmatpush1.bf16.msra.mxu0 %v6557
  %7525 = vmatprep.subr.bf16.mxu0 %v6560
  %7526 = vmatpush1.bf16.msra.mxu0 %v6559
  %7527 = vmatprep.subr.bf16.mxu0 %v6562
  %7528 = vmatpush1.bf16.msra.mxu0 %v6561
  %7529 = vmatprep.subr.bf16.mxu0 %v6564
  %7530 = vmatpush1.bf16.msra.mxu0 %v6563
  %7531 = vmatprep.subr.bf16.mxu0 %v6566
  %7532 = vmatpush1.bf16.msra.mxu0 %v6565
  %7533 = vmatprep.subr.bf16.mxu0 %v6568
  %7534 = vmatpush1.bf16.msra.mxu0 %v6567
  %7535 = vmatprep.subr.bf16.mxu0 %v6570
  %7536 = vmatpush1.bf16.msra.mxu0 %v6569
  %7537 = vmatprep.subr.bf16.mxu0 %v6572
  %7538 = vmatpush1.bf16.msra.mxu0 %v6571
  %7539 = vmatprep.subr.bf16.mxu0 %v6574
  %7540 = vmatpush1.bf16.msra.mxu0 %v6573
  %7541 = vmatprep.mubr.bf16.mxu0 %v7508
  %7542 = vmatmul.mubr.bf16.gmra.mrb[0].mxu0 %v7507
  %v7543 = vpop.f32.mrb[0].mxu0
  %v7544 = vadd.f32 0.0, %v7543
  %v7545 = vpop.f32.mrb[0].mxu0
  %v7546 = vadd.f32 0.0, %v7545
  %v7547 = vpop.f32.mrb[0].mxu0
  %v7548 = vpop.f32.mrb[0].mxu0
  %7549 = vdwg.mxu0
  %7550 = vmatprep.subr.bf16.mxu0 %v6745
  %7551 = vmatpush1.bf16.msra.mxu0 %v6744
  %7552 = vmatprep.subr.bf16.mxu0 %v6747
  %7553 = vmatpush1.bf16.msra.mxu0 %v6746
  %7554 = vmatprep.subr.bf16.mxu0 %v6749
  %7555 = vmatpush1.bf16.msra.mxu0 %v6748
  %7556 = vmatprep.subr.bf16.mxu0 %v6751
  %7557 = vmatpush1.bf16.msra.mxu0 %v6750
  %7558 = vmatprep.subr.bf16.mxu0 %v6753
  %7559 = vmatpush1.bf16.msra.mxu0 %v6752
  %7560 = vmatprep.subr.bf16.mxu0 %v6755
  %7561 = vmatpush1.bf16.msra.mxu0 %v6754
  %7562 = vmatprep.subr.bf16.mxu0 %v6757
  %7563 = vmatpush1.bf16.msra.mxu0 %v6756
  %7564 = vmatprep.subr.bf16.mxu0 %v6759
  %7565 = vmatpush1.bf16.msra.mxu0 %v6758
  %7566 = vmatprep.subr.bf16.mxu0 %v6761
  %7567 = vmatpush1.bf16.msra.mxu0 %v6760
  %7568 = vmatprep.subr.bf16.mxu0 %v6763
  %7569 = vmatpush1.bf16.msra.mxu0 %v6762
  %7570 = vmatprep.subr.bf16.mxu0 %v6765
  %7571 = vmatpush1.bf16.msra.mxu0 %v6764
  %7572 = vmatprep.subr.bf16.mxu0 %v6767
  %7573 = vmatpush1.bf16.msra.mxu0 %v6766
  %7574 = vmatprep.subr.bf16.mxu0 %v6769
  %7575 = vmatpush1.bf16.msra.mxu0 %v6768
  %7576 = vmatprep.subr.bf16.mxu0 %v6771
  %7577 = vmatpush1.bf16.msra.mxu0 %v6770
  %7578 = vmatprep.subr.bf16.mxu0 %v6773
  %7579 = vmatpush1.bf16.msra.mxu0 %v6772
  %7580 = vmatprep.subr.bf16.mxu0 %v6775
  %7581 = vmatpush1.bf16.msra.mxu0 %v6774
  %7582 = vmatprep.mubr.bf16.mxu0 %v7465
  %7583 = vmatmul.mubr.bf16.gmra.mrb[0].mxu0 %v7464
  %v7584 = vpop.f32.mrb[0].mxu0
  %v7585 = vadd.f32 %v7544, %v7584
  %v7586 = vpop.f32.mrb[0].mxu0
  %v7587 = vadd.f32 %v7546, %v7586
  %v7588 = vpop.f32.mrb[0].mxu0
  %v7589 = vpop.f32.mrb[0].mxu0
  %7590 = vdwg.mxu0
  %7591 = vmatprep.subr.bf16.mxu0 %v7421
  %7592 = vmatpush1.bf16.msra.mxu0 %v7418
  %7593 = vmatprep.subr.bf16.mxu0 0
  %7594 = vmatpush1.bf16.msra.mxu0 0
  %7595 = vmatprep.subr.bf16.mxu0 0
  %7596 = vmatpush1.bf16.msra.mxu0 0
  %7597 = vmatprep.subr.bf16.mxu0 0
  %7598 = vmatpush1.bf16.msra.mxu0 0
  %7599 = vmatprep.subr.bf16.mxu0 0
  %7600 = vmatpush1.bf16.msra.mxu0 0
  %7601 = vmatprep.subr.bf16.mxu0 0
  %7602 = vmatpush1.bf16.msra.mxu0 0
  %7603 = vmatprep.subr.bf16.mxu0 0
  %7604 = vmatpush1.bf16.msra.mxu0 0
  %7605 = vmatprep.subr.bf16.mxu0 0
  %7606 = vmatpush1.bf16.msra.mxu0 0
  %7607 = vmatprep.subr.bf16.mxu0 0
  %7608 = vmatpush1.bf16.msra.mxu0 0
  %7609 = vmatprep.subr.bf16.mxu0 0
  %7610 = vmatpush1.bf16.msra.mxu0 0
  %7611 = vmatprep.subr.bf16.mxu0 0
  %7612 = vmatpush1.bf16.msra.mxu0 0
  %7613 = vmatprep.subr.bf16.mxu0 0
  %7614 = vmatpush1.bf16.msra.mxu0 0
  %7615 = vmatprep.subr.bf16.mxu0 0
  %7616 = vmatpush1.bf16.msra.mxu0 0
  %7617 = vmatprep.subr.bf16.mxu0 0
  %7618 = vmatpush1.bf16.msra.mxu0 0
  %7619 = vmatprep.subr.bf16.mxu0 0
  %7620 = vmatpush1.bf16.msra.mxu0 0
  %7621 = vmatprep.subr.bf16.mxu0 0
  %7622 = vmatpush1.bf16.msra.mxu0 0
  %7623 = vmatprep.mubr.bf16.mxu0 0
  %7624 = vmatmul.mubr.bf16.gmra.mrb[0].mxu0 %v6852
  %v7625 = vpop.f32.mrb[0].mxu0
  %v7626 = vadd.f32 0.0, %v7625
  %v7627 = vpop.f32.mrb[0].mxu0
  %v7628 = vadd.f32 0.0, %v7627
  %v7629 = vpop.f32.mrb[0].mxu0
  %v7630 = vpop.f32.mrb[0].mxu0
  %7631 = vdwg.mxu0
  %v7632 = vpack.c.bf16 %v7626, %v7626
  %v7633 = vpack.c.bf16 %v7628, %v7628
  %7634 = vmatprep.subr.bf16.mxu0 %v7027
  %7635 = vmatpush1.bf16.msra.mxu0 %v7026
  %7636 = vmatprep.subr.bf16.mxu0 %v7029
  %7637 = vmatpush1.bf16.msra.mxu0 %v7028
  %7638 = vmatprep.subr.bf16.mxu0 %v7031
  %7639 = vmatpush1.bf16.msra.mxu0 %v7030
  %7640 = vmatprep.subr.bf16.mxu0 %v7033
  %7641 = vmatpush1.bf16.msra.mxu0 %v7032
  %7642 = vmatprep.subr.bf16.mxu0 %v7035
  %7643 = vmatpush1.bf16.msra.mxu0 %v7034
  %7644 = vmatprep.subr.bf16.mxu0 %v7037
  %7645 = vmatpush1.bf16.msra.mxu0 %v7036
  %7646 = vmatprep.subr.bf16.mxu0 %v7039
  %7647 = vmatpush1.bf16.msra.mxu0 %v7038
  %7648 = vmatprep.subr.bf16.mxu0 %v7041
  %7649 = vmatpush1.bf16.msra.mxu0 %v7040
  %7650 = vmatprep.subr.bf16.mxu0 %v7043
  %7651 = vmatpush1.bf16.msra.mxu0 %v7042
  %7652 = vmatprep.subr.bf16.mxu0 %v7045
  %7653 = vmatpush1.bf16.msra.mxu0 %v7044
  %7654 = vmatprep.subr.bf16.mxu0 %v7047
  %7655 = vmatpush1.bf16.msra.mxu0 %v7046
  %7656 = vmatprep.subr.bf16.mxu0 %v7049
  %7657 = vmatpush1.bf16.msra.mxu0 %v7048
  %7658 = vmatprep.subr.bf16.mxu0 %v7051
  %7659 = vmatpush1.bf16.msra.mxu0 %v7050
  %7660 = vmatprep.subr.bf16.mxu0 %v7053
  %7661 = vmatpush1.bf16.msra.mxu0 %v7052
  %7662 = vmatprep.subr.bf16.mxu0 %v7055
  %7663 = vmatpush1.bf16.msra.mxu0 %v7054
  %7664 = vmatprep.subr.bf16.mxu0 %v7057
  %7665 = vmatpush1.bf16.msra.mxu0 %v7056
  %7666 = vmatprep.mubr.bf16.mxu0 %v7633
  %7667 = vmatmul.mubr.bf16.gmra.mrb[0].mxu0 %v7632
  %v7668 = vpop.f32.mrb[0].mxu0
  %v7669 = vadd.f32 0.0, %v7668
  %v7670 = vpop.f32.mrb[0].mxu0
  %v7671 = vadd.f32 0.0, %v7670
  %v7672 = vpop.f32.mrb[0].mxu0
  %v7673 = vpop.f32.mrb[0].mxu0
  %7674 = vdwg.mxu0
  %v7675 = vadd.f32 %v7585, %v7669
  %v7676 = vadd.f32 %v7587, %v7671
  %7677 = vmatprep.subr.bf16.mxu0 %v7421
  %7678 = vmatpush1.bf16.msra.mxu0 %v7418
  %7679 = vmatprep.subr.bf16.mxu0 0
  %7680 = vmatpush1.bf16.msra.mxu0 0
  %7681 = vmatprep.subr.bf16.mxu0 0
  %7682 = vmatpush1.bf16.msra.mxu0 0
  %7683 = vmatprep.subr.bf16.mxu0 0
  %7684 = vmatpush1.bf16.msra.mxu0 0
  %7685 = vmatprep.subr.bf16.mxu0 0
  %7686 = vmatpush1.bf16.msra.mxu0 0
  %7687 = vmatprep.subr.bf16.mxu0 0
  %7688 = vmatpush1.bf16.msra.mxu0 0
  %7689 = vmatprep.subr.bf16.mxu0 0
  %7690 = vmatpush1.bf16.msra.mxu0 0
  %7691 = vmatprep.subr.bf16.mxu0 0
  %7692 = vmatpush1.bf16.msra.mxu0 0
  %7693 = vmatprep.subr.bf16.mxu0 0
  %7694 = vmatpush1.bf16.msra.mxu0 0
  %7695 = vmatprep.subr.bf16.mxu0 0
  %7696 = vmatpush1.bf16.msra.mxu0 0
  %7697 = vmatprep.subr.bf16.mxu0 0
  %7698 = vmatpush1.bf16.msra.mxu0 0
  %7699 = vmatprep.subr.bf16.mxu0 0
  %7700 = vmatpush1.bf16.msra.mxu0 0
  %7701 = vmatprep.subr.bf16.mxu0 0
  %7702 = vmatpush1.bf16.msra.mxu0 0
  %7703 = vmatprep.subr.bf16.mxu0 0
  %7704 = vmatpush1.bf16.msra.mxu0 0
  %7705 = vmatprep.subr.bf16.mxu0 0
  %7706 = vmatpush1.bf16.msra.mxu0 0
  %7707 = vmatprep.subr.bf16.mxu0 0
  %7708 = vmatpush1.bf16.msra.mxu0 0
  %7709 = vmatprep.mubr.bf16.mxu0 0
  %7710 = vmatmul.mubr.bf16.gmra.mrb[0].mxu0 %v7136
  %v7711 = vpop.f32.mrb[0].mxu0
  %v7712 = vadd.f32 0.0, %v7711
  %v7713 = vpop.f32.mrb[0].mxu0
  %v7714 = vadd.f32 0.0, %v7713
  %v7715 = vpop.f32.mrb[0].mxu0
  %v7716 = vpop.f32.mrb[0].mxu0
  %7717 = vdwg.mxu0
  %v7718 = vpack.c.bf16 %v7712, %v7712
  %v7719 = vpack.c.bf16 %v7714, %v7714
  %7720 = vmatprep.subr.bf16.mxu0 %v7311
  %7721 = vmatpush1.bf16.msra.mxu0 %v7310
  %7722 = vmatprep.subr.bf16.mxu0 %v7313
  %7723 = vmatpush1.bf16.msra.mxu0 %v7312
  %7724 = vmatprep.subr.bf16.mxu0 %v7315
  %7725 = vmatpush1.bf16.msra.mxu0 %v7314
  %7726 = vmatprep.subr.bf16.mxu0 %v7317
  %7727 = vmatpush1.bf16.msra.mxu0 %v7316
  %7728 = vmatprep.subr.bf16.mxu0 %v7319
  %7729 = vmatpush1.bf16.msra.mxu0 %v7318
  %7730 = vmatprep.subr.bf16.mxu0 %v7321
  %7731 = vmatpush1.bf16.msra.mxu0 %v7320
  %7732 = vmatprep.subr.bf16.mxu0 %v7323
  %7733 = vmatpush1.bf16.msra.mxu0 %v7322
  %7734 = vmatprep.subr.bf16.mxu0 %v7325
  %7735 = vmatpush1.bf16.msra.mxu0 %v7324
  %7736 = vmatprep.subr.bf16.mxu0 %v7327
  %7737 = vmatpush1.bf16.msra.mxu0 %v7326
  %7738 = vmatprep.subr.bf16.mxu0 %v7329
  %7739 = vmatpush1.bf16.msra.mxu0 %v7328
  %7740 = vmatprep.subr.bf16.mxu0 %v7331
  %7741 = vmatpush1.bf16.msra.mxu0 %v7330
  %7742 = vmatprep.subr.bf16.mxu0 %v7333
  %7743 = vmatpush1.bf16.msra.mxu0 %v7332
  %7744 = vmatprep.subr.bf16.mxu0 %v7335
  %7745 = vmatpush1.bf16.msra.mxu0 %v7334
  %7746 = vmatprep.subr.bf16.mxu0 %v7337
  %7747 = vmatpush1.bf16.msra.mxu0 %v7336
  %7748 = vmatprep.subr.bf16.mxu0 %v7339
  %7749 = vmatpush1.bf16.msra.mxu0 %v7338
  %7750 = vmatprep.subr.bf16.mxu0 %v7341
  %7751 = vmatpush1.bf16.msra.mxu0 %v7340
  %7752 = vmatprep.mubr.bf16.mxu0 %v7719
  %7753 = vmatmul.mubr.bf16.gmra.mrb[0].mxu0 %v7718
  %v7754 = vpop.f32.mrb[0].mxu0
  %v7755 = vadd.f32 0.0, %v7754
  %v7756 = vpop.f32.mrb[0].mxu0
  %v7757 = vadd.f32 0.0, %v7756
  %v7758 = vpop.f32.mrb[0].mxu0
  %v7759 = vpop.f32.mrb[0].mxu0
  %7760 = vdwg.mxu0
  %v7761 = vadd.f32 %v7675, %v7755
  %v7762 = vadd.f32 %v7676, %v7757
  %v7763 = vld [vmem:[%s15] sm:$0x1]
  %v7764 = vld [vmem:[%s16] sm:$0x1]
  %vm7765 = vcmp.lt.s32.totalorder %v2907, 0
  %v7766 = vsub.s32 0, %v2907
  %v7767 = vsel %vm7765, %v7766, %v2907
  %v7768 = vshrl.u32 %v7767, 6
  %v7769 = vand.u32 %v7767, 63
  %v7770 = vsub.s32 0, %v7769
  %v7771 = vsel %vm7765, %v7770, %v7769
  %vm7772 = vcmp.lt.s32.totalorder %v2908, 0
  %v7773 = vsub.s32 0, %v2908
  %v7774 = vsel %vm7772, %v7773, %v2908
  %v7775 = vshrl.u32 %v7774, 6
  %v7776 = vand.u32 %v7774, 63
  %v7777 = vsub.s32 0, %v7776
  %v7778 = vsel %vm7772, %v7777, %v7776
  %vm7779 = vcmp.lt.s32.totalorder %v2909, 0
  %v7780 = vsub.s32 0, %v2909
  %v7781 = vsel %vm7779, %v7780, %v2909
  %v7782 = vshrl.u32 %v7781, 6
  %v7783 = vand.u32 %v7781, 63
  %v7784 = vsub.s32 0, %v7783
  %v7785 = vsel %vm7779, %v7784, %v7783
  %vm7786 = vcmp.lt.s32.totalorder %v2910, 0
  %v7787 = vsub.s32 0, %v2910
  %v7788 = vsel %vm7786, %v7787, %v2910
  %v7789 = vshrl.u32 %v7788, 6
  %v7790 = vand.u32 %v7788, 63
  %v7791 = vsub.s32 0, %v7790
  %v7792 = vsel %vm7786, %v7791, %v7790
  %vm7793 = vcmp.lt.s32.totalorder %v2911, 0
  %v7794 = vsub.s32 0, %v2911
  %v7795 = vsel %vm7793, %v7794, %v2911
  %v7796 = vshrl.u32 %v7795, 6
  %v7797 = vand.u32 %v7795, 63
  %v7798 = vsub.s32 0, %v7797
  %v7799 = vsel %vm7793, %v7798, %v7797
  %vm7800 = vcmp.lt.s32.totalorder %v2912, 0
  %v7801 = vsub.s32 0, %v2912
  %v7802 = vsel %vm7800, %v7801, %v2912
  %v7803 = vshrl.u32 %v7802, 6
  %v7804 = vand.u32 %v7802, 63
  %v7805 = vsub.s32 0, %v7804
  %v7806 = vsel %vm7800, %v7805, %v7804
  %vm7807 = vcmp.lt.s32.totalorder %v2913, 0
  %v7808 = vsub.s32 0, %v2913
  %v7809 = vsel %vm7807, %v7808, %v2913
  %v7810 = vshrl.u32 %v7809, 6
  %v7811 = vand.u32 %v7809, 63
  %v7812 = vsub.s32 0, %v7811
  %v7813 = vsel %vm7807, %v7812, %v7811
  %vm7814 = vcmp.lt.s32.totalorder %v2914, 0
  %v7815 = vsub.s32 0, %v2914
  %v7816 = vsel %vm7814, %v7815, %v2914
  %v7817 = vshrl.u32 %v7816, 6
  %v7818 = vand.u32 %v7816, 63
  %v7819 = vsub.s32 0, %v7818
  %v7820 = vsel %vm7814, %v7819, %v7818
  %vm7821 = vcmp.lt.s32.totalorder %v2915, 0
  %v7822 = vsub.s32 0, %v2915
  %v7823 = vsel %vm7821, %v7822, %v2915
  %v7824 = vshrl.u32 %v7823, 6
  %v7825 = vand.u32 %v7823, 63
  %v7826 = vsub.s32 0, %v7825
  %v7827 = vsel %vm7821, %v7826, %v7825
  %vm7828 = vcmp.lt.s32.totalorder %v2916, 0
  %v7829 = vsub.s32 0, %v2916
  %v7830 = vsel %vm7828, %v7829, %v2916
  %v7831 = vshrl.u32 %v7830, 6
  %v7832 = vand.u32 %v7830, 63
  %v7833 = vsub.s32 0, %v7832
  %v7834 = vsel %vm7828, %v7833, %v7832
  %vm7835 = vcmp.lt.s32.totalorder %v2917, 0
  %v7836 = vsub.s32 0, %v2917
  %v7837 = vsel %vm7835, %v7836, %v2917
  %v7838 = vshrl.u32 %v7837, 6
  %v7839 = vand.u32 %v7837, 63
  %v7840 = vsub.s32 0, %v7839
  %v7841 = vsel %vm7835, %v7840, %v7839
  %vm7842 = vcmp.lt.s32.totalorder %v2918, 0
  %v7843 = vsub.s32 0, %v2918
  %v7844 = vsel %vm7842, %v7843, %v2918
  %v7845 = vshrl.u32 %v7844, 6
  %v7846 = vand.u32 %v7844, 63
  %v7847 = vsub.s32 0, %v7846
  %v7848 = vsel %vm7842, %v7847, %v7846
  %vm7849 = vcmp.lt.s32.totalorder %v2919, 0
  %v7850 = vsub.s32 0, %v2919
  %v7851 = vsel %vm7849, %v7850, %v2919
  %v7852 = vshrl.u32 %v7851, 6
  %v7853 = vand.u32 %v7851, 63
  %v7854 = vsub.s32 0, %v7853
  %v7855 = vsel %vm7849, %v7854, %v7853
  %vm7856 = vcmp.lt.s32.totalorder %v2920, 0
  %v7857 = vsub.s32 0, %v2920
  %v7858 = vsel %vm7856, %v7857, %v2920
  %v7859 = vshrl.u32 %v7858, 6
  %v7860 = vand.u32 %v7858, 63
  %v7861 = vsub.s32 0, %v7860
  %v7862 = vsel %vm7856, %v7861, %v7860
  %vm7863 = vcmp.lt.s32.totalorder %v2921, 0
  %v7864 = vsub.s32 0, %v2921
  %v7865 = vsel %vm7863, %v7864, %v2921
  %v7866 = vshrl.u32 %v7865, 6
  %v7867 = vand.u32 %v7865, 63
  %v7868 = vsub.s32 0, %v7867
  %v7869 = vsel %vm7863, %v7868, %v7867
  %vm7870 = vcmp.lt.s32.totalorder %v2922, 0
  %v7871 = vsub.s32 0, %v2922
  %v7872 = vsel %vm7870, %v7871, %v2922
  %v7873 = vshrl.u32 %v7872, 6
  %v7874 = vand.u32 %v7872, 63
  %v7875 = vsub.s32 0, %v7874
  %v7876 = vsel %vm7870, %v7875, %v7874
  %vm7877 = vcmp.lt.s32.totalorder %v2923, 0
  %v7878 = vsub.s32 0, %v2923
  %v7879 = vsel %vm7877, %v7878, %v2923
  %v7880 = vshrl.u32 %v7879, 6
  %v7881 = vand.u32 %v7879, 63
  %v7882 = vsub.s32 0, %v7881
  %v7883 = vsel %vm7877, %v7882, %v7881
  %vm7884 = vcmp.lt.s32.totalorder %v2924, 0
  %v7885 = vsub.s32 0, %v2924
  %v7886 = vsel %vm7884, %v7885, %v2924
  %v7887 = vshrl.u32 %v7886, 6
  %v7888 = vand.u32 %v7886, 63
  %v7889 = vsub.s32 0, %v7888
  %v7890 = vsel %vm7884, %v7889, %v7888
  %vm7891 = vcmp.lt.s32.totalorder %v2925, 0
  %v7892 = vsub.s32 0, %v2925
  %v7893 = vsel %vm7891, %v7892, %v2925
  %v7894 = vshrl.u32 %v7893, 6
  %v7895 = vand.u32 %v7893, 63
  %v7896 = vsub.s32 0, %v7895
  %v7897 = vsel %vm7891, %v7896, %v7895
  %vm7898 = vcmp.lt.s32.totalorder %v2926, 0
  %v7899 = vsub.s32 0, %v2926
  %v7900 = vsel %vm7898, %v7899, %v2926
  %v7901 = vshrl.u32 %v7900, 6
  %v7902 = vand.u32 %v7900, 63
  %v7903 = vsub.s32 0, %v7902
  %v7904 = vsel %vm7898, %v7903, %v7902
  %vm7905 = vcmp.lt.s32.totalorder %v2927, 0
  %v7906 = vsub.s32 0, %v2927
  %v7907 = vsel %vm7905, %v7906, %v2927
  %v7908 = vshrl.u32 %v7907, 6
  %v7909 = vand.u32 %v7907, 63
  %v7910 = vsub.s32 0, %v7909
  %v7911 = vsel %vm7905, %v7910, %v7909
  %vm7912 = vcmp.lt.s32.totalorder %v2928, 0
  %v7913 = vsub.s32 0, %v2928
  %v7914 = vsel %vm7912, %v7913, %v2928
  %v7915 = vshrl.u32 %v7914, 6
  %v7916 = vand.u32 %v7914, 63
  %v7917 = vsub.s32 0, %v7916
  %v7918 = vsel %vm7912, %v7917, %v7916
  %vm7919 = vcmp.lt.s32.totalorder %v2929, 0
  %v7920 = vsub.s32 0, %v2929
  %v7921 = vsel %vm7919, %v7920, %v2929
  %v7922 = vshrl.u32 %v7921, 6
  %v7923 = vand.u32 %v7921, 63
  %v7924 = vsub.s32 0, %v7923
  %v7925 = vsel %vm7919, %v7924, %v7923
  %vm7926 = vcmp.lt.s32.totalorder %v2930, 0
  %v7927 = vsub.s32 0, %v2930
  %v7928 = vsel %vm7926, %v7927, %v2930
  %v7929 = vshrl.u32 %v7928, 6
  %v7930 = vand.u32 %v7928, 63
  %v7931 = vsub.s32 0, %v7930
  %v7932 = vsel %vm7926, %v7931, %v7930
  %vm7933 = vcmp.lt.s32.totalorder %v2931, 0
  %v7934 = vsub.s32 0, %v2931
  %v7935 = vsel %vm7933, %v7934, %v2931
  %v7936 = vshrl.u32 %v7935, 6
  %v7937 = vand.u32 %v7935, 63
  %v7938 = vsub.s32 0, %v7937
  %v7939 = vsel %vm7933, %v7938, %v7937
  %vm7940 = vcmp.lt.s32.totalorder %v2932, 0
  %v7941 = vsub.s32 0, %v2932
  %v7942 = vsel %vm7940, %v7941, %v2932
  %v7943 = vshrl.u32 %v7942, 6
  %v7944 = vand.u32 %v7942, 63
  %v7945 = vsub.s32 0, %v7944
  %v7946 = vsel %vm7940, %v7945, %v7944
  %vm7947 = vcmp.lt.s32.totalorder %v2933, 0
  %v7948 = vsub.s32 0, %v2933
  %v7949 = vsel %vm7947, %v7948, %v2933
  %v7950 = vshrl.u32 %v7949, 6
  %v7951 = vand.u32 %v7949, 63
  %v7952 = vsub.s32 0, %v7951
  %v7953 = vsel %vm7947, %v7952, %v7951
  %vm7954 = vcmp.lt.s32.totalorder %v2934, 0
  %v7955 = vsub.s32 0, %v2934
  %v7956 = vsel %vm7954, %v7955, %v2934
  %v7957 = vshrl.u32 %v7956, 6
  %v7958 = vand.u32 %v7956, 63
  %v7959 = vsub.s32 0, %v7958
  %v7960 = vsel %vm7954, %v7959, %v7958
  %vm7961 = vcmp.lt.s32.totalorder %v2935, 0
  %v7962 = vsub.s32 0, %v2935
  %v7963 = vsel %vm7961, %v7962, %v2935
  %v7964 = vshrl.u32 %v7963, 6
  %v7965 = vand.u32 %v7963, 63
  %v7966 = vsub.s32 0, %v7965
  %v7967 = vsel %vm7961, %v7966, %v7965
  %vm7968 = vcmp.lt.s32.totalorder %v2936, 0
  %v7969 = vsub.s32 0, %v2936
  %v7970 = vsel %vm7968, %v7969, %v2936
  %v7971 = vshrl.u32 %v7970, 6
  %v7972 = vand.u32 %v7970, 63
  %v7973 = vsub.s32 0, %v7972
  %v7974 = vsel %vm7968, %v7973, %v7972
  %vm7975 = vcmp.lt.s32.totalorder %v2937, 0
  %v7976 = vsub.s32 0, %v2937
  %v7977 = vsel %vm7975, %v7976, %v2937
  %v7978 = vshrl.u32 %v7977, 6
  %v7979 = vand.u32 %v7977, 63
  %v7980 = vsub.s32 0, %v7979
  %v7981 = vsel %vm7975, %v7980, %v7979
  %vm7982 = vcmp.lt.s32.totalorder %v2938, 0
  %v7983 = vsub.s32 0, %v2938
  %v7984 = vsel %vm7982, %v7983, %v2938
  %v7985 = vshrl.u32 %v7984, 6
  %v7986 = vand.u32 %v7984, 63
  %v7987 = vsub.s32 0, %v7986
  %v7988 = vsel %vm7982, %v7987, %v7986
  %vm7989 = vcmp.ne.s32.totalorder %v7771, 0
  %vm7990 = vcmp.ne.s32.totalorder %v7778, 0
  %vm7991 = vcmp.ne.s32.totalorder %v7785, 0
  %vm7992 = vcmp.ne.s32.totalorder %v7792, 0
  %vm7993 = vcmp.ne.s32.totalorder %v7799, 0
  %vm7994 = vcmp.ne.s32.totalorder %v7806, 0
  %vm7995 = vcmp.ne.s32.totalorder %v7813, 0
  %vm7996 = vcmp.ne.s32.totalorder %v7820, 0
  %vm7997 = vcmp.ne.s32.totalorder %v7827, 0
  %vm7998 = vcmp.ne.s32.totalorder %v7834, 0
  %vm7999 = vcmp.ne.s32.totalorder %v7841, 0
  %vm8000 = vcmp.ne.s32.totalorder %v7848, 0
  %vm8001 = vcmp.ne.s32.totalorder %v7855, 0
  %vm8002 = vcmp.ne.s32.totalorder %v7862, 0
  %vm8003 = vcmp.ne.s32.totalorder %v7869, 0
  %vm8004 = vcmp.ne.s32.totalorder %v7876, 0
  %vm8005 = vcmp.ne.s32.totalorder %v7883, 0
  %vm8006 = vcmp.ne.s32.totalorder %v7890, 0
  %vm8007 = vcmp.ne.s32.totalorder %v7897, 0
  %vm8008 = vcmp.ne.s32.totalorder %v7904, 0
  %vm8009 = vcmp.ne.s32.totalorder %v7911, 0
  %vm8010 = vcmp.ne.s32.totalorder %v7918, 0
  %vm8011 = vcmp.ne.s32.totalorder %v7925, 0
  %vm8012 = vcmp.ne.s32.totalorder %v7932, 0
  %vm8013 = vcmp.ne.s32.totalorder %v7939, 0
  %vm8014 = vcmp.ne.s32.totalorder %v7946, 0
  %vm8015 = vcmp.ne.s32.totalorder %v7953, 0
  %vm8016 = vcmp.ne.s32.totalorder %v7960, 0
  %vm8017 = vcmp.ne.s32.totalorder %v7967, 0
  %vm8018 = vcmp.ne.s32.totalorder %v7974, 0
  %vm8019 = vcmp.ne.s32.totalorder %v7981, 0
  %vm8020 = vcmp.ne.s32.totalorder %v7988, 0
  %vm8021 = vcmp.lt.s32.totalorder %v7771, 0
  %vm8022 = vcmp.lt.s32.totalorder %v7778, 0
  %vm8023 = vcmp.lt.s32.totalorder %v7785, 0
  %vm8024 = vcmp.lt.s32.totalorder %v7792, 0
  %vm8025 = vcmp.lt.s32.totalorder %v7799, 0
  %vm8026 = vcmp.lt.s32.totalorder %v7806, 0
  %vm8027 = vcmp.lt.s32.totalorder %v7813, 0
  %vm8028 = vcmp.lt.s32.totalorder %v7820, 0
  %vm8029 = vcmp.lt.s32.totalorder %v7827, 0
  %vm8030 = vcmp.lt.s32.totalorder %v7834, 0
  %vm8031 = vcmp.lt.s32.totalorder %v7841, 0
  %vm8032 = vcmp.lt.s32.totalorder %v7848, 0
  %vm8033 = vcmp.lt.s32.totalorder %v7855, 0
  %vm8034 = vcmp.lt.s32.totalorder %v7862, 0
  %vm8035 = vcmp.lt.s32.totalorder %v7869, 0
  %vm8036 = vcmp.lt.s32.totalorder %v7876, 0
  %vm8037 = vcmp.lt.s32.totalorder %v7883, 0
  %vm8038 = vcmp.lt.s32.totalorder %v7890, 0
  %vm8039 = vcmp.lt.s32.totalorder %v7897, 0
  %vm8040 = vcmp.lt.s32.totalorder %v7904, 0
  %vm8041 = vcmp.lt.s32.totalorder %v7911, 0
  %vm8042 = vcmp.lt.s32.totalorder %v7918, 0
  %vm8043 = vcmp.lt.s32.totalorder %v7925, 0
  %vm8044 = vcmp.lt.s32.totalorder %v7932, 0
  %vm8045 = vcmp.lt.s32.totalorder %v7939, 0
  %vm8046 = vcmp.lt.s32.totalorder %v7946, 0
  %vm8047 = vcmp.lt.s32.totalorder %v7953, 0
  %vm8048 = vcmp.lt.s32.totalorder %v7960, 0
  %vm8049 = vcmp.lt.s32.totalorder %v7967, 0
  %vm8050 = vcmp.lt.s32.totalorder %v7974, 0
  %vm8051 = vcmp.lt.s32.totalorder %v7981, 0
  %vm8052 = vcmp.lt.s32.totalorder %v7988, 0
  %vm8053 = vmand %vm8021, %vm7989
  %vm8054 = vmand %vm8022, %vm7990
  %vm8055 = vmand %vm8023, %vm7991
  %vm8056 = vmand %vm8024, %vm7992
  %vm8057 = vmand %vm8025, %vm7993
  %vm8058 = vmand %vm8026, %vm7994
  %vm8059 = vmand %vm8027, %vm7995
  %vm8060 = vmand %vm8028, %vm7996
  %vm8061 = vmand %vm8029, %vm7997
  %vm8062 = vmand %vm8030, %vm7998
  %vm8063 = vmand %vm8031, %vm7999
  %vm8064 = vmand %vm8032, %vm8000
  %vm8065 = vmand %vm8033, %vm8001
  %vm8066 = vmand %vm8034, %vm8002
  %vm8067 = vmand %vm8035, %vm8003
  %vm8068 = vmand %vm8036, %vm8004
  %vm8069 = vmand %vm8037, %vm8005
  %vm8070 = vmand %vm8038, %vm8006
  %vm8071 = vmand %vm8039, %vm8007
  %vm8072 = vmand %vm8040, %vm8008
  %vm8073 = vmand %vm8041, %vm8009
  %vm8074 = vmand %vm8042, %vm8010
  %vm8075 = vmand %vm8043, %vm8011
  %vm8076 = vmand %vm8044, %vm8012
  %vm8077 = vmand %vm8045, %vm8013
  %vm8078 = vmand %vm8046, %vm8014
  %vm8079 = vmand %vm8047, %vm8015
  %vm8080 = vmand %vm8048, %vm8016
  %vm8081 = vmand %vm8049, %vm8017
  %vm8082 = vmand %vm8050, %vm8018
  %vm8083 = vmand %vm8051, %vm8019
  %vm8084 = vmand %vm8052, %vm8020
  %v8085 = vadd.s32 %v7771, 64
  %v8086 = vadd.s32 %v7778, 64
  %v8087 = vadd.s32 %v7785, 64
  %v8088 = vadd.s32 %v7792, 64
  %v8089 = vadd.s32 %v7799, 64
  %v8090 = vadd.s32 %v7806, 64
  %v8091 = vadd.s32 %v7813, 64
  %v8092 = vadd.s32 %v7820, 64
  %v8093 = vadd.s32 %v7827, 64
  %v8094 = vadd.s32 %v7834, 64
  %v8095 = vadd.s32 %v7841, 64
  %v8096 = vadd.s32 %v7848, 64
  %v8097 = vadd.s32 %v7855, 64
  %v8098 = vadd.s32 %v7862, 64
  %v8099 = vadd.s32 %v7869, 64
  %v8100 = vadd.s32 %v7876, 64
  %v8101 = vadd.s32 %v7883, 64
  %v8102 = vadd.s32 %v7890, 64
  %v8103 = vadd.s32 %v7897, 64
  %v8104 = vadd.s32 %v7904, 64
  %v8105 = vadd.s32 %v7911, 64
  %v8106 = vadd.s32 %v7918, 64
  %v8107 = vadd.s32 %v7925, 64
  %v8108 = vadd.s32 %v7932, 64
  %v8109 = vadd.s32 %v7939, 64
  %v8110 = vadd.s32 %v7946, 64
  %v8111 = vadd.s32 %v7953, 64
  %v8112 = vadd.s32 %v7960, 64
  %v8113 = vadd.s32 %v7967, 64
  %v8114 = vadd.s32 %v7974, 64
  %v8115 = vadd.s32 %v7981, 64
  %v8116 = vadd.s32 %v7988, 64
  %v8117 = vsel %vm8053, %v8085, %v7771
  %v8118 = vsel %vm8054, %v8086, %v7778
  %v8119 = vsel %vm8055, %v8087, %v7785
  %v8120 = vsel %vm8056, %v8088, %v7792
  %v8121 = vsel %vm8057, %v8089, %v7799
  %v8122 = vsel %vm8058, %v8090, %v7806
  %v8123 = vsel %vm8059, %v8091, %v7813
  %v8124 = vsel %vm8060, %v8092, %v7820
  %v8125 = vsel %vm8061, %v8093, %v7827
  %v8126 = vsel %vm8062, %v8094, %v7834
  %v8127 = vsel %vm8063, %v8095, %v7841
  %v8128 = vsel %vm8064, %v8096, %v7848
  %v8129 = vsel %vm8065, %v8097, %v7855
  %v8130 = vsel %vm8066, %v8098, %v7862
  %v8131 = vsel %vm8067, %v8099, %v7869
  %v8132 = vsel %vm8068, %v8100, %v7876
  %v8133 = vsel %vm8069, %v8101, %v7883
  %v8134 = vsel %vm8070, %v8102, %v7890
  %v8135 = vsel %vm8071, %v8103, %v7897
  %v8136 = vsel %vm8072, %v8104, %v7904
  %v8137 = vsel %vm8073, %v8105, %v7911
  %v8138 = vsel %vm8074, %v8106, %v7918
  %v8139 = vsel %vm8075, %v8107, %v7925
  %v8140 = vsel %vm8076, %v8108, %v7932
  %v8141 = vsel %vm8077, %v8109, %v7939
  %v8142 = vsel %vm8078, %v8110, %v7946
  %v8143 = vsel %vm8079, %v8111, %v7953
  %v8144 = vsel %vm8080, %v8112, %v7960
  %v8145 = vsel %vm8081, %v8113, %v7967
  %v8146 = vsel %vm8082, %v8114, %v7974
  %v8147 = vsel %vm8083, %v8115, %v7981
  %v8148 = vsel %vm8084, %v8116, %v7988
  %vm8149 = vcmp.eq.s32.totalorder %v8117, %v3324
  %vm8150 = vcmp.eq.s32.totalorder %v8118, %v3324
  %vm8151 = vcmp.eq.s32.totalorder %v8119, %v3324
  %vm8152 = vcmp.eq.s32.totalorder %v8120, %v3324
  %vm8153 = vcmp.eq.s32.totalorder %v8121, %v3324
  %vm8154 = vcmp.eq.s32.totalorder %v8122, %v3324
  %vm8155 = vcmp.eq.s32.totalorder %v8123, %v3324
  %vm8156 = vcmp.eq.s32.totalorder %v8124, %v3324
  %vm8157 = vcmp.eq.s32.totalorder %v8125, %v3324
  %vm8158 = vcmp.eq.s32.totalorder %v8126, %v3324
  %vm8159 = vcmp.eq.s32.totalorder %v8127, %v3324
  %vm8160 = vcmp.eq.s32.totalorder %v8128, %v3324
  %vm8161 = vcmp.eq.s32.totalorder %v8129, %v3324
  %vm8162 = vcmp.eq.s32.totalorder %v8130, %v3324
  %vm8163 = vcmp.eq.s32.totalorder %v8131, %v3324
  %vm8164 = vcmp.eq.s32.totalorder %v8132, %v3324
  %vm8165 = vcmp.eq.s32.totalorder %v8133, %v3324
  %vm8166 = vcmp.eq.s32.totalorder %v8134, %v3324
  %vm8167 = vcmp.eq.s32.totalorder %v8135, %v3324
  %vm8168 = vcmp.eq.s32.totalorder %v8136, %v3324
  %vm8169 = vcmp.eq.s32.totalorder %v8137, %v3324
  %vm8170 = vcmp.eq.s32.totalorder %v8138, %v3324
  %vm8171 = vcmp.eq.s32.totalorder %v8139, %v3324
  %vm8172 = vcmp.eq.s32.totalorder %v8140, %v3324
  %vm8173 = vcmp.eq.s32.totalorder %v8141, %v3324
  %vm8174 = vcmp.eq.s32.totalorder %v8142, %v3324
  %vm8175 = vcmp.eq.s32.totalorder %v8143, %v3324
  %vm8176 = vcmp.eq.s32.totalorder %v8144, %v3324
  %vm8177 = vcmp.eq.s32.totalorder %v8145, %v3324
  %vm8178 = vcmp.eq.s32.totalorder %v8146, %v3324
  %vm8179 = vcmp.eq.s32.totalorder %v8147, %v3324
  %vm8180 = vcmp.eq.s32.totalorder %v8148, %v3324
  %v8181 = vsel %vm8149, 1, 0
  %v8182 = vsel %vm8150, 1, 0
  %v8183 = vsel %vm8151, 1, 0
  %v8184 = vsel %vm8152, 1, 0
  %v8185 = vsel %vm8153, 1, 0
  %v8186 = vsel %vm8154, 1, 0
  %v8187 = vsel %vm8155, 1, 0
  %v8188 = vsel %vm8156, 1, 0
  %v8189 = vsel %vm8157, 1, 0
  %v8190 = vsel %vm8158, 1, 0
  %v8191 = vsel %vm8159, 1, 0
  %v8192 = vsel %vm8160, 1, 0
  %v8193 = vsel %vm8161, 1, 0
  %v8194 = vsel %vm8162, 1, 0
  %v8195 = vsel %vm8163, 1, 0
  %v8196 = vsel %vm8164, 1, 0
  %v8197 = vsel %vm8165, 1, 0
  %v8198 = vsel %vm8166, 1, 0
  %v8199 = vsel %vm8167, 1, 0
  %v8200 = vsel %vm8168, 1, 0
  %v8201 = vsel %vm8169, 1, 0
  %v8202 = vsel %vm8170, 1, 0
  %v8203 = vsel %vm8171, 1, 0
  %v8204 = vsel %vm8172, 1, 0
  %v8205 = vsel %vm8173, 1, 0
  %v8206 = vsel %vm8174, 1, 0
  %v8207 = vsel %vm8175, 1, 0
  %v8208 = vsel %vm8176, 1, 0
  %v8209 = vsel %vm8177, 1, 0
  %v8210 = vsel %vm8178, 1, 0
  %v8211 = vsel %vm8179, 1, 0
  %v8212 = vsel %vm8180, 1, 0
  %v8213 = vcvt.s32.f32 %v8181
  %v8214 = vcvt.s32.f32 %v8182
  %v8215 = vcvt.s32.f32 %v8183
  %v8216 = vcvt.s32.f32 %v8184
  %v8217 = vcvt.s32.f32 %v8185
  %v8218 = vcvt.s32.f32 %v8186
  %v8219 = vcvt.s32.f32 %v8187
  %v8220 = vcvt.s32.f32 %v8188
  %v8221 = vcvt.s32.f32 %v8189
  %v8222 = vcvt.s32.f32 %v8190
  %v8223 = vcvt.s32.f32 %v8191
  %v8224 = vcvt.s32.f32 %v8192
  %v8225 = vcvt.s32.f32 %v8193
  %v8226 = vcvt.s32.f32 %v8194
  %v8227 = vcvt.s32.f32 %v8195
  %v8228 = vcvt.s32.f32 %v8196
  %v8229 = vcvt.s32.f32 %v8197
  %v8230 = vcvt.s32.f32 %v8198
  %v8231 = vcvt.s32.f32 %v8199
  %v8232 = vcvt.s32.f32 %v8200
  %v8233 = vcvt.s32.f32 %v8201
  %v8234 = vcvt.s32.f32 %v8202
  %v8235 = vcvt.s32.f32 %v8203
  %v8236 = vcvt.s32.f32 %v8204
  %v8237 = vcvt.s32.f32 %v8205
  %v8238 = vcvt.s32.f32 %v8206
  %v8239 = vcvt.s32.f32 %v8207
  %v8240 = vcvt.s32.f32 %v8208
  %v8241 = vcvt.s32.f32 %v8209
  %v8242 = vcvt.s32.f32 %v8210
  %v8243 = vcvt.s32.f32 %v8211
  %v8244 = vcvt.s32.f32 %v8212
  %vm8245 = vcmp.lt.s32.totalorder %v3324, 0
  %v8246 = vsub.s32 0, %v3324
  %v8247 = vsel %vm8245, %v8246, %v3324
  %v8248 = vshrl.u32 %v8247, 6
  %v8249 = vand.u32 %v8247, 63
  %v8250 = vsub.s32 0, %v8249
  %v8251 = vsel %vm8245, %v8250, %v8249
  %vm8252 = vcmp.lt.s32.totalorder %v3421, 0
  %v8253 = vsub.s32 0, %v3421
  %v8254 = vsel %vm8252, %v8253, %v3421
  %v8255 = vshrl.u32 %v8254, 6
  %v8256 = vand.u32 %v8254, 63
  %v8257 = vsub.s32 0, %v8256
  %v8258 = vsel %vm8252, %v8257, %v8256
  %vm8259 = vcmp.ne.s32.totalorder %v8251, 0
  %vm8260 = vcmp.ne.s32.totalorder %v8258, 0
  %vm8261 = vcmp.lt.s32.totalorder %v8251, 0
  %vm8262 = vcmp.lt.s32.totalorder %v8258, 0
  %vm8263 = vmand %vm8261, %vm8259
  %vm8264 = vmand %vm8262, %vm8260
  %v8265 = vadd.s32 %v8251, 64
  %v8266 = vadd.s32 %v8258, 64
  %v8267 = vsel %vm8263, %v8265, %v8251
  %v8268 = vsel %vm8264, %v8266, %v8258
  %vm8269 = vcmp.eq.s32.totalorder %v2907, %v8267
  %vm8270 = vcmp.eq.s32.totalorder %v2907, %v8268
  %vm8271 = vcmp.eq.s32.totalorder %v2908, %v8267
  %vm8272 = vcmp.eq.s32.totalorder %v2908, %v8268
  %vm8273 = vcmp.eq.s32.totalorder %v2909, %v8267
  %vm8274 = vcmp.eq.s32.totalorder %v2909, %v8268
  %vm8275 = vcmp.eq.s32.totalorder %v2910, %v8267
  %vm8276 = vcmp.eq.s32.totalorder %v2910, %v8268
  %vm8277 = vcmp.eq.s32.totalorder %v2911, %v8267
  %vm8278 = vcmp.eq.s32.totalorder %v2911, %v8268
  %vm8279 = vcmp.eq.s32.totalorder %v2912, %v8267
  %vm8280 = vcmp.eq.s32.totalorder %v2912, %v8268
  %vm8281 = vcmp.eq.s32.totalorder %v2913, %v8267
  %vm8282 = vcmp.eq.s32.totalorder %v2913, %v8268
  %vm8283 = vcmp.eq.s32.totalorder %v2914, %v8267
  %vm8284 = vcmp.eq.s32.totalorder %v2914, %v8268
  %v8285 = vsel %vm8269, 1, 0
  %v8286 = vsel %vm8270, 1, 0
  %v8287 = vsel %vm8271, 1, 0
  %v8288 = vsel %vm8272, 1, 0
  %v8289 = vsel %vm8273, 1, 0
  %v8290 = vsel %vm8274, 1, 0
  %v8291 = vsel %vm8275, 1, 0
  %v8292 = vsel %vm8276, 1, 0
  %v8293 = vsel %vm8277, 1, 0
  %v8294 = vsel %vm8278, 1, 0
  %v8295 = vsel %vm8279, 1, 0
  %v8296 = vsel %vm8280, 1, 0
  %v8297 = vsel %vm8281, 1, 0
  %v8298 = vsel %vm8282, 1, 0
  %v8299 = vsel %vm8283, 1, 0
  %v8300 = vsel %vm8284, 1, 0
  %v8301 = vcvt.s32.f32 %v8285
  %v8302 = vcvt.s32.f32 %v8286
  %v8303 = vcvt.s32.f32 %v8287
  %v8304 = vcvt.s32.f32 %v8288
  %v8305 = vcvt.s32.f32 %v8289
  %v8306 = vcvt.s32.f32 %v8290
  %v8307 = vcvt.s32.f32 %v8291
  %v8308 = vcvt.s32.f32 %v8292
  %v8309 = vcvt.s32.f32 %v8293
  %v8310 = vcvt.s32.f32 %v8294
  %v8311 = vcvt.s32.f32 %v8295
  %v8312 = vcvt.s32.f32 %v8296
  %v8313 = vcvt.s32.f32 %v8297
  %v8314 = vcvt.s32.f32 %v8298
  %v8315 = vcvt.s32.f32 %v8299
  %v8316 = vcvt.s32.f32 %v8300
  %v8317 = vsel %vm6284, %v7415, 0.0
  %v8318 = vrot.slane %v8317, 4
  %v8319 = vadd.f32 %v8317, %v8318
  %v8320 = vrot.slane %v8319, 2
  %v8321 = vadd.f32 %v8319, %v8320
  %v8322 = vrot.slane %v8321, 1
  %v8323 = vadd.f32 %v8321, %v8322
  %v8324 = vsel %vm6284, %v7416, 0.0
  %v8325 = vrot.slane %v8324, 4
  %v8326 = vadd.f32 %v8324, %v8325
  %v8327 = vrot.slane %v8326, 2
  %v8328 = vadd.f32 %v8326, %v8327
  %v8329 = vrot.slane %v8328, 1
  %v8330 = vadd.f32 %v8328, %v8329
  %v8331 = vmul.f32 %v7415, %v7415
  %v8332 = vmul.f32 %v7416, %v7416
  %v8333 = vsel %vm6284, %v8331, 0.0
  %v8334 = vrot.slane %v8333, 4
  %v8335 = vadd.f32 %v8333, %v8334
  %v8336 = vrot.slane %v8335, 2
  %v8337 = vadd.f32 %v8335, %v8336
  %v8338 = vrot.slane %v8337, 1
  %v8339 = vadd.f32 %v8337, %v8338
  %v8340 = vsel %vm6284, %v8332, 0.0
  %v8341 = vrot.slane %v8340, 4
  %v8342 = vadd.f32 %v8340, %v8341
  %v8343 = vrot.slane %v8342, 2
  %v8344 = vadd.f32 %v8342, %v8343
  %v8345 = vrot.slane %v8344, 1
  %v8346 = vadd.f32 %v8344, %v8345
  %v8347 = vsel %vm6284, %v7761, 0.0
  %v8348 = vrot.slane %v8347, 4
  %v8349 = vadd.f32 %v8347, %v8348
  %v8350 = vrot.slane %v8349, 2
  %v8351 = vadd.f32 %v8349, %v8350
  %v8352 = vrot.slane %v8351, 1
  %v8353 = vadd.f32 %v8351, %v8352
  %v8354 = vsel %vm6284, %v7762, 0.0
  %v8355 = vrot.slane %v8354, 4
  %v8356 = vadd.f32 %v8354, %v8355
  %v8357 = vrot.slane %v8356, 2
  %v8358 = vadd.f32 %v8356, %v8357
  %v8359 = vrot.slane %v8358, 1
  %v8360 = vadd.f32 %v8358, %v8359
  %v8361 = vadd.f32 %v8323, %v8353
  %v8362 = vadd.f32 %v8330, %v8360
  %v8363 = vmul.f32 %v7761, %v7761
  %v8364 = vmul.f32 %v7762, %v7762
  %v8365 = vsel %vm6284, %v8363, 0.0
  %v8366 = vrot.slane %v8365, 4
  %v8367 = vadd.f32 %v8365, %v8366
  %v8368 = vrot.slane %v8367, 2
  %v8369 = vadd.f32 %v8367, %v8368
  %v8370 = vrot.slane %v8369, 1
  %v8371 = vadd.f32 %v8369, %v8370
  %v8372 = vsel %vm6284, %v8364, 0.0
  %v8373 = vrot.slane %v8372, 4
  %v8374 = vadd.f32 %v8372, %v8373
  %v8375 = vrot.slane %v8374, 2
  %v8376 = vadd.f32 %v8374, %v8375
  %v8377 = vrot.slane %v8376, 1
  %v8378 = vadd.f32 %v8376, %v8377
  %v8379 = vadd.f32 %v8339, %v8371
  %v8380 = vadd.f32 %v8346, %v8378
  %8381 = vmatprep.subr.mxu0 0.0
  %8382 = vmatpush1.msra.mxu0 %v8213
  %8383 = vmatprep.subr.mxu0 0.0
  %8384 = vmatpush1.msra.mxu0 %v8214
  %8385 = vmatprep.subr.mxu0 0.0
  %8386 = vmatpush1.msra.mxu0 %v8215
  %8387 = vmatprep.subr.mxu0 0.0
  %8388 = vmatpush1.msra.mxu0 %v8216
  %8389 = vmatprep.subr.mxu0 0.0
  %8390 = vmatpush1.msra.mxu0 %v8217
  %8391 = vmatprep.subr.mxu0 0.0
  %8392 = vmatpush1.msra.mxu0 %v8218
  %8393 = vmatprep.subr.mxu0 0.0
  %8394 = vmatpush1.msra.mxu0 %v8219
  %8395 = vmatprep.subr.mxu0 0.0
  %8396 = vmatpush1.msra.mxu0 %v8220
  %8397 = vmatprep.subr.mxu0 0.0
  %8398 = vmatpush1.msra.mxu0 %v8221
  %8399 = vmatprep.subr.mxu0 0.0
  %8400 = vmatpush1.msra.mxu0 %v8222
  %8401 = vmatprep.subr.mxu0 0.0
  %8402 = vmatpush1.msra.mxu0 %v8223
  %8403 = vmatprep.subr.mxu0 0.0
  %8404 = vmatpush1.msra.mxu0 %v8224
  %8405 = vmatprep.subr.mxu0 0.0
  %8406 = vmatpush1.msra.mxu0 %v8225
  %8407 = vmatprep.subr.mxu0 0.0
  %8408 = vmatpush1.msra.mxu0 %v8226
  %8409 = vmatprep.subr.mxu0 0.0
  %8410 = vmatpush1.msra.mxu0 %v8227
  %8411 = vmatprep.subr.mxu0 0.0
  %8412 = vmatpush1.msra.mxu0 %v8228
  %8413 = vmatprep.subr.mxu0 0.0
  %8414 = vmatpush1.msra.mxu0 %v8229
  %8415 = vmatprep.subr.mxu0 0.0
  %8416 = vmatpush1.msra.mxu0 %v8230
  %8417 = vmatprep.subr.mxu0 0.0
  %8418 = vmatpush1.msra.mxu0 %v8231
  %8419 = vmatprep.subr.mxu0 0.0
  %8420 = vmatpush1.msra.mxu0 %v8232
  %8421 = vmatprep.subr.mxu0 0.0
  %8422 = vmatpush1.msra.mxu0 %v8233
  %8423 = vmatprep.subr.mxu0 0.0
  %8424 = vmatpush1.msra.mxu0 %v8234
  %8425 = vmatprep.subr.mxu0 0.0
  %8426 = vmatpush1.msra.mxu0 %v8235
  %8427 = vmatprep.subr.mxu0 0.0
  %8428 = vmatpush1.msra.mxu0 %v8236
  %8429 = vmatprep.subr.mxu0 0.0
  %8430 = vmatpush1.msra.mxu0 %v8237
  %8431 = vmatprep.subr.mxu0 0.0
  %8432 = vmatpush1.msra.mxu0 %v8238
  %8433 = vmatprep.subr.mxu0 0.0
  %8434 = vmatpush1.msra.mxu0 %v8239
  %8435 = vmatprep.subr.mxu0 0.0
  %8436 = vmatpush1.msra.mxu0 %v8240
  %8437 = vmatprep.subr.mxu0 0.0
  %8438 = vmatpush1.msra.mxu0 %v8241
  %8439 = vmatprep.subr.mxu0 0.0
  %8440 = vmatpush1.msra.mxu0 %v8242
  %8441 = vmatprep.subr.mxu0 0.0
  %8442 = vmatpush1.msra.mxu0 %v8243
  %8443 = vmatprep.subr.mxu0 0.0
  %8444 = vmatpush1.msra.mxu0 %v8244
  %8445 = vmatprep.mubr.f32.mxu0 %v8362
  %8446 = vmatmul.mubr.f32.gmra.mrb[0].mxu0 %v8361
  %v8447 = vpop.f32.mrb[0].mxu0
  %v8448 = vadd.f32 0.0, %v8447
  %v8449 = vpop.f32.mrb[0].mxu0
  %8450 = vdwg.mxu0
  %8451 = vmatprep.subr.mxu0 0.0
  %8452 = vmatpush1.msra.mxu0 %v8213
  %8453 = vmatprep.subr.mxu0 0.0
  %8454 = vmatpush1.msra.mxu0 %v8214
  %8455 = vmatprep.subr.mxu0 0.0
  %8456 = vmatpush1.msra.mxu0 %v8215
  %8457 = vmatprep.subr.mxu0 0.0
  %8458 = vmatpush1.msra.mxu0 %v8216
  %8459 = vmatprep.subr.mxu0 0.0
  %8460 = vmatpush1.msra.mxu0 %v8217
  %8461 = vmatprep.subr.mxu0 0.0
  %8462 = vmatpush1.msra.mxu0 %v8218
  %8463 = vmatprep.subr.mxu0 0.0
  %8464 = vmatpush1.msra.mxu0 %v8219
  %8465 = vmatprep.subr.mxu0 0.0
  %8466 = vmatpush1.msra.mxu0 %v8220
  %8467 = vmatprep.subr.mxu0 0.0
  %8468 = vmatpush1.msra.mxu0 %v8221
  %8469 = vmatprep.subr.mxu0 0.0
  %8470 = vmatpush1.msra.mxu0 %v8222
  %8471 = vmatprep.subr.mxu0 0.0
  %8472 = vmatpush1.msra.mxu0 %v8223
  %8473 = vmatprep.subr.mxu0 0.0
  %8474 = vmatpush1.msra.mxu0 %v8224
  %8475 = vmatprep.subr.mxu0 0.0
  %8476 = vmatpush1.msra.mxu0 %v8225
  %8477 = vmatprep.subr.mxu0 0.0
  %8478 = vmatpush1.msra.mxu0 %v8226
  %8479 = vmatprep.subr.mxu0 0.0
  %8480 = vmatpush1.msra.mxu0 %v8227
  %8481 = vmatprep.subr.mxu0 0.0
  %8482 = vmatpush1.msra.mxu0 %v8228
  %8483 = vmatprep.subr.mxu0 0.0
  %8484 = vmatpush1.msra.mxu0 %v8229
  %8485 = vmatprep.subr.mxu0 0.0
  %8486 = vmatpush1.msra.mxu0 %v8230
  %8487 = vmatprep.subr.mxu0 0.0
  %8488 = vmatpush1.msra.mxu0 %v8231
  %8489 = vmatprep.subr.mxu0 0.0
  %8490 = vmatpush1.msra.mxu0 %v8232
  %8491 = vmatprep.subr.mxu0 0.0
  %8492 = vmatpush1.msra.mxu0 %v8233
  %8493 = vmatprep.subr.mxu0 0.0
  %8494 = vmatpush1.msra.mxu0 %v8234
  %8495 = vmatprep.subr.mxu0 0.0
  %8496 = vmatpush1.msra.mxu0 %v8235
  %8497 = vmatprep.subr.mxu0 0.0
  %8498 = vmatpush1.msra.mxu0 %v8236
  %8499 = vmatprep.subr.mxu0 0.0
  %8500 = vmatpush1.msra.mxu0 %v8237
  %8501 = vmatprep.subr.mxu0 0.0
  %8502 = vmatpush1.msra.mxu0 %v8238
  %8503 = vmatprep.subr.mxu0 0.0
  %8504 = vmatpush1.msra.mxu0 %v8239
  %8505 = vmatprep.subr.mxu0 0.0
  %8506 = vmatpush1.msra.mxu0 %v8240
  %8507 = vmatprep.subr.mxu0 0.0
  %8508 = vmatpush1.msra.mxu0 %v8241
  %8509 = vmatprep.subr.mxu0 0.0
  %8510 = vmatpush1.msra.mxu0 %v8242
  %8511 = vmatprep.subr.mxu0 0.0
  %8512 = vmatpush1.msra.mxu0 %v8243
  %8513 = vmatprep.subr.mxu0 0.0
  %8514 = vmatpush1.msra.mxu0 %v8244
  %8515 = vmatprep.mubr.f32.mxu0 %v8380
  %8516 = vmatmul.mubr.f32.gmra.mrb[0].mxu0 %v8379
  %v8517 = vpop.f32.mrb[0].mxu0
  %v8518 = vadd.f32 0.0, %v8517
  %v8519 = vpop.f32.mrb[0].mxu0
  %8520 = vdwg.mxu0
  %v8521 = vrcp.pop 32.0
  %v8522 = vmul.f32 %v8448, %v8521
  %v8523 = vmul.f32 %v8518, %v8521
  %v8524 = vmul.f32 %v8522, %v8522
  %v8525 = vsub.f32 %v8523, %v8524
  %v8526 = vadd.f32 %v8525, 1e-05
  %v8527 = vrsqrt.pop %v8526
  %v8528 = vmul.f32 %v7763, %v8527
  %v8529 = vmul.f32 %v8522, %v8528
  %v8530 = vsub.f32 %v7764, %v8529
  %v8532 = vsel %vm112, %v8528, 0
  %8534 = vmatprep.subr.mxu0 %v8302
  %8535 = vmatpush1.msra.mxu0 %v8301
  %8536 = vmatprep.subr.mxu0 %v8304
  %8537 = vmatpush1.msra.mxu0 %v8303
  %8538 = vmatprep.subr.mxu0 %v8306
  %8539 = vmatpush1.msra.mxu0 %v8305
  %8540 = vmatprep.subr.mxu0 %v8308
  %8541 = vmatpush1.msra.mxu0 %v8307
  %8542 = vmatprep.subr.mxu0 %v8310
  %8543 = vmatpush1.msra.mxu0 %v8309
  %8544 = vmatprep.subr.mxu0 %v8312
  %8545 = vmatpush1.msra.mxu0 %v8311
  %8546 = vmatprep.subr.mxu0 %v8314
  %8547 = vmatpush1.msra.mxu0 %v8313
  %8548 = vmatprep.subr.mxu0 %v8316
  %8549 = vmatpush1.msra.mxu0 %v8315
  %8550 = vmatprep.subr.mxu0 0.0
  %8551 = vmatpush1.msra.mxu0 0.0
  %8552 = vmatprep.subr.mxu0 0.0
  %8553 = vmatpush1.msra.mxu0 0.0
  %8554 = vmatprep.subr.mxu0 0.0
  %8555 = vmatpush1.msra.mxu0 0.0
  %8556 = vmatprep.subr.mxu0 0.0
  %8557 = vmatpush1.msra.mxu0 0.0
  %8558 = vmatprep.subr.mxu0 0.0
  %8559 = vmatpush1.msra.mxu0 0.0
  %8560 = vmatprep.subr.mxu0 0.0
  %8561 = vmatpush1.msra.mxu0 0.0
  %8562 = vmatprep.subr.mxu0 0.0
  %8563 = vmatpush1.msra.mxu0 0.0
  %8564 = vmatprep.subr.mxu0 0.0
  %8565 = vmatpush1.msra.mxu0 0.0
  %8566 = vmatprep.subr.mxu0 0.0
  %8567 = vmatpush1.msra.mxu0 0.0
  %8568 = vmatprep.subr.mxu0 0.0
  %8569 = vmatpush1.msra.mxu0 0.0
  %8570 = vmatprep.subr.mxu0 0.0
  %8571 = vmatpush1.msra.mxu0 0.0
  %8572 = vmatprep.subr.mxu0 0.0
  %8573 = vmatpush1.msra.mxu0 0.0
  %8574 = vmatprep.subr.mxu0 0.0
  %8575 = vmatpush1.msra.mxu0 0.0
  %8576 = vmatprep.subr.mxu0 0.0
  %8577 = vmatpush1.msra.mxu0 0.0
  %8578 = vmatprep.subr.mxu0 0.0
  %8579 = vmatpush1.msra.mxu0 0.0
  %8580 = vmatprep.subr.mxu0 0.0
  %8581 = vmatpush1.msra.mxu0 0.0
  %8582 = vmatprep.subr.mxu0 0.0
  %8583 = vmatpush1.msra.mxu0 0.0
  %8584 = vmatprep.subr.mxu0 0.0
  %8585 = vmatpush1.msra.mxu0 0.0
  %8586 = vmatprep.subr.mxu0 0.0
  %8587 = vmatpush1.msra.mxu0 0.0
  %8588 = vmatprep.subr.mxu0 0.0
  %8589 = vmatpush1.msra.mxu0 0.0
  %8590 = vmatprep.subr.mxu0 0.0
  %8591 = vmatpush1.msra.mxu0 0.0
  %8592 = vmatprep.subr.mxu0 0.0
  %8593 = vmatpush1.msra.mxu0 0.0
  %8594 = vmatprep.subr.mxu0 0.0
  %8595 = vmatpush1.msra.mxu0 0.0
  %8596 = vmatprep.subr.mxu0 0.0
  %8597 = vmatpush1.msra.mxu0 0.0
  %8598 = vmatprep.mubr.f32.mxu0 0.0
  %8599 = vmatmul.mubr.f32.gmra.mrb[0].mxu0 %v8532
  %v8600 = vpop.f32.mrb[0].mxu0
  %v8601 = vadd.f32 0.0, %v8600
  %v8602 = vpop.f32.mrb[0].mxu0
  %v8603 = vadd.f32 0.0, %v8602
  %8604 = vdwg.mxu0
  %v8606 = vsel %vm112, %v8530, 0
  %8608 = vmatprep.subr.mxu0 %v8302
  %8609 = vmatpush1.msra.mxu0 %v8301
  %8610 = vmatprep.subr.mxu0 %v8304
  %8611 = vmatpush1.msra.mxu0 %v8303
  %8612 = vmatprep.subr.mxu0 %v8306
  %8613 = vmatpush1.msra.mxu0 %v8305
  %8614 = vmatprep.subr.mxu0 %v8308
  %8615 = vmatpush1.msra.mxu0 %v8307
  %8616 = vmatprep.subr.mxu0 %v8310
  %8617 = vmatpush1.msra.mxu0 %v8309
  %8618 = vmatprep.subr.mxu0 %v8312
  %8619 = vmatpush1.msra.mxu0 %v8311
  %8620 = vmatprep.subr.mxu0 %v8314
  %8621 = vmatpush1.msra.mxu0 %v8313
  %8622 = vmatprep.subr.mxu0 %v8316
  %8623 = vmatpush1.msra.mxu0 %v8315
  %8624 = vmatprep.subr.mxu0 0.0
  %8625 = vmatpush1.msra.mxu0 0.0
  %8626 = vmatprep.subr.mxu0 0.0
  %8627 = vmatpush1.msra.mxu0 0.0
  %8628 = vmatprep.subr.mxu0 0.0
  %8629 = vmatpush1.msra.mxu0 0.0
  %8630 = vmatprep.subr.mxu0 0.0
  %8631 = vmatpush1.msra.mxu0 0.0
  %8632 = vmatprep.subr.mxu0 0.0
  %8633 = vmatpush1.msra.mxu0 0.0
  %8634 = vmatprep.subr.mxu0 0.0
  %8635 = vmatpush1.msra.mxu0 0.0
  %8636 = vmatprep.subr.mxu0 0.0
  %8637 = vmatpush1.msra.mxu0 0.0
  %8638 = vmatprep.subr.mxu0 0.0
  %8639 = vmatpush1.msra.mxu0 0.0
  %8640 = vmatprep.subr.mxu0 0.0
  %8641 = vmatpush1.msra.mxu0 0.0
  %8642 = vmatprep.subr.mxu0 0.0
  %8643 = vmatpush1.msra.mxu0 0.0
  %8644 = vmatprep.subr.mxu0 0.0
  %8645 = vmatpush1.msra.mxu0 0.0
  %8646 = vmatprep.subr.mxu0 0.0
  %8647 = vmatpush1.msra.mxu0 0.0
  %8648 = vmatprep.subr.mxu0 0.0
  %8649 = vmatpush1.msra.mxu0 0.0
  %8650 = vmatprep.subr.mxu0 0.0
  %8651 = vmatpush1.msra.mxu0 0.0
  %8652 = vmatprep.subr.mxu0 0.0
  %8653 = vmatpush1.msra.mxu0 0.0
  %8654 = vmatprep.subr.mxu0 0.0
  %8655 = vmatpush1.msra.mxu0 0.0
  %8656 = vmatprep.subr.mxu0 0.0
  %8657 = vmatpush1.msra.mxu0 0.0
  %8658 = vmatprep.subr.mxu0 0.0
  %8659 = vmatpush1.msra.mxu0 0.0
  %8660 = vmatprep.subr.mxu0 0.0
  %8661 = vmatpush1.msra.mxu0 0.0
  %8662 = vmatprep.subr.mxu0 0.0
  %8663 = vmatpush1.msra.mxu0 0.0
  %8664 = vmatprep.subr.mxu0 0.0
  %8665 = vmatpush1.msra.mxu0 0.0
  %8666 = vmatprep.subr.mxu0 0.0
  %8667 = vmatpush1.msra.mxu0 0.0
  %8668 = vmatprep.subr.mxu0 0.0
  %8669 = vmatpush1.msra.mxu0 0.0
  %8670 = vmatprep.subr.mxu0 0.0
  %8671 = vmatpush1.msra.mxu0 0.0
  %8672 = vmatprep.mubr.f32.mxu0 0.0
  %8673 = vmatmul.mubr.f32.gmra.mrb[0].mxu0 %v8606
  %v8674 = vpop.f32.mrb[0].mxu0
  %v8675 = vadd.f32 0.0, %v8674
  %v8676 = vpop.f32.mrb[0].mxu0
  %v8677 = vadd.f32 0.0, %v8676
  %8678 = vdwg.mxu0
  %v8679 = vlaneseq
  %v8680 = vshrl.u32 %v8679, 7
  %v8681 = vsub.s32 0, %v8680
  %v8682 = vrot.slane %v8601, %v8681
  %v8683 = vlaneseq
  %v8684 = vshrl.u32 %v8683, 7
  %v8685 = vsub.s32 0, %v8684
  %v8686 = vrot.slane %v8603, %v8685
  %v8687 = vmul.f32 %v7415, %v8682
  %v8688 = vmul.f32 %v7416, %v8686
  %v8689 = vlaneseq
  %v8690 = vshrl.u32 %v8689, 7
  %v8691 = vsub.s32 0, %v8690
  %v8692 = vrot.slane %v8675, %v8691
  %v8693 = vlaneseq
  %v8694 = vshrl.u32 %v8693, 7
  %v8695 = vsub.s32 0, %v8694
  %v8696 = vrot.slane %v8677, %v8695
  %v8697 = vadd.f32 %v8687, %v8692
  %v8698 = vadd.f32 %v8688, %v8696
  %v8699 = vmul.f32 %v7761, %v8682
  %v8700 = vmul.f32 %v7762, %v8686
  %v8701 = vadd.f32 %v8699, %v8692
  %v8702 = vadd.f32 %v8700, %v8696
  %vm8703 = vcmp.gt.f32.partialorder %v8697, 0.0
  %vm8704 = vcmp.gt.f32.partialorder %v8698, 0.0
  %v8705 = vmul.f32 %v8697, 0.2
  %v8706 = vmul.f32 %v8698, 0.2
  %v8707 = vsel %vm8703, %v8697, %v8705
  %v8708 = vsel %vm8704, %v8698, %v8706
  %vm8709 = vcmp.gt.f32.partialorder %v8701, 0.0
  %vm8710 = vcmp.gt.f32.partialorder %v8702, 0.0
  %v8711 = vmul.f32 %v8701, 0.2
  %v8712 = vmul.f32 %v8702, 0.2
  %v8713 = vsel %vm8709, %v8701, %v8711
  %v8714 = vsel %vm8710, %v8702, %v8712
  %v8715 = vpack.c.bf16 %v8707, %v8707
  %v8716 = vpack.c.bf16 %v8708, %v8708
  %v8717 = vpack.c.bf16 %v8713, %v8713
  %v8718 = vpack.c.bf16 %v8714, %v8714
  %v8719 = vld [vmem:[%s5] sm:$0x1]
  %vm8720 = vcmask 31744
  %v8722 = vsel %vm8720, %v8719, 0
  %vm8724 = vcmask 1041408
  %v8726 = vsel %vm8724, %v8715, 0
  %v8729 = vsel %vm8724, %v8716, 0
  %8731 = vmatprep.subr.bf16.mxu0 %v8729
  %8732 = vmatpush1.bf16.msra.mxu0 %v8726
  %8733 = vmatprep.subr.bf16.mxu0 0
  %8734 = vmatpush1.bf16.msra.mxu0 0
  %8735 = vmatprep.subr.bf16.mxu0 0
  %8736 = vmatpush1.bf16.msra.mxu0 0
  %8737 = vmatprep.subr.bf16.mxu0 0
  %8738 = vmatpush1.bf16.msra.mxu0 0
  %8739 = vmatprep.subr.bf16.mxu0 0
  %8740 = vmatpush1.bf16.msra.mxu0 0
  %8741 = vmatprep.subr.bf16.mxu0 0
  %8742 = vmatpush1.bf16.msra.mxu0 0
  %8743 = vmatprep.subr.bf16.mxu0 0
  %8744 = vmatpush1.bf16.msra.mxu0 0
  %8745 = vmatprep.subr.bf16.mxu0 0
  %8746 = vmatpush1.bf16.msra.mxu0 0
  %8747 = vmatprep.subr.bf16.mxu0 0
  %8748 = vmatpush1.bf16.msra.mxu0 0
  %8749 = vmatprep.subr.bf16.mxu0 0
  %8750 = vmatpush1.bf16.msra.mxu0 0
  %8751 = vmatprep.subr.bf16.mxu0 0
  %8752 = vmatpush1.bf16.msra.mxu0 0
  %8753 = vmatprep.subr.bf16.mxu0 0
  %8754 = vmatpush1.bf16.msra.mxu0 0
  %8755 = vmatprep.subr.bf16.mxu0 0
  %8756 = vmatpush1.bf16.msra.mxu0 0
  %8757 = vmatprep.subr.bf16.mxu0 0
  %8758 = vmatpush1.bf16.msra.mxu0 0
  %8759 = vmatprep.subr.bf16.mxu0 0
  %8760 = vmatpush1.bf16.msra.mxu0 0
  %8761 = vmatprep.subr.bf16.mxu0 0
  %8762 = vmatpush1.bf16.msra.mxu0 0
  %8763 = vmatprep.mubr.bf16.mxu0 0
  %8764 = vmatmul.mubr.bf16.gmra.mrb[0].mxu0 %v8722
  %v8765 = vpop.f32.mrb[0].mxu0
  %v8766 = vadd.f32 0.0, %v8765
  %v8767 = vpop.f32.mrb[0].mxu0
  %v8768 = vadd.f32 0.0, %v8767
  %v8769 = vpop.f32.mrb[0].mxu0
  %v8770 = vpop.f32.mrb[0].mxu0
  %8771 = vdwg.mxu0
  %v8772 = vpack.c.bf16 %v8766, %v8766
  %v8773 = vpack.c.bf16 %v8768, %v8768
  %v8774 = vld [vmem:[%s10] sm:$0xf]
  %v8775 = vld [vmem:[%s10 + $0x4] sm:$0xf]
  %v8776 = vld [vmem:[%s10 + $0x8] sm:$0xf]
  %v8777 = vld [vmem:[%s10 + $0xc] sm:$0xf]
  %v8778 = vld [vmem:[%s10 + $0x10] sm:$0xf]
  %v8779 = vld [vmem:[%s10 + $0x14] sm:$0xf]
  %v8780 = vld [vmem:[%s10 + $0x18] sm:$0xf]
  %v8781 = vld [vmem:[%s10 + $0x1c] sm:$0xf]
  %v8782 = vld [vmem:[%s10 + $0x20] sm:$0xf]
  %v8783 = vld [vmem:[%s10 + $0x24] sm:$0xf]
  %v8784 = vld [vmem:[%s10 + $0x28] sm:$0xf]
  %v8785 = vld [vmem:[%s10 + $0x2c] sm:$0xf]
  %v8786 = vld [vmem:[%s10 + $0x30] sm:$0xf]
  %v8787 = vld [vmem:[%s10 + $0x34] sm:$0xf]
  %v8788 = vld [vmem:[%s10 + $0x38] sm:$0xf]
  %v8789 = vld [vmem:[%s10 + $0x3c] sm:$0xf]
  %v8790 = vld [vmem:[%s10 + $0x40] sm:$0xf]
  %v8791 = vld [vmem:[%s10 + $0x44] sm:$0xf]
  %v8792 = vld [vmem:[%s10 + $0x48] sm:$0xf]
  %v8793 = vld [vmem:[%s10 + $0x4c] sm:$0xf]
  %v8794 = vld [vmem:[%s10 + $0x50] sm:$0xf]
  %v8795 = vld [vmem:[%s10 + $0x54] sm:$0xf]
  %v8796 = vld [vmem:[%s10 + $0x58] sm:$0xf]
  %v8797 = vld [vmem:[%s10 + $0x5c] sm:$0xf]
  %v8798 = vld [vmem:[%s10 + $0x60] sm:$0xf]
  %v8799 = vld [vmem:[%s10 + $0x64] sm:$0xf]
  %v8800 = vld [vmem:[%s10 + $0x68] sm:$0xf]
  %v8801 = vld [vmem:[%s10 + $0x6c] sm:$0xf]
  %v8802 = vld [vmem:[%s10 + $0x70] sm:$0xf]
  %v8803 = vld [vmem:[%s10 + $0x74] sm:$0xf]
  %v8804 = vld [vmem:[%s10 + $0x78] sm:$0xf]
  %v8805 = vld [vmem:[%s10 + $0x7c] sm:$0xf]
  %s8806 = scalar_lea.vmem %s5, 1
  %v8807 = vld [vmem:[%s8806] sm:$0x1]
  %v8809 = vsel %vm8720, %v8807, 0
  %8811 = vmatprep.subr.bf16.mxu0 %v8729
  %8812 = vmatpush1.bf16.msra.mxu0 %v8726
  %8813 = vmatprep.subr.bf16.mxu0 0
  %8814 = vmatpush1.bf16.msra.mxu0 0
  %8815 = vmatprep.subr.bf16.mxu0 0
  %8816 = vmatpush1.bf16.msra.mxu0 0
  %8817 = vmatprep.subr.bf16.mxu0 0
  %8818 = vmatpush1.bf16.msra.mxu0 0
  %8819 = vmatprep.subr.bf16.mxu0 0
  %8820 = vmatpush1.bf16.msra.mxu0 0
  %8821 = vmatprep.subr.bf16.mxu0 0
  %8822 = vmatpush1.bf16.msra.mxu0 0
  %8823 = vmatprep.subr.bf16.mxu0 0
  %8824 = vmatpush1.bf16.msra.mxu0 0
  %8825 = vmatprep.subr.bf16.mxu0 0
  %8826 = vmatpush1.bf16.msra.mxu0 0
  %8827 = vmatprep.subr.bf16.mxu0 0
  %8828 = vmatpush1.bf16.msra.mxu0 0
  %8829 = vmatprep.subr.bf16.mxu0 0
  %8830 = vmatpush1.bf16.msra.mxu0 0
  %8831 = vmatprep.subr.bf16.mxu0 0
  %8832 = vmatpush1.bf16.msra.mxu0 0
  %8833 = vmatprep.subr.bf16.mxu0 0
  %8834 = vmatpush1.bf16.msra.mxu0 0
  %8835 = vmatprep.subr.bf16.mxu0 0
  %8836 = vmatpush1.bf16.msra.mxu0 0
  %8837 = vmatprep.subr.bf16.mxu0 0
  %8838 = vmatpush1.bf16.msra.mxu0 0
  %8839 = vmatprep.subr.bf16.mxu0 0
  %8840 = vmatpush1.bf16.msra.mxu0 0
  %8841 = vmatprep.subr.bf16.mxu0 0
  %8842 = vmatpush1.bf16.msra.mxu0 0
  %8843 = vmatprep.mubr.bf16.mxu0 0
  %8844 = vmatmul.mubr.bf16.gmra.mrb[0].mxu0 %v8809
  %v8845 = vpop.f32.mrb[0].mxu0
  %v8846 = vadd.f32 0.0, %v8845
  %v8847 = vpop.f32.mrb[0].mxu0
  %v8848 = vadd.f32 0.0, %v8847
  %v8849 = vpop.f32.mrb[0].mxu0
  %v8850 = vpop.f32.mrb[0].mxu0
  %8851 = vdwg.mxu0
  %v8852 = vpack.c.bf16 %v8846, %v8846
  %v8853 = vpack.c.bf16 %v8848, %v8848
  %s8854 = scalar_lea.vmem %s10, 128
  %v8855 = vld [vmem:[%s8854] sm:$0xf]
  %v8856 = vld [vmem:[%s8854 + $0x4] sm:$0xf]
  %v8857 = vld [vmem:[%s8854 + $0x8] sm:$0xf]
  %v8858 = vld [vmem:[%s8854 + $0xc] sm:$0xf]
  %v8859 = vld [vmem:[%s8854 + $0x10] sm:$0xf]
  %v8860 = vld [vmem:[%s8854 + $0x14] sm:$0xf]
  %v8861 = vld [vmem:[%s8854 + $0x18] sm:$0xf]
  %v8862 = vld [vmem:[%s8854 + $0x1c] sm:$0xf]
  %v8863 = vld [vmem:[%s8854 + $0x20] sm:$0xf]
  %v8864 = vld [vmem:[%s8854 + $0x24] sm:$0xf]
  %v8865 = vld [vmem:[%s8854 + $0x28] sm:$0xf]
  %v8866 = vld [vmem:[%s8854 + $0x2c] sm:$0xf]
  %v8867 = vld [vmem:[%s8854 + $0x30] sm:$0xf]
  %v8868 = vld [vmem:[%s8854 + $0x34] sm:$0xf]
  %v8869 = vld [vmem:[%s8854 + $0x38] sm:$0xf]
  %v8870 = vld [vmem:[%s8854 + $0x3c] sm:$0xf]
  %v8871 = vld [vmem:[%s8854 + $0x40] sm:$0xf]
  %v8872 = vld [vmem:[%s8854 + $0x44] sm:$0xf]
  %v8873 = vld [vmem:[%s8854 + $0x48] sm:$0xf]
  %v8874 = vld [vmem:[%s8854 + $0x4c] sm:$0xf]
  %v8875 = vld [vmem:[%s8854 + $0x50] sm:$0xf]
  %v8876 = vld [vmem:[%s8854 + $0x54] sm:$0xf]
  %v8877 = vld [vmem:[%s8854 + $0x58] sm:$0xf]
  %v8878 = vld [vmem:[%s8854 + $0x5c] sm:$0xf]
  %v8879 = vld [vmem:[%s8854 + $0x60] sm:$0xf]
  %v8880 = vld [vmem:[%s8854 + $0x64] sm:$0xf]
  %v8881 = vld [vmem:[%s8854 + $0x68] sm:$0xf]
  %v8882 = vld [vmem:[%s8854 + $0x6c] sm:$0xf]
  %v8883 = vld [vmem:[%s8854 + $0x70] sm:$0xf]
  %v8884 = vld [vmem:[%s8854 + $0x74] sm:$0xf]
  %v8885 = vld [vmem:[%s8854 + $0x78] sm:$0xf]
  %v8886 = vld [vmem:[%s8854 + $0x7c] sm:$0xf]
  %v8919 = vunpack.c.l.b16 %v8855
  %v8920 = vunpack.c.l.b16 %v8856
  %v8921 = vunpack.c.l.b16 %v8857
  %v8922 = vunpack.c.l.b16 %v8858
  %v8923 = vunpack.c.l.b16 %v8859
  %v8924 = vunpack.c.l.b16 %v8860
  %v8925 = vunpack.c.l.b16 %v8861
  %v8926 = vunpack.c.l.b16 %v8862
  %v8927 = vunpack.c.l.b16 %v8863
  %v8928 = vunpack.c.l.b16 %v8864
  %v8929 = vunpack.c.l.b16 %v8865
  %v8930 = vunpack.c.l.b16 %v8866
  %v8931 = vunpack.c.l.b16 %v8867
  %v8932 = vunpack.c.l.b16 %v8868
  %v8933 = vunpack.c.l.b16 %v8869
  %v8934 = vunpack.c.l.b16 %v8870
  %v8935 = vunpack.c.l.b16 %v8871
  %v8936 = vunpack.c.l.b16 %v8872
  %v8937 = vunpack.c.l.b16 %v8873
  %v8938 = vunpack.c.l.b16 %v8874
  %v8939 = vunpack.c.l.b16 %v8875
  %v8940 = vunpack.c.l.b16 %v8876
  %v8941 = vunpack.c.l.b16 %v8877
  %v8942 = vunpack.c.l.b16 %v8878
  %v8943 = vunpack.c.l.b16 %v8879
  %v8944 = vunpack.c.l.b16 %v8880
  %v8945 = vunpack.c.l.b16 %v8881
  %v8946 = vunpack.c.l.b16 %v8882
  %v8947 = vunpack.c.l.b16 %v8883
  %v8948 = vunpack.c.l.b16 %v8884
  %v8949 = vunpack.c.l.b16 %v8885
  %v8950 = vunpack.c.l.b16 %v8886
  %v8951 = vpack.c.b16 %v8920, %v8919
  %v8952 = vpack.c.b16 %v8922, %v8921
  %v8953 = vpack.c.b16 %v8924, %v8923
  %v8954 = vpack.c.b16 %v8926, %v8925
  %v8955 = vpack.c.b16 %v8928, %v8927
  %v8956 = vpack.c.b16 %v8930, %v8929
  %v8957 = vpack.c.b16 %v8932, %v8931
  %v8958 = vpack.c.b16 %v8934, %v8933
  %v8959 = vpack.c.b16 %v8936, %v8935
  %v8960 = vpack.c.b16 %v8938, %v8937
  %v8961 = vpack.c.b16 %v8940, %v8939
  %v8962 = vpack.c.b16 %v8942, %v8941
  %v8963 = vpack.c.b16 %v8944, %v8943
  %v8964 = vpack.c.b16 %v8946, %v8945
  %v8965 = vpack.c.b16 %v8948, %v8947
  %v8966 = vpack.c.b16 %v8950, %v8949
  %8983 = vmatprep.subr.bf16.mxu0 0
  %8984 = vmatpush1.bf16.msra.mxu0 %v8951
  %8985 = vmatprep.subr.bf16.mxu0 0
  %8986 = vmatpush1.bf16.msra.mxu0 %v8952
  %8987 = vmatprep.subr.bf16.mxu0 0
  %8988 = vmatpush1.bf16.msra.mxu0 %v8953
  %8989 = vmatprep.subr.bf16.mxu0 0
  %8990 = vmatpush1.bf16.msra.mxu0 %v8954
  %8991 = vmatprep.subr.bf16.mxu0 0
  %8992 = vmatpush1.bf16.msra.mxu0 %v8955
  %8993 = vmatprep.subr.bf16.mxu0 0
  %8994 = vmatpush1.bf16.msra.mxu0 %v8956
  %8995 = vmatprep.subr.bf16.mxu0 0
  %8996 = vmatpush1.bf16.msra.mxu0 %v8957
  %8997 = vmatprep.subr.bf16.mxu0 0
  %8998 = vmatpush1.bf16.msra.mxu0 %v8958
  %8999 = vmatprep.subr.bf16.mxu0 0
  %9000 = vmatpush1.bf16.msra.mxu0 %v8959
  %9001 = vmatprep.subr.bf16.mxu0 0
  %9002 = vmatpush1.bf16.msra.mxu0 %v8960
  %9003 = vmatprep.subr.bf16.mxu0 0
  %9004 = vmatpush1.bf16.msra.mxu0 %v8961
  %9005 = vmatprep.subr.bf16.mxu0 0
  %9006 = vmatpush1.bf16.msra.mxu0 %v8962
  %9007 = vmatprep.subr.bf16.mxu0 0
  %9008 = vmatpush1.bf16.msra.mxu0 %v8963
  %9009 = vmatprep.subr.bf16.mxu0 0
  %9010 = vmatpush1.bf16.msra.mxu0 %v8964
  %9011 = vmatprep.subr.bf16.mxu0 0
  %9012 = vmatpush1.bf16.msra.mxu0 %v8965
  %9013 = vmatprep.subr.bf16.mxu0 0
  %9014 = vmatpush1.bf16.msra.mxu0 %v8966
  %9015 = vmatprep.mubr.bf16.mxu0 %v8853
  %9016 = vmatmul.mubr.bf16.gmra.mrb[0].mxu0 %v8852
  %v9017 = vpop.f32.mrb[0].mxu0
  %v9018 = vadd.f32 0.0, %v9017
  %v9019 = vpop.f32.mrb[0].mxu0
  %v9020 = vpop.f32.mrb[0].mxu0
  %v9021 = vpop.f32.mrb[0].mxu0
  %9022 = vdwg.mxu0
  %v9055 = vunpack.c.l.b16 %v8774
  %v9056 = vunpack.c.l.b16 %v8775
  %v9057 = vunpack.c.l.b16 %v8776
  %v9058 = vunpack.c.l.b16 %v8777
  %v9059 = vunpack.c.l.b16 %v8778
  %v9060 = vunpack.c.l.b16 %v8779
  %v9061 = vunpack.c.l.b16 %v8780
  %v9062 = vunpack.c.l.b16 %v8781
  %v9063 = vunpack.c.l.b16 %v8782
  %v9064 = vunpack.c.l.b16 %v8783
  %v9065 = vunpack.c.l.b16 %v8784
  %v9066 = vunpack.c.l.b16 %v8785
  %v9067 = vunpack.c.l.b16 %v8786
  %v9068 = vunpack.c.l.b16 %v8787
  %v9069 = vunpack.c.l.b16 %v8788
  %v9070 = vunpack.c.l.b16 %v8789
  %v9071 = vunpack.c.l.b16 %v8790
  %v9072 = vunpack.c.l.b16 %v8791
  %v9073 = vunpack.c.l.b16 %v8792
  %v9074 = vunpack.c.l.b16 %v8793
  %v9075 = vunpack.c.l.b16 %v8794
  %v9076 = vunpack.c.l.b16 %v8795
  %v9077 = vunpack.c.l.b16 %v8796
  %v9078 = vunpack.c.l.b16 %v8797
  %v9079 = vunpack.c.l.b16 %v8798
  %v9080 = vunpack.c.l.b16 %v8799
  %v9081 = vunpack.c.l.b16 %v8800
  %v9082 = vunpack.c.l.b16 %v8801
  %v9083 = vunpack.c.l.b16 %v8802
  %v9084 = vunpack.c.l.b16 %v8803
  %v9085 = vunpack.c.l.b16 %v8804
  %v9086 = vunpack.c.l.b16 %v8805
  %v9087 = vpack.c.b16 %v9056, %v9055
  %v9088 = vpack.c.b16 %v9058, %v9057
  %v9089 = vpack.c.b16 %v9060, %v9059
  %v9090 = vpack.c.b16 %v9062, %v9061
  %v9091 = vpack.c.b16 %v9064, %v9063
  %v9092 = vpack.c.b16 %v9066, %v9065
  %v9093 = vpack.c.b16 %v9068, %v9067
  %v9094 = vpack.c.b16 %v9070, %v9069
  %v9095 = vpack.c.b16 %v9072, %v9071
  %v9096 = vpack.c.b16 %v9074, %v9073
  %v9097 = vpack.c.b16 %v9076, %v9075
  %v9098 = vpack.c.b16 %v9078, %v9077
  %v9099 = vpack.c.b16 %v9080, %v9079
  %v9100 = vpack.c.b16 %v9082, %v9081
  %v9101 = vpack.c.b16 %v9084, %v9083
  %v9102 = vpack.c.b16 %v9086, %v9085
  %9119 = vmatprep.subr.bf16.mxu0 0
  %9120 = vmatpush1.bf16.msra.mxu0 %v9087
  %9121 = vmatprep.subr.bf16.mxu0 0
  %9122 = vmatpush1.bf16.msra.mxu0 %v9088
  %9123 = vmatprep.subr.bf16.mxu0 0
  %9124 = vmatpush1.bf16.msra.mxu0 %v9089
  %9125 = vmatprep.subr.bf16.mxu0 0
  %9126 = vmatpush1.bf16.msra.mxu0 %v9090
  %9127 = vmatprep.subr.bf16.mxu0 0
  %9128 = vmatpush1.bf16.msra.mxu0 %v9091
  %9129 = vmatprep.subr.bf16.mxu0 0
  %9130 = vmatpush1.bf16.msra.mxu0 %v9092
  %9131 = vmatprep.subr.bf16.mxu0 0
  %9132 = vmatpush1.bf16.msra.mxu0 %v9093
  %9133 = vmatprep.subr.bf16.mxu0 0
  %9134 = vmatpush1.bf16.msra.mxu0 %v9094
  %9135 = vmatprep.subr.bf16.mxu0 0
  %9136 = vmatpush1.bf16.msra.mxu0 %v9095
  %9137 = vmatprep.subr.bf16.mxu0 0
  %9138 = vmatpush1.bf16.msra.mxu0 %v9096
  %9139 = vmatprep.subr.bf16.mxu0 0
  %9140 = vmatpush1.bf16.msra.mxu0 %v9097
  %9141 = vmatprep.subr.bf16.mxu0 0
  %9142 = vmatpush1.bf16.msra.mxu0 %v9098
  %9143 = vmatprep.subr.bf16.mxu0 0
  %9144 = vmatpush1.bf16.msra.mxu0 %v9099
  %9145 = vmatprep.subr.bf16.mxu0 0
  %9146 = vmatpush1.bf16.msra.mxu0 %v9100
  %9147 = vmatprep.subr.bf16.mxu0 0
  %9148 = vmatpush1.bf16.msra.mxu0 %v9101
  %9149 = vmatprep.subr.bf16.mxu0 0
  %9150 = vmatpush1.bf16.msra.mxu0 %v9102
  %9151 = vmatprep.mubr.bf16.mxu0 %v8773
  %9152 = vmatmul.mubr.bf16.gmra.mrb[0].mxu0 %v8772
  %v9153 = vpop.f32.mrb[0].mxu0
  %v9154 = vadd.f32 %v9018, %v9153
  %v9155 = vpop.f32.mrb[0].mxu0
  %v9156 = vpop.f32.mrb[0].mxu0
  %v9157 = vpop.f32.mrb[0].mxu0
  %9158 = vdwg.mxu0
  %s9159 = scalar_lea.vmem %s5, 2
  %v9160 = vld [vmem:[%s9159] sm:$0x1]
  %v9162 = vsel %vm8720, %v9160, 0
  %9164 = vmatprep.subr.bf16.mxu0 %v8729
  %9165 = vmatpush1.bf16.msra.mxu0 %v8726
  %9166 = vmatprep.subr.bf16.mxu0 0
  %9167 = vmatpush1.bf16.msra.mxu0 0
  %9168 = vmatprep.subr.bf16.mxu0 0
  %9169 = vmatpush1.bf16.msra.mxu0 0
  %9170 = vmatprep.subr.bf16.mxu0 0
  %9171 = vmatpush1.bf16.msra.mxu0 0
  %9172 = vmatprep.subr.bf16.mxu0 0
  %9173 = vmatpush1.bf16.msra.mxu0 0
  %9174 = vmatprep.subr.bf16.mxu0 0
  %9175 = vmatpush1.bf16.msra.mxu0 0
  %9176 = vmatprep.subr.bf16.mxu0 0
  %9177 = vmatpush1.bf16.msra.mxu0 0
  %9178 = vmatprep.subr.bf16.mxu0 0
  %9179 = vmatpush1.bf16.msra.mxu0 0
  %9180 = vmatprep.subr.bf16.mxu0 0
  %9181 = vmatpush1.bf16.msra.mxu0 0
  %9182 = vmatprep.subr.bf16.mxu0 0
  %9183 = vmatpush1.bf16.msra.mxu0 0
  %9184 = vmatprep.subr.bf16.mxu0 0
  %9185 = vmatpush1.bf16.msra.mxu0 0
  %9186 = vmatprep.subr.bf16.mxu0 0
  %9187 = vmatpush1.bf16.msra.mxu0 0
  %9188 = vmatprep.subr.bf16.mxu0 0
  %9189 = vmatpush1.bf16.msra.mxu0 0
  %9190 = vmatprep.subr.bf16.mxu0 0
  %9191 = vmatpush1.bf16.msra.mxu0 0
  %9192 = vmatprep.subr.bf16.mxu0 0
  %9193 = vmatpush1.bf16.msra.mxu0 0
  %9194 = vmatprep.subr.bf16.mxu0 0
  %9195 = vmatpush1.bf16.msra.mxu0 0
  %9196 = vmatprep.mubr.bf16.mxu0 0
  %9197 = vmatmul.mubr.bf16.gmra.mrb[0].mxu0 %v9162
  %v9198 = vpop.f32.mrb[0].mxu0
  %v9199 = vadd.f32 0.0, %v9198
  %v9200 = vpop.f32.mrb[0].mxu0
  %v9201 = vadd.f32 0.0, %v9200
  %v9202 = vpop.f32.mrb[0].mxu0
  %v9203 = vpop.f32.mrb[0].mxu0
  %9204 = vdwg.mxu0
  %v9205 = vpack.c.bf16 %v9199, %v9199
  %v9206 = vpack.c.bf16 %v9201, %v9201
  %s9207 = scalar_lea.vmem %s10, 256
  %v9208 = vld [vmem:[%s9207] sm:$0xf]
  %v9209 = vld [vmem:[%s9207 + $0x4] sm:$0xf]
  %v9210 = vld [vmem:[%s9207 + $0x8] sm:$0xf]
  %v9211 = vld [vmem:[%s9207 + $0xc] sm:$0xf]
  %v9212 = vld [vmem:[%s9207 + $0x10] sm:$0xf]
  %v9213 = vld [vmem:[%s9207 + $0x14] sm:$0xf]
  %v9214 = vld [vmem:[%s9207 + $0x18] sm:$0xf]
  %v9215 = vld [vmem:[%s9207 + $0x1c] sm:$0xf]
  %v9216 = vld [vmem:[%s9207 + $0x20] sm:$0xf]
  %v9217 = vld [vmem:[%s9207 + $0x24] sm:$0xf]
  %v9218 = vld [vmem:[%s9207 + $0x28] sm:$0xf]
  %v9219 = vld [vmem:[%s9207 + $0x2c] sm:$0xf]
  %v9220 = vld [vmem:[%s9207 + $0x30] sm:$0xf]
  %v9221 = vld [vmem:[%s9207 + $0x34] sm:$0xf]
  %v9222 = vld [vmem:[%s9207 + $0x38] sm:$0xf]
  %v9223 = vld [vmem:[%s9207 + $0x3c] sm:$0xf]
  %v9224 = vld [vmem:[%s9207 + $0x40] sm:$0xf]
  %v9225 = vld [vmem:[%s9207 + $0x44] sm:$0xf]
  %v9226 = vld [vmem:[%s9207 + $0x48] sm:$0xf]
  %v9227 = vld [vmem:[%s9207 + $0x4c] sm:$0xf]
  %v9228 = vld [vmem:[%s9207 + $0x50] sm:$0xf]
  %v9229 = vld [vmem:[%s9207 + $0x54] sm:$0xf]
  %v9230 = vld [vmem:[%s9207 + $0x58] sm:$0xf]
  %v9231 = vld [vmem:[%s9207 + $0x5c] sm:$0xf]
  %v9232 = vld [vmem:[%s9207 + $0x60] sm:$0xf]
  %v9233 = vld [vmem:[%s9207 + $0x64] sm:$0xf]
  %v9234 = vld [vmem:[%s9207 + $0x68] sm:$0xf]
  %v9235 = vld [vmem:[%s9207 + $0x6c] sm:$0xf]
  %v9236 = vld [vmem:[%s9207 + $0x70] sm:$0xf]
  %v9237 = vld [vmem:[%s9207 + $0x74] sm:$0xf]
  %v9238 = vld [vmem:[%s9207 + $0x78] sm:$0xf]
  %v9239 = vld [vmem:[%s9207 + $0x7c] sm:$0xf]
  %v9272 = vunpack.c.l.b16 %v9208
  %v9273 = vunpack.c.l.b16 %v9209
  %v9274 = vunpack.c.l.b16 %v9210
  %v9275 = vunpack.c.l.b16 %v9211
  %v9276 = vunpack.c.l.b16 %v9212
  %v9277 = vunpack.c.l.b16 %v9213
  %v9278 = vunpack.c.l.b16 %v9214
  %v9279 = vunpack.c.l.b16 %v9215
  %v9280 = vunpack.c.l.b16 %v9216
  %v9281 = vunpack.c.l.b16 %v9217
  %v9282 = vunpack.c.l.b16 %v9218
  %v9283 = vunpack.c.l.b16 %v9219
  %v9284 = vunpack.c.l.b16 %v9220
  %v9285 = vunpack.c.l.b16 %v9221
  %v9286 = vunpack.c.l.b16 %v9222
  %v9287 = vunpack.c.l.b16 %v9223
  %v9288 = vunpack.c.l.b16 %v9224
  %v9289 = vunpack.c.l.b16 %v9225
  %v9290 = vunpack.c.l.b16 %v9226
  %v9291 = vunpack.c.l.b16 %v9227
  %v9292 = vunpack.c.l.b16 %v9228
  %v9293 = vunpack.c.l.b16 %v9229
  %v9294 = vunpack.c.l.b16 %v9230
  %v9295 = vunpack.c.l.b16 %v9231
  %v9296 = vunpack.c.l.b16 %v9232
  %v9297 = vunpack.c.l.b16 %v9233
  %v9298 = vunpack.c.l.b16 %v9234
  %v9299 = vunpack.c.l.b16 %v9235
  %v9300 = vunpack.c.l.b16 %v9236
  %v9301 = vunpack.c.l.b16 %v9237
  %v9302 = vunpack.c.l.b16 %v9238
  %v9303 = vunpack.c.l.b16 %v9239
  %v9304 = vpack.c.b16 %v9273, %v9272
  %v9305 = vpack.c.b16 %v9275, %v9274
  %v9306 = vpack.c.b16 %v9277, %v9276
  %v9307 = vpack.c.b16 %v9279, %v9278
  %v9308 = vpack.c.b16 %v9281, %v9280
  %v9309 = vpack.c.b16 %v9283, %v9282
  %v9310 = vpack.c.b16 %v9285, %v9284
  %v9311 = vpack.c.b16 %v9287, %v9286
  %v9312 = vpack.c.b16 %v9289, %v9288
  %v9313 = vpack.c.b16 %v9291, %v9290
  %v9314 = vpack.c.b16 %v9293, %v9292
  %v9315 = vpack.c.b16 %v9295, %v9294
  %v9316 = vpack.c.b16 %v9297, %v9296
  %v9317 = vpack.c.b16 %v9299, %v9298
  %v9318 = vpack.c.b16 %v9301, %v9300
  %v9319 = vpack.c.b16 %v9303, %v9302
  %9336 = vmatprep.subr.bf16.mxu0 0
  %9337 = vmatpush1.bf16.msra.mxu0 %v9304
  %9338 = vmatprep.subr.bf16.mxu0 0
  %9339 = vmatpush1.bf16.msra.mxu0 %v9305
  %9340 = vmatprep.subr.bf16.mxu0 0
  %9341 = vmatpush1.bf16.msra.mxu0 %v9306
  %9342 = vmatprep.subr.bf16.mxu0 0
  %9343 = vmatpush1.bf16.msra.mxu0 %v9307
  %9344 = vmatprep.subr.bf16.mxu0 0
  %9345 = vmatpush1.bf16.msra.mxu0 %v9308
  %9346 = vmatprep.subr.bf16.mxu0 0
  %9347 = vmatpush1.bf16.msra.mxu0 %v9309
  %9348 = vmatprep.subr.bf16.mxu0 0
  %9349 = vmatpush1.bf16.msra.mxu0 %v9310
  %9350 = vmatprep.subr.bf16.mxu0 0
  %9351 = vmatpush1.bf16.msra.mxu0 %v9311
  %9352 = vmatprep.subr.bf16.mxu0 0
  %9353 = vmatpush1.bf16.msra.mxu0 %v9312
  %9354 = vmatprep.subr.bf16.mxu0 0
  %9355 = vmatpush1.bf16.msra.mxu0 %v9313
  %9356 = vmatprep.subr.bf16.mxu0 0
  %9357 = vmatpush1.bf16.msra.mxu0 %v9314
  %9358 = vmatprep.subr.bf16.mxu0 0
  %9359 = vmatpush1.bf16.msra.mxu0 %v9315
  %9360 = vmatprep.subr.bf16.mxu0 0
  %9361 = vmatpush1.bf16.msra.mxu0 %v9316
  %9362 = vmatprep.subr.bf16.mxu0 0
  %9363 = vmatpush1.bf16.msra.mxu0 %v9317
  %9364 = vmatprep.subr.bf16.mxu0 0
  %9365 = vmatpush1.bf16.msra.mxu0 %v9318
  %9366 = vmatprep.subr.bf16.mxu0 0
  %9367 = vmatpush1.bf16.msra.mxu0 %v9319
  %9368 = vmatprep.mubr.bf16.mxu0 %v9206
  %9369 = vmatmul.mubr.bf16.gmra.mrb[0].mxu0 %v9205
  %v9370 = vpop.f32.mrb[0].mxu0
  %v9371 = vadd.f32 0.0, %v9370
  %v9372 = vpop.f32.mrb[0].mxu0
  %v9373 = vpop.f32.mrb[0].mxu0
  %v9374 = vpop.f32.mrb[0].mxu0
  %9375 = vdwg.mxu0
  %v9376 = vadd.f32 %v9154, %v9371
  %s9377 = scalar_lea.vmem %s5, 3
  %v9378 = vld [vmem:[%s9377] sm:$0x1]
  %v9380 = vsel %vm8720, %v9378, 0
  %9382 = vmatprep.subr.bf16.mxu0 %v8729
  %9383 = vmatpush1.bf16.msra.mxu0 %v8726
  %9384 = vmatprep.subr.bf16.mxu0 0
  %9385 = vmatpush1.bf16.msra.mxu0 0
  %9386 = vmatprep.subr.bf16.mxu0 0
  %9387 = vmatpush1.bf16.msra.mxu0 0
  %9388 = vmatprep.subr.bf16.mxu0 0
  %9389 = vmatpush1.bf16.msra.mxu0 0
  %9390 = vmatprep.subr.bf16.mxu0 0
  %9391 = vmatpush1.bf16.msra.mxu0 0
  %9392 = vmatprep.subr.bf16.mxu0 0
  %9393 = vmatpush1.bf16.msra.mxu0 0
  %9394 = vmatprep.subr.bf16.mxu0 0
  %9395 = vmatpush1.bf16.msra.mxu0 0
  %9396 = vmatprep.subr.bf16.mxu0 0
  %9397 = vmatpush1.bf16.msra.mxu0 0
  %9398 = vmatprep.subr.bf16.mxu0 0
  %9399 = vmatpush1.bf16.msra.mxu0 0
  %9400 = vmatprep.subr.bf16.mxu0 0
  %9401 = vmatpush1.bf16.msra.mxu0 0
  %9402 = vmatprep.subr.bf16.mxu0 0
  %9403 = vmatpush1.bf16.msra.mxu0 0
  %9404 = vmatprep.subr.bf16.mxu0 0
  %9405 = vmatpush1.bf16.msra.mxu0 0
  %9406 = vmatprep.subr.bf16.mxu0 0
  %9407 = vmatpush1.bf16.msra.mxu0 0
  %9408 = vmatprep.subr.bf16.mxu0 0
  %9409 = vmatpush1.bf16.msra.mxu0 0
  %9410 = vmatprep.subr.bf16.mxu0 0
  %9411 = vmatpush1.bf16.msra.mxu0 0
  %9412 = vmatprep.subr.bf16.mxu0 0
  %9413 = vmatpush1.bf16.msra.mxu0 0
  %9414 = vmatprep.mubr.bf16.mxu0 0
  %9415 = vmatmul.mubr.bf16.gmra.mrb[0].mxu0 %v9380
  %v9416 = vpop.f32.mrb[0].mxu0
  %v9417 = vadd.f32 0.0, %v9416
  %v9418 = vpop.f32.mrb[0].mxu0
  %v9419 = vadd.f32 0.0, %v9418
  %v9420 = vpop.f32.mrb[0].mxu0
  %v9421 = vpop.f32.mrb[0].mxu0
  %9422 = vdwg.mxu0
  %v9423 = vpack.c.bf16 %v9417, %v9417
  %v9424 = vpack.c.bf16 %v9419, %v9419
  %s9425 = scalar_lea.vmem %s10, 384
  %v9426 = vld [vmem:[%s9425] sm:$0xf]
  %v9427 = vld [vmem:[%s9425 + $0x4] sm:$0xf]
  %v9428 = vld [vmem:[%s9425 + $0x8] sm:$0xf]
  %v9429 = vld [vmem:[%s9425 + $0xc] sm:$0xf]
  %v9430 = vld [vmem:[%s9425 + $0x10] sm:$0xf]
  %v9431 = vld [vmem:[%s9425 + $0x14] sm:$0xf]
  %v9432 = vld [vmem:[%s9425 + $0x18] sm:$0xf]
  %v9433 = vld [vmem:[%s9425 + $0x1c] sm:$0xf]
  %v9434 = vld [vmem:[%s9425 + $0x20] sm:$0xf]
  %v9435 = vld [vmem:[%s9425 + $0x24] sm:$0xf]
  %v9436 = vld [vmem:[%s9425 + $0x28] sm:$0xf]
  %v9437 = vld [vmem:[%s9425 + $0x2c] sm:$0xf]
  %v9438 = vld [vmem:[%s9425 + $0x30] sm:$0xf]
  %v9439 = vld [vmem:[%s9425 + $0x34] sm:$0xf]
  %v9440 = vld [vmem:[%s9425 + $0x38] sm:$0xf]
  %v9441 = vld [vmem:[%s9425 + $0x3c] sm:$0xf]
  %v9442 = vld [vmem:[%s9425 + $0x40] sm:$0xf]
  %v9443 = vld [vmem:[%s9425 + $0x44] sm:$0xf]
  %v9444 = vld [vmem:[%s9425 + $0x48] sm:$0xf]
  %v9445 = vld [vmem:[%s9425 + $0x4c] sm:$0xf]
  %v9446 = vld [vmem:[%s9425 + $0x50] sm:$0xf]
  %v9447 = vld [vmem:[%s9425 + $0x54] sm:$0xf]
  %v9448 = vld [vmem:[%s9425 + $0x58] sm:$0xf]
  %v9449 = vld [vmem:[%s9425 + $0x5c] sm:$0xf]
  %v9450 = vld [vmem:[%s9425 + $0x60] sm:$0xf]
  %v9451 = vld [vmem:[%s9425 + $0x64] sm:$0xf]
  %v9452 = vld [vmem:[%s9425 + $0x68] sm:$0xf]
  %v9453 = vld [vmem:[%s9425 + $0x6c] sm:$0xf]
  %v9454 = vld [vmem:[%s9425 + $0x70] sm:$0xf]
  %v9455 = vld [vmem:[%s9425 + $0x74] sm:$0xf]
  %v9456 = vld [vmem:[%s9425 + $0x78] sm:$0xf]
  %v9457 = vld [vmem:[%s9425 + $0x7c] sm:$0xf]
  %v9490 = vunpack.c.l.b16 %v9426
  %v9491 = vunpack.c.l.b16 %v9427
  %v9492 = vunpack.c.l.b16 %v9428
  %v9493 = vunpack.c.l.b16 %v9429
  %v9494 = vunpack.c.l.b16 %v9430
  %v9495 = vunpack.c.l.b16 %v9431
  %v9496 = vunpack.c.l.b16 %v9432
  %v9497 = vunpack.c.l.b16 %v9433
  %v9498 = vunpack.c.l.b16 %v9434
  %v9499 = vunpack.c.l.b16 %v9435
  %v9500 = vunpack.c.l.b16 %v9436
  %v9501 = vunpack.c.l.b16 %v9437
  %v9502 = vunpack.c.l.b16 %v9438
  %v9503 = vunpack.c.l.b16 %v9439
  %v9504 = vunpack.c.l.b16 %v9440
  %v9505 = vunpack.c.l.b16 %v9441
  %v9506 = vunpack.c.l.b16 %v9442
  %v9507 = vunpack.c.l.b16 %v9443
  %v9508 = vunpack.c.l.b16 %v9444
  %v9509 = vunpack.c.l.b16 %v9445
  %v9510 = vunpack.c.l.b16 %v9446
  %v9511 = vunpack.c.l.b16 %v9447
  %v9512 = vunpack.c.l.b16 %v9448
  %v9513 = vunpack.c.l.b16 %v9449
  %v9514 = vunpack.c.l.b16 %v9450
  %v9515 = vunpack.c.l.b16 %v9451
  %v9516 = vunpack.c.l.b16 %v9452
  %v9517 = vunpack.c.l.b16 %v9453
  %v9518 = vunpack.c.l.b16 %v9454
  %v9519 = vunpack.c.l.b16 %v9455
  %v9520 = vunpack.c.l.b16 %v9456
  %v9521 = vunpack.c.l.b16 %v9457
  %v9522 = vpack.c.b16 %v9491, %v9490
  %v9523 = vpack.c.b16 %v9493, %v9492
  %v9524 = vpack.c.b16 %v9495, %v9494
  %v9525 = vpack.c.b16 %v9497, %v9496
  %v9526 = vpack.c.b16 %v9499, %v9498
  %v9527 = vpack.c.b16 %v9501, %v9500
  %v9528 = vpack.c.b16 %v9503, %v9502
  %v9529 = vpack.c.b16 %v9505, %v9504
  %v9530 = vpack.c.b16 %v9507, %v9506
  %v9531 = vpack.c.b16 %v9509, %v9508
  %v9532 = vpack.c.b16 %v9511, %v9510
  %v9533 = vpack.c.b16 %v9513, %v9512
  %v9534 = vpack.c.b16 %v9515, %v9514
  %v9535 = vpack.c.b16 %v9517, %v9516
  %v9536 = vpack.c.b16 %v9519, %v9518
  %v9537 = vpack.c.b16 %v9521, %v9520
  %9554 = vmatprep.subr.bf16.mxu0 0
  %9555 = vmatpush1.bf16.msra.mxu0 %v9522
  %9556 = vmatprep.subr.bf16.mxu0 0
  %9557 = vmatpush1.bf16.msra.mxu0 %v9523
  %9558 = vmatprep.subr.bf16.mxu0 0
  %9559 = vmatpush1.bf16.msra.mxu0 %v9524
  %9560 = vmatprep.subr.bf16.mxu0 0
  %9561 = vmatpush1.bf16.msra.mxu0 %v9525
  %9562 = vmatprep.subr.bf16.mxu0 0
  %9563 = vmatpush1.bf16.msra.mxu0 %v9526
  %9564 = vmatprep.subr.bf16.mxu0 0
  %9565 = vmatpush1.bf16.msra.mxu0 %v9527
  %9566 = vmatprep.subr.bf16.mxu0 0
  %9567 = vmatpush1.bf16.msra.mxu0 %v9528
  %9568 = vmatprep.subr.bf16.mxu0 0
  %9569 = vmatpush1.bf16.msra.mxu0 %v9529
  %9570 = vmatprep.subr.bf16.mxu0 0
  %9571 = vmatpush1.bf16.msra.mxu0 %v9530
  %9572 = vmatprep.subr.bf16.mxu0 0
  %9573 = vmatpush1.bf16.msra.mxu0 %v9531
  %9574 = vmatprep.subr.bf16.mxu0 0
  %9575 = vmatpush1.bf16.msra.mxu0 %v9532
  %9576 = vmatprep.subr.bf16.mxu0 0
  %9577 = vmatpush1.bf16.msra.mxu0 %v9533
  %9578 = vmatprep.subr.bf16.mxu0 0
  %9579 = vmatpush1.bf16.msra.mxu0 %v9534
  %9580 = vmatprep.subr.bf16.mxu0 0
  %9581 = vmatpush1.bf16.msra.mxu0 %v9535
  %9582 = vmatprep.subr.bf16.mxu0 0
  %9583 = vmatpush1.bf16.msra.mxu0 %v9536
  %9584 = vmatprep.subr.bf16.mxu0 0
  %9585 = vmatpush1.bf16.msra.mxu0 %v9537
  %9586 = vmatprep.mubr.bf16.mxu0 %v9424
  %9587 = vmatmul.mubr.bf16.gmra.mrb[0].mxu0 %v9423
  %v9588 = vpop.f32.mrb[0].mxu0
  %v9589 = vadd.f32 0.0, %v9588
  %v9590 = vpop.f32.mrb[0].mxu0
  %v9591 = vpop.f32.mrb[0].mxu0
  %v9592 = vpop.f32.mrb[0].mxu0
  %9593 = vdwg.mxu0
  %v9594 = vadd.f32 %v9376, %v9589
  %v9596 = vsel %vm8724, %v8717, 0
  %v9599 = vsel %vm8724, %v8718, 0
  %9601 = vmatprep.subr.bf16.mxu0 %v9599
  %9602 = vmatpush1.bf16.msra.mxu0 %v9596
  %9603 = vmatprep.subr.bf16.mxu0 0
  %9604 = vmatpush1.bf16.msra.mxu0 0
  %9605 = vmatprep.subr.bf16.mxu0 0
  %9606 = vmatpush1.bf16.msra.mxu0 0
  %9607 = vmatprep.subr.bf16.mxu0 0
  %9608 = vmatpush1.bf16.msra.mxu0 0
  %9609 = vmatprep.subr.bf16.mxu0 0
  %9610 = vmatpush1.bf16.msra.mxu0 0
  %9611 = vmatprep.subr.bf16.mxu0 0
  %9612 = vmatpush1.bf16.msra.mxu0 0
  %9613 = vmatprep.subr.bf16.mxu0 0
  %9614 = vmatpush1.bf16.msra.mxu0 0
  %9615 = vmatprep.subr.bf16.mxu0 0
  %9616 = vmatpush1.bf16.msra.mxu0 0
  %9617 = vmatprep.subr.bf16.mxu0 0
  %9618 = vmatpush1.bf16.msra.mxu0 0
  %9619 = vmatprep.subr.bf16.mxu0 0
  %9620 = vmatpush1.bf16.msra.mxu0 0
  %9621 = vmatprep.subr.bf16.mxu0 0
  %9622 = vmatpush1.bf16.msra.mxu0 0
  %9623 = vmatprep.subr.bf16.mxu0 0
  %9624 = vmatpush1.bf16.msra.mxu0 0
  %9625 = vmatprep.subr.bf16.mxu0 0
  %9626 = vmatpush1.bf16.msra.mxu0 0
  %9627 = vmatprep.subr.bf16.mxu0 0
  %9628 = vmatpush1.bf16.msra.mxu0 0
  %9629 = vmatprep.subr.bf16.mxu0 0
  %9630 = vmatpush1.bf16.msra.mxu0 0
  %9631 = vmatprep.subr.bf16.mxu0 0
  %9632 = vmatpush1.bf16.msra.mxu0 0
  %9633 = vmatprep.mubr.bf16.mxu0 0
  %9634 = vmatmul.mubr.bf16.gmra.mrb[0].mxu0 %v8722
  %v9635 = vpop.f32.mrb[0].mxu0
  %v9636 = vadd.f32 0.0, %v9635
  %v9637 = vpop.f32.mrb[0].mxu0
  %v9638 = vadd.f32 0.0, %v9637
  %v9639 = vpop.f32.mrb[0].mxu0
  %v9640 = vpop.f32.mrb[0].mxu0
  %9641 = vdwg.mxu0
  %v9642 = vpack.c.bf16 %v9636, %v9636
  %v9643 = vpack.c.bf16 %v9638, %v9638
  %9644 = vmatprep.subr.bf16.mxu0 %v9599
  %9645 = vmatpush1.bf16.msra.mxu0 %v9596
  %9646 = vmatprep.subr.bf16.mxu0 0
  %9647 = vmatpush1.bf16.msra.mxu0 0
  %9648 = vmatprep.subr.bf16.mxu0 0
  %9649 = vmatpush1.bf16.msra.mxu0 0
  %9650 = vmatprep.subr.bf16.mxu0 0
  %9651 = vmatpush1.bf16.msra.mxu0 0
  %9652 = vmatprep.subr.bf16.mxu0 0
  %9653 = vmatpush1.bf16.msra.mxu0 0
  %9654 = vmatprep.subr.bf16.mxu0 0
  %9655 = vmatpush1.bf16.msra.mxu0 0
  %9656 = vmatprep.subr.bf16.mxu0 0
  %9657 = vmatpush1.bf16.msra.mxu0 0
  %9658 = vmatprep.subr.bf16.mxu0 0
  %9659 = vmatpush1.bf16.msra.mxu0 0
  %9660 = vmatprep.subr.bf16.mxu0 0
  %9661 = vmatpush1.bf16.msra.mxu0 0
  %9662 = vmatprep.subr.bf16.mxu0 0
  %9663 = vmatpush1.bf16.msra.mxu0 0
  %9664 = vmatprep.subr.bf16.mxu0 0
  %9665 = vmatpush1.bf16.msra.mxu0 0
  %9666 = vmatprep.subr.bf16.mxu0 0
  %9667 = vmatpush1.bf16.msra.mxu0 0
  %9668 = vmatprep.subr.bf16.mxu0 0
  %9669 = vmatpush1.bf16.msra.mxu0 0
  %9670 = vmatprep.subr.bf16.mxu0 0
  %9671 = vmatpush1.bf16.msra.mxu0 0
  %9672 = vmatprep.subr.bf16.mxu0 0
  %9673 = vmatpush1.bf16.msra.mxu0 0
  %9674 = vmatprep.subr.bf16.mxu0 0
  %9675 = vmatpush1.bf16.msra.mxu0 0
  %9676 = vmatprep.mubr.bf16.mxu0 0
  %9677 = vmatmul.mubr.bf16.gmra.mrb[0].mxu0 %v8809
  %v9678 = vpop.f32.mrb[0].mxu0
  %v9679 = vadd.f32 0.0, %v9678
  %v9680 = vpop.f32.mrb[0].mxu0
  %v9681 = vadd.f32 0.0, %v9680
  %v9682 = vpop.f32.mrb[0].mxu0
  %v9683 = vpop.f32.mrb[0].mxu0
  %9684 = vdwg.mxu0
  %v9685 = vpack.c.bf16 %v9679, %v9679
  %v9686 = vpack.c.bf16 %v9681, %v9681
  %9687 = vmatprep.subr.bf16.mxu0 0
  %9688 = vmatpush1.bf16.msra.mxu0 %v8951
  %9689 = vmatprep.subr.bf16.mxu0 0
  %9690 = vmatpush1.bf16.msra.mxu0 %v8952
  %9691 = vmatprep.subr.bf16.mxu0 0
  %9692 = vmatpush1.bf16.msra.mxu0 %v8953
  %9693 = vmatprep.subr.bf16.mxu0 0
  %9694 = vmatpush1.bf16.msra.mxu0 %v8954
  %9695 = vmatprep.subr.bf16.mxu0 0
  %9696 = vmatpush1.bf16.msra.mxu0 %v8955
  %9697 = vmatprep.subr.bf16.mxu0 0
  %9698 = vmatpush1.bf16.msra.mxu0 %v8956
  %9699 = vmatprep.subr.bf16.mxu0 0
  %9700 = vmatpush1.bf16.msra.mxu0 %v8957
  %9701 = vmatprep.subr.bf16.mxu0 0
  %9702 = vmatpush1.bf16.msra.mxu0 %v8958
  %9703 = vmatprep.subr.bf16.mxu0 0
  %9704 = vmatpush1.bf16.msra.mxu0 %v8959
  %9705 = vmatprep.subr.bf16.mxu0 0
  %9706 = vmatpush1.bf16.msra.mxu0 %v8960
  %9707 = vmatprep.subr.bf16.mxu0 0
  %9708 = vmatpush1.bf16.msra.mxu0 %v8961
  %9709 = vmatprep.subr.bf16.mxu0 0
  %9710 = vmatpush1.bf16.msra.mxu0 %v8962
  %9711 = vmatprep.subr.bf16.mxu0 0
  %9712 = vmatpush1.bf16.msra.mxu0 %v8963
  %9713 = vmatprep.subr.bf16.mxu0 0
  %9714 = vmatpush1.bf16.msra.mxu0 %v8964
  %9715 = vmatprep.subr.bf16.mxu0 0
  %9716 = vmatpush1.bf16.msra.mxu0 %v8965
  %9717 = vmatprep.subr.bf16.mxu0 0
  %9718 = vmatpush1.bf16.msra.mxu0 %v8966
  %9719 = vmatprep.mubr.bf16.mxu0 %v9686
  %9720 = vmatmul.mubr.bf16.gmra.mrb[0].mxu0 %v9685
  %v9721 = vpop.f32.mrb[0].mxu0
  %v9722 = vadd.f32 0.0, %v9721
  %v9723 = vpop.f32.mrb[0].mxu0
  %v9724 = vpop.f32.mrb[0].mxu0
  %v9725 = vpop.f32.mrb[0].mxu0
  %9726 = vdwg.mxu0
  %9727 = vmatprep.subr.bf16.mxu0 0
  %9728 = vmatpush1.bf16.msra.mxu0 %v9087
  %9729 = vmatprep.subr.bf16.mxu0 0
  %9730 = vmatpush1.bf16.msra.mxu0 %v9088
  %9731 = vmatprep.subr.bf16.mxu0 0
  %9732 = vmatpush1.bf16.msra.mxu0 %v9089
  %9733 = vmatprep.subr.bf16.mxu0 0
  %9734 = vmatpush1.bf16.msra.mxu0 %v9090
  %9735 = vmatprep.subr.bf16.mxu0 0
  %9736 = vmatpush1.bf16.msra.mxu0 %v9091
  %9737 = vmatprep.subr.bf16.mxu0 0
  %9738 = vmatpush1.bf16.msra.mxu0 %v9092
  %9739 = vmatprep.subr.bf16.mxu0 0
  %9740 = vmatpush1.bf16.msra.mxu0 %v9093
  %9741 = vmatprep.subr.bf16.mxu0 0
  %9742 = vmatpush1.bf16.msra.mxu0 %v9094
  %9743 = vmatprep.subr.bf16.mxu0 0
  %9744 = vmatpush1.bf16.msra.mxu0 %v9095
  %9745 = vmatprep.subr.bf16.mxu0 0
  %9746 = vmatpush1.bf16.msra.mxu0 %v9096
  %9747 = vmatprep.subr.bf16.mxu0 0
  %9748 = vmatpush1.bf16.msra.mxu0 %v9097
  %9749 = vmatprep.subr.bf16.mxu0 0
  %9750 = vmatpush1.bf16.msra.mxu0 %v9098
  %9751 = vmatprep.subr.bf16.mxu0 0
  %9752 = vmatpush1.bf16.msra.mxu0 %v9099
  %9753 = vmatprep.subr.bf16.mxu0 0
  %9754 = vmatpush1.bf16.msra.mxu0 %v9100
  %9755 = vmatprep.subr.bf16.mxu0 0
  %9756 = vmatpush1.bf16.msra.mxu0 %v9101
  %9757 = vmatprep.subr.bf16.mxu0 0
  %9758 = vmatpush1.bf16.msra.mxu0 %v9102
  %9759 = vmatprep.mubr.bf16.mxu0 %v9643
  %9760 = vmatmul.mubr.bf16.gmra.mrb[0].mxu0 %v9642
  %v9761 = vpop.f32.mrb[0].mxu0
  %v9762 = vadd.f32 %v9722, %v9761
  %v9763 = vpop.f32.mrb[0].mxu0
  %v9764 = vpop.f32.mrb[0].mxu0
  %v9765 = vpop.f32.mrb[0].mxu0
  %9766 = vdwg.mxu0
  %9767 = vmatprep.subr.bf16.mxu0 %v9599
  %9768 = vmatpush1.bf16.msra.mxu0 %v9596
  %9769 = vmatprep.subr.bf16.mxu0 0
  %9770 = vmatpush1.bf16.msra.mxu0 0
  %9771 = vmatprep.subr.bf16.mxu0 0
  %9772 = vmatpush1.bf16.msra.mxu0 0
  %9773 = vmatprep.subr.bf16.mxu0 0
  %9774 = vmatpush1.bf16.msra.mxu0 0
  %9775 = vmatprep.subr.bf16.mxu0 0
  %9776 = vmatpush1.bf16.msra.mxu0 0
  %9777 = vmatprep.subr.bf16.mxu0 0
  %9778 = vmatpush1.bf16.msra.mxu0 0
  %9779 = vmatprep.subr.bf16.mxu0 0
  %9780 = vmatpush1.bf16.msra.mxu0 0
  %9781 = vmatprep.subr.bf16.mxu0 0
  %9782 = vmatpush1.bf16.msra.mxu0 0
  %9783 = vmatprep.subr.bf16.mxu0 0
  %9784 = vmatpush1.bf16.msra.mxu0 0
  %9785 = vmatprep.subr.bf16.mxu0 0
  %9786 = vmatpush1.bf16.msra.mxu0 0
  %9787 = vmatprep.subr.bf16.mxu0 0
  %9788 = vmatpush1.bf16.msra.mxu0 0
  %9789 = vmatprep.subr.bf16.mxu0 0
  %9790 = vmatpush1.bf16.msra.mxu0 0
  %9791 = vmatprep.subr.bf16.mxu0 0
  %9792 = vmatpush1.bf16.msra.mxu0 0
  %9793 = vmatprep.subr.bf16.mxu0 0
  %9794 = vmatpush1.bf16.msra.mxu0 0
  %9795 = vmatprep.subr.bf16.mxu0 0
  %9796 = vmatpush1.bf16.msra.mxu0 0
  %9797 = vmatprep.subr.bf16.mxu0 0
  %9798 = vmatpush1.bf16.msra.mxu0 0
  %9799 = vmatprep.mubr.bf16.mxu0 0
  %9800 = vmatmul.mubr.bf16.gmra.mrb[0].mxu0 %v9162
  %v9801 = vpop.f32.mrb[0].mxu0
  %v9802 = vadd.f32 0.0, %v9801
  %v9803 = vpop.f32.mrb[0].mxu0
  %v9804 = vadd.f32 0.0, %v9803
  %v9805 = vpop.f32.mrb[0].mxu0
  %v9806 = vpop.f32.mrb[0].mxu0
  %9807 = vdwg.mxu0
  %v9808 = vpack.c.bf16 %v9802, %v9802
  %v9809 = vpack.c.bf16 %v9804, %v9804
  %9810 = vmatprep.subr.bf16.mxu0 0
  %9811 = vmatpush1.bf16.msra.mxu0 %v9304
  %9812 = vmatprep.subr.bf16.mxu0 0
  %9813 = vmatpush1.bf16.msra.mxu0 %v9305
  %9814 = vmatprep.subr.bf16.mxu0 0
  %9815 = vmatpush1.bf16.msra.mxu0 %v9306
  %9816 = vmatprep.subr.bf16.mxu0 0
  %9817 = vmatpush1.bf16.msra.mxu0 %v9307
  %9818 = vmatprep.subr.bf16.mxu0 0
  %9819 = vmatpush1.bf16.msra.mxu0 %v9308
  %9820 = vmatprep.subr.bf16.mxu0 0
  %9821 = vmatpush1.bf16.msra.mxu0 %v9309
  %9822 = vmatprep.subr.bf16.mxu0 0
  %9823 = vmatpush1.bf16.msra.mxu0 %v9310
  %9824 = vmatprep.subr.bf16.mxu0 0
  %9825 = vmatpush1.bf16.msra.mxu0 %v9311
  %9826 = vmatprep.subr.bf16.mxu0 0
  %9827 = vmatpush1.bf16.msra.mxu0 %v9312
  %9828 = vmatprep.subr.bf16.mxu0 0
  %9829 = vmatpush1.bf16.msra.mxu0 %v9313
  %9830 = vmatprep.subr.bf16.mxu0 0
  %9831 = vmatpush1.bf16.msra.mxu0 %v9314
  %9832 = vmatprep.subr.bf16.mxu0 0
  %9833 = vmatpush1.bf16.msra.mxu0 %v9315
  %9834 = vmatprep.subr.bf16.mxu0 0
  %9835 = vmatpush1.bf16.msra.mxu0 %v9316
  %9836 = vmatprep.subr.bf16.mxu0 0
  %9837 = vmatpush1.bf16.msra.mxu0 %v9317
  %9838 = vmatprep.subr.bf16.mxu0 0
  %9839 = vmatpush1.bf16.msra.mxu0 %v9318
  %9840 = vmatprep.subr.bf16.mxu0 0
  %9841 = vmatpush1.bf16.msra.mxu0 %v9319
  %9842 = vmatprep.mubr.bf16.mxu0 %v9809
  %9843 = vmatmul.mubr.bf16.gmra.mrb[0].mxu0 %v9808
  %v9844 = vpop.f32.mrb[0].mxu0
  %v9845 = vadd.f32 0.0, %v9844
  %v9846 = vpop.f32.mrb[0].mxu0
  %v9847 = vpop.f32.mrb[0].mxu0
  %v9848 = vpop.f32.mrb[0].mxu0
  %9849 = vdwg.mxu0
  %v9850 = vadd.f32 %v9762, %v9845
  %9851 = vmatprep.subr.bf16.mxu0 %v9599
  %9852 = vmatpush1.bf16.msra.mxu0 %v9596
  %9853 = vmatprep.subr.bf16.mxu0 0
  %9854 = vmatpush1.bf16.msra.mxu0 0
  %9855 = vmatprep.subr.bf16.mxu0 0
  %9856 = vmatpush1.bf16.msra.mxu0 0
  %9857 = vmatprep.subr.bf16.mxu0 0
  %9858 = vmatpush1.bf16.msra.mxu0 0
  %9859 = vmatprep.subr.bf16.mxu0 0
  %9860 = vmatpush1.bf16.msra.mxu0 0
  %9861 = vmatprep.subr.bf16.mxu0 0
  %9862 = vmatpush1.bf16.msra.mxu0 0
  %9863 = vmatprep.subr.bf16.mxu0 0
  %9864 = vmatpush1.bf16.msra.mxu0 0
  %9865 = vmatprep.subr.bf16.mxu0 0
  %9866 = vmatpush1.bf16.msra.mxu0 0
  %9867 = vmatprep.subr.bf16.mxu0 0
  %9868 = vmatpush1.bf16.msra.mxu0 0
  %9869 = vmatprep.subr.bf16.mxu0 0
  %9870 = vmatpush1.bf16.msra.mxu0 0
  %9871 = vmatprep.subr.bf16.mxu0 0
  %9872 = vmatpush1.bf16.msra.mxu0 0
  %9873 = vmatprep.subr.bf16.mxu0 0
  %9874 = vmatpush1.bf16.msra.mxu0 0
  %9875 = vmatprep.subr.bf16.mxu0 0
  %9876 = vmatpush1.bf16.msra.mxu0 0
  %9877 = vmatprep.subr.bf16.mxu0 0
  %9878 = vmatpush1.bf16.msra.mxu0 0
  %9879 = vmatprep.subr.bf16.mxu0 0
  %9880 = vmatpush1.bf16.msra.mxu0 0
  %9881 = vmatprep.subr.bf16.mxu0 0
  %9882 = vmatpush1.bf16.msra.mxu0 0
  %9883 = vmatprep.mubr.bf16.mxu0 0
  %9884 = vmatmul.mubr.bf16.gmra.mrb[0].mxu0 %v9380
  %v9885 = vpop.f32.mrb[0].mxu0
  %v9886 = vadd.f32 0.0, %v9885
  %v9887 = vpop.f32.mrb[0].mxu0
  %v9888 = vadd.f32 0.0, %v9887
  %v9889 = vpop.f32.mrb[0].mxu0
  %v9890 = vpop.f32.mrb[0].mxu0
  %9891 = vdwg.mxu0
  %v9892 = vpack.c.bf16 %v9886, %v9886
  %v9893 = vpack.c.bf16 %v9888, %v9888
  %9894 = vmatprep.subr.bf16.mxu0 0
  %9895 = vmatpush1.bf16.msra.mxu0 %v9522
  %9896 = vmatprep.subr.bf16.mxu0 0
  %9897 = vmatpush1.bf16.msra.mxu0 %v9523
  %9898 = vmatprep.subr.bf16.mxu0 0
  %9899 = vmatpush1.bf16.msra.mxu0 %v9524
  %9900 = vmatprep.subr.bf16.mxu0 0
  %9901 = vmatpush1.bf16.msra.mxu0 %v9525
  %9902 = vmatprep.subr.bf16.mxu0 0
  %9903 = vmatpush1.bf16.msra.mxu0 %v9526
  %9904 = vmatprep.subr.bf16.mxu0 0
  %9905 = vmatpush1.bf16.msra.mxu0 %v9527
  %9906 = vmatprep.subr.bf16.mxu0 0
  %9907 = vmatpush1.bf16.msra.mxu0 %v9528
  %9908 = vmatprep.subr.bf16.mxu0 0
  %9909 = vmatpush1.bf16.msra.mxu0 %v9529
  %9910 = vmatprep.subr.bf16.mxu0 0
  %9911 = vmatpush1.bf16.msra.mxu0 %v9530
  %9912 = vmatprep.subr.bf16.mxu0 0
  %9913 = vmatpush1.bf16.msra.mxu0 %v9531
  %9914 = vmatprep.subr.bf16.mxu0 0
  %9915 = vmatpush1.bf16.msra.mxu0 %v9532
  %9916 = vmatprep.subr.bf16.mxu0 0
  %9917 = vmatpush1.bf16.msra.mxu0 %v9533
  %9918 = vmatprep.subr.bf16.mxu0 0
  %9919 = vmatpush1.bf16.msra.mxu0 %v9534
  %9920 = vmatprep.subr.bf16.mxu0 0
  %9921 = vmatpush1.bf16.msra.mxu0 %v9535
  %9922 = vmatprep.subr.bf16.mxu0 0
  %9923 = vmatpush1.bf16.msra.mxu0 %v9536
  %9924 = vmatprep.subr.bf16.mxu0 0
  %9925 = vmatpush1.bf16.msra.mxu0 %v9537
  %9926 = vmatprep.mubr.bf16.mxu0 %v9893
  %9927 = vmatmul.mubr.bf16.gmra.mrb[0].mxu0 %v9892
  %v9928 = vpop.f32.mrb[0].mxu0
  %v9929 = vadd.f32 0.0, %v9928
  %v9930 = vpop.f32.mrb[0].mxu0
  %v9931 = vpop.f32.mrb[0].mxu0
  %v9932 = vpop.f32.mrb[0].mxu0
  %9933 = vdwg.mxu0
  %v9934 = vadd.f32 %v9850, %v9929
  %v9935 = vsub.f32 0.0, %v9594
  %v9936 = vmul.f32 %v9935, 1.442695
  %v9937 = vpow.pop %v9936
  %v9938 = vadd.f32 %v9937, 1.0
  %v9939 = vrcp.pop %v9938
  %v9940 = vsub.f32 0.0, %v9934
  %v9941 = vmul.f32 %v9940, 1.442695
  %v9942 = vpow.pop %v9941
  %v9943 = vadd.f32 %v9942, 1.0
  %v9944 = vrcp.pop %v9943
  %vm9945 = vcmask 0
  %9946 = vst.msk [vmem:[%s17] sm:$0x1] %vm9945, %v9939
  %9947 = vst.msk [vmem:[%s17 + $0x1] sm:$0x1] %vm9945, %v9944
  // Predicated region
  $region70: #{discriminator_forward.1} parent=0 // pred_check
    _
  $region71: #{discriminator_forward.1} parent=0 // pred_check_branch
    %9949 = sbr.rel (0) target = $region73
  $region72: #{discriminator_forward.1} parent=0 // pred_region
    _
  $region73: #{discriminator_forward.1} parent=0 // pred_fallthru
    _
  // Predicated region
  $region74: #{discriminator_forward.1} parent=0 // pred_check
    _
  $region75: #{discriminator_forward.1} parent=0 // pred_check_branch
    %9951 = sbr.rel (0) target = $region77
  $region76: #{discriminator_forward.1} parent=0 // pred_region
    _
  $region77: #{discriminator_forward.1} parent=0 // pred_fallthru
    _

</llo_original>
